<compile_context>
chip_gen: v5e
topology: v5e:2x2
jax: 0.10.0
libtpu: 0.0.40
codegen_flags: <defaults>
</compile_context>

<pallas_src>
import jax
import jax.numpy as jnp
from jax import lax
from jax.experimental import pallas as pl
from jax.experimental.pallas import tpu as pltpu

H = 200                    # LSTM hidden size (fixed by the module)
HP = 256                   # lane-padded hidden size per gate
G4 = 4 * HP                # padded gate width (i, f, g, o)
O1P = 256                  # padded Linear(400,200) output
O2P = 128                  # padded Linear(200,100) output
VMEM_LIMIT = 32 * 1024 * 1024   # safe on all generations; raise (and/or tile T)
                                # for real BERT sizes (T=512, E=768) on v7x.


def _round_up(x, m):
    return (x + m - 1) // m * m


def _full_spec(shape):
    nd = len(shape)
    return pl.BlockSpec(shape, lambda i, _nd=nd: (0,) * _nd)


# ---------------------------------------------------------------------------
# Shared LSTM cell (element-wise part, f32, lane-aligned 256-wide gate slices)
# ---------------------------------------------------------------------------
def _lstm_cell(gates, c_prev):
    i = jax.nn.sigmoid(gates[:, 0 * HP:1 * HP])
    f = jax.nn.sigmoid(gates[:, 1 * HP:2 * HP])
    g = jnp.tanh(gates[:, 2 * HP:3 * HP])
    o = jax.nn.sigmoid(gates[:, 3 * HP:4 * HP])
    c_new = f * c_prev + i * g
    h_new = o * jnp.tanh(c_new)
    return h_new, c_new


# ---------------------------------------------------------------------------
# Kernel 1: bidirectional LSTM layer 0 (emits the full per-step output slabs)
# ---------------------------------------------------------------------------
def _bidir_lstm_seq_kernel(x_ref, wihf_ref, whhf_ref, bf_ref,
                           wihb_ref, whhb_ref, bb_ref,
                           outf_ref, outb_ref,
                           gxf_scr, gxb_scr, hf_scr, cf_scr, hb_scr, cb_scr):
    bp = hf_scr.shape[0]
    seq_len = x_ref.shape[0] // bp

    # Hoisted input projection: one (T*B, E) x (E, 4*HP) matmul per direction.
    x = x_ref[...]
    gxf_scr[...] = jnp.dot(x, wihf_ref[...],
                           preferred_element_type=jnp.float32) + bf_ref[...]
    gxb_scr[...] = jnp.dot(x, wihb_ref[...],
                           preferred_element_type=jnp.float32) + bb_ref[...]

    hf_scr[...] = jnp.zeros_like(hf_scr)
    cf_scr[...] = jnp.zeros_like(cf_scr)
    hb_scr[...] = jnp.zeros_like(hb_scr)
    cb_scr[...] = jnp.zeros_like(cb_scr)

    def step(t, carry):
        # forward direction, time t
        row_f = pl.multiple_of(t * bp, bp)
        gf = gxf_scr[pl.ds(row_f, bp), :] + jnp.dot(
            hf_scr[...].astype(jnp.bfloat16), whhf_ref[...],
            preferred_element_type=jnp.float32)
        hf_new, cf_new = _lstm_cell(gf, cf_scr[...])
        hf_scr[...] = hf_new
        cf_scr[...] = cf_new
        outf_ref[pl.ds(row_f, bp), :] = hf_new.astype(outf_ref.dtype)

        # backward direction, time T-1-t
        row_b = pl.multiple_of((seq_len - 1 - t) * bp, bp)
        gb = gxb_scr[pl.ds(row_b, bp), :] + jnp.dot(
            hb_scr[...].astype(jnp.bfloat16), whhb_ref[...],
            preferred_element_type=jnp.float32)
        hb_new, cb_new = _lstm_cell(gb, cb_scr[...])
        hb_scr[...] = hb_new
        cb_scr[...] = cb_new
        outb_ref[pl.ds(row_b, bp), :] = hb_new.astype(outb_ref.dtype)
        return carry

    lax.fori_loop(0, seq_len, step, 0)


def bidir_lstm_layer(x2d, bp, wih_f, whh_f, b_f, wih_b, whh_b, b_b):
    # x2d: (T*bp, EP) bf16.  Returns (fwd, bwd) per-step outputs, each (T*bp, HP) f32.
    tb = x2d.shape[0]
    args = (x2d, wih_f, whh_f, b_f, wih_b, whh_b, b_b)
    out_sh = jax.ShapeDtypeStruct((tb, HP), jnp.float32)
    return pl.pallas_call(
        _bidir_lstm_seq_kernel,
        out_shape=(out_sh, out_sh),
        grid_spec=pltpu.PrefetchScalarGridSpec(
            num_scalar_prefetch=0,
            grid=(1,),
            in_specs=[_full_spec(a.shape) for a in args],
            out_specs=[_full_spec((tb, HP)), _full_spec((tb, HP))],
            scratch_shapes=[
                pltpu.VMEM((tb, G4), jnp.float32),   # precomputed gates fwd
                pltpu.VMEM((tb, G4), jnp.float32),   # precomputed gates bwd
                pltpu.VMEM((bp, HP), jnp.float32),   # h fwd
                pltpu.VMEM((bp, HP), jnp.float32),   # c fwd
                pltpu.VMEM((bp, HP), jnp.float32),   # h bwd
                pltpu.VMEM((bp, HP), jnp.float32),   # c bwd
            ]),
        compiler_params=pltpu.CompilerParams(
            dimension_semantics=("arbitrary",),      # serial recurrence
            vmem_limit_bytes=VMEM_LIMIT),
    )(*args)


# ---------------------------------------------------------------------------
# Kernel 2: bidirectional LSTM layer 1 + fused MLP head
# (no per-step output writes: only the final fwd h and final bwd h are needed)
# ---------------------------------------------------------------------------
def _bidir_lstm_head_kernel(xf_ref, xb_ref,
                            wihff_ref, wihfb_ref, whhf_ref, bf_ref,
                            wihbf_ref, wihbb_ref, whhb_ref, bb_ref,
                            w1a_ref, w1b_ref, b1_ref,
                            w2_ref, b2_ref, w3_ref, b3_ref,
                            o_ref,
                            gxf_scr, gxb_scr, hf_scr, cf_scr, hb_scr, cb_scr):
    bp = hf_scr.shape[0]
    seq_len = xf_ref.shape[0] // bp

    xf = xf_ref[...].astype(jnp.bfloat16)
    xb = xb_ref[...].astype(jnp.bfloat16)

    # Hoisted input projection for both directions of layer 1.
    gxf_scr[...] = (
        jnp.dot(xf, wihff_ref[...], preferred_element_type=jnp.float32)
        + jnp.dot(xb, wihfb_ref[...], preferred_element_type=jnp.float32)
        + bf_ref[...])
    gxb_scr[...] = (
        jnp.dot(xf, wihbf_ref[...], preferred_element_type=jnp.float32)
        + jnp.dot(xb, wihbb_ref[...], preferred_element_type=jnp.float32)
        + bb_ref[...])

    hf_scr[...] = jnp.zeros_like(hf_scr)
    cf_scr[...] = jnp.zeros_like(cf_scr)
    hb_scr[...] = jnp.zeros_like(hb_scr)
    cb_scr[...] = jnp.zeros_like(cb_scr)

    def step(t, carry):
        row_f = pl.multiple_of(t * bp, bp)
        gf = gxf_scr[pl.ds(row_f, bp), :] + jnp.dot(
            hf_scr[...].astype(jnp.bfloat16), whhf_ref[...],
            preferred_element_type=jnp.float32)
        hf_new, cf_new = _lstm_cell(gf, cf_scr[...])
        hf_scr[...] = hf_new
        cf_scr[...] = cf_new

        row_b = pl.multiple_of((seq_len - 1 - t) * bp, bp)
        gb = gxb_scr[pl.ds(row_b, bp), :] + jnp.dot(
            hb_scr[...].astype(jnp.bfloat16), whhb_ref[...],
            preferred_element_type=jnp.float32)
        hb_new, cb_new = _lstm_cell(gb, cb_scr[...])
        hb_scr[...] = hb_new
        cb_scr[...] = cb_new
        return carry

    lax.fori_loop(0, seq_len, step, 0)

    # hidden = cat(lstm_out[:, -1, :H], lstm_out[:, 0, H:])
    #        = cat(h_fwd at t=T-1, h_bwd at t=0) == (hf_scr, hb_scr) now.
    hf = hf_scr[...].astype(jnp.bfloat16)
    hb = hb_scr[...].astype(jnp.bfloat16)
    z1 = jnp.maximum(
        jnp.dot(hf, w1a_ref[...], preferred_element_type=jnp.float32)
        + jnp.dot(hb, w1b_ref[...], preferred_element_type=jnp.float32)
        + b1_ref[...], 0.0)
    z2 = jnp.maximum(
        jnp.dot(z1.astype(jnp.bfloat16), w2_ref[...],
                preferred_element_type=jnp.float32) + b2_ref[...], 0.0)
    o_ref[...] = (jnp.dot(z2.astype(jnp.bfloat16), w3_ref[...],
                          preferred_element_type=jnp.float32) + b3_ref[...])


def bidir_lstm_head(xf, xb, bp, wih_ff, wih_fb, whh_f, b_f,
                    wih_bf, wih_bb, whh_b, b_b,
                    w1a, w1b, b1, w2, b2, w3, b3):
    tb = xf.shape[0]
    out_p = w3.shape[1]
    args = (xf, xb, wih_ff, wih_fb, whh_f, b_f,
            wih_bf, wih_bb, whh_b, b_b, w1a, w1b, b1, w2, b2, w3, b3)
    return pl.pallas_call(
        _bidir_lstm_head_kernel,
        out_shape=jax.ShapeDtypeStruct((bp, out_p), jnp.float32),
        grid_spec=pltpu.PrefetchScalarGridSpec(
            num_scalar_prefetch=0,
            grid=(1,),
            in_specs=[_full_spec(a.shape) for a in args],
            out_specs=_full_spec((bp, out_p)),
            scratch_shapes=[
                pltpu.VMEM((tb, G4), jnp.float32),
                pltpu.VMEM((tb, G4), jnp.float32),
                pltpu.VMEM((bp, HP), jnp.float32),
                pltpu.VMEM((bp, HP), jnp.float32),
                pltpu.VMEM((bp, HP), jnp.float32),
                pltpu.VMEM((bp, HP), jnp.float32),
            ]),
        compiler_params=pltpu.CompilerParams(
            dimension_semantics=("arbitrary",),
            vmem_limit_bytes=VMEM_LIMIT),
    )(*args)


# ---------------------------------------------------------------------------
# Weight packing: PyTorch layout -> lane-aligned, gate-padded, bf16 operands
# ---------------------------------------------------------------------------
def _pack_ih(w):
    # w: (4H, in_dim) torch layout -> (pad(in_dim,128), 4*HP) bf16, gate-padded.
    in_dim = w.shape[1]
    inp = _round_up(in_dim, 128)
    out = jnp.zeros((inp, G4), jnp.float32)
    for g in range(4):
        out = out.at[:in_dim, g * HP:g * HP + H].set(
            jnp.transpose(w[g * H:(g + 1) * H, :]))
    return out.astype(jnp.bfloat16)


def _pack_hh(w):
    # w: (4H, H) -> (HP, 4*HP) bf16, gate-padded.
    out = jnp.zeros((HP, G4), jnp.float32)
    for g in range(4):
        out = out.at[:H, g * HP:g * HP + H].set(
            jnp.transpose(w[g * H:(g + 1) * H, :]))
    return out.astype(jnp.bfloat16)


def _pack_bias(b_ih, b_hh):
    # folded b_ih + b_hh -> (1, 4*HP) f32, gate-padded.
    b = b_ih + b_hh
    out = jnp.zeros((1, G4), jnp.float32)
    for g in range(4):
        out = out.at[0, g * HP:g * HP + H].set(b[g * H:(g + 1) * H])
    return out


def _pack_linear_w(w, in_p, out_p):
    # w: (out, in) torch layout -> (in_p, out_p) bf16.
    o, i = w.shape
    wp = jnp.zeros((in_p, out_p), jnp.float32).at[:i, :o].set(jnp.transpose(w))
    return wp.astype(jnp.bfloat16)


def _pack_vec(b, out_p):
    return jnp.zeros((1, out_p), jnp.float32).at[0, :b.shape[0]].set(b)


def pack_params(raw):
    l0f, l0b, l1f, l1b = raw["lstm"]
    num_labels = raw["w3"].shape[0]
    o3p = _round_up(max(num_labels, 1), 128)
    return {
        "embedding": raw["embedding"],
        "l0": {
            "wih_f": _pack_ih(l0f["w_ih"]), "whh_f": _pack_hh(l0f["w_hh"]),
            "b_f": _pack_bias(l0f["b_ih"], l0f["b_hh"]),
            "wih_b": _pack_ih(l0b["w_ih"]), "whh_b": _pack_hh(l0b["w_hh"]),
            "b_b": _pack_bias(l0b["b_ih"], l0b["b_hh"]),
        },
        "l1": {
            # layer-1 input is cat(fwd, bwd): split W_ih into the two halves.
            "wih_ff": _pack_ih(l1f["w_ih"][:, :H]),
            "wih_fb": _pack_ih(l1f["w_ih"][:, H:]),
            "whh_f": _pack_hh(l1f["w_hh"]),
            "b_f": _pack_bias(l1f["b_ih"], l1f["b_hh"]),
            "wih_bf": _pack_ih(l1b["w_ih"][:, :H]),
            "wih_bb": _pack_ih(l1b["w_ih"][:, H:]),
            "whh_b": _pack_hh(l1b["w_hh"]),
            "b_b": _pack_bias(l1b["b_ih"], l1b["b_hh"]),
        },
        "head": {
            "w1a": _pack_linear_w(raw["w1"][:, :H], HP, O1P),
            "w1b": _pack_linear_w(raw["w1"][:, H:], HP, O1P),
            "b1": _pack_vec(raw["b1"], O1P),
            "w2": _pack_linear_w(raw["w2"], O1P, O2P),
            "b2": _pack_vec(raw["b2"], O2P),
            "w3": _pack_linear_w(raw["w3"], O2P, o3p),
            "b3": _pack_vec(raw["b3"], o3p),
        },
    }


# ---------------------------------------------------------------------------
# Full forward
# ---------------------------------------------------------------------------
def custom_bert_forward(ids, p, *, num_labels):
    # TODO(synk): self.encoderModel is an external HF BERT not defined in the
    # module; stand-in is a deterministic embedding lookup producing
    # `last_hidden_state` of shape (B, T, embedding_size).
    B, T = ids.shape
    seq = jnp.take(p["embedding"], ids, axis=0)               # (B, T, E)
    x = jnp.transpose(seq, (1, 0, 2)).astype(jnp.float32)     # time-major (T, B, E)
    E = x.shape[-1]
    bp = _round_up(max(B, 8), 8)                              # sublane-pad batch
    ep = _round_up(E, 128)                                    # lane-pad embedding
    x = jnp.pad(x, ((0, 0), (0, bp - B), (0, ep - E)))
    x2d = x.reshape(T * bp, ep).astype(jnp.bfloat16)          # (T*bp, EP)

    l0, l1, hd = p["l0"], p["l1"], p["head"]
    # Layer 0: fused bidirectional LSTM, per-step outputs kept (layer 1 needs them).
    outf, outb = bidir_lstm_layer(x2d, bp,
                                  l0["wih_f"], l0["whh_f"], l0["b_f"],
                                  l0["wih_b"], l0["whh_b"], l0["b_b"])
    # TODO(synk): on v7x the two directions could run on the two TensorCores via
    # pl.core_map; here both directions are interleaved in one serial loop.

    # Layer 1 + fused MLP head (only final fwd/bwd hidden states are used).
    logits_p = bidir_lstm_head(outf, outb, bp,
                               l1["wih_ff"], l1["wih_fb"], l1["whh_f"], l1["b_f"],
                               l1["wih_bf"], l1["wih_bb"], l1["whh_b"], l1["b_b"],
                               hd["w1a"], hd["w1b"], hd["b1"],
                               hd["w2"], hd["b2"], hd["w3"], hd["b3"])
    return logits_p[:B, :num_labels]


# ---------------------------------------------------------------------------
# Deterministic parameters in PyTorch layout (shapes from the module __init__)
# ---------------------------------------------------------------------------
def init_params(key, vocab_size, emb_size, num_labels):
    keys = jax.random.split(key, 24)
    kit = iter(keys)

    def u(shape, scale=0.08):
        return jax.random.uniform(next(kit), shape, jnp.float32, -scale, scale)

    params = {"embedding": u((vocab_size, emb_size))}
    lstm = []
    in_dims = [emb_size, 2 * H]
    for layer in range(2):
        for _direction in range(2):   # fwd, reverse
            lstm.append({
                "w_ih": u((4 * H, in_dims[layer])),
                "w_hh": u((4 * H, H)),
                "b_ih": u((4 * H,)),
                "b_hh": u((4 * H,)),
            })
    params["lstm"] = lstm
    params["w1"] = u((200, 2 * H)); params["b1"] = u((200,))
    params["w2"] = u((100, 200));   params["b2"] = u((100,))
    params["w3"] = u((num_labels, 100)); params["b3"] = u((num_labels,))
    return params


# ---------------------------------------------------------------------------
# Pure-JAX reference (f32) for a correctness check
# ---------------------------------------------------------------------------
def _reference_lstm_dir(x_tbe, p, reverse):
    T_, B_, _ = x_tbe.shape
    xs = x_tbe[::-1] if reverse else x_tbe

    def cell(carry, xt):
        h, c = carry
        gates = xt @ p["w_ih"].T + p["b_ih"] + h @ p["w_hh"].T + p["b_hh"]
        i = jax.nn.sigmoid(gates[:, :H])
        f = jax.nn.sigmoid(gates[:, H:2 * H])
        g = jnp.tanh(gates[:, 2 * H:3 * H])
        o = jax.nn.sigmoid(gates[:, 3 * H:])
        c = f * c + i * g
        h = o * jnp.tanh(c)
        return (h, c), h

    init = (jnp.zeros((B_, H), jnp.float32), jnp.zeros((B_, H), jnp.float32))
    _, hs = lax.scan(cell, init, xs)
    return hs[::-1] if reverse else hs


def reference_forward(ids, raw):
    seq = jnp.take(raw["embedding"], ids, axis=0).astype(jnp.float32)
    x = jnp.transpose(seq, (1, 0, 2))   # (T, B, E)
    for layer in range(2):
        fwd = _reference_lstm_dir(x, raw["lstm"][2 * layer], reverse=False)
        bwd = _reference_lstm_dir(x, raw["lstm"][2 * layer + 1], reverse=True)
        x = jnp.concatenate([fwd, bwd], axis=-1)
    hidden = jnp.concatenate([x[-1, :, :H], x[0, :, H:]], axis=-1)
    z1 = jax.nn.relu(hidden @ raw["w1"].T + raw["b1"])
    z2 = jax.nn.relu(z1 @ raw["w2"].T + raw["b2"])
    return z2 @ raw["w3"].T + raw["b3"]


if __name__ == "__main__":
    B, T, E, V, L = 2, 8, 32, 50, 3   # small embedding_size stand-in for 768
    key = jax.random.PRNGKey(0)
    pkey, ikey = jax.random.split(key)
    raw = init_params(pkey, V, E, L)
    ids = jax.random.randint(ikey, (B, T), 0, V, dtype=jnp.int32)

    packed = pack_params(raw)
    fwd = jax.jit(custom_bert_forward, static_argnames="num_labels")
    out = fwd(ids, packed, num_labels=L)
    out = jax.block_until_ready(out)
    assert out.shape == (B, L) and out.dtype == jnp.float32

    ref = jax.block_until_ready(jax.jit(reference_forward)(ids, raw))
    err = float(jnp.max(jnp.abs(out - ref)))
    assert err < 5e-2, f"mismatch vs f32 reference: max abs err {err}"
    print("KERNEL_OK")
</pallas_src>

<mosaic_0001>
module attributes {stable_mosaic.version = 11 : i64} {
  func.func @_bidir_lstm_seq_kernel(%arg0: i32, %arg1: memref<64x128xbf16, #tpu.memory_space<vmem>>, %arg2: memref<128x1024xbf16, #tpu.memory_space<vmem>>, %arg3: memref<256x1024xbf16, #tpu.memory_space<vmem>>, %arg4: memref<1x1024xf32, #tpu.memory_space<vmem>>, %arg5: memref<128x1024xbf16, #tpu.memory_space<vmem>>, %arg6: memref<256x1024xbf16, #tpu.memory_space<vmem>>, %arg7: memref<1x1024xf32, #tpu.memory_space<vmem>>, %arg8: memref<64x256xf32, #tpu.memory_space<vmem>>, %arg9: memref<64x256xf32, #tpu.memory_space<vmem>>, %arg10: memref<64x1024xf32, #tpu.memory_space<vmem>>, %arg11: memref<64x1024xf32, #tpu.memory_space<vmem>>, %arg12: memref<8x256xf32, #tpu.memory_space<vmem>>, %arg13: memref<8x256xf32, #tpu.memory_space<vmem>>, %arg14: memref<8x256xf32, #tpu.memory_space<vmem>>, %arg15: memref<8x256xf32, #tpu.memory_space<vmem>>) attributes {dimension_semantics = [#tpu.dimension_semantics<arbitrary>], iteration_bounds = array<i64: 1>, scalar_prefetch = 0 : i64, scratch_operands = 6 : i64, tpu.core_type = #tpu.core_type<tc>, window_params = [{pipeline_mode = #tpu.pipeline_mode<synchronous>, transform_indices = @transform_0, window_bounds = array<i64: 64, 128>}, {pipeline_mode = #tpu.pipeline_mode<synchronous>, transform_indices = @transform_1, window_bounds = array<i64: 128, 1024>}, {pipeline_mode = #tpu.pipeline_mode<synchronous>, transform_indices = @transform_2, window_bounds = array<i64: 256, 1024>}, {pipeline_mode = #tpu.pipeline_mode<synchronous>, transform_indices = @transform_3, window_bounds = array<i64: 1, 1024>}, {pipeline_mode = #tpu.pipeline_mode<synchronous>, transform_indices = @transform_4, window_bounds = array<i64: 128, 1024>}, {pipeline_mode = #tpu.pipeline_mode<synchronous>, transform_indices = @transform_5, window_bounds = array<i64: 256, 1024>}, {pipeline_mode = #tpu.pipeline_mode<synchronous>, transform_indices = @transform_6, window_bounds = array<i64: 1, 1024>}, {pipeline_mode = #tpu.pipeline_mode<synchronous>, transform_indices = @transform_7, window_bounds = array<i64: 64, 256>}, {pipeline_mode = #tpu.pipeline_mode<synchronous>, transform_indices = @transform_8, window_bounds = array<i64: 64, 256>}]} {
    %c0 = arith.constant 0 : index
    %c0_0 = arith.constant 0 : index
    %0 = vector.load %arg1[%c0, %c0_0] : memref<64x128xbf16, #tpu.memory_space<vmem>>, vector<64x128xbf16>
    %c0_1 = arith.constant 0 : index
    %c0_2 = arith.constant 0 : index
    %1 = vector.load %arg2[%c0_1, %c0_2] : memref<128x1024xbf16, #tpu.memory_space<vmem>>, vector<128x1024xbf16>
    %cst = arith.constant dense<0.000000e+00> : vector<64x1024xf32>
    %2 = tpu.matmul %0, %1, %cst {dimension_numbers = #tpu.dot_dimension_numbers<[1], [0], [0], [1], [0, 0, 1, 1], [], []>} : vector<64x128xbf16>, vector<128x1024xbf16>, vector<64x1024xf32> -> vector<64x1024xf32>
    %c0_3 = arith.constant 0 : index
    %c0_4 = arith.constant 0 : index
    %3 = vector.load %arg4[%c0_3, %c0_4] : memref<1x1024xf32, #tpu.memory_space<vmem>>, vector<1x1024xf32>
    %4 = vector.broadcast %3 : vector<1x1024xf32> to vector<64x1024xf32>
    %5 = arith.addf %2, %4 : vector<64x1024xf32>
    %c0_5 = arith.constant 0 : index
    %c0_6 = arith.constant 0 : index
    %6 = vector.load %arg10[%c0_5, %c0_6] : memref<64x1024xf32, #tpu.memory_space<vmem>>, vector<64x1024xf32>
    tpu.vector_store %arg10[%c0_5, %c0_6], %5 {strides = array<i32>} : memref<64x1024xf32, #tpu.memory_space<vmem>>, vector<64x1024xf32>,
    %c0_7 = arith.constant 0 : index
    %c0_8 = arith.constant 0 : index
    %7 = vector.load %arg5[%c0_7, %c0_8] : memref<128x1024xbf16, #tpu.memory_space<vmem>>, vector<128x1024xbf16>
    %cst_9 = arith.constant dense<0.000000e+00> : vector<64x1024xf32>
    %8 = tpu.matmul %0, %7, %cst_9 {dimension_numbers = #tpu.dot_dimension_numbers<[1], [0], [0], [1], [0, 0, 1, 1], [], []>} : vector<64x128xbf16>, vector<128x1024xbf16>, vector<64x1024xf32> -> vector<64x1024xf32>
    %c0_10 = arith.constant 0 : index
    %c0_11 = arith.constant 0 : index
    %9 = vector.load %arg7[%c0_10, %c0_11] : memref<1x1024xf32, #tpu.memory_space<vmem>>, vector<1x1024xf32>
    %10 = vector.broadcast %9 : vector<1x1024xf32> to vector<64x1024xf32>
    %11 = arith.addf %8, %10 : vector<64x1024xf32>
    %c0_12 = arith.constant 0 : index
    %c0_13 = arith.constant 0 : index
    %12 = vector.load %arg11[%c0_12, %c0_13] : memref<64x1024xf32, #tpu.memory_space<vmem>>, vector<64x1024xf32>
    tpu.vector_store %arg11[%c0_12, %c0_13], %11 {strides = array<i32>} : memref<64x1024xf32, #tpu.memory_space<vmem>>, vector<64x1024xf32>,
    %cst_14 = arith.constant 0.000000e+00 : f32
    %13 = vector.broadcast %cst_14 : f32 to vector<8x256xf32>
    %c0_15 = arith.constant 0 : index
    %c0_16 = arith.constant 0 : index
    %14 = vector.load %arg12[%c0_15, %c0_16] : memref<8x256xf32, #tpu.memory_space<vmem>>, vector<8x256xf32>
    tpu.vector_store %arg12[%c0_15, %c0_16], %13 {strides = array<i32>} : memref<8x256xf32, #tpu.memory_space<vmem>>, vector<8x256xf32>,
    %cst_17 = arith.constant 0.000000e+00 : f32
    %15 = vector.broadcast %cst_17 : f32 to vector<8x256xf32>
    %c0_18 = arith.constant 0 : index
    %c0_19 = arith.constant 0 : index
    %16 = vector.load %arg13[%c0_18, %c0_19] : memref<8x256xf32, #tpu.memory_space<vmem>>, vector<8x256xf32>
    tpu.vector_store %arg13[%c0_18, %c0_19], %15 {strides = array<i32>} : memref<8x256xf32, #tpu.memory_space<vmem>>, vector<8x256xf32>,
    %cst_20 = arith.constant 0.000000e+00 : f32
    %17 = vector.broadcast %cst_20 : f32 to vector<8x256xf32>
    %c0_21 = arith.constant 0 : index
    %c0_22 = arith.constant 0 : index
    %18 = vector.load %arg14[%c0_21, %c0_22] : memref<8x256xf32, #tpu.memory_space<vmem>>, vector<8x256xf32>
    tpu.vector_store %arg14[%c0_21, %c0_22], %17 {strides = array<i32>} : memref<8x256xf32, #tpu.memory_space<vmem>>, vector<8x256xf32>,
    %cst_23 = arith.constant 0.000000e+00 : f32
    %19 = vector.broadcast %cst_23 : f32 to vector<8x256xf32>
    %c0_24 = arith.constant 0 : index
    %c0_25 = arith.constant 0 : index
    %20 = vector.load %arg15[%c0_24, %c0_25] : memref<8x256xf32, #tpu.memory_space<vmem>>, vector<8x256xf32>
    tpu.vector_store %arg15[%c0_24, %c0_25], %19 {strides = array<i32>} : memref<8x256xf32, #tpu.memory_space<vmem>>, vector<8x256xf32>,
    %c0_i32 = arith.constant 0 : i32
    %c8_i32 = arith.constant 8 : i32
    %21 = arith.addi %c0_i32, %c8_i32 : i32
    %c1_i32 = arith.constant 1 : i32
    scf.for %arg16 = %c0_i32 to %21 step %c1_i32  : i32 {
      %c8_i32_27 = arith.constant 8 : i32
      %22 = arith.muli %arg16, %c8_i32_27 : i32
      %23 = tpu.assume_multiple %22, 8 : i32
      %24 = arith.index_cast %23 : i32 to index
      %c0_28 = arith.constant 0 : index
      %25 = vector.load %arg10[%24, %c0_28] : memref<64x1024xf32, #tpu.memory_space<vmem>>, vector<8x1024xf32>
      %c0_29 = arith.constant 0 : index
      %c0_30 = arith.constant 0 : index
      %26 = vector.load %arg12[%c0_29, %c0_30] : memref<8x256xf32, #tpu.memory_space<vmem>>, vector<8x256xf32>
      %27 = arith.truncf %26 : vector<8x256xf32> to vector<8x256xbf16>
      %c0_31 = arith.constant 0 : index
      %c0_32 = arith.constant 0 : index
      %28 = vector.load %arg3[%c0_31, %c0_32] : memref<256x1024xbf16, #tpu.memory_space<vmem>>, vector<256x1024xbf16>
      %cst_33 = arith.constant dense<0.000000e+00> : vector<8x1024xf32>
      %29 = tpu.matmul %27, %28, %cst_33 {dimension_numbers = #tpu.dot_dimension_numbers<[1], [0], [0], [1], [0, 0, 1, 1], [], []>} : vector<8x256xbf16>, vector<256x1024xbf16>, vector<8x1024xf32> -> vector<8x1024xf32>
      %30 = arith.addf %25, %29 : vector<8x1024xf32>
      %c0_34 = arith.constant 0 : index
      %c0_35 = arith.constant 0 : index
      %31 = vector.load %arg13[%c0_34, %c0_35] : memref<8x256xf32, #tpu.memory_space<vmem>>, vector<8x256xf32>
      %32 = vector.extract_strided_slice %30 {offsets = [0, 0], sizes = [8, 256], strides = [1, 1]} : vector<8x1024xf32> to vector<8x256xf32>
      %33 = arith.negf %32 : vector<8x256xf32>
      %34 = math.exp %33 : vector<8x256xf32>
      %cst_36 = arith.constant 1.000000e+00 : f32
      %35 = vector.broadcast %cst_36 : f32 to vector<8x256xf32>
      %36 = arith.addf %35, %34 : vector<8x256xf32>
      %37 = arith.divf %35, %36 : vector<8x256xf32>
      %38 = vector.extract_strided_slice %30 {offsets = [0, 256], sizes = [8, 256], strides = [1, 1]} : vector<8x1024xf32> to vector<8x256xf32>
      %39 = arith.negf %38 : vector<8x256xf32>
      %40 = math.exp %39 : vector<8x256xf32>
      %cst_37 = arith.constant 1.000000e+00 : f32
      %41 = vector.broadcast %cst_37 : f32 to vector<8x256xf32>
      %42 = arith.addf %41, %40 : vector<8x256xf32>
      %43 = arith.divf %41, %42 : vector<8x256xf32>
      %44 = vector.extract_strided_slice %30 {offsets = [0, 512], sizes = [8, 256], strides = [1, 1]} : vector<8x1024xf32> to vector<8x256xf32>
      %45 = math.tanh %44 : vector<8x256xf32>
      %46 = vector.extract_strided_slice %30 {offsets = [0, 768], sizes = [8, 256], strides = [1, 1]} : vector<8x1024xf32> to vector<8x256xf32>
      %47 = arith.negf %46 : vector<8x256xf32>
      %48 = math.exp %47 : vector<8x256xf32>
      %cst_38 = arith.constant 1.000000e+00 : f32
      %49 = vector.broadcast %cst_38 : f32 to vector<8x256xf32>
      %50 = arith.addf %49, %48 : vector<8x256xf32>
      %51 = arith.divf %49, %50 : vector<8x256xf32>
      %52 = arith.mulf %43, %31 : vector<8x256xf32>
      %53 = arith.mulf %37, %45 : vector<8x256xf32>
      %54 = arith.addf %52, %53 : vector<8x256xf32>
      %55 = math.tanh %54 : vector<8x256xf32>
      %56 = arith.mulf %51, %55 : vector<8x256xf32>
      %c0_39 = arith.constant 0 : index
      %c0_40 = arith.constant 0 : index
      %57 = vector.load %arg12[%c0_39, %c0_40] : memref<8x256xf32, #tpu.memory_space<vmem>>, vector<8x256xf32>
      tpu.vector_store %arg12[%c0_39, %c0_40], %56 {strides = array<i32>} : memref<8x256xf32, #tpu.memory_space<vmem>>, vector<8x256xf32>,
      %c0_41 = arith.constant 0 : index
      %c0_42 = arith.constant 0 : index
      %58 = vector.load %arg13[%c0_41, %c0_42] : memref<8x256xf32, #tpu.memory_space<vmem>>, vector<8x256xf32>
      tpu.vector_store %arg13[%c0_41, %c0_42], %54 {strides = array<i32>} : memref<8x256xf32, #tpu.memory_space<vmem>>, vector<8x256xf32>,
      %59 = arith.index_cast %23 : i32 to index
      %c0_43 = arith.constant 0 : index
      %60 = vector.load %arg8[%59, %c0_43] : memref<64x256xf32, #tpu.memory_space<vmem>>, vector<8x256xf32>
      tpu.vector_store %arg8[%59, %c0_43], %56 {strides = array<i32>} : memref<64x256xf32, #tpu.memory_space<vmem>>, vector<8x256xf32>,
      %c7_i32 = arith.constant 7 : i32
      %61 = arith.subi %c7_i32, %arg16 : i32
      %c8_i32_44 = arith.constant 8 : i32
      %62 = arith.muli %61, %c8_i32_44 : i32
      %63 = tpu.assume_multiple %62, 8 : i32
      %64 = arith.index_cast %63 : i32 to index
      %c0_45 = arith.constant 0 : index
      %65 = vector.load %arg11[%64, %c0_45] : memref<64x1024xf32, #tpu.memory_space<vmem>>, vector<8x1024xf32>
      %c0_46 = arith.constant 0 : index
      %c0_47 = arith.constant 0 : index
      %66 = vector.load %arg14[%c0_46, %c0_47] : memref<8x256xf32, #tpu.memory_space<vmem>>, vector<8x256xf32>
      %67 = arith.truncf %66 : vector<8x256xf32> to vector<8x256xbf16>
      %c0_48 = arith.constant 0 : index
      %c0_49 = arith.constant 0 : index
      %68 = vector.load %arg6[%c0_48, %c0_49] : memref<256x1024xbf16, #tpu.memory_space<vmem>>, vector<256x1024xbf16>
      %cst_50 = arith.constant dense<0.000000e+00> : vector<8x1024xf32>
      %69 = tpu.matmul %67, %68, %cst_50 {dimension_numbers = #tpu.dot_dimension_numbers<[1], [0], [0], [1], [0, 0, 1, 1], [], []>} : vector<8x256xbf16>, vector<256x1024xbf16>, vector<8x1024xf32> -> vector<8x1024xf32>
      %70 = arith.addf %65, %69 : vector<8x1024xf32>
      %c0_51 = arith.constant 0 : index
      %c0_52 = arith.constant 0 : index
      %71 = vector.load %arg15[%c0_51, %c0_52] : memref<8x256xf32, #tpu.memory_space<vmem>>, vector<8x256xf32>
      %72 = vector.extract_strided_slice %70 {offsets = [0, 0], sizes = [8, 256], strides = [1, 1]} : vector<8x1024xf32> to vector<8x256xf32>
      %73 = arith.negf %72 : vector<8x256xf32>
      %74 = math.exp %73 : vector<8x256xf32>
      %cst_53 = arith.constant 1.000000e+00 : f32
      %75 = vector.broadcast %cst_53 : f32 to vector<8x256xf32>
      %76 = arith.addf %75, %74 : vector<8x256xf32>
      %77 = arith.divf %75, %76 : vector<8x256xf32>
      %78 = vector.extract_strided_slice %70 {offsets = [0, 256], sizes = [8, 256], strides = [1, 1]} : vector<8x1024xf32> to vector<8x256xf32>
      %79 = arith.negf %78 : vector<8x256xf32>
      %80 = math.exp %79 : vector<8x256xf32>
      %cst_54 = arith.constant 1.000000e+00 : f32
      %81 = vector.broadcast %cst_54 : f32 to vector<8x256xf32>
      %82 = arith.addf %81, %80 : vector<8x256xf32>
      %83 = arith.divf %81, %82 : vector<8x256xf32>
      %84 = vector.extract_strided_slice %70 {offsets = [0, 512], sizes = [8, 256], strides = [1, 1]} : vector<8x1024xf32> to vector<8x256xf32>
      %85 = math.tanh %84 : vector<8x256xf32>
      %86 = vector.extract_strided_slice %70 {offsets = [0, 768], sizes = [8, 256], strides = [1, 1]} : vector<8x1024xf32> to vector<8x256xf32>
      %87 = arith.negf %86 : vector<8x256xf32>
      %88 = math.exp %87 : vector<8x256xf32>
      %cst_55 = arith.constant 1.000000e+00 : f32
      %89 = vector.broadcast %cst_55 : f32 to vector<8x256xf32>
      %90 = arith.addf %89, %88 : vector<8x256xf32>
      %91 = arith.divf %89, %90 : vector<8x256xf32>
      %92 = arith.mulf %83, %71 : vector<8x256xf32>
      %93 = arith.mulf %77, %85 : vector<8x256xf32>
      %94 = arith.addf %92, %93 : vector<8x256xf32>
      %95 = math.tanh %94 : vector<8x256xf32>
      %96 = arith.mulf %91, %95 : vector<8x256xf32>
      %c0_56 = arith.constant 0 : index
      %c0_57 = arith.constant 0 : index
      %97 = vector.load %arg14[%c0_56, %c0_57] : memref<8x256xf32, #tpu.memory_space<vmem>>, vector<8x256xf32>
      tpu.vector_store %arg14[%c0_56, %c0_57], %96 {strides = array<i32>} : memref<8x256xf32, #tpu.memory_space<vmem>>, vector<8x256xf32>,
      %c0_58 = arith.constant 0 : index
      %c0_59 = arith.constant 0 : index
      %98 = vector.load %arg15[%c0_58, %c0_59] : memref<8x256xf32, #tpu.memory_space<vmem>>, vector<8x256xf32>
      tpu.vector_store %arg15[%c0_58, %c0_59], %94 {strides = array<i32>} : memref<8x256xf32, #tpu.memory_space<vmem>>, vector<8x256xf32>,
      %99 = arith.index_cast %63 : i32 to index
      %c0_60 = arith.constant 0 : index
      %100 = vector.load %arg9[%99, %c0_60] : memref<64x256xf32, #tpu.memory_space<vmem>>, vector<8x256xf32>
      tpu.vector_store %arg9[%99, %c0_60], %96 {strides = array<i32>} : memref<64x256xf32, #tpu.memory_space<vmem>>, vector<8x256xf32>,
    }
    %c8_i32_26 = arith.constant 8 : i32
    return
  }
  func.func @transform_0(%arg0: i32) -> (i32, i32) {
    %c0_i32 = arith.constant 0 : i32
    %c0_i32_0 = arith.constant 0 : i32
    %c0_i32_1 = arith.constant 0 : i32
    return %c0_i32, %c0_i32_0 : i32, i32
  }
  func.func @transform_1(%arg0: i32) -> (i32, i32) {
    %c0_i32 = arith.constant 0 : i32
    %c0_i32_0 = arith.constant 0 : i32
    %c0_i32_1 = arith.constant 0 : i32
    return %c0_i32, %c0_i32_0 : i32, i32
  }
  func.func @transform_2(%arg0: i32) -> (i32, i32) {
    %c0_i32 = arith.constant 0 : i32
    %c0_i32_0 = arith.constant 0 : i32
    %c0_i32_1 = arith.constant 0 : i32
    return %c0_i32, %c0_i32_0 : i32, i32
  }
  func.func @transform_3(%arg0: i32) -> (i32, i32) {
    %c0_i32 = arith.constant 0 : i32
    %c0_i32_0 = arith.constant 0 : i32
    %c0_i32_1 = arith.constant 0 : i32
    return %c0_i32, %c0_i32_0 : i32, i32
  }
  func.func @transform_4(%arg0: i32) -> (i32, i32) {
    %c0_i32 = arith.constant 0 : i32
    %c0_i32_0 = arith.constant 0 : i32
    %c0_i32_1 = arith.constant 0 : i32
    return %c0_i32, %c0_i32_0 : i32, i32
  }
  func.func @transform_5(%arg0: i32) -> (i32, i32) {
    %c0_i32 = arith.constant 0 : i32
    %c0_i32_0 = arith.constant 0 : i32
    %c0_i32_1 = arith.constant 0 : i32
    return %c0_i32, %c0_i32_0 : i32, i32
  }
  func.func @transform_6(%arg0: i32) -> (i32, i32) {
    %c0_i32 = arith.constant 0 : i32
    %c0_i32_0 = arith.constant 0 : i32
    %c0_i32_1 = arith.constant 0 : i32
    return %c0_i32, %c0_i32_0 : i32, i32
  }
  func.func @transform_7(%arg0: i32) -> (i32, i32) {
    %c0_i32 = arith.constant 0 : i32
    %c0_i32_0 = arith.constant 0 : i32
    %c0_i32_1 = arith.constant 0 : i32
    return %c0_i32, %c0_i32_0 : i32, i32
  }
  func.func @transform_8(%arg0: i32) -> (i32, i32) {
    %c0_i32 = arith.constant 0 : i32
    %c0_i32_0 = arith.constant 0 : i32
    %c0_i32_1 = arith.constant 0 : i32
    return %c0_i32, %c0_i32_0 : i32, i32
  }
}

module attributes {stable_mosaic.version = 11 : i64} {
  func.func @_bidir_lstm_head_kernel(%arg0: i32, %arg1: memref<64x256xf32, #tpu.memory_space<vmem>>, %arg2: memref<64x256xf32, #tpu.memory_space<vmem>>, %arg3: memref<256x1024xbf16, #tpu.memory_space<vmem>>, %arg4: memref<256x1024xbf16, #tpu.memory_space<vmem>>, %arg5: memref<256x1024xbf16, #tpu.memory_space<vmem>>, %arg6: memref<1x1024xf32, #tpu.memory_space<vmem>>, %arg7: memref<256x1024xbf16, #tpu.memory_space<vmem>>, %arg8: memref<256x1024xbf16, #tpu.memory_space<vmem>>, %arg9: memref<256x1024xbf16, #tpu.memory_space<vmem>>, %arg10: memref<1x1024xf32, #tpu.memory_space<vmem>>, %arg11: memref<256x256xbf16, #tpu.memory_space<vmem>>, %arg12: memref<256x256xbf16, #tpu.memory_space<vmem>>, %arg13: memref<1x256xf32, #tpu.memory_space<vmem>>, %arg14: memref<256x128xbf16, #tpu.memory_space<vmem>>, %arg15: memref<1x128xf32, #tpu.memory_space<vmem>>, %arg16: memref<128x128xbf16, #tpu.memory_space<vmem>>, %arg17: memref<1x128xf32, #tpu.memory_space<vmem>>, %arg18: memref<8x128xf32, #tpu.memory_space<vmem>>, %arg19: memref<64x1024xf32, #tpu.memory_space<vmem>>, %arg20: memref<64x1024xf32, #tpu.memory_space<vmem>>, %arg21: memref<8x256xf32, #tpu.memory_space<vmem>>, %arg22: memref<8x256xf32, #tpu.memory_space<vmem>>, %arg23: memref<8x256xf32, #tpu.memory_space<vmem>>, %arg24: memref<8x256xf32, #tpu.memory_space<vmem>>) attributes {dimension_semantics = [#tpu.dimension_semantics<arbitrary>], iteration_bounds = array<i64: 1>, scalar_prefetch = 0 : i64, scratch_operands = 6 : i64, tpu.core_type = #tpu.core_type<tc>, window_params = [{pipeline_mode = #tpu.pipeline_mode<synchronous>, transform_indices = @transform_0, window_bounds = array<i64: 64, 256>}, {pipeline_mode = #tpu.pipeline_mode<synchronous>, transform_indices = @transform_1, window_bounds = array<i64: 64, 256>}, {pipeline_mode = #tpu.pipeline_mode<synchronous>, transform_indices = @transform_2, window_bounds = array<i64: 256, 1024>}, {pipeline_mode = #tpu.pipeline_mode<synchronous>, transform_indices = @transform_3, window_bounds = array<i64: 256, 1024>}, {pipeline_mode = #tpu.pipeline_mode<synchronous>, transform_indices = @transform_4, window_bounds = array<i64: 256, 1024>}, {pipeline_mode = #tpu.pipeline_mode<synchronous>, transform_indices = @transform_5, window_bounds = array<i64: 1, 1024>}, {pipeline_mode = #tpu.pipeline_mode<synchronous>, transform_indices = @transform_6, window_bounds = array<i64: 256, 1024>}, {pipeline_mode = #tpu.pipeline_mode<synchronous>, transform_indices = @transform_7, window_bounds = array<i64: 256, 1024>}, {pipeline_mode = #tpu.pipeline_mode<synchronous>, transform_indices = @transform_8, window_bounds = array<i64: 256, 1024>}, {pipeline_mode = #tpu.pipeline_mode<synchronous>, transform_indices = @transform_9, window_bounds = array<i64: 1, 1024>}, {pipeline_mode = #tpu.pipeline_mode<synchronous>, transform_indices = @transform_10, window_bounds = array<i64: 256, 256>}, {pipeline_mode = #tpu.pipeline_mode<synchronous>, transform_indices = @transform_11, window_bounds = array<i64: 256, 256>}, {pipeline_mode = #tpu.pipeline_mode<synchronous>, transform_indices = @transform_12, window_bounds = array<i64: 1, 256>}, {pipeline_mode = #tpu.pipeline_mode<synchronous>, transform_indices = @transform_13, window_bounds = array<i64: 256, 128>}, {pipeline_mode = #tpu.pipeline_mode<synchronous>, transform_indices = @transform_14, window_bounds = array<i64: 1, 128>}, {pipeline_mode = #tpu.pipeline_mode<synchronous>, transform_indices = @transform_15, window_bounds = array<i64: 128, 128>}, {pipeline_mode = #tpu.pipeline_mode<synchronous>, transform_indices = @transform_16, window_bounds = array<i64: 1, 128>}, {pipeline_mode = #tpu.pipeline_mode<synchronous>, transform_indices = @transform_17, window_bounds = array<i64: 8, 128>}]} {
    %c0 = arith.constant 0 : index
    %c0_0 = arith.constant 0 : index
    %0 = vector.load %arg1[%c0, %c0_0] : memref<64x256xf32, #tpu.memory_space<vmem>>, vector<64x256xf32>
    %1 = arith.truncf %0 : vector<64x256xf32> to vector<64x256xbf16>
    %c0_1 = arith.constant 0 : index
    %c0_2 = arith.constant 0 : index
    %2 = vector.load %arg2[%c0_1, %c0_2] : memref<64x256xf32, #tpu.memory_space<vmem>>, vector<64x256xf32>
    %3 = arith.truncf %2 : vector<64x256xf32> to vector<64x256xbf16>
    %c0_3 = arith.constant 0 : index
    %c0_4 = arith.constant 0 : index
    %4 = vector.load %arg3[%c0_3, %c0_4] : memref<256x1024xbf16, #tpu.memory_space<vmem>>, vector<256x1024xbf16>
    %cst = arith.constant dense<0.000000e+00> : vector<64x1024xf32>
    %5 = tpu.matmul %1, %4, %cst {dimension_numbers = #tpu.dot_dimension_numbers<[1], [0], [0], [1], [0, 0, 1, 1], [], []>} : vector<64x256xbf16>, vector<256x1024xbf16>, vector<64x1024xf32> -> vector<64x1024xf32>
    %c0_5 = arith.constant 0 : index
    %c0_6 = arith.constant 0 : index
    %6 = vector.load %arg4[%c0_5, %c0_6] : memref<256x1024xbf16, #tpu.memory_space<vmem>>, vector<256x1024xbf16>
    %cst_7 = arith.constant dense<0.000000e+00> : vector<64x1024xf32>
    %7 = tpu.matmul %3, %6, %cst_7 {dimension_numbers = #tpu.dot_dimension_numbers<[1], [0], [0], [1], [0, 0, 1, 1], [], []>} : vector<64x256xbf16>, vector<256x1024xbf16>, vector<64x1024xf32> -> vector<64x1024xf32>
    %8 = arith.addf %5, %7 : vector<64x1024xf32>
    %c0_8 = arith.constant 0 : index
    %c0_9 = arith.constant 0 : index
    %9 = vector.load %arg6[%c0_8, %c0_9] : memref<1x1024xf32, #tpu.memory_space<vmem>>, vector<1x1024xf32>
    %10 = vector.broadcast %9 : vector<1x1024xf32> to vector<64x1024xf32>
    %11 = arith.addf %8, %10 : vector<64x1024xf32>
    %c0_10 = arith.constant 0 : index
    %c0_11 = arith.constant 0 : index
    %12 = vector.load %arg19[%c0_10, %c0_11] : memref<64x1024xf32, #tpu.memory_space<vmem>>, vector<64x1024xf32>
    tpu.vector_store %arg19[%c0_10, %c0_11], %11 {strides = array<i32>} : memref<64x1024xf32, #tpu.memory_space<vmem>>, vector<64x1024xf32>,
    %c0_12 = arith.constant 0 : index
    %c0_13 = arith.constant 0 : index
    %13 = vector.load %arg7[%c0_12, %c0_13] : memref<256x1024xbf16, #tpu.memory_space<vmem>>, vector<256x1024xbf16>
    %cst_14 = arith.constant dense<0.000000e+00> : vector<64x1024xf32>
    %14 = tpu.matmul %1, %13, %cst_14 {dimension_numbers = #tpu.dot_dimension_numbers<[1], [0], [0], [1], [0, 0, 1, 1], [], []>} : vector<64x256xbf16>, vector<256x1024xbf16>, vector<64x1024xf32> -> vector<64x1024xf32>
    %c0_15 = arith.constant 0 : index
    %c0_16 = arith.constant 0 : index
    %15 = vector.load %arg8[%c0_15, %c0_16] : memref<256x1024xbf16, #tpu.memory_space<vmem>>, vector<256x1024xbf16>
    %cst_17 = arith.constant dense<0.000000e+00> : vector<64x1024xf32>
    %16 = tpu.matmul %3, %15, %cst_17 {dimension_numbers = #tpu.dot_dimension_numbers<[1], [0], [0], [1], [0, 0, 1, 1], [], []>} : vector<64x256xbf16>, vector<256x1024xbf16>, vector<64x1024xf32> -> vector<64x1024xf32>
    %17 = arith.addf %14, %16 : vector<64x1024xf32>
    %c0_18 = arith.constant 0 : index
    %c0_19 = arith.constant 0 : index
    %18 = vector.load %arg10[%c0_18, %c0_19] : memref<1x1024xf32, #tpu.memory_space<vmem>>, vector<1x1024xf32>
    %19 = vector.broadcast %18 : vector<1x1024xf32> to vector<64x1024xf32>
    %20 = arith.addf %17, %19 : vector<64x1024xf32>
    %c0_20 = arith.constant 0 : index
    %c0_21 = arith.constant 0 : index
    %21 = vector.load %arg20[%c0_20, %c0_21] : memref<64x1024xf32, #tpu.memory_space<vmem>>, vector<64x1024xf32>
    tpu.vector_store %arg20[%c0_20, %c0_21], %20 {strides = array<i32>} : memref<64x1024xf32, #tpu.memory_space<vmem>>, vector<64x1024xf32>,
    %cst_22 = arith.constant 0.000000e+00 : f32
    %22 = vector.broadcast %cst_22 : f32 to vector<8x256xf32>
    %c0_23 = arith.constant 0 : index
    %c0_24 = arith.constant 0 : index
    %23 = vector.load %arg21[%c0_23, %c0_24] : memref<8x256xf32, #tpu.memory_space<vmem>>, vector<8x256xf32>
    tpu.vector_store %arg21[%c0_23, %c0_24], %22 {strides = array<i32>} : memref<8x256xf32, #tpu.memory_space<vmem>>, vector<8x256xf32>,
    %cst_25 = arith.constant 0.000000e+00 : f32
    %24 = vector.broadcast %cst_25 : f32 to vector<8x256xf32>
    %c0_26 = arith.constant 0 : index
    %c0_27 = arith.constant 0 : index
    %25 = vector.load %arg22[%c0_26, %c0_27] : memref<8x256xf32, #tpu.memory_space<vmem>>, vector<8x256xf32>
    tpu.vector_store %arg22[%c0_26, %c0_27], %24 {strides = array<i32>} : memref<8x256xf32, #tpu.memory_space<vmem>>, vector<8x256xf32>,
    %cst_28 = arith.constant 0.000000e+00 : f32
    %26 = vector.broadcast %cst_28 : f32 to vector<8x256xf32>
    %c0_29 = arith.constant 0 : index
    %c0_30 = arith.constant 0 : index
    %27 = vector.load %arg23[%c0_29, %c0_30] : memref<8x256xf32, #tpu.memory_space<vmem>>, vector<8x256xf32>
    tpu.vector_store %arg23[%c0_29, %c0_30], %26 {strides = array<i32>} : memref<8x256xf32, #tpu.memory_space<vmem>>, vector<8x256xf32>,
    %cst_31 = arith.constant 0.000000e+00 : f32
    %28 = vector.broadcast %cst_31 : f32 to vector<8x256xf32>
    %c0_32 = arith.constant 0 : index
    %c0_33 = arith.constant 0 : index
    %29 = vector.load %arg24[%c0_32, %c0_33] : memref<8x256xf32, #tpu.memory_space<vmem>>, vector<8x256xf32>
    tpu.vector_store %arg24[%c0_32, %c0_33], %28 {strides = array<i32>} : memref<8x256xf32, #tpu.memory_space<vmem>>, vector<8x256xf32>,
    %c0_i32 = arith.constant 0 : i32
    %c8_i32 = arith.constant 8 : i32
    %30 = arith.addi %c0_i32, %c8_i32 : i32
    %c1_i32 = arith.constant 1 : i32
    scf.for %arg25 = %c0_i32 to %30 step %c1_i32  : i32 {
      %c8_i32_61 = arith.constant 8 : i32
      %60 = arith.muli %arg25, %c8_i32_61 : i32
      %61 = tpu.assume_multiple %60, 8 : i32
      %62 = arith.index_cast %61 : i32 to index
      %c0_62 = arith.constant 0 : index
      %63 = vector.load %arg19[%62, %c0_62] : memref<64x1024xf32, #tpu.memory_space<vmem>>, vector<8x1024xf32>
      %c0_63 = arith.constant 0 : index
      %c0_64 = arith.constant 0 : index
      %64 = vector.load %arg21[%c0_63, %c0_64] : memref<8x256xf32, #tpu.memory_space<vmem>>, vector<8x256xf32>
      %65 = arith.truncf %64 : vector<8x256xf32> to vector<8x256xbf16>
      %c0_65 = arith.constant 0 : index
      %c0_66 = arith.constant 0 : index
      %66 = vector.load %arg5[%c0_65, %c0_66] : memref<256x1024xbf16, #tpu.memory_space<vmem>>, vector<256x1024xbf16>
      %cst_67 = arith.constant dense<0.000000e+00> : vector<8x1024xf32>
      %67 = tpu.matmul %65, %66, %cst_67 {dimension_numbers = #tpu.dot_dimension_numbers<[1], [0], [0], [1], [0, 0, 1, 1], [], []>} : vector<8x256xbf16>, vector<256x1024xbf16>, vector<8x1024xf32> -> vector<8x1024xf32>
      %68 = arith.addf %63, %67 : vector<8x1024xf32>
      %c0_68 = arith.constant 0 : index
      %c0_69 = arith.constant 0 : index
      %69 = vector.load %arg22[%c0_68, %c0_69] : memref<8x256xf32, #tpu.memory_space<vmem>>, vector<8x256xf32>
      %70 = vector.extract_strided_slice %68 {offsets = [0, 0], sizes = [8, 256], strides = [1, 1]} : vector<8x1024xf32> to vector<8x256xf32>
      %71 = arith.negf %70 : vector<8x256xf32>
      %72 = math.exp %71 : vector<8x256xf32>
      %cst_70 = arith.constant 1.000000e+00 : f32
      %73 = vector.broadcast %cst_70 : f32 to vector<8x256xf32>
      %74 = arith.addf %73, %72 : vector<8x256xf32>
      %75 = arith.divf %73, %74 : vector<8x256xf32>
      %76 = vector.extract_strided_slice %68 {offsets = [0, 256], sizes = [8, 256], strides = [1, 1]} : vector<8x1024xf32> to vector<8x256xf32>
      %77 = arith.negf %76 : vector<8x256xf32>
      %78 = math.exp %77 : vector<8x256xf32>
      %cst_71 = arith.constant 1.000000e+00 : f32
      %79 = vector.broadcast %cst_71 : f32 to vector<8x256xf32>
      %80 = arith.addf %79, %78 : vector<8x256xf32>
      %81 = arith.divf %79, %80 : vector<8x256xf32>
      %82 = vector.extract_strided_slice %68 {offsets = [0, 512], sizes = [8, 256], strides = [1, 1]} : vector<8x1024xf32> to vector<8x256xf32>
      %83 = math.tanh %82 : vector<8x256xf32>
      %84 = vector.extract_strided_slice %68 {offsets = [0, 768], sizes = [8, 256], strides = [1, 1]} : vector<8x1024xf32> to vector<8x256xf32>
      %85 = arith.negf %84 : vector<8x256xf32>
      %86 = math.exp %85 : vector<8x256xf32>
      %cst_72 = arith.constant 1.000000e+00 : f32
      %87 = vector.broadcast %cst_72 : f32 to vector<8x256xf32>
      %88 = arith.addf %87, %86 : vector<8x256xf32>
      %89 = arith.divf %87, %88 : vector<8x256xf32>
      %90 = arith.mulf %81, %69 : vector<8x256xf32>
      %91 = arith.mulf %75, %83 : vector<8x256xf32>
      %92 = arith.addf %90, %91 : vector<8x256xf32>
      %93 = math.tanh %92 : vector<8x256xf32>
      %94 = arith.mulf %89, %93 : vector<8x256xf32>
      %c0_73 = arith.constant 0 : index
      %c0_74 = arith.constant 0 : index
      %95 = vector.load %arg21[%c0_73, %c0_74] : memref<8x256xf32, #tpu.memory_space<vmem>>, vector<8x256xf32>
      tpu.vector_store %arg21[%c0_73, %c0_74], %94 {strides = array<i32>} : memref<8x256xf32, #tpu.memory_space<vmem>>, vector<8x256xf32>,
      %c0_75 = arith.constant 0 : index
      %c0_76 = arith.constant 0 : index
      %96 = vector.load %arg22[%c0_75, %c0_76] : memref<8x256xf32, #tpu.memory_space<vmem>>, vector<8x256xf32>
      tpu.vector_store %arg22[%c0_75, %c0_76], %92 {strides = array<i32>} : memref<8x256xf32, #tpu.memory_space<vmem>>, vector<8x256xf32>,
      %c7_i32 = arith.constant 7 : i32
      %97 = arith.subi %c7_i32, %arg25 : i32
      %c8_i32_77 = arith.constant 8 : i32
      %98 = arith.muli %97, %c8_i32_77 : i32
      %99 = tpu.assume_multiple %98, 8 : i32
      %100 = arith.index_cast %99 : i32 to index
      %c0_78 = arith.constant 0 : index
      %101 = vector.load %arg20[%100, %c0_78] : memref<64x1024xf32, #tpu.memory_space<vmem>>, vector<8x1024xf32>
      %c0_79 = arith.constant 0 : index
      %c0_80 = arith.constant 0 : index
      %102 = vector.load %arg23[%c0_79, %c0_80] : memref<8x256xf32, #tpu.memory_space<vmem>>, vector<8x256xf32>
      %103 = arith.truncf %102 : vector<8x256xf32> to vector<8x256xbf16>
      %c0_81 = arith.constant 0 : index
      %c0_82 = arith.constant 0 : index
      %104 = vector.load %arg9[%c0_81, %c0_82] : memref<256x1024xbf16, #tpu.memory_space<vmem>>, vector<256x1024xbf16>
      %cst_83 = arith.constant dense<0.000000e+00> : vector<8x1024xf32>
      %105 = tpu.matmul %103, %104, %cst_83 {dimension_numbers = #tpu.dot_dimension_numbers<[1], [0], [0], [1], [0, 0, 1, 1], [], []>} : vector<8x256xbf16>, vector<256x1024xbf16>, vector<8x1024xf32> -> vector<8x1024xf32>
      %106 = arith.addf %101, %105 : vector<8x1024xf32>
      %c0_84 = arith.constant 0 : index
      %c0_85 = arith.constant 0 : index
      %107 = vector.load %arg24[%c0_84, %c0_85] : memref<8x256xf32, #tpu.memory_space<vmem>>, vector<8x256xf32>
      %108 = vector.extract_strided_slice %106 {offsets = [0, 0], sizes = [8, 256], strides = [1, 1]} : vector<8x1024xf32> to vector<8x256xf32>
      %109 = arith.negf %108 : vector<8x256xf32>
      %110 = math.exp %109 : vector<8x256xf32>
      %cst_86 = arith.constant 1.000000e+00 : f32
      %111 = vector.broadcast %cst_86 : f32 to vector<8x256xf32>
      %112 = arith.addf %111, %110 : vector<8x256xf32>
      %113 = arith.divf %111, %112 : vector<8x256xf32>
      %114 = vector.extract_strided_slice %106 {offsets = [0, 256], sizes = [8, 256], strides = [1, 1]} : vector<8x1024xf32> to vector<8x256xf32>
      %115 = arith.negf %114 : vector<8x256xf32>
      %116 = math.exp %115 : vector<8x256xf32>
      %cst_87 = arith.constant 1.000000e+00 : f32
      %117 = vector.broadcast %cst_87 : f32 to vector<8x256xf32>
      %118 = arith.addf %117, %116 : vector<8x256xf32>
      %119 = arith.divf %117, %118 : vector<8x256xf32>
      %120 = vector.extract_strided_slice %106 {offsets = [0, 512], sizes = [8, 256], strides = [1, 1]} : vector<8x1024xf32> to vector<8x256xf32>
      %121 = math.tanh %120 : vector<8x256xf32>
      %122 = vector.extract_strided_slice %106 {offsets = [0, 768], sizes = [8, 256], strides = [1, 1]} : vector<8x1024xf32> to vector<8x256xf32>
      %123 = arith.negf %122 : vector<8x256xf32>
      %124 = math.exp %123 : vector<8x256xf32>
      %cst_88 = arith.constant 1.000000e+00 : f32
      %125 = vector.broadcast %cst_88 : f32 to vector<8x256xf32>
      %126 = arith.addf %125, %124 : vector<8x256xf32>
      %127 = arith.divf %125, %126 : vector<8x256xf32>
      %128 = arith.mulf %119, %107 : vector<8x256xf32>
      %129 = arith.mulf %113, %121 : vector<8x256xf32>
      %130 = arith.addf %128, %129 : vector<8x256xf32>
      %131 = math.tanh %130 : vector<8x256xf32>
      %132 = arith.mulf %127, %131 : vector<8x256xf32>
      %c0_89 = arith.constant 0 : index
      %c0_90 = arith.constant 0 : index
      %133 = vector.load %arg23[%c0_89, %c0_90] : memref<8x256xf32, #tpu.memory_space<vmem>>, vector<8x256xf32>
      tpu.vector_store %arg23[%c0_89, %c0_90], %132 {strides = array<i32>} : memref<8x256xf32, #tpu.memory_space<vmem>>, vector<8x256xf32>,
      %c0_91 = arith.constant 0 : index
      %c0_92 = arith.constant 0 : index
      %134 = vector.load %arg24[%c0_91, %c0_92] : memref<8x256xf32, #tpu.memory_space<vmem>>, vector<8x256xf32>
      tpu.vector_store %arg24[%c0_91, %c0_92], %130 {strides = array<i32>} : memref<8x256xf32, #tpu.memory_space<vmem>>, vector<8x256xf32>,
    }
    %c8_i32_34 = arith.constant 8 : i32
    %c0_35 = arith.constant 0 : index
    %c0_36 = arith.constant 0 : index
    %31 = vector.load %arg21[%c0_35, %c0_36] : memref<8x256xf32, #tpu.memory_space<vmem>>, vector<8x256xf32>
    %32 = arith.truncf %31 : vector<8x256xf32> to vector<8x256xbf16>
    %c0_37 = arith.constant 0 : index
    %c0_38 = arith.constant 0 : index
    %33 = vector.load %arg23[%c0_37, %c0_38] : memref<8x256xf32, #tpu.memory_space<vmem>>, vector<8x256xf32>
    %34 = arith.truncf %33 : vector<8x256xf32> to vector<8x256xbf16>
    %c0_39 = arith.constant 0 : index
    %c0_40 = arith.constant 0 : index
    %35 = vector.load %arg11[%c0_39, %c0_40] : memref<256x256xbf16, #tpu.memory_space<vmem>>, vector<256x256xbf16>
    %cst_41 = arith.constant dense<0.000000e+00> : vector<8x256xf32>
    %36 = tpu.matmul %32, %35, %cst_41 {dimension_numbers = #tpu.dot_dimension_numbers<[1], [0], [0], [1], [0, 0, 1, 1], [], []>} : vector<8x256xbf16>, vector<256x256xbf16>, vector<8x256xf32> -> vector<8x256xf32>
    %c0_42 = arith.constant 0 : index
    %c0_43 = arith.constant 0 : index
    %37 = vector.load %arg12[%c0_42, %c0_43] : memref<256x256xbf16, #tpu.memory_space<vmem>>, vector<256x256xbf16>
    %cst_44 = arith.constant dense<0.000000e+00> : vector<8x256xf32>
    %38 = tpu.matmul %34, %37, %cst_44 {dimension_numbers = #tpu.dot_dimension_numbers<[1], [0], [0], [1], [0, 0, 1, 1], [], []>} : vector<8x256xbf16>, vector<256x256xbf16>, vector<8x256xf32> -> vector<8x256xf32>
    %39 = arith.addf %36, %38 : vector<8x256xf32>
    %c0_45 = arith.constant 0 : index
    %c0_46 = arith.constant 0 : index
    %40 = vector.load %arg13[%c0_45, %c0_46] : memref<1x256xf32, #tpu.memory_space<vmem>>, vector<1x256xf32>
    %41 = vector.broadcast %40 : vector<1x256xf32> to vector<8x256xf32>
    %42 = arith.addf %39, %41 : vector<8x256xf32>
    %cst_47 = arith.constant 0.000000e+00 : f32
    %43 = vector.broadcast %cst_47 : f32 to vector<8x256xf32>
    %44 = arith.maximumf %42, %43 : vector<8x256xf32>
    %45 = arith.truncf %44 : vector<8x256xf32> to vector<8x256xbf16>
    %c0_48 = arith.constant 0 : index
    %c0_49 = arith.constant 0 : index
    %46 = vector.load %arg14[%c0_48, %c0_49] : memref<256x128xbf16, #tpu.memory_space<vmem>>, vector<256x128xbf16>
    %cst_50 = arith.constant dense<0.000000e+00> : vector<8x128xf32>
    %47 = tpu.matmul %45, %46, %cst_50 {dimension_numbers = #tpu.dot_dimension_numbers<[1], [0], [0], [1], [0, 0, 1, 1], [], []>} : vector<8x256xbf16>, vector<256x128xbf16>, vector<8x128xf32> -> vector<8x128xf32>
    %c0_51 = arith.constant 0 : index
    %c0_52 = arith.constant 0 : index
    %48 = vector.load %arg15[%c0_51, %c0_52] : memref<1x128xf32, #tpu.memory_space<vmem>>, vector<1x128xf32>
    %49 = vector.broadcast %48 : vector<1x128xf32> to vector<8x128xf32>
    %50 = arith.addf %47, %49 : vector<8x128xf32>
    %cst_53 = arith.constant 0.000000e+00 : f32
    %51 = vector.broadcast %cst_53 : f32 to vector<8x128xf32>
    %52 = arith.maximumf %50, %51 : vector<8x128xf32>
    %53 = arith.truncf %52 : vector<8x128xf32> to vector<8x128xbf16>
    %c0_54 = arith.constant 0 : index
    %c0_55 = arith.constant 0 : index
    %54 = vector.load %arg16[%c0_54, %c0_55] : memref<128x128xbf16, #tpu.memory_space<vmem>>, vector<128x128xbf16>
    %cst_56 = arith.constant dense<0.000000e+00> : vector<8x128xf32>
    %55 = tpu.matmul %53, %54, %cst_56 {dimension_numbers = #tpu.dot_dimension_numbers<[1], [0], [0], [1], [0, 0, 1, 1], [], []>} : vector<8x128xbf16>, vector<128x128xbf16>, vector<8x128xf32> -> vector<8x128xf32>
    %c0_57 = arith.constant 0 : index
    %c0_58 = arith.constant 0 : index
    %56 = vector.load %arg17[%c0_57, %c0_58] : memref<1x128xf32, #tpu.memory_space<vmem>>, vector<1x128xf32>
    %57 = vector.broadcast %56 : vector<1x128xf32> to vector<8x128xf32>
    %58 = arith.addf %55, %57 : vector<8x128xf32>
    %c0_59 = arith.constant 0 : index
    %c0_60 = arith.constant 0 : index
    %59 = vector.load %arg18[%c0_59, %c0_60] : memref<8x128xf32, #tpu.memory_space<vmem>>, vector<8x128xf32>
    tpu.vector_store %arg18[%c0_59, %c0_60], %58 {strides = array<i32>} : memref<8x128xf32, #tpu.memory_space<vmem>>, vector<8x128xf32>,
    return
  }
  func.func @transform_0(%arg0: i32) -> (i32, i32) {
    %c0_i32 = arith.constant 0 : i32
    %c0_i32_0 = arith.constant 0 : i32
    %c0_i32_1 = arith.constant 0 : i32
    return %c0_i32, %c0_i32_0 : i32, i32
  }
  func.func @transform_1(%arg0: i32) -> (i32, i32) {
    %c0_i32 = arith.constant 0 : i32
    %c0_i32_0 = arith.constant 0 : i32
    %c0_i32_1 = arith.constant 0 : i32
    return %c0_i32, %c0_i32_0 : i32, i32
  }
  func.func @transform_2(%arg0: i32) -> (i32, i32) {
    %c0_i32 = arith.constant 0 : i32
    %c0_i32_0 = arith.constant 0 : i32
    %c0_i32_1 = arith.constant 0 : i32
    return %c0_i32, %c0_i32_0 : i32, i32
  }
  func.func @transform_3(%arg0: i32) -> (i32, i32) {
    %c0_i32 = arith.constant 0 : i32
    %c0_i32_0 = arith.constant 0 : i32
    %c0_i32_1 = arith.constant 0 : i32
    return %c0_i32, %c0_i32_0 : i32, i32
  }
  func.func @transform_4(%arg0: i32) -> (i32, i32) {
    %c0_i32 = arith.constant 0 : i32
    %c0_i32_0 = arith.constant 0 : i32
    %c0_i32_1 = arith.constant 0 : i32
    return %c0_i32, %c0_i32_0 : i32, i32
  }
  func.func @transform_5(%arg0: i32) -> (i32, i32) {
    %c0_i32 = arith.constant 0 : i32
    %c0_i32_0 = arith.constant 0 : i32
    %c0_i32_1 = arith.constant 0 : i32
    return %c0_i32, %c0_i32_0 : i32, i32
  }
  func.func @transform_6(%arg0: i32) -> (i32, i32) {
    %c0_i32 = arith.constant 0 : i32
    %c0_i32_0 = arith.constant 0 : i32
    %c0_i32_1 = arith.constant 0 : i32
    return %c0_i32, %c0_i32_0 : i32, i32
  }
  func.func @transform_7(%arg0: i32) -> (i32, i32) {
    %c0_i32 = arith.constant 0 : i32
    %c0_i32_0 = arith.constant 0 : i32
    %c0_i32_1 = arith.constant 0 : i32
    return %c0_i32, %c0_i32_0 : i32, i32
  }
  func.func @transform_8(%arg0: i32) -> (i32, i32) {
    %c0_i32 = arith.constant 0 : i32
    %c0_i32_0 = arith.constant 0 : i32
    %c0_i32_1 = arith.constant 0 : i32
    return %c0_i32, %c0_i32_0 : i32, i32
  }
  func.func @transform_9(%arg0: i32) -> (i32, i32) {
    %c0_i32 = arith.constant 0 : i32
    %c0_i32_0 = arith.constant 0 : i32
    %c0_i32_1 = arith.constant 0 : i32
    return %c0_i32, %c0_i32_0 : i32, i32
  }
  func.func @transform_10(%arg0: i32) -> (i32, i32) {
    %c0_i32 = arith.constant 0 : i32
    %c0_i32_0 = arith.constant 0 : i32
    %c0_i32_1 = arith.constant 0 : i32
    return %c0_i32, %c0_i32_0 : i32, i32
  }
  func.func @transform_11(%arg0: i32) -> (i32, i32) {
    %c0_i32 = arith.constant 0 : i32
    %c0_i32_0 = arith.constant 0 : i32
    %c0_i32_1 = arith.constant 0 : i32
    return %c0_i32, %c0_i32_0 : i32, i32
  }
  func.func @transform_12(%arg0: i32) -> (i32, i32) {
    %c0_i32 = arith.constant 0 : i32
    %c0_i32_0 = arith.constant 0 : i32
    %c0_i32_1 = arith.constant 0 : i32
    return %c0_i32, %c0_i32_0 : i32, i32
  }
  func.func @transform_13(%arg0: i32) -> (i32, i32) {
    %c0_i32 = arith.constant 0 : i32
    %c0_i32_0 = arith.constant 0 : i32
    %c0_i32_1 = arith.constant 0 : i32
    return %c0_i32, %c0_i32_0 : i32, i32
  }
  func.func @transform_14(%arg0: i32) -> (i32, i32) {
    %c0_i32 = arith.constant 0 : i32
    %c0_i32_0 = arith.constant 0 : i32
    %c0_i32_1 = arith.constant 0 : i32
    return %c0_i32, %c0_i32_0 : i32, i32
  }
  func.func @transform_15(%arg0: i32) -> (i32, i32) {
    %c0_i32 = arith.constant 0 : i32
    %c0_i32_0 = arith.constant 0 : i32
    %c0_i32_1 = arith.constant 0 : i32
    return %c0_i32, %c0_i32_0 : i32, i32
  }
  func.func @transform_16(%arg0: i32) -> (i32, i32) {
    %c0_i32 = arith.constant 0 : i32
    %c0_i32_0 = arith.constant 0 : i32
    %c0_i32_1 = arith.constant 0 : i32
    return %c0_i32, %c0_i32_0 : i32, i32
  }
  func.func @transform_17(%arg0: i32) -> (i32, i32) {
    %c0_i32 = arith.constant 0 : i32
    %c0_i32_0 = arith.constant 0 : i32
    %c0_i32_1 = arith.constant 0 : i32
    return %c0_i32, %c0_i32_0 : i32, i32
  }
}

</mosaic_0001>

<llo_original>
// kernel: custom_bert_forward.2
$region0: #{custom_bert_forward.2}
  #allocation0 [shape = 'u32[]', space=smem, size = 0x4, offset = 0x4, fixed_abs, tag = 'smem constant byte address 0x4 - core index']
  #allocation1 [shape = 'u32[72,128]{1,0:T(1,128)}', space=vmem, size = 0x9000, scoped, tag = 'internal scratch']
  #allocation2 [shape = 'f32[64,1024]{1,0:T(8,128)}', space=vmem, size = 0x40000, scoped, tag = 'scratch operand']
  #allocation3 [shape = 'f32[64,1024]{1,0:T(8,128)}', space=vmem, size = 0x40000, scoped, tag = 'scratch operand']
  #allocation4 [shape = 'f32[8,256]{1,0:T(8,128)}', space=vmem, size = 0x2000, scoped, tag = 'scratch operand']
  #allocation5 [shape = 'f32[8,256]{1,0:T(8,128)}', space=vmem, size = 0x2000, scoped, tag = 'scratch operand']
  #allocation6 [shape = 'f32[8,256]{1,0:T(8,128)}', space=vmem, size = 0x2000, scoped, tag = 'scratch operand']
  #allocation7 [shape = 'f32[8,256]{1,0:T(8,128)}', space=vmem, size = 0x2000, scoped, tag = 'scratch operand']
  %s0 = inlined_call_operand.vmem [shape: bf16[64,128], index: 0, kind: input, shape index: {}]
  %s1 = inlined_call_operand.hbm [shape: bf16[128,1024], index: 1, kind: input, shape index: {}]
  %s2 = inlined_call_operand.hbm [shape: bf16[256,1024], index: 2, kind: input, shape index: {}]
  %s3 = inlined_call_operand.vmem [shape: f32[1,1024], index: 3, kind: input, shape index: {}]
  %s4 = inlined_call_operand.hbm [shape: bf16[128,1024], index: 4, kind: input, shape index: {}]
  %s5 = inlined_call_operand.hbm [shape: bf16[256,1024], index: 5, kind: input, shape index: {}]
  %s6 = inlined_call_operand.vmem [shape: f32[1,1024], index: 6, kind: input, shape index: {}]
  %s7 = inlined_call_operand.vmem [shape: f32[64,256], index: 7, kind: output, shape index: {0}]
  %s8 = inlined_call_operand.vmem [shape: f32[64,256], index: 8, kind: output, shape index: {1}]
  %9 = xla_tuple %s7, %s8
  %s10 = sld [smem:[#allocation0]]
  $region69: #{custom_bert_forward.2} parent=0
    _
  %s12 = ssub.s32 1, %s10
  %s13 = scalar_select 0, %s12, %s10
  $region1: #{custom_bert_forward.2} parent=0
    #allocation8 [shape = 'u8[262144]{0}', space=vmem, size = 0x40000, scoped, tag = 'input window, operand 1, single buffered']
    #allocation9 [shape = 's32[1]{0}', space=sflag, size = 0x4, scoped, tag = 'scoped memory for custom_bert_forward.2']
    #allocation10 [shape = 'u8[524288]{0}', space=vmem, size = 0x80000, scoped, tag = 'input window, operand 2, single buffered']
    #allocation11 [shape = 's32[1]{0}', space=sflag, size = 0x4, scoped, tag = 'scoped memory for custom_bert_forward.2']
    #allocation12 [shape = 'u8[262144]{0}', space=vmem, size = 0x40000, scoped, tag = 'input window, operand 4, single buffered']
    #allocation13 [shape = 'u8[524288]{0}', space=vmem, size = 0x80000, scoped, tag = 'input window, operand 5, single buffered']
    #allocation14 [shape = 's32[1]{0}', space=sflag, size = 0x4, scoped, tag = 'scoped memory for custom_bert_forward.2']
    %14 = vsyncpa [#allocation9], 0
    %15 = vsyncpa [#allocation11], 0
    %16 = vsyncpa [#allocation14], 0
    // Predicated region
    $region2: #{custom_bert_forward.2} parent=1 // pred_check
      _
    $region3: #{custom_bert_forward.2} parent=1 // pred_check_branch
      %18 = sbr.rel (0) target = $region5
    $region4: #{custom_bert_forward.2} parent=1 // pred_region
      _
    $region5: #{custom_bert_forward.2} parent=1 // pred_fallthru
      _
    // Predicated region
    $region6: #{custom_bert_forward.2} parent=1 // pred_check
      _
    $region7: #{custom_bert_forward.2} parent=1 // pred_check_branch
      %20 = sbr.rel (0) target = $region9
    $region8: #{custom_bert_forward.2} parent=1 // pred_region
      %22 = vsyncadd [#allocation9], 0
      %s23 = sshll.u32 %s1, 4
      %s24 = int_to_ptr.hbm [resolvable:$true] %s23
      %s25 = sshll.u32 [#allocation8], 4
      %s26 = int_to_ptr.vmem [resolvable:$true] %s25
      %31 = dma.hbm_to_vmem [thread:$0]  %s24, 8192, %s26, [#allocation9], 512, 512, 32
    $region9: #{custom_bert_forward.2} parent=1 // pred_fallthru
      _
    // Predicated region
    $region10: #{custom_bert_forward.2} parent=1 // pred_check
      _
    $region11: #{custom_bert_forward.2} parent=1 // pred_check_branch
      %33 = sbr.rel (0) target = $region13
    $region12: #{custom_bert_forward.2} parent=1 // pred_region
      %35 = vsyncadd [#allocation11], 0
      %s36 = sshll.u32 %s2, 4
      %s37 = int_to_ptr.hbm [resolvable:$true] %s36
      %s38 = sshll.u32 [#allocation10], 4
      %s39 = int_to_ptr.vmem [resolvable:$true] %s38
      %44 = dma.hbm_to_vmem [thread:$0]  %s37, 16384, %s39, [#allocation11], 512, 512, 32
    $region13: #{custom_bert_forward.2} parent=1 // pred_fallthru
      _
    // Predicated region
    $region14: #{custom_bert_forward.2} parent=1 // pred_check
      _
    $region15: #{custom_bert_forward.2} parent=1 // pred_check_branch
      %46 = sbr.rel (0) target = $region17
    $region16: #{custom_bert_forward.2} parent=1 // pred_region
      _
    $region17: #{custom_bert_forward.2} parent=1 // pred_fallthru
      _
    // Predicated region
    $region18: #{custom_bert_forward.2} parent=1 // pred_check
      _
    $region19: #{custom_bert_forward.2} parent=1 // pred_check_branch
      %48 = sbr.rel (0) target = $region21
    $region20: #{custom_bert_forward.2} parent=1 // pred_region
      %50 = vsyncadd [#allocation11], 0
      %s51 = sshll.u32 %s4, 4
      %s52 = int_to_ptr.hbm [resolvable:$true] %s51
      %s53 = sshll.u32 [#allocation12], 4
      %s54 = int_to_ptr.vmem [resolvable:$true] %s53
      %59 = dma.hbm_to_vmem [thread:$0]  %s52, 8192, %s54, [#allocation11], 512, 512, 32
    $region21: #{custom_bert_forward.2} parent=1 // pred_fallthru
      _
    // Predicated region
    $region22: #{custom_bert_forward.2} parent=1 // pred_check
      _
    $region23: #{custom_bert_forward.2} parent=1 // pred_check_branch
      %61 = sbr.rel (0) target = $region25
    $region24: #{custom_bert_forward.2} parent=1 // pred_region
      %63 = vsyncadd [#allocation14], 0
      %s64 = sshll.u32 %s5, 4
      %s65 = int_to_ptr.hbm [resolvable:$true] %s64
      %s66 = sshll.u32 [#allocation13], 4
      %s67 = int_to_ptr.vmem [resolvable:$true] %s66
      %72 = dma.hbm_to_vmem [thread:$0]  %s65, 16384, %s67, [#allocation14], 512, 512, 32
    $region25: #{custom_bert_forward.2} parent=1 // pred_fallthru
      _
    // Predicated region
    $region26: #{custom_bert_forward.2} parent=1 // pred_check
      _
    $region27: #{custom_bert_forward.2} parent=1 // pred_check_branch
      %74 = sbr.rel (0) target = $region29
    $region28: #{custom_bert_forward.2} parent=1 // pred_region
      _
    $region29: #{custom_bert_forward.2} parent=1 // pred_fallthru
      _
    // Predicated region
    $region30: #{custom_bert_forward.2} parent=1 // pred_check
      _
    $region31: #{custom_bert_forward.2} parent=1 // pred_check_branch
      %76 = sbr.rel (0) target = $region33
    $region32: #{custom_bert_forward.2} parent=1 // pred_region
      %78 = dma.done [#allocation9], 8192
    $region33: #{custom_bert_forward.2} parent=1 // pred_fallthru
      _
    // Predicated region
    $region34: #{custom_bert_forward.2} parent=1 // pred_check
      _
    $region35: #{custom_bert_forward.2} parent=1 // pred_check_branch
      %80 = sbr.rel (0) target = $region37
    $region36: #{custom_bert_forward.2} parent=1 // pred_region
      %82 = dma.done [#allocation11], 16384
    $region37: #{custom_bert_forward.2} parent=1 // pred_fallthru
      _
    // Predicated region
    $region38: #{custom_bert_forward.2} parent=1 // pred_check
      _
    $region39: #{custom_bert_forward.2} parent=1 // pred_check_branch
      %84 = sbr.rel (0) target = $region41
    $region40: #{custom_bert_forward.2} parent=1 // pred_region
      %86 = dma.done [#allocation11], 8192
    $region41: #{custom_bert_forward.2} parent=1 // pred_fallthru
      _
    // Predicated region
    $region42: #{custom_bert_forward.2} parent=1 // pred_check
      _
    $region43: #{custom_bert_forward.2} parent=1 // pred_check_branch
      %88 = sbr.rel (0) target = $region45
    $region44: #{custom_bert_forward.2} parent=1 // pred_region
      %90 = dma.done [#allocation14], 16384
    $region45: #{custom_bert_forward.2} parent=1 // pred_fallthru
      _
    %v91 = vld [vmem:[%s0] sm:$0xf]
    %v92 = vld [vmem:[%s0 + $0x4] sm:$0xf]
    %v93 = vld [vmem:[%s0 + $0x8] sm:$0xf]
    %v94 = vld [vmem:[%s0 + $0xc] sm:$0xf]
    %v95 = vld [vmem:[%s0 + $0x10] sm:$0xf]
    %v96 = vld [vmem:[%s0 + $0x14] sm:$0xf]
    %v97 = vld [vmem:[%s0 + $0x18] sm:$0xf]
    %v98 = vld [vmem:[%s0 + $0x1c] sm:$0xf]
    %v99 = vld [vmem:[#allocation8] sm:$0xff]
    %v100 = vld [vmem:[#allocation8 + $0x8] sm:$0xff]
    %v101 = vld [vmem:[#allocation8 + $0x10] sm:$0xff]
    %v102 = vld [vmem:[#allocation8 + $0x18] sm:$0xff]
    %v103 = vld [vmem:[#allocation8 + $0x20] sm:$0xff]
    %v104 = vld [vmem:[#allocation8 + $0x28] sm:$0xff]
    %v105 = vld [vmem:[#allocation8 + $0x30] sm:$0xff]
    %v106 = vld [vmem:[#allocation8 + $0x38] sm:$0xff]
    %v107 = vld [vmem:[#allocation8 + $0x40] sm:$0xff]
    %v108 = vld [vmem:[#allocation8 + $0x48] sm:$0xff]
    %v109 = vld [vmem:[#allocation8 + $0x50] sm:$0xff]
    %v110 = vld [vmem:[#allocation8 + $0x58] sm:$0xff]
    %v111 = vld [vmem:[#allocation8 + $0x60] sm:$0xff]
    %v112 = vld [vmem:[#allocation8 + $0x68] sm:$0xff]
    %v113 = vld [vmem:[#allocation8 + $0x70] sm:$0xff]
    %v114 = vld [vmem:[#allocation8 + $0x78] sm:$0xff]
    %v115 = vld [vmem:[#allocation8 + $0x80] sm:$0xff]
    %v116 = vld [vmem:[#allocation8 + $0x88] sm:$0xff]
    %v117 = vld [vmem:[#allocation8 + $0x90] sm:$0xff]
    %v118 = vld [vmem:[#allocation8 + $0x98] sm:$0xff]
    %v119 = vld [vmem:[#allocation8 + $0xa0] sm:$0xff]
    %v120 = vld [vmem:[#allocation8 + $0xa8] sm:$0xff]
    %v121 = vld [vmem:[#allocation8 + $0xb0] sm:$0xff]
    %v122 = vld [vmem:[#allocation8 + $0xb8] sm:$0xff]
    %v123 = vld [vmem:[#allocation8 + $0xc0] sm:$0xff]
    %v124 = vld [vmem:[#allocation8 + $0xc8] sm:$0xff]
    %v125 = vld [vmem:[#allocation8 + $0xd0] sm:$0xff]
    %v126 = vld [vmem:[#allocation8 + $0xd8] sm:$0xff]
    %v127 = vld [vmem:[#allocation8 + $0xe0] sm:$0xff]
    %v128 = vld [vmem:[#allocation8 + $0xe8] sm:$0xff]
    %v129 = vld [vmem:[#allocation8 + $0xf0] sm:$0xff]
    %v130 = vld [vmem:[#allocation8 + $0xf8] sm:$0xff]
    %v131 = vld [vmem:[#allocation8 + $0x100] sm:$0xff]
    %v132 = vld [vmem:[#allocation8 + $0x108] sm:$0xff]
    %v133 = vld [vmem:[#allocation8 + $0x110] sm:$0xff]
    %v134 = vld [vmem:[#allocation8 + $0x118] sm:$0xff]
    %v135 = vld [vmem:[#allocation8 + $0x120] sm:$0xff]
    %v136 = vld [vmem:[#allocation8 + $0x128] sm:$0xff]
    %v137 = vld [vmem:[#allocation8 + $0x130] sm:$0xff]
    %v138 = vld [vmem:[#allocation8 + $0x138] sm:$0xff]
    %v139 = vld [vmem:[#allocation8 + $0x140] sm:$0xff]
    %v140 = vld [vmem:[#allocation8 + $0x148] sm:$0xff]
    %v141 = vld [vmem:[#allocation8 + $0x150] sm:$0xff]
    %v142 = vld [vmem:[#allocation8 + $0x158] sm:$0xff]
    %v143 = vld [vmem:[#allocation8 + $0x160] sm:$0xff]
    %v144 = vld [vmem:[#allocation8 + $0x168] sm:$0xff]
    %v145 = vld [vmem:[#allocation8 + $0x170] sm:$0xff]
    %v146 = vld [vmem:[#allocation8 + $0x178] sm:$0xff]
    %v147 = vld [vmem:[#allocation8 + $0x180] sm:$0xff]
    %v148 = vld [vmem:[#allocation8 + $0x188] sm:$0xff]
    %v149 = vld [vmem:[#allocation8 + $0x190] sm:$0xff]
    %v150 = vld [vmem:[#allocation8 + $0x198] sm:$0xff]
    %v151 = vld [vmem:[#allocation8 + $0x1a0] sm:$0xff]
    %v152 = vld [vmem:[#allocation8 + $0x1a8] sm:$0xff]
    %v153 = vld [vmem:[#allocation8 + $0x1b0] sm:$0xff]
    %v154 = vld [vmem:[#allocation8 + $0x1b8] sm:$0xff]
    %v155 = vld [vmem:[#allocation8 + $0x1c0] sm:$0xff]
    %v156 = vld [vmem:[#allocation8 + $0x1c8] sm:$0xff]
    %v157 = vld [vmem:[#allocation8 + $0x1d0] sm:$0xff]
    %v158 = vld [vmem:[#allocation8 + $0x1d8] sm:$0xff]
    %v159 = vld [vmem:[#allocation8 + $0x1e0] sm:$0xff]
    %v160 = vld [vmem:[#allocation8 + $0x1e8] sm:$0xff]
    %v161 = vld [vmem:[#allocation8 + $0x1f0] sm:$0xff]
    %v162 = vld [vmem:[#allocation8 + $0x1f8] sm:$0xff]
    %v163 = vld [vmem:[%s3] sm:$0xff]
    %v165 = vperm.slane %v163, 0
    %v166 = vperm.slane %v163, 1
    %v167 = vperm.slane %v163, 2
    %v168 = vperm.slane %v163, 3
    %v169 = vperm.slane %v163, 4
    %v170 = vperm.slane %v163, 5
    %v171 = vperm.slane %v163, 6
    %v172 = vperm.slane %v163, 7
    %v189 = vunpack.c.l.b16 %v91
    %v190 = vunpack.c.l.b16 %v92
    %v191 = vunpack.c.l.b16 %v93
    %v192 = vunpack.c.l.b16 %v94
    %v193 = vunpack.c.l.b16 %v95
    %v194 = vunpack.c.l.b16 %v96
    %v195 = vunpack.c.l.b16 %v97
    %v196 = vunpack.c.l.b16 %v98
    %v197 = vpack.c.b16 %v190, %v189
    %v198 = vpack.c.b16 %v192, %v191
    %v199 = vpack.c.b16 %v194, %v193
    %v200 = vpack.c.b16 %v196, %v195
    %v269 = vunpack.c.l.b16 %v99
    %v270 = vunpack.c.h.b16 %v99
    %v271 = vunpack.c.l.b16 %v100
    %v272 = vunpack.c.h.b16 %v100
    %v273 = vunpack.c.l.b16 %v101
    %v274 = vunpack.c.h.b16 %v101
    %v275 = vunpack.c.l.b16 %v102
    %v276 = vunpack.c.h.b16 %v102
    %v277 = vunpack.c.l.b16 %v103
    %v278 = vunpack.c.h.b16 %v103
    %v279 = vunpack.c.l.b16 %v104
    %v280 = vunpack.c.h.b16 %v104
    %v281 = vunpack.c.l.b16 %v105
    %v282 = vunpack.c.h.b16 %v105
    %v283 = vunpack.c.l.b16 %v106
    %v284 = vunpack.c.h.b16 %v106
    %v285 = vunpack.c.l.b16 %v107
    %v286 = vunpack.c.h.b16 %v107
    %v287 = vunpack.c.l.b16 %v108
    %v288 = vunpack.c.h.b16 %v108
    %v289 = vunpack.c.l.b16 %v109
    %v290 = vunpack.c.h.b16 %v109
    %v291 = vunpack.c.l.b16 %v110
    %v292 = vunpack.c.h.b16 %v110
    %v293 = vunpack.c.l.b16 %v111
    %v294 = vunpack.c.h.b16 %v111
    %v295 = vunpack.c.l.b16 %v112
    %v296 = vunpack.c.h.b16 %v112
    %v297 = vunpack.c.l.b16 %v113
    %v298 = vunpack.c.h.b16 %v113
    %v299 = vunpack.c.l.b16 %v114
    %v300 = vunpack.c.h.b16 %v114
    %v301 = vunpack.c.l.b16 %v115
    %v302 = vunpack.c.h.b16 %v115
    %v303 = vunpack.c.l.b16 %v116
    %v304 = vunpack.c.h.b16 %v116
    %v305 = vunpack.c.l.b16 %v117
    %v306 = vunpack.c.h.b16 %v117
    %v307 = vunpack.c.l.b16 %v118
    %v308 = vunpack.c.h.b16 %v118
    %v309 = vunpack.c.l.b16 %v119
    %v310 = vunpack.c.h.b16 %v119
    %v311 = vunpack.c.l.b16 %v120
    %v312 = vunpack.c.h.b16 %v120
    %v313 = vunpack.c.l.b16 %v121
    %v314 = vunpack.c.h.b16 %v121
    %v315 = vunpack.c.l.b16 %v122
    %v316 = vunpack.c.h.b16 %v122
    %v317 = vunpack.c.l.b16 %v123
    %v318 = vunpack.c.h.b16 %v123
    %v319 = vunpack.c.l.b16 %v124
    %v320 = vunpack.c.h.b16 %v124
    %v321 = vunpack.c.l.b16 %v125
    %v322 = vunpack.c.h.b16 %v125
    %v323 = vunpack.c.l.b16 %v126
    %v324 = vunpack.c.h.b16 %v126
    %v325 = vunpack.c.l.b16 %v127
    %v326 = vunpack.c.h.b16 %v127
    %v327 = vunpack.c.l.b16 %v128
    %v328 = vunpack.c.h.b16 %v128
    %v329 = vunpack.c.l.b16 %v129
    %v330 = vunpack.c.h.b16 %v129
    %v331 = vunpack.c.l.b16 %v130
    %v332 = vunpack.c.h.b16 %v130
    %v333 = vunpack.c.l.b16 %v131
    %v334 = vunpack.c.h.b16 %v131
    %v335 = vunpack.c.l.b16 %v132
    %v336 = vunpack.c.h.b16 %v132
    %v337 = vunpack.c.l.b16 %v133
    %v338 = vunpack.c.h.b16 %v133
    %v339 = vunpack.c.l.b16 %v134
    %v340 = vunpack.c.h.b16 %v134
    %v341 = vunpack.c.l.b16 %v135
    %v342 = vunpack.c.h.b16 %v135
    %v343 = vunpack.c.l.b16 %v136
    %v344 = vunpack.c.h.b16 %v136
    %v345 = vunpack.c.l.b16 %v137
    %v346 = vunpack.c.h.b16 %v137
    %v347 = vunpack.c.l.b16 %v138
    %v348 = vunpack.c.h.b16 %v138
    %v349 = vunpack.c.l.b16 %v139
    %v350 = vunpack.c.h.b16 %v139
    %v351 = vunpack.c.l.b16 %v140
    %v352 = vunpack.c.h.b16 %v140
    %v353 = vunpack.c.l.b16 %v141
    %v354 = vunpack.c.h.b16 %v141
    %v355 = vunpack.c.l.b16 %v142
    %v356 = vunpack.c.h.b16 %v142
    %v357 = vunpack.c.l.b16 %v143
    %v358 = vunpack.c.h.b16 %v143
    %v359 = vunpack.c.l.b16 %v144
    %v360 = vunpack.c.h.b16 %v144
    %v361 = vunpack.c.l.b16 %v145
    %v362 = vunpack.c.h.b16 %v145
    %v363 = vunpack.c.l.b16 %v146
    %v364 = vunpack.c.h.b16 %v146
    %v365 = vunpack.c.l.b16 %v147
    %v366 = vunpack.c.h.b16 %v147
    %v367 = vunpack.c.l.b16 %v148
    %v368 = vunpack.c.h.b16 %v148
    %v369 = vunpack.c.l.b16 %v149
    %v370 = vunpack.c.h.b16 %v149
    %v371 = vunpack.c.l.b16 %v150
    %v372 = vunpack.c.h.b16 %v150
    %v373 = vunpack.c.l.b16 %v151
    %v374 = vunpack.c.h.b16 %v151
    %v375 = vunpack.c.l.b16 %v152
    %v376 = vunpack.c.h.b16 %v152
    %v377 = vunpack.c.l.b16 %v153
    %v378 = vunpack.c.h.b16 %v153
    %v379 = vunpack.c.l.b16 %v154
    %v380 = vunpack.c.h.b16 %v154
    %v381 = vunpack.c.l.b16 %v155
    %v382 = vunpack.c.h.b16 %v155
    %v383 = vunpack.c.l.b16 %v156
    %v384 = vunpack.c.h.b16 %v156
    %v385 = vunpack.c.l.b16 %v157
    %v386 = vunpack.c.h.b16 %v157
    %v387 = vunpack.c.l.b16 %v158
    %v388 = vunpack.c.h.b16 %v158
    %v389 = vunpack.c.l.b16 %v159
    %v390 = vunpack.c.h.b16 %v159
    %v391 = vunpack.c.l.b16 %v160
    %v392 = vunpack.c.h.b16 %v160
    %v393 = vunpack.c.l.b16 %v161
    %v394 = vunpack.c.h.b16 %v161
    %v395 = vunpack.c.l.b16 %v162
    %v396 = vunpack.c.h.b16 %v162
    %v397 = vpack.c.b16 %v277, %v269
    %v398 = vpack.c.b16 %v278, %v270
    %v399 = vpack.c.b16 %v279, %v271
    %v400 = vpack.c.b16 %v280, %v272
    %v401 = vpack.c.b16 %v281, %v273
    %v402 = vpack.c.b16 %v282, %v274
    %v403 = vpack.c.b16 %v283, %v275
    %v404 = vpack.c.b16 %v284, %v276
    %v405 = vpack.c.b16 %v293, %v285
    %v406 = vpack.c.b16 %v294, %v286
    %v407 = vpack.c.b16 %v295, %v287
    %v408 = vpack.c.b16 %v296, %v288
    %v409 = vpack.c.b16 %v297, %v289
    %v410 = vpack.c.b16 %v298, %v290
    %v411 = vpack.c.b16 %v299, %v291
    %v412 = vpack.c.b16 %v300, %v292
    %v413 = vpack.c.b16 %v309, %v301
    %v414 = vpack.c.b16 %v310, %v302
    %v415 = vpack.c.b16 %v311, %v303
    %v416 = vpack.c.b16 %v312, %v304
    %v417 = vpack.c.b16 %v313, %v305
    %v418 = vpack.c.b16 %v314, %v306
    %v419 = vpack.c.b16 %v315, %v307
    %v420 = vpack.c.b16 %v316, %v308
    %v421 = vpack.c.b16 %v325, %v317
    %v422 = vpack.c.b16 %v326, %v318
    %v423 = vpack.c.b16 %v327, %v319
    %v424 = vpack.c.b16 %v328, %v320
    %v425 = vpack.c.b16 %v329, %v321
    %v426 = vpack.c.b16 %v330, %v322
    %v427 = vpack.c.b16 %v331, %v323
    %v428 = vpack.c.b16 %v332, %v324
    %v429 = vpack.c.b16 %v341, %v333
    %v430 = vpack.c.b16 %v342, %v334
    %v431 = vpack.c.b16 %v343, %v335
    %v432 = vpack.c.b16 %v344, %v336
    %v433 = vpack.c.b16 %v345, %v337
    %v434 = vpack.c.b16 %v346, %v338
    %v435 = vpack.c.b16 %v347, %v339
    %v436 = vpack.c.b16 %v348, %v340
    %v437 = vpack.c.b16 %v357, %v349
    %v438 = vpack.c.b16 %v358, %v350
    %v439 = vpack.c.b16 %v359, %v351
    %v440 = vpack.c.b16 %v360, %v352
    %v441 = vpack.c.b16 %v361, %v353
    %v442 = vpack.c.b16 %v362, %v354
    %v443 = vpack.c.b16 %v363, %v355
    %v444 = vpack.c.b16 %v364, %v356
    %v445 = vpack.c.b16 %v373, %v365
    %v446 = vpack.c.b16 %v374, %v366
    %v447 = vpack.c.b16 %v375, %v367
    %v448 = vpack.c.b16 %v376, %v368
    %v449 = vpack.c.b16 %v377, %v369
    %v450 = vpack.c.b16 %v378, %v370
    %v451 = vpack.c.b16 %v379, %v371
    %v452 = vpack.c.b16 %v380, %v372
    %v453 = vpack.c.b16 %v389, %v381
    %v454 = vpack.c.b16 %v390, %v382
    %v455 = vpack.c.b16 %v391, %v383
    %v456 = vpack.c.b16 %v392, %v384
    %v457 = vpack.c.b16 %v393, %v385
    %v458 = vpack.c.b16 %v394, %v386
    %v459 = vpack.c.b16 %v395, %v387
    %v460 = vpack.c.b16 %v396, %v388
    %525 = vmatpush.bf16.msra.mxu0 %v453
    %526 = vmatpush.bf16.msra.mxu0 %v445
    %527 = vmatpush.bf16.msra.mxu0 %v437
    %528 = vmatpush.bf16.msra.mxu0 %v429
    %529 = vmatpush.bf16.msra.mxu0 %v421
    %530 = vmatpush.bf16.msra.mxu0 %v413
    %531 = vmatpush.bf16.msra.mxu0 %v405
    %532 = vmatpush.bf16.msra.mxu0 %v397
    %533 = vmatmul.bf16.gmra.mxu0 %v197
    %v534 = vpop.f32.mrf.mxu0
    %v535 = vadd.f32 %v165, %v534
    %v536 = vpop.f32.mrf.mxu0
    %v537 = vadd.f32 %v165, %v536
    %538 = vmatmul.bf16.gmra.mxu0 %v198
    %v539 = vpop.f32.mrf.mxu0
    %v540 = vadd.f32 %v165, %v539
    %v541 = vpop.f32.mrf.mxu0
    %v542 = vadd.f32 %v165, %v541
    %543 = vmatmul.bf16.gmra.mxu0 %v199
    %v544 = vpop.f32.mrf.mxu0
    %v545 = vadd.f32 %v165, %v544
    %v546 = vpop.f32.mrf.mxu0
    %v547 = vadd.f32 %v165, %v546
    %548 = vmatmul.bf16.gmra.mxu0 %v200
    %v549 = vpop.f32.mrf.mxu0
    %v550 = vadd.f32 %v165, %v549
    %v551 = vpop.f32.mrf.mxu0
    %v552 = vadd.f32 %v165, %v551
    %553 = vdwg.mxu0
    %554 = vmatpush.bf16.msra.mxu0 %v454
    %555 = vmatpush.bf16.msra.mxu0 %v446
    %556 = vmatpush.bf16.msra.mxu0 %v438
    %557 = vmatpush.bf16.msra.mxu0 %v430
    %558 = vmatpush.bf16.msra.mxu0 %v422
    %559 = vmatpush.bf16.msra.mxu0 %v414
    %560 = vmatpush.bf16.msra.mxu0 %v406
    %561 = vmatpush.bf16.msra.mxu0 %v398
    %562 = vmatmul.bf16.gmra.mxu0 %v197
    %v563 = vpop.f32.mrf.mxu0
    %v564 = vadd.f32 %v166, %v563
    %v565 = vpop.f32.mrf.mxu0
    %v566 = vadd.f32 %v166, %v565
    %567 = vmatmul.bf16.gmra.mxu0 %v198
    %v568 = vpop.f32.mrf.mxu0
    %v569 = vadd.f32 %v166, %v568
    %v570 = vpop.f32.mrf.mxu0
    %v571 = vadd.f32 %v166, %v570
    %572 = vmatmul.bf16.gmra.mxu0 %v199
    %v573 = vpop.f32.mrf.mxu0
    %v574 = vadd.f32 %v166, %v573
    %v575 = vpop.f32.mrf.mxu0
    %v576 = vadd.f32 %v166, %v575
    %577 = vmatmul.bf16.gmra.mxu0 %v200
    %v578 = vpop.f32.mrf.mxu0
    %v579 = vadd.f32 %v166, %v578
    %v580 = vpop.f32.mrf.mxu0
    %v581 = vadd.f32 %v166, %v580
    %582 = vdwg.mxu0
    %583 = vmatpush.bf16.msra.mxu0 %v455
    %584 = vmatpush.bf16.msra.mxu0 %v447
    %585 = vmatpush.bf16.msra.mxu0 %v439
    %586 = vmatpush.bf16.msra.mxu0 %v431
    %587 = vmatpush.bf16.msra.mxu0 %v423
    %588 = vmatpush.bf16.msra.mxu0 %v415
    %589 = vmatpush.bf16.msra.mxu0 %v407
    %590 = vmatpush.bf16.msra.mxu0 %v399
    %591 = vmatmul.bf16.gmra.mxu0 %v197
    %v592 = vpop.f32.mrf.mxu0
    %v593 = vadd.f32 %v167, %v592
    %v594 = vpop.f32.mrf.mxu0
    %v595 = vadd.f32 %v167, %v594
    %596 = vmatmul.bf16.gmra.mxu0 %v198
    %v597 = vpop.f32.mrf.mxu0
    %v598 = vadd.f32 %v167, %v597
    %v599 = vpop.f32.mrf.mxu0
    %v600 = vadd.f32 %v167, %v599
    %601 = vmatmul.bf16.gmra.mxu0 %v199
    %v602 = vpop.f32.mrf.mxu0
    %v603 = vadd.f32 %v167, %v602
    %v604 = vpop.f32.mrf.mxu0
    %v605 = vadd.f32 %v167, %v604
    %606 = vmatmul.bf16.gmra.mxu0 %v200
    %v607 = vpop.f32.mrf.mxu0
    %v608 = vadd.f32 %v167, %v607
    %v609 = vpop.f32.mrf.mxu0
    %v610 = vadd.f32 %v167, %v609
    %611 = vdwg.mxu0
    %612 = vmatpush.bf16.msra.mxu0 %v456
    %613 = vmatpush.bf16.msra.mxu0 %v448
    %614 = vmatpush.bf16.msra.mxu0 %v440
    %615 = vmatpush.bf16.msra.mxu0 %v432
    %616 = vmatpush.bf16.msra.mxu0 %v424
    %617 = vmatpush.bf16.msra.mxu0 %v416
    %618 = vmatpush.bf16.msra.mxu0 %v408
    %619 = vmatpush.bf16.msra.mxu0 %v400
    %620 = vmatmul.bf16.gmra.mxu0 %v197
    %v621 = vpop.f32.mrf.mxu0
    %v622 = vadd.f32 %v168, %v621
    %v623 = vpop.f32.mrf.mxu0
    %v624 = vadd.f32 %v168, %v623
    %625 = vmatmul.bf16.gmra.mxu0 %v198
    %v626 = vpop.f32.mrf.mxu0
    %v627 = vadd.f32 %v168, %v626
    %v628 = vpop.f32.mrf.mxu0
    %v629 = vadd.f32 %v168, %v628
    %630 = vmatmul.bf16.gmra.mxu0 %v199
    %v631 = vpop.f32.mrf.mxu0
    %v632 = vadd.f32 %v168, %v631
    %v633 = vpop.f32.mrf.mxu0
    %v634 = vadd.f32 %v168, %v633
    %635 = vmatmul.bf16.gmra.mxu0 %v200
    %v636 = vpop.f32.mrf.mxu0
    %v637 = vadd.f32 %v168, %v636
    %v638 = vpop.f32.mrf.mxu0
    %v639 = vadd.f32 %v168, %v638
    %640 = vdwg.mxu0
    %641 = vmatpush.bf16.msra.mxu0 %v457
    %642 = vmatpush.bf16.msra.mxu0 %v449
    %643 = vmatpush.bf16.msra.mxu0 %v441
    %644 = vmatpush.bf16.msra.mxu0 %v433
    %645 = vmatpush.bf16.msra.mxu0 %v425
    %646 = vmatpush.bf16.msra.mxu0 %v417
    %647 = vmatpush.bf16.msra.mxu0 %v409
    %648 = vmatpush.bf16.msra.mxu0 %v401
    %649 = vmatmul.bf16.gmra.mxu0 %v197
    %v650 = vpop.f32.mrf.mxu0
    %v651 = vadd.f32 %v169, %v650
    %v652 = vpop.f32.mrf.mxu0
    %v653 = vadd.f32 %v169, %v652
    %654 = vmatmul.bf16.gmra.mxu0 %v198
    %v655 = vpop.f32.mrf.mxu0
    %v656 = vadd.f32 %v169, %v655
    %v657 = vpop.f32.mrf.mxu0
    %v658 = vadd.f32 %v169, %v657
    %659 = vmatmul.bf16.gmra.mxu0 %v199
    %v660 = vpop.f32.mrf.mxu0
    %v661 = vadd.f32 %v169, %v660
    %v662 = vpop.f32.mrf.mxu0
    %v663 = vadd.f32 %v169, %v662
    %664 = vmatmul.bf16.gmra.mxu0 %v200
    %v665 = vpop.f32.mrf.mxu0
    %v666 = vadd.f32 %v169, %v665
    %v667 = vpop.f32.mrf.mxu0
    %v668 = vadd.f32 %v169, %v667
    %669 = vdwg.mxu0
    %670 = vmatpush.bf16.msra.mxu0 %v458
    %671 = vmatpush.bf16.msra.mxu0 %v450
    %672 = vmatpush.bf16.msra.mxu0 %v442
    %673 = vmatpush.bf16.msra.mxu0 %v434
    %674 = vmatpush.bf16.msra.mxu0 %v426
    %675 = vmatpush.bf16.msra.mxu0 %v418
    %676 = vmatpush.bf16.msra.mxu0 %v410
    %677 = vmatpush.bf16.msra.mxu0 %v402
    %678 = vmatmul.bf16.gmra.mxu0 %v197
    %v679 = vpop.f32.mrf.mxu0
    %v680 = vadd.f32 %v170, %v679
    %v681 = vpop.f32.mrf.mxu0
    %v682 = vadd.f32 %v170, %v681
    %683 = vmatmul.bf16.gmra.mxu0 %v198
    %v684 = vpop.f32.mrf.mxu0
    %v685 = vadd.f32 %v170, %v684
    %v686 = vpop.f32.mrf.mxu0
    %v687 = vadd.f32 %v170, %v686
    %688 = vmatmul.bf16.gmra.mxu0 %v199
    %v689 = vpop.f32.mrf.mxu0
    %v690 = vadd.f32 %v170, %v689
    %v691 = vpop.f32.mrf.mxu0
    %v692 = vadd.f32 %v170, %v691
    %693 = vmatmul.bf16.gmra.mxu0 %v200
    %v694 = vpop.f32.mrf.mxu0
    %v695 = vadd.f32 %v170, %v694
    %v696 = vpop.f32.mrf.mxu0
    %v697 = vadd.f32 %v170, %v696
    %698 = vdwg.mxu0
    %699 = vmatpush.bf16.msra.mxu0 %v459
    %700 = vmatpush.bf16.msra.mxu0 %v451
    %701 = vmatpush.bf16.msra.mxu0 %v443
    %702 = vmatpush.bf16.msra.mxu0 %v435
    %703 = vmatpush.bf16.msra.mxu0 %v427
    %704 = vmatpush.bf16.msra.mxu0 %v419
    %705 = vmatpush.bf16.msra.mxu0 %v411
    %706 = vmatpush.bf16.msra.mxu0 %v403
    %707 = vmatmul.bf16.gmra.mxu0 %v197
    %v708 = vpop.f32.mrf.mxu0
    %v709 = vadd.f32 %v171, %v708
    %v710 = vpop.f32.mrf.mxu0
    %v711 = vadd.f32 %v171, %v710
    %712 = vmatmul.bf16.gmra.mxu0 %v198
    %v713 = vpop.f32.mrf.mxu0
    %v714 = vadd.f32 %v171, %v713
    %v715 = vpop.f32.mrf.mxu0
    %v716 = vadd.f32 %v171, %v715
    %717 = vmatmul.bf16.gmra.mxu0 %v199
    %v718 = vpop.f32.mrf.mxu0
    %v719 = vadd.f32 %v171, %v718
    %v720 = vpop.f32.mrf.mxu0
    %v721 = vadd.f32 %v171, %v720
    %722 = vmatmul.bf16.gmra.mxu0 %v200
    %v723 = vpop.f32.mrf.mxu0
    %v724 = vadd.f32 %v171, %v723
    %v725 = vpop.f32.mrf.mxu0
    %v726 = vadd.f32 %v171, %v725
    %727 = vdwg.mxu0
    %728 = vmatpush.bf16.msra.mxu0 %v460
    %729 = vmatpush.bf16.msra.mxu0 %v452
    %730 = vmatpush.bf16.msra.mxu0 %v444
    %731 = vmatpush.bf16.msra.mxu0 %v436
    %732 = vmatpush.bf16.msra.mxu0 %v428
    %733 = vmatpush.bf16.msra.mxu0 %v420
    %734 = vmatpush.bf16.msra.mxu0 %v412
    %735 = vmatpush.bf16.msra.mxu0 %v404
    %736 = vmatmul.bf16.gmra.mxu0 %v197
    %v737 = vpop.f32.mrf.mxu0
    %v738 = vadd.f32 %v172, %v737
    %v739 = vpop.f32.mrf.mxu0
    %v740 = vadd.f32 %v172, %v739
    %741 = vmatmul.bf16.gmra.mxu0 %v198
    %v742 = vpop.f32.mrf.mxu0
    %v743 = vadd.f32 %v172, %v742
    %v744 = vpop.f32.mrf.mxu0
    %v745 = vadd.f32 %v172, %v744
    %746 = vmatmul.bf16.gmra.mxu0 %v199
    %v747 = vpop.f32.mrf.mxu0
    %v748 = vadd.f32 %v172, %v747
    %v749 = vpop.f32.mrf.mxu0
    %v750 = vadd.f32 %v172, %v749
    %751 = vmatmul.bf16.gmra.mxu0 %v200
    %v752 = vpop.f32.mrf.mxu0
    %v753 = vadd.f32 %v172, %v752
    %v754 = vpop.f32.mrf.mxu0
    %v755 = vadd.f32 %v172, %v754
    %756 = vdwg.mxu0
    %757 = vst [vmem:[#allocation2] sm:$0xff] %v535
    %758 = vst [vmem:[#allocation2 + $0x8] sm:$0xff] %v564
    %759 = vst [vmem:[#allocation2 + $0x10] sm:$0xff] %v593
    %760 = vst [vmem:[#allocation2 + $0x18] sm:$0xff] %v622
    %761 = vst [vmem:[#allocation2 + $0x20] sm:$0xff] %v651
    %762 = vst [vmem:[#allocation2 + $0x28] sm:$0xff] %v680
    %763 = vst [vmem:[#allocation2 + $0x30] sm:$0xff] %v709
    %764 = vst [vmem:[#allocation2 + $0x38] sm:$0xff] %v738
    %765 = vst [vmem:[#allocation2 + $0x40] sm:$0xff] %v537
    %766 = vst [vmem:[#allocation2 + $0x48] sm:$0xff] %v566
    %767 = vst [vmem:[#allocation2 + $0x50] sm:$0xff] %v595
    %768 = vst [vmem:[#allocation2 + $0x58] sm:$0xff] %v624
    %769 = vst [vmem:[#allocation2 + $0x60] sm:$0xff] %v653
    %770 = vst [vmem:[#allocation2 + $0x68] sm:$0xff] %v682
    %771 = vst [vmem:[#allocation2 + $0x70] sm:$0xff] %v711
    %772 = vst [vmem:[#allocation2 + $0x78] sm:$0xff] %v740
    %773 = vst [vmem:[#allocation2 + $0x80] sm:$0xff] %v540
    %774 = vst [vmem:[#allocation2 + $0x88] sm:$0xff] %v569
    %775 = vst [vmem:[#allocation2 + $0x90] sm:$0xff] %v598
    %776 = vst [vmem:[#allocation2 + $0x98] sm:$0xff] %v627
    %777 = vst [vmem:[#allocation2 + $0xa0] sm:$0xff] %v656
    %778 = vst [vmem:[#allocation2 + $0xa8] sm:$0xff] %v685
    %779 = vst [vmem:[#allocation2 + $0xb0] sm:$0xff] %v714
    %780 = vst [vmem:[#allocation2 + $0xb8] sm:$0xff] %v743
    %781 = vst [vmem:[#allocation2 + $0xc0] sm:$0xff] %v542
    %782 = vst [vmem:[#allocation2 + $0xc8] sm:$0xff] %v571
    %783 = vst [vmem:[#allocation2 + $0xd0] sm:$0xff] %v600
    %784 = vst [vmem:[#allocation2 + $0xd8] sm:$0xff] %v629
    %785 = vst [vmem:[#allocation2 + $0xe0] sm:$0xff] %v658
    %786 = vst [vmem:[#allocation2 + $0xe8] sm:$0xff] %v687
    %787 = vst [vmem:[#allocation2 + $0xf0] sm:$0xff] %v716
    %788 = vst [vmem:[#allocation2 + $0xf8] sm:$0xff] %v745
    %789 = vst [vmem:[#allocation2 + $0x100] sm:$0xff] %v545
    %790 = vst [vmem:[#allocation2 + $0x108] sm:$0xff] %v574
    %791 = vst [vmem:[#allocation2 + $0x110] sm:$0xff] %v603
    %792 = vst [vmem:[#allocation2 + $0x118] sm:$0xff] %v632
    %793 = vst [vmem:[#allocation2 + $0x120] sm:$0xff] %v661
    %794 = vst [vmem:[#allocation2 + $0x128] sm:$0xff] %v690
    %795 = vst [vmem:[#allocation2 + $0x130] sm:$0xff] %v719
    %796 = vst [vmem:[#allocation2 + $0x138] sm:$0xff] %v748
    %797 = vst [vmem:[#allocation2 + $0x140] sm:$0xff] %v547
    %798 = vst [vmem:[#allocation2 + $0x148] sm:$0xff] %v576
    %799 = vst [vmem:[#allocation2 + $0x150] sm:$0xff] %v605
    %800 = vst [vmem:[#allocation2 + $0x158] sm:$0xff] %v634
    %801 = vst [vmem:[#allocation2 + $0x160] sm:$0xff] %v663
    %802 = vst [vmem:[#allocation2 + $0x168] sm:$0xff] %v692
    %803 = vst [vmem:[#allocation2 + $0x170] sm:$0xff] %v721
    %804 = vst [vmem:[#allocation2 + $0x178] sm:$0xff] %v750
    %805 = vst [vmem:[#allocation2 + $0x180] sm:$0xff] %v550
    %806 = vst [vmem:[#allocation2 + $0x188] sm:$0xff] %v579
    %807 = vst [vmem:[#allocation2 + $0x190] sm:$0xff] %v608
    %808 = vst [vmem:[#allocation2 + $0x198] sm:$0xff] %v637
    %809 = vst [vmem:[#allocation2 + $0x1a0] sm:$0xff] %v666
    %810 = vst [vmem:[#allocation2 + $0x1a8] sm:$0xff] %v695
    %811 = vst [vmem:[#allocation2 + $0x1b0] sm:$0xff] %v724
    %812 = vst [vmem:[#allocation2 + $0x1b8] sm:$0xff] %v753
    %813 = vst [vmem:[#allocation2 + $0x1c0] sm:$0xff] %v552
    %814 = vst [vmem:[#allocation2 + $0x1c8] sm:$0xff] %v581
    %815 = vst [vmem:[#allocation2 + $0x1d0] sm:$0xff] %v610
    %816 = vst [vmem:[#allocation2 + $0x1d8] sm:$0xff] %v639
    %817 = vst [vmem:[#allocation2 + $0x1e0] sm:$0xff] %v668
    %818 = vst [vmem:[#allocation2 + $0x1e8] sm:$0xff] %v697
    %819 = vst [vmem:[#allocation2 + $0x1f0] sm:$0xff] %v726
    %820 = vst [vmem:[#allocation2 + $0x1f8] sm:$0xff] %v755
    %v821 = vld [vmem:[#allocation12] sm:$0xff]
    %v822 = vld [vmem:[#allocation12 + $0x8] sm:$0xff]
    %v823 = vld [vmem:[#allocation12 + $0x10] sm:$0xff]
    %v824 = vld [vmem:[#allocation12 + $0x18] sm:$0xff]
    %v825 = vld [vmem:[#allocation12 + $0x20] sm:$0xff]
    %v826 = vld [vmem:[#allocation12 + $0x28] sm:$0xff]
    %v827 = vld [vmem:[#allocation12 + $0x30] sm:$0xff]
    %v828 = vld [vmem:[#allocation12 + $0x38] sm:$0xff]
    %v829 = vld [vmem:[#allocation12 + $0x40] sm:$0xff]
    %v830 = vld [vmem:[#allocation12 + $0x48] sm:$0xff]
    %v831 = vld [vmem:[#allocation12 + $0x50] sm:$0xff]
    %v832 = vld [vmem:[#allocation12 + $0x58] sm:$0xff]
    %v833 = vld [vmem:[#allocation12 + $0x60] sm:$0xff]
    %v834 = vld [vmem:[#allocation12 + $0x68] sm:$0xff]
    %v835 = vld [vmem:[#allocation12 + $0x70] sm:$0xff]
    %v836 = vld [vmem:[#allocation12 + $0x78] sm:$0xff]
    %v837 = vld [vmem:[#allocation12 + $0x80] sm:$0xff]
    %v838 = vld [vmem:[#allocation12 + $0x88] sm:$0xff]
    %v839 = vld [vmem:[#allocation12 + $0x90] sm:$0xff]
    %v840 = vld [vmem:[#allocation12 + $0x98] sm:$0xff]
    %v841 = vld [vmem:[#allocation12 + $0xa0] sm:$0xff]
    %v842 = vld [vmem:[#allocation12 + $0xa8] sm:$0xff]
    %v843 = vld [vmem:[#allocation12 + $0xb0] sm:$0xff]
    %v844 = vld [vmem:[#allocation12 + $0xb8] sm:$0xff]
    %v845 = vld [vmem:[#allocation12 + $0xc0] sm:$0xff]
    %v846 = vld [vmem:[#allocation12 + $0xc8] sm:$0xff]
    %v847 = vld [vmem:[#allocation12 + $0xd0] sm:$0xff]
    %v848 = vld [vmem:[#allocation12 + $0xd8] sm:$0xff]
    %v849 = vld [vmem:[#allocation12 + $0xe0] sm:$0xff]
    %v850 = vld [vmem:[#allocation12 + $0xe8] sm:$0xff]
    %v851 = vld [vmem:[#allocation12 + $0xf0] sm:$0xff]
    %v852 = vld [vmem:[#allocation12 + $0xf8] sm:$0xff]
    %v853 = vld [vmem:[#allocation12 + $0x100] sm:$0xff]
    %v854 = vld [vmem:[#allocation12 + $0x108] sm:$0xff]
    %v855 = vld [vmem:[#allocation12 + $0x110] sm:$0xff]
    %v856 = vld [vmem:[#allocation12 + $0x118] sm:$0xff]
    %v857 = vld [vmem:[#allocation12 + $0x120] sm:$0xff]
    %v858 = vld [vmem:[#allocation12 + $0x128] sm:$0xff]
    %v859 = vld [vmem:[#allocation12 + $0x130] sm:$0xff]
    %v860 = vld [vmem:[#allocation12 + $0x138] sm:$0xff]
    %v861 = vld [vmem:[#allocation12 + $0x140] sm:$0xff]
    %v862 = vld [vmem:[#allocation12 + $0x148] sm:$0xff]
    %v863 = vld [vmem:[#allocation12 + $0x150] sm:$0xff]
    %v864 = vld [vmem:[#allocation12 + $0x158] sm:$0xff]
    %v865 = vld [vmem:[#allocation12 + $0x160] sm:$0xff]
    %v866 = vld [vmem:[#allocation12 + $0x168] sm:$0xff]
    %v867 = vld [vmem:[#allocation12 + $0x170] sm:$0xff]
    %v868 = vld [vmem:[#allocation12 + $0x178] sm:$0xff]
    %v869 = vld [vmem:[#allocation12 + $0x180] sm:$0xff]
    %v870 = vld [vmem:[#allocation12 + $0x188] sm:$0xff]
    %v871 = vld [vmem:[#allocation12 + $0x190] sm:$0xff]
    %v872 = vld [vmem:[#allocation12 + $0x198] sm:$0xff]
    %v873 = vld [vmem:[#allocation12 + $0x1a0] sm:$0xff]
    %v874 = vld [vmem:[#allocation12 + $0x1a8] sm:$0xff]
    %v875 = vld [vmem:[#allocation12 + $0x1b0] sm:$0xff]
    %v876 = vld [vmem:[#allocation12 + $0x1b8] sm:$0xff]
    %v877 = vld [vmem:[#allocation12 + $0x1c0] sm:$0xff]
    %v878 = vld [vmem:[#allocation12 + $0x1c8] sm:$0xff]
    %v879 = vld [vmem:[#allocation12 + $0x1d0] sm:$0xff]
    %v880 = vld [vmem:[#allocation12 + $0x1d8] sm:$0xff]
    %v881 = vld [vmem:[#allocation12 + $0x1e0] sm:$0xff]
    %v882 = vld [vmem:[#allocation12 + $0x1e8] sm:$0xff]
    %v883 = vld [vmem:[#allocation12 + $0x1f0] sm:$0xff]
    %v884 = vld [vmem:[#allocation12 + $0x1f8] sm:$0xff]
    %v885 = vld [vmem:[%s6] sm:$0xff]
    %v887 = vperm.slane %v885, 0
    %v888 = vperm.slane %v885, 1
    %v889 = vperm.slane %v885, 2
    %v890 = vperm.slane %v885, 3
    %v891 = vperm.slane %v885, 4
    %v892 = vperm.slane %v885, 5
    %v893 = vperm.slane %v885, 6
    %v894 = vperm.slane %v885, 7
    %v967 = vunpack.c.l.b16 %v821
    %v968 = vunpack.c.h.b16 %v821
    %v969 = vunpack.c.l.b16 %v822
    %v970 = vunpack.c.h.b16 %v822
    %v971 = vunpack.c.l.b16 %v823
    %v972 = vunpack.c.h.b16 %v823
    %v973 = vunpack.c.l.b16 %v824
    %v974 = vunpack.c.h.b16 %v824
    %v975 = vunpack.c.l.b16 %v825
    %v976 = vunpack.c.h.b16 %v825
    %v977 = vunpack.c.l.b16 %v826
    %v978 = vunpack.c.h.b16 %v826
    %v979 = vunpack.c.l.b16 %v827
    %v980 = vunpack.c.h.b16 %v827
    %v981 = vunpack.c.l.b16 %v828
    %v982 = vunpack.c.h.b16 %v828
    %v983 = vunpack.c.l.b16 %v829
    %v984 = vunpack.c.h.b16 %v829
    %v985 = vunpack.c.l.b16 %v830
    %v986 = vunpack.c.h.b16 %v830
    %v987 = vunpack.c.l.b16 %v831
    %v988 = vunpack.c.h.b16 %v831
    %v989 = vunpack.c.l.b16 %v832
    %v990 = vunpack.c.h.b16 %v832
    %v991 = vunpack.c.l.b16 %v833
    %v992 = vunpack.c.h.b16 %v833
    %v993 = vunpack.c.l.b16 %v834
    %v994 = vunpack.c.h.b16 %v834
    %v995 = vunpack.c.l.b16 %v835
    %v996 = vunpack.c.h.b16 %v835
    %v997 = vunpack.c.l.b16 %v836
    %v998 = vunpack.c.h.b16 %v836
    %v999 = vunpack.c.l.b16 %v837
    %v1000 = vunpack.c.h.b16 %v837
    %v1001 = vunpack.c.l.b16 %v838
    %v1002 = vunpack.c.h.b16 %v838
    %v1003 = vunpack.c.l.b16 %v839
    %v1004 = vunpack.c.h.b16 %v839
    %v1005 = vunpack.c.l.b16 %v840
    %v1006 = vunpack.c.h.b16 %v840
    %v1007 = vunpack.c.l.b16 %v841
    %v1008 = vunpack.c.h.b16 %v841
    %v1009 = vunpack.c.l.b16 %v842
    %v1010 = vunpack.c.h.b16 %v842
    %v1011 = vunpack.c.l.b16 %v843
    %v1012 = vunpack.c.h.b16 %v843
    %v1013 = vunpack.c.l.b16 %v844
    %v1014 = vunpack.c.h.b16 %v844
    %v1015 = vunpack.c.l.b16 %v845
    %v1016 = vunpack.c.h.b16 %v845
    %v1017 = vunpack.c.l.b16 %v846
    %v1018 = vunpack.c.h.b16 %v846
    %v1019 = vunpack.c.l.b16 %v847
    %v1020 = vunpack.c.h.b16 %v847
    %v1021 = vunpack.c.l.b16 %v848
    %v1022 = vunpack.c.h.b16 %v848
    %v1023 = vunpack.c.l.b16 %v849
    %v1024 = vunpack.c.h.b16 %v849
    %v1025 = vunpack.c.l.b16 %v850
    %v1026 = vunpack.c.h.b16 %v850
    %v1027 = vunpack.c.l.b16 %v851
    %v1028 = vunpack.c.h.b16 %v851
    %v1029 = vunpack.c.l.b16 %v852
    %v1030 = vunpack.c.h.b16 %v852
    %v1031 = vunpack.c.l.b16 %v853
    %v1032 = vunpack.c.h.b16 %v853
    %v1033 = vunpack.c.l.b16 %v854
    %v1034 = vunpack.c.h.b16 %v854
    %v1035 = vunpack.c.l.b16 %v855
    %v1036 = vunpack.c.h.b16 %v855
    %v1037 = vunpack.c.l.b16 %v856
    %v1038 = vunpack.c.h.b16 %v856
    %v1039 = vunpack.c.l.b16 %v857
    %v1040 = vunpack.c.h.b16 %v857
    %v1041 = vunpack.c.l.b16 %v858
    %v1042 = vunpack.c.h.b16 %v858
    %v1043 = vunpack.c.l.b16 %v859
    %v1044 = vunpack.c.h.b16 %v859
    %v1045 = vunpack.c.l.b16 %v860
    %v1046 = vunpack.c.h.b16 %v860
    %v1047 = vunpack.c.l.b16 %v861
    %v1048 = vunpack.c.h.b16 %v861
    %v1049 = vunpack.c.l.b16 %v862
    %v1050 = vunpack.c.h.b16 %v862
    %v1051 = vunpack.c.l.b16 %v863
    %v1052 = vunpack.c.h.b16 %v863
    %v1053 = vunpack.c.l.b16 %v864
    %v1054 = vunpack.c.h.b16 %v864
    %v1055 = vunpack.c.l.b16 %v865
    %v1056 = vunpack.c.h.b16 %v865
    %v1057 = vunpack.c.l.b16 %v866
    %v1058 = vunpack.c.h.b16 %v866
    %v1059 = vunpack.c.l.b16 %v867
    %v1060 = vunpack.c.h.b16 %v867
    %v1061 = vunpack.c.l.b16 %v868
    %v1062 = vunpack.c.h.b16 %v868
    %v1063 = vunpack.c.l.b16 %v869
    %v1064 = vunpack.c.h.b16 %v869
    %v1065 = vunpack.c.l.b16 %v870
    %v1066 = vunpack.c.h.b16 %v870
    %v1067 = vunpack.c.l.b16 %v871
    %v1068 = vunpack.c.h.b16 %v871
    %v1069 = vunpack.c.l.b16 %v872
    %v1070 = vunpack.c.h.b16 %v872
    %v1071 = vunpack.c.l.b16 %v873
    %v1072 = vunpack.c.h.b16 %v873
    %v1073 = vunpack.c.l.b16 %v874
    %v1074 = vunpack.c.h.b16 %v874
    %v1075 = vunpack.c.l.b16 %v875
    %v1076 = vunpack.c.h.b16 %v875
    %v1077 = vunpack.c.l.b16 %v876
    %v1078 = vunpack.c.h.b16 %v876
    %v1079 = vunpack.c.l.b16 %v877
    %v1080 = vunpack.c.h.b16 %v877
    %v1081 = vunpack.c.l.b16 %v878
    %v1082 = vunpack.c.h.b16 %v878
    %v1083 = vunpack.c.l.b16 %v879
    %v1084 = vunpack.c.h.b16 %v879
    %v1085 = vunpack.c.l.b16 %v880
    %v1086 = vunpack.c.h.b16 %v880
    %v1087 = vunpack.c.l.b16 %v881
    %v1088 = vunpack.c.h.b16 %v881
    %v1089 = vunpack.c.l.b16 %v882
    %v1090 = vunpack.c.h.b16 %v882
    %v1091 = vunpack.c.l.b16 %v883
    %v1092 = vunpack.c.h.b16 %v883
    %v1093 = vunpack.c.l.b16 %v884
    %v1094 = vunpack.c.h.b16 %v884
    %v1095 = vpack.c.b16 %v975, %v967
    %v1096 = vpack.c.b16 %v976, %v968
    %v1097 = vpack.c.b16 %v977, %v969
    %v1098 = vpack.c.b16 %v978, %v970
    %v1099 = vpack.c.b16 %v979, %v971
    %v1100 = vpack.c.b16 %v980, %v972
    %v1101 = vpack.c.b16 %v981, %v973
    %v1102 = vpack.c.b16 %v982, %v974
    %v1103 = vpack.c.b16 %v991, %v983
    %v1104 = vpack.c.b16 %v992, %v984
    %v1105 = vpack.c.b16 %v993, %v985
    %v1106 = vpack.c.b16 %v994, %v986
    %v1107 = vpack.c.b16 %v995, %v987
    %v1108 = vpack.c.b16 %v996, %v988
    %v1109 = vpack.c.b16 %v997, %v989
    %v1110 = vpack.c.b16 %v998, %v990
    %v1111 = vpack.c.b16 %v1007, %v999
    %v1112 = vpack.c.b16 %v1008, %v1000
    %v1113 = vpack.c.b16 %v1009, %v1001
    %v1114 = vpack.c.b16 %v1010, %v1002
    %v1115 = vpack.c.b16 %v1011, %v1003
    %v1116 = vpack.c.b16 %v1012, %v1004
    %v1117 = vpack.c.b16 %v1013, %v1005
    %v1118 = vpack.c.b16 %v1014, %v1006
    %v1119 = vpack.c.b16 %v1023, %v1015
    %v1120 = vpack.c.b16 %v1024, %v1016
    %v1121 = vpack.c.b16 %v1025, %v1017
    %v1122 = vpack.c.b16 %v1026, %v1018
    %v1123 = vpack.c.b16 %v1027, %v1019
    %v1124 = vpack.c.b16 %v1028, %v1020
    %v1125 = vpack.c.b16 %v1029, %v1021
    %v1126 = vpack.c.b16 %v1030, %v1022
    %v1127 = vpack.c.b16 %v1039, %v1031
    %v1128 = vpack.c.b16 %v1040, %v1032
    %v1129 = vpack.c.b16 %v1041, %v1033
    %v1130 = vpack.c.b16 %v1042, %v1034
    %v1131 = vpack.c.b16 %v1043, %v1035
    %v1132 = vpack.c.b16 %v1044, %v1036
    %v1133 = vpack.c.b16 %v1045, %v1037
    %v1134 = vpack.c.b16 %v1046, %v1038
    %v1135 = vpack.c.b16 %v1055, %v1047
    %v1136 = vpack.c.b16 %v1056, %v1048
    %v1137 = vpack.c.b16 %v1057, %v1049
    %v1138 = vpack.c.b16 %v1058, %v1050
    %v1139 = vpack.c.b16 %v1059, %v1051
    %v1140 = vpack.c.b16 %v1060, %v1052
    %v1141 = vpack.c.b16 %v1061, %v1053
    %v1142 = vpack.c.b16 %v1062, %v1054
    %v1143 = vpack.c.b16 %v1071, %v1063
    %v1144 = vpack.c.b16 %v1072, %v1064
    %v1145 = vpack.c.b16 %v1073, %v1065
    %v1146 = vpack.c.b16 %v1074, %v1066
    %v1147 = vpack.c.b16 %v1075, %v1067
    %v1148 = vpack.c.b16 %v1076, %v1068
    %v1149 = vpack.c.b16 %v1077, %v1069
    %v1150 = vpack.c.b16 %v1078, %v1070
    %v1151 = vpack.c.b16 %v1087, %v1079
    %v1152 = vpack.c.b16 %v1088, %v1080
    %v1153 = vpack.c.b16 %v1089, %v1081
    %v1154 = vpack.c.b16 %v1090, %v1082
    %v1155 = vpack.c.b16 %v1091, %v1083
    %v1156 = vpack.c.b16 %v1092, %v1084
    %v1157 = vpack.c.b16 %v1093, %v1085
    %v1158 = vpack.c.b16 %v1094, %v1086
    %1223 = vmatpush.bf16.msra.mxu0 %v1151
    %1224 = vmatpush.bf16.msra.mxu0 %v1143
    %1225 = vmatpush.bf16.msra.mxu0 %v1135
    %1226 = vmatpush.bf16.msra.mxu0 %v1127
    %1227 = vmatpush.bf16.msra.mxu0 %v1119
    %1228 = vmatpush.bf16.msra.mxu0 %v1111
    %1229 = vmatpush.bf16.msra.mxu0 %v1103
    %1230 = vmatpush.bf16.msra.mxu0 %v1095
    %1231 = vmatmul.bf16.gmra.mxu0 %v197
    %v1232 = vpop.f32.mrf.mxu0
    %v1233 = vadd.f32 %v887, %v1232
    %v1234 = vpop.f32.mrf.mxu0
    %v1235 = vadd.f32 %v887, %v1234
    %1236 = vmatmul.bf16.gmra.mxu0 %v198
    %v1237 = vpop.f32.mrf.mxu0
    %v1238 = vadd.f32 %v887, %v1237
    %v1239 = vpop.f32.mrf.mxu0
    %v1240 = vadd.f32 %v887, %v1239
    %1241 = vmatmul.bf16.gmra.mxu0 %v199
    %v1242 = vpop.f32.mrf.mxu0
    %v1243 = vadd.f32 %v887, %v1242
    %v1244 = vpop.f32.mrf.mxu0
    %v1245 = vadd.f32 %v887, %v1244
    %1246 = vmatmul.bf16.gmra.mxu0 %v200
    %v1247 = vpop.f32.mrf.mxu0
    %v1248 = vadd.f32 %v887, %v1247
    %v1249 = vpop.f32.mrf.mxu0
    %v1250 = vadd.f32 %v887, %v1249
    %1251 = vdwg.mxu0
    %1252 = vmatpush.bf16.msra.mxu0 %v1152
    %1253 = vmatpush.bf16.msra.mxu0 %v1144
    %1254 = vmatpush.bf16.msra.mxu0 %v1136
    %1255 = vmatpush.bf16.msra.mxu0 %v1128
    %1256 = vmatpush.bf16.msra.mxu0 %v1120
    %1257 = vmatpush.bf16.msra.mxu0 %v1112
    %1258 = vmatpush.bf16.msra.mxu0 %v1104
    %1259 = vmatpush.bf16.msra.mxu0 %v1096
    %1260 = vmatmul.bf16.gmra.mxu0 %v197
    %v1261 = vpop.f32.mrf.mxu0
    %v1262 = vadd.f32 %v888, %v1261
    %v1263 = vpop.f32.mrf.mxu0
    %v1264 = vadd.f32 %v888, %v1263
    %1265 = vmatmul.bf16.gmra.mxu0 %v198
    %v1266 = vpop.f32.mrf.mxu0
    %v1267 = vadd.f32 %v888, %v1266
    %v1268 = vpop.f32.mrf.mxu0
    %v1269 = vadd.f32 %v888, %v1268
    %1270 = vmatmul.bf16.gmra.mxu0 %v199
    %v1271 = vpop.f32.mrf.mxu0
    %v1272 = vadd.f32 %v888, %v1271
    %v1273 = vpop.f32.mrf.mxu0
    %v1274 = vadd.f32 %v888, %v1273
    %1275 = vmatmul.bf16.gmra.mxu0 %v200
    %v1276 = vpop.f32.mrf.mxu0
    %v1277 = vadd.f32 %v888, %v1276
    %v1278 = vpop.f32.mrf.mxu0
    %v1279 = vadd.f32 %v888, %v1278
    %1280 = vdwg.mxu0
    %1281 = vmatpush.bf16.msra.mxu0 %v1153
    %1282 = vmatpush.bf16.msra.mxu0 %v1145
    %1283 = vmatpush.bf16.msra.mxu0 %v1137
    %1284 = vmatpush.bf16.msra.mxu0 %v1129
    %1285 = vmatpush.bf16.msra.mxu0 %v1121
    %1286 = vmatpush.bf16.msra.mxu0 %v1113
    %1287 = vmatpush.bf16.msra.mxu0 %v1105
    %1288 = vmatpush.bf16.msra.mxu0 %v1097
    %1289 = vmatmul.bf16.gmra.mxu0 %v197
    %v1290 = vpop.f32.mrf.mxu0
    %v1291 = vadd.f32 %v889, %v1290
    %v1292 = vpop.f32.mrf.mxu0
    %v1293 = vadd.f32 %v889, %v1292
    %1294 = vmatmul.bf16.gmra.mxu0 %v198
    %v1295 = vpop.f32.mrf.mxu0
    %v1296 = vadd.f32 %v889, %v1295
    %v1297 = vpop.f32.mrf.mxu0
    %v1298 = vadd.f32 %v889, %v1297
    %1299 = vmatmul.bf16.gmra.mxu0 %v199
    %v1300 = vpop.f32.mrf.mxu0
    %v1301 = vadd.f32 %v889, %v1300
    %v1302 = vpop.f32.mrf.mxu0
    %v1303 = vadd.f32 %v889, %v1302
    %1304 = vmatmul.bf16.gmra.mxu0 %v200
    %v1305 = vpop.f32.mrf.mxu0
    %v1306 = vadd.f32 %v889, %v1305
    %v1307 = vpop.f32.mrf.mxu0
    %v1308 = vadd.f32 %v889, %v1307
    %1309 = vdwg.mxu0
    %1310 = vmatpush.bf16.msra.mxu0 %v1154
    %1311 = vmatpush.bf16.msra.mxu0 %v1146
    %1312 = vmatpush.bf16.msra.mxu0 %v1138
    %1313 = vmatpush.bf16.msra.mxu0 %v1130
    %1314 = vmatpush.bf16.msra.mxu0 %v1122
    %1315 = vmatpush.bf16.msra.mxu0 %v1114
    %1316 = vmatpush.bf16.msra.mxu0 %v1106
    %1317 = vmatpush.bf16.msra.mxu0 %v1098
    %1318 = vmatmul.bf16.gmra.mxu0 %v197
    %v1319 = vpop.f32.mrf.mxu0
    %v1320 = vadd.f32 %v890, %v1319
    %v1321 = vpop.f32.mrf.mxu0
    %v1322 = vadd.f32 %v890, %v1321
    %1323 = vmatmul.bf16.gmra.mxu0 %v198
    %v1324 = vpop.f32.mrf.mxu0
    %v1325 = vadd.f32 %v890, %v1324
    %v1326 = vpop.f32.mrf.mxu0
    %v1327 = vadd.f32 %v890, %v1326
    %1328 = vmatmul.bf16.gmra.mxu0 %v199
    %v1329 = vpop.f32.mrf.mxu0
    %v1330 = vadd.f32 %v890, %v1329
    %v1331 = vpop.f32.mrf.mxu0
    %v1332 = vadd.f32 %v890, %v1331
    %1333 = vmatmul.bf16.gmra.mxu0 %v200
    %v1334 = vpop.f32.mrf.mxu0
    %v1335 = vadd.f32 %v890, %v1334
    %v1336 = vpop.f32.mrf.mxu0
    %v1337 = vadd.f32 %v890, %v1336
    %1338 = vdwg.mxu0
    %1339 = vmatpush.bf16.msra.mxu0 %v1155
    %1340 = vmatpush.bf16.msra.mxu0 %v1147
    %1341 = vmatpush.bf16.msra.mxu0 %v1139
    %1342 = vmatpush.bf16.msra.mxu0 %v1131
    %1343 = vmatpush.bf16.msra.mxu0 %v1123
    %1344 = vmatpush.bf16.msra.mxu0 %v1115
    %1345 = vmatpush.bf16.msra.mxu0 %v1107
    %1346 = vmatpush.bf16.msra.mxu0 %v1099
    %1347 = vmatmul.bf16.gmra.mxu0 %v197
    %v1348 = vpop.f32.mrf.mxu0
    %v1349 = vadd.f32 %v891, %v1348
    %v1350 = vpop.f32.mrf.mxu0
    %v1351 = vadd.f32 %v891, %v1350
    %1352 = vmatmul.bf16.gmra.mxu0 %v198
    %v1353 = vpop.f32.mrf.mxu0
    %v1354 = vadd.f32 %v891, %v1353
    %v1355 = vpop.f32.mrf.mxu0
    %v1356 = vadd.f32 %v891, %v1355
    %1357 = vmatmul.bf16.gmra.mxu0 %v199
    %v1358 = vpop.f32.mrf.mxu0
    %v1359 = vadd.f32 %v891, %v1358
    %v1360 = vpop.f32.mrf.mxu0
    %v1361 = vadd.f32 %v891, %v1360
    %1362 = vmatmul.bf16.gmra.mxu0 %v200
    %v1363 = vpop.f32.mrf.mxu0
    %v1364 = vadd.f32 %v891, %v1363
    %v1365 = vpop.f32.mrf.mxu0
    %v1366 = vadd.f32 %v891, %v1365
    %1367 = vdwg.mxu0
    %1368 = vmatpush.bf16.msra.mxu0 %v1156
    %1369 = vmatpush.bf16.msra.mxu0 %v1148
    %1370 = vmatpush.bf16.msra.mxu0 %v1140
    %1371 = vmatpush.bf16.msra.mxu0 %v1132
    %1372 = vmatpush.bf16.msra.mxu0 %v1124
    %1373 = vmatpush.bf16.msra.mxu0 %v1116
    %1374 = vmatpush.bf16.msra.mxu0 %v1108
    %1375 = vmatpush.bf16.msra.mxu0 %v1100
    %1376 = vmatmul.bf16.gmra.mxu0 %v197
    %v1377 = vpop.f32.mrf.mxu0
    %v1378 = vadd.f32 %v892, %v1377
    %v1379 = vpop.f32.mrf.mxu0
    %v1380 = vadd.f32 %v892, %v1379
    %1381 = vmatmul.bf16.gmra.mxu0 %v198
    %v1382 = vpop.f32.mrf.mxu0
    %v1383 = vadd.f32 %v892, %v1382
    %v1384 = vpop.f32.mrf.mxu0
    %v1385 = vadd.f32 %v892, %v1384
    %1386 = vmatmul.bf16.gmra.mxu0 %v199
    %v1387 = vpop.f32.mrf.mxu0
    %v1388 = vadd.f32 %v892, %v1387
    %v1389 = vpop.f32.mrf.mxu0
    %v1390 = vadd.f32 %v892, %v1389
    %1391 = vmatmul.bf16.gmra.mxu0 %v200
    %v1392 = vpop.f32.mrf.mxu0
    %v1393 = vadd.f32 %v892, %v1392
    %v1394 = vpop.f32.mrf.mxu0
    %v1395 = vadd.f32 %v892, %v1394
    %1396 = vdwg.mxu0
    %1397 = vmatpush.bf16.msra.mxu0 %v1157
    %1398 = vmatpush.bf16.msra.mxu0 %v1149
    %1399 = vmatpush.bf16.msra.mxu0 %v1141
    %1400 = vmatpush.bf16.msra.mxu0 %v1133
    %1401 = vmatpush.bf16.msra.mxu0 %v1125
    %1402 = vmatpush.bf16.msra.mxu0 %v1117
    %1403 = vmatpush.bf16.msra.mxu0 %v1109
    %1404 = vmatpush.bf16.msra.mxu0 %v1101
    %1405 = vmatmul.bf16.gmra.mxu0 %v197
    %v1406 = vpop.f32.mrf.mxu0
    %v1407 = vadd.f32 %v893, %v1406
    %v1408 = vpop.f32.mrf.mxu0
    %v1409 = vadd.f32 %v893, %v1408
    %1410 = vmatmul.bf16.gmra.mxu0 %v198
    %v1411 = vpop.f32.mrf.mxu0
    %v1412 = vadd.f32 %v893, %v1411
    %v1413 = vpop.f32.mrf.mxu0
    %v1414 = vadd.f32 %v893, %v1413
    %1415 = vmatmul.bf16.gmra.mxu0 %v199
    %v1416 = vpop.f32.mrf.mxu0
    %v1417 = vadd.f32 %v893, %v1416
    %v1418 = vpop.f32.mrf.mxu0
    %v1419 = vadd.f32 %v893, %v1418
    %1420 = vmatmul.bf16.gmra.mxu0 %v200
    %v1421 = vpop.f32.mrf.mxu0
    %v1422 = vadd.f32 %v893, %v1421
    %v1423 = vpop.f32.mrf.mxu0
    %v1424 = vadd.f32 %v893, %v1423
    %1425 = vdwg.mxu0
    %1426 = vmatpush.bf16.msra.mxu0 %v1158
    %1427 = vmatpush.bf16.msra.mxu0 %v1150
    %1428 = vmatpush.bf16.msra.mxu0 %v1142
    %1429 = vmatpush.bf16.msra.mxu0 %v1134
    %1430 = vmatpush.bf16.msra.mxu0 %v1126
    %1431 = vmatpush.bf16.msra.mxu0 %v1118
    %1432 = vmatpush.bf16.msra.mxu0 %v1110
    %1433 = vmatpush.bf16.msra.mxu0 %v1102
    %1434 = vmatmul.bf16.gmra.mxu0 %v197
    %v1435 = vpop.f32.mrf.mxu0
    %v1436 = vadd.f32 %v894, %v1435
    %v1437 = vpop.f32.mrf.mxu0
    %v1438 = vadd.f32 %v894, %v1437
    %1439 = vmatmul.bf16.gmra.mxu0 %v198
    %v1440 = vpop.f32.mrf.mxu0
    %v1441 = vadd.f32 %v894, %v1440
    %v1442 = vpop.f32.mrf.mxu0
    %v1443 = vadd.f32 %v894, %v1442
    %1444 = vmatmul.bf16.gmra.mxu0 %v199
    %v1445 = vpop.f32.mrf.mxu0
    %v1446 = vadd.f32 %v894, %v1445
    %v1447 = vpop.f32.mrf.mxu0
    %v1448 = vadd.f32 %v894, %v1447
    %1449 = vmatmul.bf16.gmra.mxu0 %v200
    %v1450 = vpop.f32.mrf.mxu0
    %v1451 = vadd.f32 %v894, %v1450
    %v1452 = vpop.f32.mrf.mxu0
    %v1453 = vadd.f32 %v894, %v1452
    %1454 = vdwg.mxu0
    %1455 = vst [vmem:[#allocation3] sm:$0xff] %v1233
    %1456 = vst [vmem:[#allocation3 + $0x8] sm:$0xff] %v1262
    %1457 = vst [vmem:[#allocation3 + $0x10] sm:$0xff] %v1291
    %1458 = vst [vmem:[#allocation3 + $0x18] sm:$0xff] %v1320
    %1459 = vst [vmem:[#allocation3 + $0x20] sm:$0xff] %v1349
    %1460 = vst [vmem:[#allocation3 + $0x28] sm:$0xff] %v1378
    %1461 = vst [vmem:[#allocation3 + $0x30] sm:$0xff] %v1407
    %1462 = vst [vmem:[#allocation3 + $0x38] sm:$0xff] %v1436
    %1463 = vst [vmem:[#allocation3 + $0x40] sm:$0xff] %v1235
    %1464 = vst [vmem:[#allocation3 + $0x48] sm:$0xff] %v1264
    %1465 = vst [vmem:[#allocation3 + $0x50] sm:$0xff] %v1293
    %1466 = vst [vmem:[#allocation3 + $0x58] sm:$0xff] %v1322
    %1467 = vst [vmem:[#allocation3 + $0x60] sm:$0xff] %v1351
    %1468 = vst [vmem:[#allocation3 + $0x68] sm:$0xff] %v1380
    %1469 = vst [vmem:[#allocation3 + $0x70] sm:$0xff] %v1409
    %1470 = vst [vmem:[#allocation3 + $0x78] sm:$0xff] %v1438
    %1471 = vst [vmem:[#allocation3 + $0x80] sm:$0xff] %v1238
    %1472 = vst [vmem:[#allocation3 + $0x88] sm:$0xff] %v1267
    %1473 = vst [vmem:[#allocation3 + $0x90] sm:$0xff] %v1296
    %1474 = vst [vmem:[#allocation3 + $0x98] sm:$0xff] %v1325
    %1475 = vst [vmem:[#allocation3 + $0xa0] sm:$0xff] %v1354
    %1476 = vst [vmem:[#allocation3 + $0xa8] sm:$0xff] %v1383
    %1477 = vst [vmem:[#allocation3 + $0xb0] sm:$0xff] %v1412
    %1478 = vst [vmem:[#allocation3 + $0xb8] sm:$0xff] %v1441
    %1479 = vst [vmem:[#allocation3 + $0xc0] sm:$0xff] %v1240
    %1480 = vst [vmem:[#allocation3 + $0xc8] sm:$0xff] %v1269
    %1481 = vst [vmem:[#allocation3 + $0xd0] sm:$0xff] %v1298
    %1482 = vst [vmem:[#allocation3 + $0xd8] sm:$0xff] %v1327
    %1483 = vst [vmem:[#allocation3 + $0xe0] sm:$0xff] %v1356
    %1484 = vst [vmem:[#allocation3 + $0xe8] sm:$0xff] %v1385
    %1485 = vst [vmem:[#allocation3 + $0xf0] sm:$0xff] %v1414
    %1486 = vst [vmem:[#allocation3 + $0xf8] sm:$0xff] %v1443
    %1487 = vst [vmem:[#allocation3 + $0x100] sm:$0xff] %v1243
    %1488 = vst [vmem:[#allocation3 + $0x108] sm:$0xff] %v1272
    %1489 = vst [vmem:[#allocation3 + $0x110] sm:$0xff] %v1301
    %1490 = vst [vmem:[#allocation3 + $0x118] sm:$0xff] %v1330
    %1491 = vst [vmem:[#allocation3 + $0x120] sm:$0xff] %v1359
    %1492 = vst [vmem:[#allocation3 + $0x128] sm:$0xff] %v1388
    %1493 = vst [vmem:[#allocation3 + $0x130] sm:$0xff] %v1417
    %1494 = vst [vmem:[#allocation3 + $0x138] sm:$0xff] %v1446
    %1495 = vst [vmem:[#allocation3 + $0x140] sm:$0xff] %v1245
    %1496 = vst [vmem:[#allocation3 + $0x148] sm:$0xff] %v1274
    %1497 = vst [vmem:[#allocation3 + $0x150] sm:$0xff] %v1303
    %1498 = vst [vmem:[#allocation3 + $0x158] sm:$0xff] %v1332
    %1499 = vst [vmem:[#allocation3 + $0x160] sm:$0xff] %v1361
    %1500 = vst [vmem:[#allocation3 + $0x168] sm:$0xff] %v1390
    %1501 = vst [vmem:[#allocation3 + $0x170] sm:$0xff] %v1419
    %1502 = vst [vmem:[#allocation3 + $0x178] sm:$0xff] %v1448
    %1503 = vst [vmem:[#allocation3 + $0x180] sm:$0xff] %v1248
    %1504 = vst [vmem:[#allocation3 + $0x188] sm:$0xff] %v1277
    %1505 = vst [vmem:[#allocation3 + $0x190] sm:$0xff] %v1306
    %1506 = vst [vmem:[#allocation3 + $0x198] sm:$0xff] %v1335
    %1507 = vst [vmem:[#allocation3 + $0x1a0] sm:$0xff] %v1364
    %1508 = vst [vmem:[#allocation3 + $0x1a8] sm:$0xff] %v1393
    %1509 = vst [vmem:[#allocation3 + $0x1b0] sm:$0xff] %v1422
    %1510 = vst [vmem:[#allocation3 + $0x1b8] sm:$0xff] %v1451
    %1511 = vst [vmem:[#allocation3 + $0x1c0] sm:$0xff] %v1250
    %1512 = vst [vmem:[#allocation3 + $0x1c8] sm:$0xff] %v1279
    %1513 = vst [vmem:[#allocation3 + $0x1d0] sm:$0xff] %v1308
    %1514 = vst [vmem:[#allocation3 + $0x1d8] sm:$0xff] %v1337
    %1515 = vst [vmem:[#allocation3 + $0x1e0] sm:$0xff] %v1366
    %1516 = vst [vmem:[#allocation3 + $0x1e8] sm:$0xff] %v1395
    %1517 = vst [vmem:[#allocation3 + $0x1f0] sm:$0xff] %v1424
    %1518 = vst [vmem:[#allocation3 + $0x1f8] sm:$0xff] %v1453
    %1519 = vst [vmem:[#allocation4] sm:$0xff] 0.0
    %1520 = vst [vmem:[#allocation4 + $0x8] sm:$0xff] 0.0
    %1521 = vst [vmem:[#allocation5] sm:$0xff] 0.0
    %1522 = vst [vmem:[#allocation5 + $0x8] sm:$0xff] 0.0
    %1523 = vst [vmem:[#allocation6] sm:$0xff] 0.0
    %1524 = vst [vmem:[#allocation6 + $0x8] sm:$0xff] 0.0
    %1525 = vst [vmem:[#allocation7] sm:$0xff] 0.0
    %1526 = vst [vmem:[#allocation7 + $0x8] sm:$0xff] 0.0
    loop: start=0, step=1, limit=8
    $region46: #{custom_bert_forward.2} parent=1 // loop_pre_header
      _
    $region47: #{custom_bert_forward.2} parent=1 // loop_header
      %s1528 = sphi 0, %s1532
      %p1529 = scmp.ge.s32.totalorder %s1528, 8
    $region48: #{custom_bert_forward.2} parent=1 // loop_header_branch
      %1531 = sbr.rel (%p1529) target = $region52
    $region49: #{custom_bert_forward.2} parent=1 // loop_body
      %s1533 = smul.u32 %s1528, 8
      %s1534 = sshra.s32 %s1533, 3
      %s1535 = sand.u32 %s1533, 7
      %s1536 = smul.u32 %s1534, 8
      %s1537 = smul.addr %s1536, 8
      %s1538 = scalar_lea.vmem [#allocation2], %s1537
      %v1539 = vld [vmem:[%s1538] sm:$0xff]
      %v1540 = vld [vmem:[%s1538 + $0x8] sm:$0xff]
      %v1541 = vld [vmem:[%s1538 + $0x10] sm:$0xff]
      %v1542 = vld [vmem:[%s1538 + $0x18] sm:$0xff]
      %v1543 = vld [vmem:[%s1538 + $0x20] sm:$0xff]
      %v1544 = vld [vmem:[%s1538 + $0x28] sm:$0xff]
      %v1545 = vld [vmem:[%s1538 + $0x30] sm:$0xff]
      %v1546 = vld [vmem:[%s1538 + $0x38] sm:$0xff]
      %v1547 = vld [vmem:[#allocation4] sm:$0xff]
      %v1548 = vld [vmem:[#allocation4 + $0x8] sm:$0xff]
      %v1549 = vpack.c.bf16 %v1547, %v1547
      %v1550 = vpack.c.bf16 %v1548, %v1548
      %v1551 = vld [vmem:[#allocation10] sm:$0xff]
      %v1552 = vld [vmem:[#allocation10 + $0x8] sm:$0xff]
      %v1553 = vld [vmem:[#allocation10 + $0x10] sm:$0xff]
      %v1554 = vld [vmem:[#allocation10 + $0x18] sm:$0xff]
      %v1555 = vld [vmem:[#allocation10 + $0x20] sm:$0xff]
      %v1556 = vld [vmem:[#allocation10 + $0x28] sm:$0xff]
      %v1557 = vld [vmem:[#allocation10 + $0x30] sm:$0xff]
      %v1558 = vld [vmem:[#allocation10 + $0x38] sm:$0xff]
      %v1559 = vld [vmem:[#allocation10 + $0x40] sm:$0xff]
      %v1560 = vld [vmem:[#allocation10 + $0x48] sm:$0xff]
      %v1561 = vld [vmem:[#allocation10 + $0x50] sm:$0xff]
      %v1562 = vld [vmem:[#allocation10 + $0x58] sm:$0xff]
      %v1563 = vld [vmem:[#allocation10 + $0x60] sm:$0xff]
      %v1564 = vld [vmem:[#allocation10 + $0x68] sm:$0xff]
      %v1565 = vld [vmem:[#allocation10 + $0x70] sm:$0xff]
      %v1566 = vld [vmem:[#allocation10 + $0x78] sm:$0xff]
      %v1567 = vld [vmem:[#allocation10 + $0x80] sm:$0xff]
      %v1568 = vld [vmem:[#allocation10 + $0x88] sm:$0xff]
      %v1569 = vld [vmem:[#allocation10 + $0x90] sm:$0xff]
      %v1570 = vld [vmem:[#allocation10 + $0x98] sm:$0xff]
      %v1571 = vld [vmem:[#allocation10 + $0xa0] sm:$0xff]
      %v1572 = vld [vmem:[#allocation10 + $0xa8] sm:$0xff]
      %v1573 = vld [vmem:[#allocation10 + $0xb0] sm:$0xff]
      %v1574 = vld [vmem:[#allocation10 + $0xb8] sm:$0xff]
      %v1575 = vld [vmem:[#allocation10 + $0xc0] sm:$0xff]
      %v1576 = vld [vmem:[#allocation10 + $0xc8] sm:$0xff]
      %v1577 = vld [vmem:[#allocation10 + $0xd0] sm:$0xff]
      %v1578 = vld [vmem:[#allocation10 + $0xd8] sm:$0xff]
      %v1579 = vld [vmem:[#allocation10 + $0xe0] sm:$0xff]
      %v1580 = vld [vmem:[#allocation10 + $0xe8] sm:$0xff]
      %v1581 = vld [vmem:[#allocation10 + $0xf0] sm:$0xff]
      %v1582 = vld [vmem:[#allocation10 + $0xf8] sm:$0xff]
      %v1583 = vld [vmem:[#allocation10 + $0x100] sm:$0xff]
      %v1584 = vld [vmem:[#allocation10 + $0x108] sm:$0xff]
      %v1585 = vld [vmem:[#allocation10 + $0x110] sm:$0xff]
      %v1586 = vld [vmem:[#allocation10 + $0x118] sm:$0xff]
      %v1587 = vld [vmem:[#allocation10 + $0x120] sm:$0xff]
      %v1588 = vld [vmem:[#allocation10 + $0x128] sm:$0xff]
      %v1589 = vld [vmem:[#allocation10 + $0x130] sm:$0xff]
      %v1590 = vld [vmem:[#allocation10 + $0x138] sm:$0xff]
      %v1591 = vld [vmem:[#allocation10 + $0x140] sm:$0xff]
      %v1592 = vld [vmem:[#allocation10 + $0x148] sm:$0xff]
      %v1593 = vld [vmem:[#allocation10 + $0x150] sm:$0xff]
      %v1594 = vld [vmem:[#allocation10 + $0x158] sm:$0xff]
      %v1595 = vld [vmem:[#allocation10 + $0x160] sm:$0xff]
      %v1596 = vld [vmem:[#allocation10 + $0x168] sm:$0xff]
      %v1597 = vld [vmem:[#allocation10 + $0x170] sm:$0xff]
      %v1598 = vld [vmem:[#allocation10 + $0x178] sm:$0xff]
      %v1599 = vld [vmem:[#allocation10 + $0x180] sm:$0xff]
      %v1600 = vld [vmem:[#allocation10 + $0x188] sm:$0xff]
      %v1601 = vld [vmem:[#allocation10 + $0x190] sm:$0xff]
      %v1602 = vld [vmem:[#allocation10 + $0x198] sm:$0xff]
      %v1603 = vld [vmem:[#allocation10 + $0x1a0] sm:$0xff]
      %v1604 = vld [vmem:[#allocation10 + $0x1a8] sm:$0xff]
      %v1605 = vld [vmem:[#allocation10 + $0x1b0] sm:$0xff]
      %v1606 = vld [vmem:[#allocation10 + $0x1b8] sm:$0xff]
      %v1607 = vld [vmem:[#allocation10 + $0x1c0] sm:$0xff]
      %v1608 = vld [vmem:[#allocation10 + $0x1c8] sm:$0xff]
      %v1609 = vld [vmem:[#allocation10 + $0x1d0] sm:$0xff]
      %v1610 = vld [vmem:[#allocation10 + $0x1d8] sm:$0xff]
      %v1611 = vld [vmem:[#allocation10 + $0x1e0] sm:$0xff]
      %v1612 = vld [vmem:[#allocation10 + $0x1e8] sm:$0xff]
      %v1613 = vld [vmem:[#allocation10 + $0x1f0] sm:$0xff]
      %v1614 = vld [vmem:[#allocation10 + $0x1f8] sm:$0xff]
      %v1615 = vld [vmem:[#allocation10 + $0x200] sm:$0xff]
      %v1616 = vld [vmem:[#allocation10 + $0x208] sm:$0xff]
      %v1617 = vld [vmem:[#allocation10 + $0x210] sm:$0xff]
      %v1618 = vld [vmem:[#allocation10 + $0x218] sm:$0xff]
      %v1619 = vld [vmem:[#allocation10 + $0x220] sm:$0xff]
      %v1620 = vld [vmem:[#allocation10 + $0x228] sm:$0xff]
      %v1621 = vld [vmem:[#allocation10 + $0x230] sm:$0xff]
      %v1622 = vld [vmem:[#allocation10 + $0x238] sm:$0xff]
      %v1623 = vld [vmem:[#allocation10 + $0x240] sm:$0xff]
      %v1624 = vld [vmem:[#allocation10 + $0x248] sm:$0xff]
      %v1625 = vld [vmem:[#allocation10 + $0x250] sm:$0xff]
      %v1626 = vld [vmem:[#allocation10 + $0x258] sm:$0xff]
      %v1627 = vld [vmem:[#allocation10 + $0x260] sm:$0xff]
      %v1628 = vld [vmem:[#allocation10 + $0x268] sm:$0xff]
      %v1629 = vld [vmem:[#allocation10 + $0x270] sm:$0xff]
      %v1630 = vld [vmem:[#allocation10 + $0x278] sm:$0xff]
      %v1631 = vld [vmem:[#allocation10 + $0x280] sm:$0xff]
      %v1632 = vld [vmem:[#allocation10 + $0x288] sm:$0xff]
      %v1633 = vld [vmem:[#allocation10 + $0x290] sm:$0xff]
      %v1634 = vld [vmem:[#allocation10 + $0x298] sm:$0xff]
      %v1635 = vld [vmem:[#allocation10 + $0x2a0] sm:$0xff]
      %v1636 = vld [vmem:[#allocation10 + $0x2a8] sm:$0xff]
      %v1637 = vld [vmem:[#allocation10 + $0x2b0] sm:$0xff]
      %v1638 = vld [vmem:[#allocation10 + $0x2b8] sm:$0xff]
      %v1639 = vld [vmem:[#allocation10 + $0x2c0] sm:$0xff]
      %v1640 = vld [vmem:[#allocation10 + $0x2c8] sm:$0xff]
      %v1641 = vld [vmem:[#allocation10 + $0x2d0] sm:$0xff]
      %v1642 = vld [vmem:[#allocation10 + $0x2d8] sm:$0xff]
      %v1643 = vld [vmem:[#allocation10 + $0x2e0] sm:$0xff]
      %v1644 = vld [vmem:[#allocation10 + $0x2e8] sm:$0xff]
      %v1645 = vld [vmem:[#allocation10 + $0x2f0] sm:$0xff]
      %v1646 = vld [vmem:[#allocation10 + $0x2f8] sm:$0xff]
      %v1647 = vld [vmem:[#allocation10 + $0x300] sm:$0xff]
      %v1648 = vld [vmem:[#allocation10 + $0x308] sm:$0xff]
      %v1649 = vld [vmem:[#allocation10 + $0x310] sm:$0xff]
      %v1650 = vld [vmem:[#allocation10 + $0x318] sm:$0xff]
      %v1651 = vld [vmem:[#allocation10 + $0x320] sm:$0xff]
      %v1652 = vld [vmem:[#allocation10 + $0x328] sm:$0xff]
      %v1653 = vld [vmem:[#allocation10 + $0x330] sm:$0xff]
      %v1654 = vld [vmem:[#allocation10 + $0x338] sm:$0xff]
      %v1655 = vld [vmem:[#allocation10 + $0x340] sm:$0xff]
      %v1656 = vld [vmem:[#allocation10 + $0x348] sm:$0xff]
      %v1657 = vld [vmem:[#allocation10 + $0x350] sm:$0xff]
      %v1658 = vld [vmem:[#allocation10 + $0x358] sm:$0xff]
      %v1659 = vld [vmem:[#allocation10 + $0x360] sm:$0xff]
      %v1660 = vld [vmem:[#allocation10 + $0x368] sm:$0xff]
      %v1661 = vld [vmem:[#allocation10 + $0x370] sm:$0xff]
      %v1662 = vld [vmem:[#allocation10 + $0x378] sm:$0xff]
      %v1663 = vld [vmem:[#allocation10 + $0x380] sm:$0xff]
      %v1664 = vld [vmem:[#allocation10 + $0x388] sm:$0xff]
      %v1665 = vld [vmem:[#allocation10 + $0x390] sm:$0xff]
      %v1666 = vld [vmem:[#allocation10 + $0x398] sm:$0xff]
      %v1667 = vld [vmem:[#allocation10 + $0x3a0] sm:$0xff]
      %v1668 = vld [vmem:[#allocation10 + $0x3a8] sm:$0xff]
      %v1669 = vld [vmem:[#allocation10 + $0x3b0] sm:$0xff]
      %v1670 = vld [vmem:[#allocation10 + $0x3b8] sm:$0xff]
      %v1671 = vld [vmem:[#allocation10 + $0x3c0] sm:$0xff]
      %v1672 = vld [vmem:[#allocation10 + $0x3c8] sm:$0xff]
      %v1673 = vld [vmem:[#allocation10 + $0x3d0] sm:$0xff]
      %v1674 = vld [vmem:[#allocation10 + $0x3d8] sm:$0xff]
      %v1675 = vld [vmem:[#allocation10 + $0x3e0] sm:$0xff]
      %v1676 = vld [vmem:[#allocation10 + $0x3e8] sm:$0xff]
      %v1677 = vld [vmem:[#allocation10 + $0x3f0] sm:$0xff]
      %v1678 = vld [vmem:[#allocation10 + $0x3f8] sm:$0xff]
      %v1807 = vunpack.c.l.b16 %v1551
      %v1808 = vunpack.c.h.b16 %v1551
      %v1809 = vunpack.c.l.b16 %v1552
      %v1810 = vunpack.c.h.b16 %v1552
      %v1811 = vunpack.c.l.b16 %v1553
      %v1812 = vunpack.c.h.b16 %v1553
      %v1813 = vunpack.c.l.b16 %v1554
      %v1814 = vunpack.c.h.b16 %v1554
      %v1815 = vunpack.c.l.b16 %v1555
      %v1816 = vunpack.c.h.b16 %v1555
      %v1817 = vunpack.c.l.b16 %v1556
      %v1818 = vunpack.c.h.b16 %v1556
      %v1819 = vunpack.c.l.b16 %v1557
      %v1820 = vunpack.c.h.b16 %v1557
      %v1821 = vunpack.c.l.b16 %v1558
      %v1822 = vunpack.c.h.b16 %v1558
      %v1823 = vunpack.c.l.b16 %v1559
      %v1824 = vunpack.c.h.b16 %v1559
      %v1825 = vunpack.c.l.b16 %v1560
      %v1826 = vunpack.c.h.b16 %v1560
      %v1827 = vunpack.c.l.b16 %v1561
      %v1828 = vunpack.c.h.b16 %v1561
      %v1829 = vunpack.c.l.b16 %v1562
      %v1830 = vunpack.c.h.b16 %v1562
      %v1831 = vunpack.c.l.b16 %v1563
      %v1832 = vunpack.c.h.b16 %v1563
      %v1833 = vunpack.c.l.b16 %v1564
      %v1834 = vunpack.c.h.b16 %v1564
      %v1835 = vunpack.c.l.b16 %v1565
      %v1836 = vunpack.c.h.b16 %v1565
      %v1837 = vunpack.c.l.b16 %v1566
      %v1838 = vunpack.c.h.b16 %v1566
      %v1839 = vunpack.c.l.b16 %v1567
      %v1840 = vunpack.c.h.b16 %v1567
      %v1841 = vunpack.c.l.b16 %v1568
      %v1842 = vunpack.c.h.b16 %v1568
      %v1843 = vunpack.c.l.b16 %v1569
      %v1844 = vunpack.c.h.b16 %v1569
      %v1845 = vunpack.c.l.b16 %v1570
      %v1846 = vunpack.c.h.b16 %v1570
      %v1847 = vunpack.c.l.b16 %v1571
      %v1848 = vunpack.c.h.b16 %v1571
      %v1849 = vunpack.c.l.b16 %v1572
      %v1850 = vunpack.c.h.b16 %v1572
      %v1851 = vunpack.c.l.b16 %v1573
      %v1852 = vunpack.c.h.b16 %v1573
      %v1853 = vunpack.c.l.b16 %v1574
      %v1854 = vunpack.c.h.b16 %v1574
      %v1855 = vunpack.c.l.b16 %v1575
      %v1856 = vunpack.c.h.b16 %v1575
      %v1857 = vunpack.c.l.b16 %v1576
      %v1858 = vunpack.c.h.b16 %v1576
      %v1859 = vunpack.c.l.b16 %v1577
      %v1860 = vunpack.c.h.b16 %v1577
      %v1861 = vunpack.c.l.b16 %v1578
      %v1862 = vunpack.c.h.b16 %v1578
      %v1863 = vunpack.c.l.b16 %v1579
      %v1864 = vunpack.c.h.b16 %v1579
      %v1865 = vunpack.c.l.b16 %v1580
      %v1866 = vunpack.c.h.b16 %v1580
      %v1867 = vunpack.c.l.b16 %v1581
      %v1868 = vunpack.c.h.b16 %v1581
      %v1869 = vunpack.c.l.b16 %v1582
      %v1870 = vunpack.c.h.b16 %v1582
      %v1871 = vunpack.c.l.b16 %v1583
      %v1872 = vunpack.c.h.b16 %v1583
      %v1873 = vunpack.c.l.b16 %v1584
      %v1874 = vunpack.c.h.b16 %v1584
      %v1875 = vunpack.c.l.b16 %v1585
      %v1876 = vunpack.c.h.b16 %v1585
      %v1877 = vunpack.c.l.b16 %v1586
      %v1878 = vunpack.c.h.b16 %v1586
      %v1879 = vunpack.c.l.b16 %v1587
      %v1880 = vunpack.c.h.b16 %v1587
      %v1881 = vunpack.c.l.b16 %v1588
      %v1882 = vunpack.c.h.b16 %v1588
      %v1883 = vunpack.c.l.b16 %v1589
      %v1884 = vunpack.c.h.b16 %v1589
      %v1885 = vunpack.c.l.b16 %v1590
      %v1886 = vunpack.c.h.b16 %v1590
      %v1887 = vunpack.c.l.b16 %v1591
      %v1888 = vunpack.c.h.b16 %v1591
      %v1889 = vunpack.c.l.b16 %v1592
      %v1890 = vunpack.c.h.b16 %v1592
      %v1891 = vunpack.c.l.b16 %v1593
      %v1892 = vunpack.c.h.b16 %v1593
      %v1893 = vunpack.c.l.b16 %v1594
      %v1894 = vunpack.c.h.b16 %v1594
      %v1895 = vunpack.c.l.b16 %v1595
      %v1896 = vunpack.c.h.b16 %v1595
      %v1897 = vunpack.c.l.b16 %v1596
      %v1898 = vunpack.c.h.b16 %v1596
      %v1899 = vunpack.c.l.b16 %v1597
      %v1900 = vunpack.c.h.b16 %v1597
      %v1901 = vunpack.c.l.b16 %v1598
      %v1902 = vunpack.c.h.b16 %v1598
      %v1903 = vunpack.c.l.b16 %v1599
      %v1904 = vunpack.c.h.b16 %v1599
      %v1905 = vunpack.c.l.b16 %v1600
      %v1906 = vunpack.c.h.b16 %v1600
      %v1907 = vunpack.c.l.b16 %v1601
      %v1908 = vunpack.c.h.b16 %v1601
      %v1909 = vunpack.c.l.b16 %v1602
      %v1910 = vunpack.c.h.b16 %v1602
      %v1911 = vunpack.c.l.b16 %v1603
      %v1912 = vunpack.c.h.b16 %v1603
      %v1913 = vunpack.c.l.b16 %v1604
      %v1914 = vunpack.c.h.b16 %v1604
      %v1915 = vunpack.c.l.b16 %v1605
      %v1916 = vunpack.c.h.b16 %v1605
      %v1917 = vunpack.c.l.b16 %v1606
      %v1918 = vunpack.c.h.b16 %v1606
      %v1919 = vunpack.c.l.b16 %v1607
      %v1920 = vunpack.c.h.b16 %v1607
      %v1921 = vunpack.c.l.b16 %v1608
      %v1922 = vunpack.c.h.b16 %v1608
      %v1923 = vunpack.c.l.b16 %v1609
      %v1924 = vunpack.c.h.b16 %v1609
      %v1925 = vunpack.c.l.b16 %v1610
      %v1926 = vunpack.c.h.b16 %v1610
      %v1927 = vunpack.c.l.b16 %v1611
      %v1928 = vunpack.c.h.b16 %v1611
      %v1929 = vunpack.c.l.b16 %v1612
      %v1930 = vunpack.c.h.b16 %v1612
      %v1931 = vunpack.c.l.b16 %v1613
      %v1932 = vunpack.c.h.b16 %v1613
      %v1933 = vunpack.c.l.b16 %v1614
      %v1934 = vunpack.c.h.b16 %v1614
      %v1935 = vunpack.c.l.b16 %v1615
      %v1936 = vunpack.c.h.b16 %v1615
      %v1937 = vunpack.c.l.b16 %v1616
      %v1938 = vunpack.c.h.b16 %v1616
      %v1939 = vunpack.c.l.b16 %v1617
      %v1940 = vunpack.c.h.b16 %v1617
      %v1941 = vunpack.c.l.b16 %v1618
      %v1942 = vunpack.c.h.b16 %v1618
      %v1943 = vunpack.c.l.b16 %v1619
      %v1944 = vunpack.c.h.b16 %v1619
      %v1945 = vunpack.c.l.b16 %v1620
      %v1946 = vunpack.c.h.b16 %v1620
      %v1947 = vunpack.c.l.b16 %v1621
      %v1948 = vunpack.c.h.b16 %v1621
      %v1949 = vunpack.c.l.b16 %v1622
      %v1950 = vunpack.c.h.b16 %v1622
      %v1951 = vunpack.c.l.b16 %v1623
      %v1952 = vunpack.c.h.b16 %v1623
      %v1953 = vunpack.c.l.b16 %v1624
      %v1954 = vunpack.c.h.b16 %v1624
      %v1955 = vunpack.c.l.b16 %v1625
      %v1956 = vunpack.c.h.b16 %v1625
      %v1957 = vunpack.c.l.b16 %v1626
      %v1958 = vunpack.c.h.b16 %v1626
      %v1959 = vunpack.c.l.b16 %v1627
      %v1960 = vunpack.c.h.b16 %v1627
      %v1961 = vunpack.c.l.b16 %v1628
      %v1962 = vunpack.c.h.b16 %v1628
      %v1963 = vunpack.c.l.b16 %v1629
      %v1964 = vunpack.c.h.b16 %v1629
      %v1965 = vunpack.c.l.b16 %v1630
      %v1966 = vunpack.c.h.b16 %v1630
      %v1967 = vunpack.c.l.b16 %v1631
      %v1968 = vunpack.c.h.b16 %v1631
      %v1969 = vunpack.c.l.b16 %v1632
      %v1970 = vunpack.c.h.b16 %v1632
      %v1971 = vunpack.c.l.b16 %v1633
      %v1972 = vunpack.c.h.b16 %v1633
      %v1973 = vunpack.c.l.b16 %v1634
      %v1974 = vunpack.c.h.b16 %v1634
      %v1975 = vunpack.c.l.b16 %v1635
      %v1976 = vunpack.c.h.b16 %v1635
      %v1977 = vunpack.c.l.b16 %v1636
      %v1978 = vunpack.c.h.b16 %v1636
      %v1979 = vunpack.c.l.b16 %v1637
      %v1980 = vunpack.c.h.b16 %v1637
      %v1981 = vunpack.c.l.b16 %v1638
      %v1982 = vunpack.c.h.b16 %v1638
      %v1983 = vunpack.c.l.b16 %v1639
      %v1984 = vunpack.c.h.b16 %v1639
      %v1985 = vunpack.c.l.b16 %v1640
      %v1986 = vunpack.c.h.b16 %v1640
      %v1987 = vunpack.c.l.b16 %v1641
      %v1988 = vunpack.c.h.b16 %v1641
      %v1989 = vunpack.c.l.b16 %v1642
      %v1990 = vunpack.c.h.b16 %v1642
      %v1991 = vunpack.c.l.b16 %v1643
      %v1992 = vunpack.c.h.b16 %v1643
      %v1993 = vunpack.c.l.b16 %v1644
      %v1994 = vunpack.c.h.b16 %v1644
      %v1995 = vunpack.c.l.b16 %v1645
      %v1996 = vunpack.c.h.b16 %v1645
      %v1997 = vunpack.c.l.b16 %v1646
      %v1998 = vunpack.c.h.b16 %v1646
      %v1999 = vunpack.c.l.b16 %v1647
      %v2000 = vunpack.c.h.b16 %v1647
      %v2001 = vunpack.c.l.b16 %v1648
      %v2002 = vunpack.c.h.b16 %v1648
      %v2003 = vunpack.c.l.b16 %v1649
      %v2004 = vunpack.c.h.b16 %v1649
      %v2005 = vunpack.c.l.b16 %v1650
      %v2006 = vunpack.c.h.b16 %v1650
      %v2007 = vunpack.c.l.b16 %v1651
      %v2008 = vunpack.c.h.b16 %v1651
      %v2009 = vunpack.c.l.b16 %v1652
      %v2010 = vunpack.c.h.b16 %v1652
      %v2011 = vunpack.c.l.b16 %v1653
      %v2012 = vunpack.c.h.b16 %v1653
      %v2013 = vunpack.c.l.b16 %v1654
      %v2014 = vunpack.c.h.b16 %v1654
      %v2015 = vunpack.c.l.b16 %v1655
      %v2016 = vunpack.c.h.b16 %v1655
      %v2017 = vunpack.c.l.b16 %v1656
      %v2018 = vunpack.c.h.b16 %v1656
      %v2019 = vunpack.c.l.b16 %v1657
      %v2020 = vunpack.c.h.b16 %v1657
      %v2021 = vunpack.c.l.b16 %v1658
      %v2022 = vunpack.c.h.b16 %v1658
      %v2023 = vunpack.c.l.b16 %v1659
      %v2024 = vunpack.c.h.b16 %v1659
      %v2025 = vunpack.c.l.b16 %v1660
      %v2026 = vunpack.c.h.b16 %v1660
      %v2027 = vunpack.c.l.b16 %v1661
      %v2028 = vunpack.c.h.b16 %v1661
      %v2029 = vunpack.c.l.b16 %v1662
      %v2030 = vunpack.c.h.b16 %v1662
      %v2031 = vunpack.c.l.b16 %v1663
      %v2032 = vunpack.c.h.b16 %v1663
      %v2033 = vunpack.c.l.b16 %v1664
      %v2034 = vunpack.c.h.b16 %v1664
      %v2035 = vunpack.c.l.b16 %v1665
      %v2036 = vunpack.c.h.b16 %v1665
      %v2037 = vunpack.c.l.b16 %v1666
      %v2038 = vunpack.c.h.b16 %v1666
      %v2039 = vunpack.c.l.b16 %v1667
      %v2040 = vunpack.c.h.b16 %v1667
      %v2041 = vunpack.c.l.b16 %v1668
      %v2042 = vunpack.c.h.b16 %v1668
      %v2043 = vunpack.c.l.b16 %v1669
      %v2044 = vunpack.c.h.b16 %v1669
      %v2045 = vunpack.c.l.b16 %v1670
      %v2046 = vunpack.c.h.b16 %v1670
      %v2047 = vunpack.c.l.b16 %v1671
      %v2048 = vunpack.c.h.b16 %v1671
      %v2049 = vunpack.c.l.b16 %v1672
      %v2050 = vunpack.c.h.b16 %v1672
      %v2051 = vunpack.c.l.b16 %v1673
      %v2052 = vunpack.c.h.b16 %v1673
      %v2053 = vunpack.c.l.b16 %v1674
      %v2054 = vunpack.c.h.b16 %v1674
      %v2055 = vunpack.c.l.b16 %v1675
      %v2056 = vunpack.c.h.b16 %v1675
      %v2057 = vunpack.c.l.b16 %v1676
      %v2058 = vunpack.c.h.b16 %v1676
      %v2059 = vunpack.c.l.b16 %v1677
      %v2060 = vunpack.c.h.b16 %v1677
      %v2061 = vunpack.c.l.b16 %v1678
      %v2062 = vunpack.c.h.b16 %v1678
      %v2063 = vpack.c.b16 %v1815, %v1807
      %v2064 = vpack.c.b16 %v1816, %v1808
      %v2065 = vpack.c.b16 %v1817, %v1809
      %v2066 = vpack.c.b16 %v1818, %v1810
      %v2067 = vpack.c.b16 %v1819, %v1811
      %v2068 = vpack.c.b16 %v1820, %v1812
      %v2069 = vpack.c.b16 %v1821, %v1813
      %v2070 = vpack.c.b16 %v1822, %v1814
      %v2071 = vpack.c.b16 %v1831, %v1823
      %v2072 = vpack.c.b16 %v1832, %v1824
      %v2073 = vpack.c.b16 %v1833, %v1825
      %v2074 = vpack.c.b16 %v1834, %v1826
      %v2075 = vpack.c.b16 %v1835, %v1827
      %v2076 = vpack.c.b16 %v1836, %v1828
      %v2077 = vpack.c.b16 %v1837, %v1829
      %v2078 = vpack.c.b16 %v1838, %v1830
      %v2079 = vpack.c.b16 %v1847, %v1839
      %v2080 = vpack.c.b16 %v1848, %v1840
      %v2081 = vpack.c.b16 %v1849, %v1841
      %v2082 = vpack.c.b16 %v1850, %v1842
      %v2083 = vpack.c.b16 %v1851, %v1843
      %v2084 = vpack.c.b16 %v1852, %v1844
      %v2085 = vpack.c.b16 %v1853, %v1845
      %v2086 = vpack.c.b16 %v1854, %v1846
      %v2087 = vpack.c.b16 %v1863, %v1855
      %v2088 = vpack.c.b16 %v1864, %v1856
      %v2089 = vpack.c.b16 %v1865, %v1857
      %v2090 = vpack.c.b16 %v1866, %v1858
      %v2091 = vpack.c.b16 %v1867, %v1859
      %v2092 = vpack.c.b16 %v1868, %v1860
      %v2093 = vpack.c.b16 %v1869, %v1861
      %v2094 = vpack.c.b16 %v1870, %v1862
      %v2095 = vpack.c.b16 %v1879, %v1871
      %v2096 = vpack.c.b16 %v1880, %v1872
      %v2097 = vpack.c.b16 %v1881, %v1873
      %v2098 = vpack.c.b16 %v1882, %v1874
      %v2099 = vpack.c.b16 %v1883, %v1875
      %v2100 = vpack.c.b16 %v1884, %v1876
      %v2101 = vpack.c.b16 %v1885, %v1877
      %v2102 = vpack.c.b16 %v1886, %v1878
      %v2103 = vpack.c.b16 %v1895, %v1887
      %v2104 = vpack.c.b16 %v1896, %v1888
      %v2105 = vpack.c.b16 %v1897, %v1889
      %v2106 = vpack.c.b16 %v1898, %v1890
      %v2107 = vpack.c.b16 %v1899, %v1891
      %v2108 = vpack.c.b16 %v1900, %v1892
      %v2109 = vpack.c.b16 %v1901, %v1893
      %v2110 = vpack.c.b16 %v1902, %v1894
      %v2111 = vpack.c.b16 %v1911, %v1903
      %v2112 = vpack.c.b16 %v1912, %v1904
      %v2113 = vpack.c.b16 %v1913, %v1905
      %v2114 = vpack.c.b16 %v1914, %v1906
      %v2115 = vpack.c.b16 %v1915, %v1907
      %v2116 = vpack.c.b16 %v1916, %v1908
      %v2117 = vpack.c.b16 %v1917, %v1909
      %v2118 = vpack.c.b16 %v1918, %v1910
      %v2119 = vpack.c.b16 %v1927, %v1919
      %v2120 = vpack.c.b16 %v1928, %v1920
      %v2121 = vpack.c.b16 %v1929, %v1921
      %v2122 = vpack.c.b16 %v1930, %v1922
      %v2123 = vpack.c.b16 %v1931, %v1923
      %v2124 = vpack.c.b16 %v1932, %v1924
      %v2125 = vpack.c.b16 %v1933, %v1925
      %v2126 = vpack.c.b16 %v1934, %v1926
      %v2127 = vpack.c.b16 %v1943, %v1935
      %v2128 = vpack.c.b16 %v1944, %v1936
      %v2129 = vpack.c.b16 %v1945, %v1937
      %v2130 = vpack.c.b16 %v1946, %v1938
      %v2131 = vpack.c.b16 %v1947, %v1939
      %v2132 = vpack.c.b16 %v1948, %v1940
      %v2133 = vpack.c.b16 %v1949, %v1941
      %v2134 = vpack.c.b16 %v1950, %v1942
      %v2135 = vpack.c.b16 %v1959, %v1951
      %v2136 = vpack.c.b16 %v1960, %v1952
      %v2137 = vpack.c.b16 %v1961, %v1953
      %v2138 = vpack.c.b16 %v1962, %v1954
      %v2139 = vpack.c.b16 %v1963, %v1955
      %v2140 = vpack.c.b16 %v1964, %v1956
      %v2141 = vpack.c.b16 %v1965, %v1957
      %v2142 = vpack.c.b16 %v1966, %v1958
      %v2143 = vpack.c.b16 %v1975, %v1967
      %v2144 = vpack.c.b16 %v1976, %v1968
      %v2145 = vpack.c.b16 %v1977, %v1969
      %v2146 = vpack.c.b16 %v1978, %v1970
      %v2147 = vpack.c.b16 %v1979, %v1971
      %v2148 = vpack.c.b16 %v1980, %v1972
      %v2149 = vpack.c.b16 %v1981, %v1973
      %v2150 = vpack.c.b16 %v1982, %v1974
      %v2151 = vpack.c.b16 %v1991, %v1983
      %v2152 = vpack.c.b16 %v1992, %v1984
      %v2153 = vpack.c.b16 %v1993, %v1985
      %v2154 = vpack.c.b16 %v1994, %v1986
      %v2155 = vpack.c.b16 %v1995, %v1987
      %v2156 = vpack.c.b16 %v1996, %v1988
      %v2157 = vpack.c.b16 %v1997, %v1989
      %v2158 = vpack.c.b16 %v1998, %v1990
      %v2159 = vpack.c.b16 %v2007, %v1999
      %v2160 = vpack.c.b16 %v2008, %v2000
      %v2161 = vpack.c.b16 %v2009, %v2001
      %v2162 = vpack.c.b16 %v2010, %v2002
      %v2163 = vpack.c.b16 %v2011, %v2003
      %v2164 = vpack.c.b16 %v2012, %v2004
      %v2165 = vpack.c.b16 %v2013, %v2005
      %v2166 = vpack.c.b16 %v2014, %v2006
      %v2167 = vpack.c.b16 %v2023, %v2015
      %v2168 = vpack.c.b16 %v2024, %v2016
      %v2169 = vpack.c.b16 %v2025, %v2017
      %v2170 = vpack.c.b16 %v2026, %v2018
      %v2171 = vpack.c.b16 %v2027, %v2019
      %v2172 = vpack.c.b16 %v2028, %v2020
      %v2173 = vpack.c.b16 %v2029, %v2021
      %v2174 = vpack.c.b16 %v2030, %v2022
      %v2175 = vpack.c.b16 %v2039, %v2031
      %v2176 = vpack.c.b16 %v2040, %v2032
      %v2177 = vpack.c.b16 %v2041, %v2033
      %v2178 = vpack.c.b16 %v2042, %v2034
      %v2179 = vpack.c.b16 %v2043, %v2035
      %v2180 = vpack.c.b16 %v2044, %v2036
      %v2181 = vpack.c.b16 %v2045, %v2037
      %v2182 = vpack.c.b16 %v2046, %v2038
      %v2183 = vpack.c.b16 %v2055, %v2047
      %v2184 = vpack.c.b16 %v2056, %v2048
      %v2185 = vpack.c.b16 %v2057, %v2049
      %v2186 = vpack.c.b16 %v2058, %v2050
      %v2187 = vpack.c.b16 %v2059, %v2051
      %v2188 = vpack.c.b16 %v2060, %v2052
      %v2189 = vpack.c.b16 %v2061, %v2053
      %v2190 = vpack.c.b16 %v2062, %v2054
      %2319 = vmatpush.bf16.msra.mxu0 %v2119
      %2320 = vmatpush.bf16.msra.mxu0 %v2111
      %2321 = vmatpush.bf16.msra.mxu0 %v2103
      %2322 = vmatpush.bf16.msra.mxu0 %v2095
      %2323 = vmatpush.bf16.msra.mxu0 %v2087
      %2324 = vmatpush.bf16.msra.mxu0 %v2079
      %2325 = vmatpush.bf16.msra.mxu0 %v2071
      %2326 = vmatpush.bf16.msra.mxu0 %v2063
      %2327 = vmatmul.bf16.gmra.mxu0 %v1549
      %v2328 = vpop.f32.mrf.mxu0
      %v2329 = vadd.f32 0.0, %v2328
      %v2330 = vpop.f32.mrf.mxu0
      %2331 = vdwg.mxu0
      %2332 = vmatpush.bf16.msra.mxu0 %v2183
      %2333 = vmatpush.bf16.msra.mxu0 %v2175
      %2334 = vmatpush.bf16.msra.mxu0 %v2167
      %2335 = vmatpush.bf16.msra.mxu0 %v2159
      %2336 = vmatpush.bf16.msra.mxu0 %v2151
      %2337 = vmatpush.bf16.msra.mxu0 %v2143
      %2338 = vmatpush.bf16.msra.mxu0 %v2135
      %2339 = vmatpush.bf16.msra.mxu0 %v2127
      %2340 = vmatmul.bf16.gmra.mxu0 %v1550
      %v2341 = vpop.f32.mrf.mxu0
      %v2342 = vadd.f32 %v2329, %v2341
      %v2343 = vpop.f32.mrf.mxu0
      %2344 = vdwg.mxu0
      %2345 = vmatpush.bf16.msra.mxu0 %v2120
      %2346 = vmatpush.bf16.msra.mxu0 %v2112
      %2347 = vmatpush.bf16.msra.mxu0 %v2104
      %2348 = vmatpush.bf16.msra.mxu0 %v2096
      %2349 = vmatpush.bf16.msra.mxu0 %v2088
      %2350 = vmatpush.bf16.msra.mxu0 %v2080
      %2351 = vmatpush.bf16.msra.mxu0 %v2072
      %2352 = vmatpush.bf16.msra.mxu0 %v2064
      %2353 = vmatmul.bf16.gmra.mxu0 %v1549
      %v2354 = vpop.f32.mrf.mxu0
      %v2355 = vadd.f32 0.0, %v2354
      %v2356 = vpop.f32.mrf.mxu0
      %2357 = vdwg.mxu0
      %2358 = vmatpush.bf16.msra.mxu0 %v2184
      %2359 = vmatpush.bf16.msra.mxu0 %v2176
      %2360 = vmatpush.bf16.msra.mxu0 %v2168
      %2361 = vmatpush.bf16.msra.mxu0 %v2160
      %2362 = vmatpush.bf16.msra.mxu0 %v2152
      %2363 = vmatpush.bf16.msra.mxu0 %v2144
      %2364 = vmatpush.bf16.msra.mxu0 %v2136
      %2365 = vmatpush.bf16.msra.mxu0 %v2128
      %2366 = vmatmul.bf16.gmra.mxu0 %v1550
      %v2367 = vpop.f32.mrf.mxu0
      %v2368 = vadd.f32 %v2355, %v2367
      %v2369 = vpop.f32.mrf.mxu0
      %2370 = vdwg.mxu0
      %2371 = vmatpush.bf16.msra.mxu0 %v2121
      %2372 = vmatpush.bf16.msra.mxu0 %v2113
      %2373 = vmatpush.bf16.msra.mxu0 %v2105
      %2374 = vmatpush.bf16.msra.mxu0 %v2097
      %2375 = vmatpush.bf16.msra.mxu0 %v2089
      %2376 = vmatpush.bf16.msra.mxu0 %v2081
      %2377 = vmatpush.bf16.msra.mxu0 %v2073
      %2378 = vmatpush.bf16.msra.mxu0 %v2065
      %2379 = vmatmul.bf16.gmra.mxu0 %v1549
      %v2380 = vpop.f32.mrf.mxu0
      %v2381 = vadd.f32 0.0, %v2380
      %v2382 = vpop.f32.mrf.mxu0
      %2383 = vdwg.mxu0
      %2384 = vmatpush.bf16.msra.mxu0 %v2185
      %2385 = vmatpush.bf16.msra.mxu0 %v2177
      %2386 = vmatpush.bf16.msra.mxu0 %v2169
      %2387 = vmatpush.bf16.msra.mxu0 %v2161
      %2388 = vmatpush.bf16.msra.mxu0 %v2153
      %2389 = vmatpush.bf16.msra.mxu0 %v2145
      %2390 = vmatpush.bf16.msra.mxu0 %v2137
      %2391 = vmatpush.bf16.msra.mxu0 %v2129
      %2392 = vmatmul.bf16.gmra.mxu0 %v1550
      %v2393 = vpop.f32.mrf.mxu0
      %v2394 = vadd.f32 %v2381, %v2393
      %v2395 = vpop.f32.mrf.mxu0
      %2396 = vdwg.mxu0
      %2397 = vmatpush.bf16.msra.mxu0 %v2122
      %2398 = vmatpush.bf16.msra.mxu0 %v2114
      %2399 = vmatpush.bf16.msra.mxu0 %v2106
      %2400 = vmatpush.bf16.msra.mxu0 %v2098
      %2401 = vmatpush.bf16.msra.mxu0 %v2090
      %2402 = vmatpush.bf16.msra.mxu0 %v2082
      %2403 = vmatpush.bf16.msra.mxu0 %v2074
      %2404 = vmatpush.bf16.msra.mxu0 %v2066
      %2405 = vmatmul.bf16.gmra.mxu0 %v1549
      %v2406 = vpop.f32.mrf.mxu0
      %v2407 = vadd.f32 0.0, %v2406
      %v2408 = vpop.f32.mrf.mxu0
      %2409 = vdwg.mxu0
      %2410 = vmatpush.bf16.msra.mxu0 %v2186
      %2411 = vmatpush.bf16.msra.mxu0 %v2178
      %2412 = vmatpush.bf16.msra.mxu0 %v2170
      %2413 = vmatpush.bf16.msra.mxu0 %v2162
      %2414 = vmatpush.bf16.msra.mxu0 %v2154
      %2415 = vmatpush.bf16.msra.mxu0 %v2146
      %2416 = vmatpush.bf16.msra.mxu0 %v2138
      %2417 = vmatpush.bf16.msra.mxu0 %v2130
      %2418 = vmatmul.bf16.gmra.mxu0 %v1550
      %v2419 = vpop.f32.mrf.mxu0
      %v2420 = vadd.f32 %v2407, %v2419
      %v2421 = vpop.f32.mrf.mxu0
      %2422 = vdwg.mxu0
      %2423 = vmatpush.bf16.msra.mxu0 %v2123
      %2424 = vmatpush.bf16.msra.mxu0 %v2115
      %2425 = vmatpush.bf16.msra.mxu0 %v2107
      %2426 = vmatpush.bf16.msra.mxu0 %v2099
      %2427 = vmatpush.bf16.msra.mxu0 %v2091
      %2428 = vmatpush.bf16.msra.mxu0 %v2083
      %2429 = vmatpush.bf16.msra.mxu0 %v2075
      %2430 = vmatpush.bf16.msra.mxu0 %v2067
      %2431 = vmatmul.bf16.gmra.mxu0 %v1549
      %v2432 = vpop.f32.mrf.mxu0
      %v2433 = vadd.f32 0.0, %v2432
      %v2434 = vpop.f32.mrf.mxu0
      %2435 = vdwg.mxu0
      %2436 = vmatpush.bf16.msra.mxu0 %v2187
      %2437 = vmatpush.bf16.msra.mxu0 %v2179
      %2438 = vmatpush.bf16.msra.mxu0 %v2171
      %2439 = vmatpush.bf16.msra.mxu0 %v2163
      %2440 = vmatpush.bf16.msra.mxu0 %v2155
      %2441 = vmatpush.bf16.msra.mxu0 %v2147
      %2442 = vmatpush.bf16.msra.mxu0 %v2139
      %2443 = vmatpush.bf16.msra.mxu0 %v2131
      %2444 = vmatmul.bf16.gmra.mxu0 %v1550
      %v2445 = vpop.f32.mrf.mxu0
      %v2446 = vadd.f32 %v2433, %v2445
      %v2447 = vpop.f32.mrf.mxu0
      %2448 = vdwg.mxu0
      %2449 = vmatpush.bf16.msra.mxu0 %v2124
      %2450 = vmatpush.bf16.msra.mxu0 %v2116
      %2451 = vmatpush.bf16.msra.mxu0 %v2108
      %2452 = vmatpush.bf16.msra.mxu0 %v2100
      %2453 = vmatpush.bf16.msra.mxu0 %v2092
      %2454 = vmatpush.bf16.msra.mxu0 %v2084
      %2455 = vmatpush.bf16.msra.mxu0 %v2076
      %2456 = vmatpush.bf16.msra.mxu0 %v2068
      %2457 = vmatmul.bf16.gmra.mxu0 %v1549
      %v2458 = vpop.f32.mrf.mxu0
      %v2459 = vadd.f32 0.0, %v2458
      %v2460 = vpop.f32.mrf.mxu0
      %2461 = vdwg.mxu0
      %2462 = vmatpush.bf16.msra.mxu0 %v2188
      %2463 = vmatpush.bf16.msra.mxu0 %v2180
      %2464 = vmatpush.bf16.msra.mxu0 %v2172
      %2465 = vmatpush.bf16.msra.mxu0 %v2164
      %2466 = vmatpush.bf16.msra.mxu0 %v2156
      %2467 = vmatpush.bf16.msra.mxu0 %v2148
      %2468 = vmatpush.bf16.msra.mxu0 %v2140
      %2469 = vmatpush.bf16.msra.mxu0 %v2132
      %2470 = vmatmul.bf16.gmra.mxu0 %v1550
      %v2471 = vpop.f32.mrf.mxu0
      %v2472 = vadd.f32 %v2459, %v2471
      %v2473 = vpop.f32.mrf.mxu0
      %2474 = vdwg.mxu0
      %2475 = vmatpush.bf16.msra.mxu0 %v2125
      %2476 = vmatpush.bf16.msra.mxu0 %v2117
      %2477 = vmatpush.bf16.msra.mxu0 %v2109
      %2478 = vmatpush.bf16.msra.mxu0 %v2101
      %2479 = vmatpush.bf16.msra.mxu0 %v2093
      %2480 = vmatpush.bf16.msra.mxu0 %v2085
      %2481 = vmatpush.bf16.msra.mxu0 %v2077
      %2482 = vmatpush.bf16.msra.mxu0 %v2069
      %2483 = vmatmul.bf16.gmra.mxu0 %v1549
      %v2484 = vpop.f32.mrf.mxu0
      %v2485 = vadd.f32 0.0, %v2484
      %v2486 = vpop.f32.mrf.mxu0
      %2487 = vdwg.mxu0
      %2488 = vmatpush.bf16.msra.mxu0 %v2189
      %2489 = vmatpush.bf16.msra.mxu0 %v2181
      %2490 = vmatpush.bf16.msra.mxu0 %v2173
      %2491 = vmatpush.bf16.msra.mxu0 %v2165
      %2492 = vmatpush.bf16.msra.mxu0 %v2157
      %2493 = vmatpush.bf16.msra.mxu0 %v2149
      %2494 = vmatpush.bf16.msra.mxu0 %v2141
      %2495 = vmatpush.bf16.msra.mxu0 %v2133
      %2496 = vmatmul.bf16.gmra.mxu0 %v1550
      %v2497 = vpop.f32.mrf.mxu0
      %v2498 = vadd.f32 %v2485, %v2497
      %v2499 = vpop.f32.mrf.mxu0
      %2500 = vdwg.mxu0
      %2501 = vmatpush.bf16.msra.mxu0 %v2126
      %2502 = vmatpush.bf16.msra.mxu0 %v2118
      %2503 = vmatpush.bf16.msra.mxu0 %v2110
      %2504 = vmatpush.bf16.msra.mxu0 %v2102
      %2505 = vmatpush.bf16.msra.mxu0 %v2094
      %2506 = vmatpush.bf16.msra.mxu0 %v2086
      %2507 = vmatpush.bf16.msra.mxu0 %v2078
      %2508 = vmatpush.bf16.msra.mxu0 %v2070
      %2509 = vmatmul.bf16.gmra.mxu0 %v1549
      %v2510 = vpop.f32.mrf.mxu0
      %v2511 = vadd.f32 0.0, %v2510
      %v2512 = vpop.f32.mrf.mxu0
      %2513 = vdwg.mxu0
      %2514 = vmatpush.bf16.msra.mxu0 %v2190
      %2515 = vmatpush.bf16.msra.mxu0 %v2182
      %2516 = vmatpush.bf16.msra.mxu0 %v2174
      %2517 = vmatpush.bf16.msra.mxu0 %v2166
      %2518 = vmatpush.bf16.msra.mxu0 %v2158
      %2519 = vmatpush.bf16.msra.mxu0 %v2150
      %2520 = vmatpush.bf16.msra.mxu0 %v2142
      %2521 = vmatpush.bf16.msra.mxu0 %v2134
      %2522 = vmatmul.bf16.gmra.mxu0 %v1550
      %v2523 = vpop.f32.mrf.mxu0
      %v2524 = vadd.f32 %v2511, %v2523
      %v2525 = vpop.f32.mrf.mxu0
      %2526 = vdwg.mxu0
      %v2527 = vadd.f32 %v1539, %v2342
      %v2528 = vadd.f32 %v1540, %v2368
      %v2529 = vadd.f32 %v1541, %v2394
      %v2530 = vadd.f32 %v1542, %v2420
      %v2531 = vadd.f32 %v1543, %v2446
      %v2532 = vadd.f32 %v1544, %v2472
      %v2533 = vadd.f32 %v1545, %v2498
      %v2534 = vadd.f32 %v1546, %v2524
      %v2535 = vld [vmem:[#allocation5] sm:$0xff]
      %v2536 = vld [vmem:[#allocation5 + $0x8] sm:$0xff]
      %v2537 = vxor.u32 %v2527, 2147483648
      %v2538 = vxor.u32 %v2528, 2147483648
      %v2539 = vmul.f32 %v2537, 1.442695
      %v2540 = vpow.pop %v2539
      %v2541 = vmul.f32 %v2538, 1.442695
      %v2542 = vpow.pop %v2541
      %v2543 = vadd.f32 %v2540, 1.0
      %v2544 = vadd.f32 %v2542, 1.0
      %v2545 = vrcp.pop %v2543
      %v2546 = vmul.f32 %v2543, %v2545
      %v2547 = vsub.f32 1.0, %v2546
      %v2548 = vmul.f32 %v2545, %v2547
      %v2549 = vadd.f32 %v2545, %v2548
      %vm2550 = vweird.f32 %v2543
      %vm2551 = vweird.f32 %v2545
      %vm2552 = vmor %vm2550, %vm2551
      %v2553 = vsel %vm2552, %v2545, %v2549
      %v2554 = vand.u32 2147483647, %v2543
      %vm2555 = vcmp.eq.f32.partialorder %v2554, 8.507059e+37
      %v2556 = vand.u32 %v2543, 2147483648
      %v2557 = vor.u32 1.1754944e-38, %v2556
      %v2558 = vsel %vm2555, %v2557, %v2553
      %v2559 = vmul.f32 1.0, %v2558
      %v2560 = vrcp.pop %v2544
      %v2561 = vmul.f32 %v2544, %v2560
      %v2562 = vsub.f32 1.0, %v2561
      %v2563 = vmul.f32 %v2560, %v2562
      %v2564 = vadd.f32 %v2560, %v2563
      %vm2565 = vweird.f32 %v2544
      %vm2566 = vweird.f32 %v2560
      %vm2567 = vmor %vm2565, %vm2566
      %v2568 = vsel %vm2567, %v2560, %v2564
      %v2569 = vand.u32 2147483647, %v2544
      %vm2570 = vcmp.eq.f32.partialorder %v2569, 8.507059e+37
      %v2571 = vand.u32 %v2544, 2147483648
      %v2572 = vor.u32 1.1754944e-38, %v2571
      %v2573 = vsel %vm2570, %v2572, %v2568
      %v2574 = vmul.f32 1.0, %v2573
      %v2575 = vxor.u32 %v2529, 2147483648
      %v2576 = vxor.u32 %v2530, 2147483648
      %v2577 = vmul.f32 %v2575, 1.442695
      %v2578 = vpow.pop %v2577
      %v2579 = vmul.f32 %v2576, 1.442695
      %v2580 = vpow.pop %v2579
      %v2581 = vadd.f32 %v2578, 1.0
      %v2582 = vadd.f32 %v2580, 1.0
      %v2583 = vrcp.pop %v2581
      %v2584 = vmul.f32 %v2581, %v2583
      %v2585 = vsub.f32 1.0, %v2584
      %v2586 = vmul.f32 %v2583, %v2585
      %v2587 = vadd.f32 %v2583, %v2586
      %vm2588 = vweird.f32 %v2581
      %vm2589 = vweird.f32 %v2583
      %vm2590 = vmor %vm2588, %vm2589
      %v2591 = vsel %vm2590, %v2583, %v2587
      %v2592 = vand.u32 2147483647, %v2581
      %vm2593 = vcmp.eq.f32.partialorder %v2592, 8.507059e+37
      %v2594 = vand.u32 %v2581, 2147483648
      %v2595 = vor.u32 1.1754944e-38, %v2594
      %v2596 = vsel %vm2593, %v2595, %v2591
      %v2597 = vmul.f32 1.0, %v2596
      %v2598 = vrcp.pop %v2582
      %v2599 = vmul.f32 %v2582, %v2598
      %v2600 = vsub.f32 1.0, %v2599
      %v2601 = vmul.f32 %v2598, %v2600
      %v2602 = vadd.f32 %v2598, %v2601
      %vm2603 = vweird.f32 %v2582
      %vm2604 = vweird.f32 %v2598
      %vm2605 = vmor %vm2603, %vm2604
      %v2606 = vsel %vm2605, %v2598, %v2602
      %v2607 = vand.u32 2147483647, %v2582
      %vm2608 = vcmp.eq.f32.partialorder %v2607, 8.507059e+37
      %v2609 = vand.u32 %v2582, 2147483648
      %v2610 = vor.u32 1.1754944e-38, %v2609
      %v2611 = vsel %vm2608, %v2610, %v2606
      %v2612 = vmul.f32 1.0, %v2611
      %v2613 = vtanh.pop %v2531
      %v2614 = vtanh.pop %v2532
      %v2615 = vxor.u32 %v2533, 2147483648
      %v2616 = vxor.u32 %v2534, 2147483648
      %v2617 = vmul.f32 %v2615, 1.442695
      %v2618 = vpow.pop %v2617
      %v2619 = vmul.f32 %v2616, 1.442695
      %v2620 = vpow.pop %v2619
      %v2621 = vadd.f32 %v2618, 1.0
      %v2622 = vadd.f32 %v2620, 1.0
      %v2623 = vrcp.pop %v2621
      %v2624 = vmul.f32 %v2621, %v2623
      %v2625 = vsub.f32 1.0, %v2624
      %v2626 = vmul.f32 %v2623, %v2625
      %v2627 = vadd.f32 %v2623, %v2626
      %vm2628 = vweird.f32 %v2621
      %vm2629 = vweird.f32 %v2623
      %vm2630 = vmor %vm2628, %vm2629
      %v2631 = vsel %vm2630, %v2623, %v2627
      %v2632 = vand.u32 2147483647, %v2621
      %vm2633 = vcmp.eq.f32.partialorder %v2632, 8.507059e+37
      %v2634 = vand.u32 %v2621, 2147483648
      %v2635 = vor.u32 1.1754944e-38, %v2634
      %v2636 = vsel %vm2633, %v2635, %v2631
      %v2637 = vmul.f32 1.0, %v2636
      %v2638 = vrcp.pop %v2622
      %v2639 = vmul.f32 %v2622, %v2638
      %v2640 = vsub.f32 1.0, %v2639
      %v2641 = vmul.f32 %v2638, %v2640
      %v2642 = vadd.f32 %v2638, %v2641
      %vm2643 = vweird.f32 %v2622
      %vm2644 = vweird.f32 %v2638
      %vm2645 = vmor %vm2643, %vm2644
      %v2646 = vsel %vm2645, %v2638, %v2642
      %v2647 = vand.u32 2147483647, %v2622
      %vm2648 = vcmp.eq.f32.partialorder %v2647, 8.507059e+37
      %v2649 = vand.u32 %v2622, 2147483648
      %v2650 = vor.u32 1.1754944e-38, %v2649
      %v2651 = vsel %vm2648, %v2650, %v2646
      %v2652 = vmul.f32 1.0, %v2651
      %v2653 = vmul.f32 %v2597, %v2535
      %v2654 = vmul.f32 %v2612, %v2536
      %v2655 = vmul.f32 %v2559, %v2613
      %v2656 = vmul.f32 %v2574, %v2614
      %v2657 = vadd.f32 %v2653, %v2655
      %v2658 = vadd.f32 %v2654, %v2656
      %v2659 = vtanh.pop %v2657
      %v2660 = vtanh.pop %v2658
      %v2661 = vmul.f32 %v2637, %v2659
      %v2662 = vmul.f32 %v2652, %v2660
      %2663 = vst [vmem:[#allocation4] sm:$0xff] %v2661
      %2664 = vst [vmem:[#allocation4 + $0x8] sm:$0xff] %v2662
      %2665 = vst [vmem:[#allocation5] sm:$0xff] %v2657
      %2666 = vst [vmem:[#allocation5 + $0x8] sm:$0xff] %v2658
      %s2667 = smul.u32 %s1534, 2
      %s2668 = smul.addr %s2667, 8
      %s2669 = scalar_lea.vmem %s7, %s2668
      %2670 = vst [vmem:[%s2669] sm:$0xff] %v2661
      %2671 = vst [vmem:[%s2669 + $0x8] sm:$0xff] %v2662
      %s2672 = ssub.s32 7, %s1528
      %s2673 = smul.u32 %s2672, 8
      %s2674 = sshra.s32 %s2673, 3
      %s2675 = sand.u32 %s2673, 7
      %s2676 = smul.u32 %s2674, 8
      %s2677 = smul.addr %s2676, 8
      %s2678 = scalar_lea.vmem [#allocation3], %s2677
      %v2679 = vld [vmem:[%s2678] sm:$0xff]
      %v2680 = vld [vmem:[%s2678 + $0x8] sm:$0xff]
      %v2681 = vld [vmem:[%s2678 + $0x10] sm:$0xff]
      %v2682 = vld [vmem:[%s2678 + $0x18] sm:$0xff]
      %v2683 = vld [vmem:[%s2678 + $0x20] sm:$0xff]
      %v2684 = vld [vmem:[%s2678 + $0x28] sm:$0xff]
      %v2685 = vld [vmem:[%s2678 + $0x30] sm:$0xff]
      %v2686 = vld [vmem:[%s2678 + $0x38] sm:$0xff]
      %v2687 = vld [vmem:[#allocation6] sm:$0xff]
      %v2688 = vld [vmem:[#allocation6 + $0x8] sm:$0xff]
      %v2689 = vpack.c.bf16 %v2687, %v2687
      %v2690 = vpack.c.bf16 %v2688, %v2688
      %v2691 = vld [vmem:[#allocation13] sm:$0xff]
      %v2692 = vld [vmem:[#allocation13 + $0x8] sm:$0xff]
      %v2693 = vld [vmem:[#allocation13 + $0x10] sm:$0xff]
      %v2694 = vld [vmem:[#allocation13 + $0x18] sm:$0xff]
      %v2695 = vld [vmem:[#allocation13 + $0x20] sm:$0xff]
      %v2696 = vld [vmem:[#allocation13 + $0x28] sm:$0xff]
      %v2697 = vld [vmem:[#allocation13 + $0x30] sm:$0xff]
      %v2698 = vld [vmem:[#allocation13 + $0x38] sm:$0xff]
      %v2699 = vld [vmem:[#allocation13 + $0x40] sm:$0xff]
      %v2700 = vld [vmem:[#allocation13 + $0x48] sm:$0xff]
      %v2701 = vld [vmem:[#allocation13 + $0x50] sm:$0xff]
      %v2702 = vld [vmem:[#allocation13 + $0x58] sm:$0xff]
      %v2703 = vld [vmem:[#allocation13 + $0x60] sm:$0xff]
      %v2704 = vld [vmem:[#allocation13 + $0x68] sm:$0xff]
      %v2705 = vld [vmem:[#allocation13 + $0x70] sm:$0xff]
      %v2706 = vld [vmem:[#allocation13 + $0x78] sm:$0xff]
      %v2707 = vld [vmem:[#allocation13 + $0x80] sm:$0xff]
      %v2708 = vld [vmem:[#allocation13 + $0x88] sm:$0xff]
      %v2709 = vld [vmem:[#allocation13 + $0x90] sm:$0xff]
      %v2710 = vld [vmem:[#allocation13 + $0x98] sm:$0xff]
      %v2711 = vld [vmem:[#allocation13 + $0xa0] sm:$0xff]
      %v2712 = vld [vmem:[#allocation13 + $0xa8] sm:$0xff]
      %v2713 = vld [vmem:[#allocation13 + $0xb0] sm:$0xff]
      %v2714 = vld [vmem:[#allocation13 + $0xb8] sm:$0xff]
      %v2715 = vld [vmem:[#allocation13 + $0xc0] sm:$0xff]
      %v2716 = vld [vmem:[#allocation13 + $0xc8] sm:$0xff]
      %v2717 = vld [vmem:[#allocation13 + $0xd0] sm:$0xff]
      %v2718 = vld [vmem:[#allocation13 + $0xd8] sm:$0xff]
      %v2719 = vld [vmem:[#allocation13 + $0xe0] sm:$0xff]
      %v2720 = vld [vmem:[#allocation13 + $0xe8] sm:$0xff]
      %v2721 = vld [vmem:[#allocation13 + $0xf0] sm:$0xff]
      %v2722 = vld [vmem:[#allocation13 + $0xf8] sm:$0xff]
      %v2723 = vld [vmem:[#allocation13 + $0x100] sm:$0xff]
      %v2724 = vld [vmem:[#allocation13 + $0x108] sm:$0xff]
      %v2725 = vld [vmem:[#allocation13 + $0x110] sm:$0xff]
      %v2726 = vld [vmem:[#allocation13 + $0x118] sm:$0xff]
      %v2727 = vld [vmem:[#allocation13 + $0x120] sm:$0xff]
      %v2728 = vld [vmem:[#allocation13 + $0x128] sm:$0xff]
      %v2729 = vld [vmem:[#allocation13 + $0x130] sm:$0xff]
      %v2730 = vld [vmem:[#allocation13 + $0x138] sm:$0xff]
      %v2731 = vld [vmem:[#allocation13 + $0x140] sm:$0xff]
      %v2732 = vld [vmem:[#allocation13 + $0x148] sm:$0xff]
      %v2733 = vld [vmem:[#allocation13 + $0x150] sm:$0xff]
      %v2734 = vld [vmem:[#allocation13 + $0x158] sm:$0xff]
      %v2735 = vld [vmem:[#allocation13 + $0x160] sm:$0xff]
      %v2736 = vld [vmem:[#allocation13 + $0x168] sm:$0xff]
      %v2737 = vld [vmem:[#allocation13 + $0x170] sm:$0xff]
      %v2738 = vld [vmem:[#allocation13 + $0x178] sm:$0xff]
      %v2739 = vld [vmem:[#allocation13 + $0x180] sm:$0xff]
      %v2740 = vld [vmem:[#allocation13 + $0x188] sm:$0xff]
      %v2741 = vld [vmem:[#allocation13 + $0x190] sm:$0xff]
      %v2742 = vld [vmem:[#allocation13 + $0x198] sm:$0xff]
      %v2743 = vld [vmem:[#allocation13 + $0x1a0] sm:$0xff]
      %v2744 = vld [vmem:[#allocation13 + $0x1a8] sm:$0xff]
      %v2745 = vld [vmem:[#allocation13 + $0x1b0] sm:$0xff]
      %v2746 = vld [vmem:[#allocation13 + $0x1b8] sm:$0xff]
      %v2747 = vld [vmem:[#allocation13 + $0x1c0] sm:$0xff]
      %v2748 = vld [vmem:[#allocation13 + $0x1c8] sm:$0xff]
      %v2749 = vld [vmem:[#allocation13 + $0x1d0] sm:$0xff]
      %v2750 = vld [vmem:[#allocation13 + $0x1d8] sm:$0xff]
      %v2751 = vld [vmem:[#allocation13 + $0x1e0] sm:$0xff]
      %v2752 = vld [vmem:[#allocation13 + $0x1e8] sm:$0xff]
      %v2753 = vld [vmem:[#allocation13 + $0x1f0] sm:$0xff]
      %v2754 = vld [vmem:[#allocation13 + $0x1f8] sm:$0xff]
      %v2755 = vld [vmem:[#allocation13 + $0x200] sm:$0xff]
      %v2756 = vld [vmem:[#allocation13 + $0x208] sm:$0xff]
      %v2757 = vld [vmem:[#allocation13 + $0x210] sm:$0xff]
      %v2758 = vld [vmem:[#allocation13 + $0x218] sm:$0xff]
      %v2759 = vld [vmem:[#allocation13 + $0x220] sm:$0xff]
      %v2760 = vld [vmem:[#allocation13 + $0x228] sm:$0xff]
      %v2761 = vld [vmem:[#allocation13 + $0x230] sm:$0xff]
      %v2762 = vld [vmem:[#allocation13 + $0x238] sm:$0xff]
      %v2763 = vld [vmem:[#allocation13 + $0x240] sm:$0xff]
      %v2764 = vld [vmem:[#allocation13 + $0x248] sm:$0xff]
      %v2765 = vld [vmem:[#allocation13 + $0x250] sm:$0xff]
      %v2766 = vld [vmem:[#allocation13 + $0x258] sm:$0xff]
      %v2767 = vld [vmem:[#allocation13 + $0x260] sm:$0xff]
      %v2768 = vld [vmem:[#allocation13 + $0x268] sm:$0xff]
      %v2769 = vld [vmem:[#allocation13 + $0x270] sm:$0xff]
      %v2770 = vld [vmem:[#allocation13 + $0x278] sm:$0xff]
      %v2771 = vld [vmem:[#allocation13 + $0x280] sm:$0xff]
      %v2772 = vld [vmem:[#allocation13 + $0x288] sm:$0xff]
      %v2773 = vld [vmem:[#allocation13 + $0x290] sm:$0xff]
      %v2774 = vld [vmem:[#allocation13 + $0x298] sm:$0xff]
      %v2775 = vld [vmem:[#allocation13 + $0x2a0] sm:$0xff]
      %v2776 = vld [vmem:[#allocation13 + $0x2a8] sm:$0xff]
      %v2777 = vld [vmem:[#allocation13 + $0x2b0] sm:$0xff]
      %v2778 = vld [vmem:[#allocation13 + $0x2b8] sm:$0xff]
      %v2779 = vld [vmem:[#allocation13 + $0x2c0] sm:$0xff]
      %v2780 = vld [vmem:[#allocation13 + $0x2c8] sm:$0xff]
      %v2781 = vld [vmem:[#allocation13 + $0x2d0] sm:$0xff]
      %v2782 = vld [vmem:[#allocation13 + $0x2d8] sm:$0xff]
      %v2783 = vld [vmem:[#allocation13 + $0x2e0] sm:$0xff]
      %v2784 = vld [vmem:[#allocation13 + $0x2e8] sm:$0xff]
      %v2785 = vld [vmem:[#allocation13 + $0x2f0] sm:$0xff]
      %v2786 = vld [vmem:[#allocation13 + $0x2f8] sm:$0xff]
      %v2787 = vld [vmem:[#allocation13 + $0x300] sm:$0xff]
      %v2788 = vld [vmem:[#allocation13 + $0x308] sm:$0xff]
      %v2789 = vld [vmem:[#allocation13 + $0x310] sm:$0xff]
      %v2790 = vld [vmem:[#allocation13 + $0x318] sm:$0xff]
      %v2791 = vld [vmem:[#allocation13 + $0x320] sm:$0xff]
      %v2792 = vld [vmem:[#allocation13 + $0x328] sm:$0xff]
      %v2793 = vld [vmem:[#allocation13 + $0x330] sm:$0xff]
      %v2794 = vld [vmem:[#allocation13 + $0x338] sm:$0xff]
      %v2795 = vld [vmem:[#allocation13 + $0x340] sm:$0xff]
      %v2796 = vld [vmem:[#allocation13 + $0x348] sm:$0xff]
      %v2797 = vld [vmem:[#allocation13 + $0x350] sm:$0xff]
      %v2798 = vld [vmem:[#allocation13 + $0x358] sm:$0xff]
      %v2799 = vld [vmem:[#allocation13 + $0x360] sm:$0xff]
      %v2800 = vld [vmem:[#allocation13 + $0x368] sm:$0xff]
      %v2801 = vld [vmem:[#allocation13 + $0x370] sm:$0xff]
      %v2802 = vld [vmem:[#allocation13 + $0x378] sm:$0xff]
      %v2803 = vld [vmem:[#allocation13 + $0x380] sm:$0xff]
      %v2804 = vld [vmem:[#allocation13 + $0x388] sm:$0xff]
      %v2805 = vld [vmem:[#allocation13 + $0x390] sm:$0xff]
      %v2806 = vld [vmem:[#allocation13 + $0x398] sm:$0xff]
      %v2807 = vld [vmem:[#allocation13 + $0x3a0] sm:$0xff]
      %v2808 = vld [vmem:[#allocation13 + $0x3a8] sm:$0xff]
      %v2809 = vld [vmem:[#allocation13 + $0x3b0] sm:$0xff]
      %v2810 = vld [vmem:[#allocation13 + $0x3b8] sm:$0xff]
      %v2811 = vld [vmem:[#allocation13 + $0x3c0] sm:$0xff]
      %v2812 = vld [vmem:[#allocation13 + $0x3c8] sm:$0xff]
      %v2813 = vld [vmem:[#allocation13 + $0x3d0] sm:$0xff]
      %v2814 = vld [vmem:[#allocation13 + $0x3d8] sm:$0xff]
      %v2815 = vld [vmem:[#allocation13 + $0x3e0] sm:$0xff]
      %v2816 = vld [vmem:[#allocation13 + $0x3e8] sm:$0xff]
      %v2817 = vld [vmem:[#allocation13 + $0x3f0] sm:$0xff]
      %v2818 = vld [vmem:[#allocation13 + $0x3f8] sm:$0xff]
      %v2947 = vunpack.c.l.b16 %v2691
      %v2948 = vunpack.c.h.b16 %v2691
      %v2949 = vunpack.c.l.b16 %v2692
      %v2950 = vunpack.c.h.b16 %v2692
      %v2951 = vunpack.c.l.b16 %v2693
      %v2952 = vunpack.c.h.b16 %v2693
      %v2953 = vunpack.c.l.b16 %v2694
      %v2954 = vunpack.c.h.b16 %v2694
      %v2955 = vunpack.c.l.b16 %v2695
      %v2956 = vunpack.c.h.b16 %v2695
      %v2957 = vunpack.c.l.b16 %v2696
      %v2958 = vunpack.c.h.b16 %v2696
      %v2959 = vunpack.c.l.b16 %v2697
      %v2960 = vunpack.c.h.b16 %v2697
      %v2961 = vunpack.c.l.b16 %v2698
      %v2962 = vunpack.c.h.b16 %v2698
      %v2963 = vunpack.c.l.b16 %v2699
      %v2964 = vunpack.c.h.b16 %v2699
      %v2965 = vunpack.c.l.b16 %v2700
      %v2966 = vunpack.c.h.b16 %v2700
      %v2967 = vunpack.c.l.b16 %v2701
      %v2968 = vunpack.c.h.b16 %v2701
      %v2969 = vunpack.c.l.b16 %v2702
      %v2970 = vunpack.c.h.b16 %v2702
      %v2971 = vunpack.c.l.b16 %v2703
      %v2972 = vunpack.c.h.b16 %v2703
      %v2973 = vunpack.c.l.b16 %v2704
      %v2974 = vunpack.c.h.b16 %v2704
      %v2975 = vunpack.c.l.b16 %v2705
      %v2976 = vunpack.c.h.b16 %v2705
      %v2977 = vunpack.c.l.b16 %v2706
      %v2978 = vunpack.c.h.b16 %v2706
      %v2979 = vunpack.c.l.b16 %v2707
      %v2980 = vunpack.c.h.b16 %v2707
      %v2981 = vunpack.c.l.b16 %v2708
      %v2982 = vunpack.c.h.b16 %v2708
      %v2983 = vunpack.c.l.b16 %v2709
      %v2984 = vunpack.c.h.b16 %v2709
      %v2985 = vunpack.c.l.b16 %v2710
      %v2986 = vunpack.c.h.b16 %v2710
      %v2987 = vunpack.c.l.b16 %v2711
      %v2988 = vunpack.c.h.b16 %v2711
      %v2989 = vunpack.c.l.b16 %v2712
      %v2990 = vunpack.c.h.b16 %v2712
      %v2991 = vunpack.c.l.b16 %v2713
      %v2992 = vunpack.c.h.b16 %v2713
      %v2993 = vunpack.c.l.b16 %v2714
      %v2994 = vunpack.c.h.b16 %v2714
      %v2995 = vunpack.c.l.b16 %v2715
      %v2996 = vunpack.c.h.b16 %v2715
      %v2997 = vunpack.c.l.b16 %v2716
      %v2998 = vunpack.c.h.b16 %v2716
      %v2999 = vunpack.c.l.b16 %v2717
      %v3000 = vunpack.c.h.b16 %v2717
      %v3001 = vunpack.c.l.b16 %v2718
      %v3002 = vunpack.c.h.b16 %v2718
      %v3003 = vunpack.c.l.b16 %v2719
      %v3004 = vunpack.c.h.b16 %v2719
      %v3005 = vunpack.c.l.b16 %v2720
      %v3006 = vunpack.c.h.b16 %v2720
      %v3007 = vunpack.c.l.b16 %v2721
      %v3008 = vunpack.c.h.b16 %v2721
      %v3009 = vunpack.c.l.b16 %v2722
      %v3010 = vunpack.c.h.b16 %v2722
      %v3011 = vunpack.c.l.b16 %v2723
      %v3012 = vunpack.c.h.b16 %v2723
      %v3013 = vunpack.c.l.b16 %v2724
      %v3014 = vunpack.c.h.b16 %v2724
      %v3015 = vunpack.c.l.b16 %v2725
      %v3016 = vunpack.c.h.b16 %v2725
      %v3017 = vunpack.c.l.b16 %v2726
      %v3018 = vunpack.c.h.b16 %v2726
      %v3019 = vunpack.c.l.b16 %v2727
      %v3020 = vunpack.c.h.b16 %v2727
      %v3021 = vunpack.c.l.b16 %v2728
      %v3022 = vunpack.c.h.b16 %v2728
      %v3023 = vunpack.c.l.b16 %v2729
      %v3024 = vunpack.c.h.b16 %v2729
      %v3025 = vunpack.c.l.b16 %v2730
      %v3026 = vunpack.c.h.b16 %v2730
      %v3027 = vunpack.c.l.b16 %v2731
      %v3028 = vunpack.c.h.b16 %v2731
      %v3029 = vunpack.c.l.b16 %v2732
      %v3030 = vunpack.c.h.b16 %v2732
      %v3031 = vunpack.c.l.b16 %v2733
      %v3032 = vunpack.c.h.b16 %v2733
      %v3033 = vunpack.c.l.b16 %v2734
      %v3034 = vunpack.c.h.b16 %v2734
      %v3035 = vunpack.c.l.b16 %v2735
      %v3036 = vunpack.c.h.b16 %v2735
      %v3037 = vunpack.c.l.b16 %v2736
      %v3038 = vunpack.c.h.b16 %v2736
      %v3039 = vunpack.c.l.b16 %v2737
      %v3040 = vunpack.c.h.b16 %v2737
      %v3041 = vunpack.c.l.b16 %v2738
      %v3042 = vunpack.c.h.b16 %v2738
      %v3043 = vunpack.c.l.b16 %v2739
      %v3044 = vunpack.c.h.b16 %v2739
      %v3045 = vunpack.c.l.b16 %v2740
      %v3046 = vunpack.c.h.b16 %v2740
      %v3047 = vunpack.c.l.b16 %v2741
      %v3048 = vunpack.c.h.b16 %v2741
      %v3049 = vunpack.c.l.b16 %v2742
      %v3050 = vunpack.c.h.b16 %v2742
      %v3051 = vunpack.c.l.b16 %v2743
      %v3052 = vunpack.c.h.b16 %v2743
      %v3053 = vunpack.c.l.b16 %v2744
      %v3054 = vunpack.c.h.b16 %v2744
      %v3055 = vunpack.c.l.b16 %v2745
      %v3056 = vunpack.c.h.b16 %v2745
      %v3057 = vunpack.c.l.b16 %v2746
      %v3058 = vunpack.c.h.b16 %v2746
      %v3059 = vunpack.c.l.b16 %v2747
      %v3060 = vunpack.c.h.b16 %v2747
      %v3061 = vunpack.c.l.b16 %v2748
      %v3062 = vunpack.c.h.b16 %v2748
      %v3063 = vunpack.c.l.b16 %v2749
      %v3064 = vunpack.c.h.b16 %v2749
      %v3065 = vunpack.c.l.b16 %v2750
      %v3066 = vunpack.c.h.b16 %v2750
      %v3067 = vunpack.c.l.b16 %v2751
      %v3068 = vunpack.c.h.b16 %v2751
      %v3069 = vunpack.c.l.b16 %v2752
      %v3070 = vunpack.c.h.b16 %v2752
      %v3071 = vunpack.c.l.b16 %v2753
      %v3072 = vunpack.c.h.b16 %v2753
      %v3073 = vunpack.c.l.b16 %v2754
      %v3074 = vunpack.c.h.b16 %v2754
      %v3075 = vunpack.c.l.b16 %v2755
      %v3076 = vunpack.c.h.b16 %v2755
      %v3077 = vunpack.c.l.b16 %v2756
      %v3078 = vunpack.c.h.b16 %v2756
      %v3079 = vunpack.c.l.b16 %v2757
      %v3080 = vunpack.c.h.b16 %v2757
      %v3081 = vunpack.c.l.b16 %v2758
      %v3082 = vunpack.c.h.b16 %v2758
      %v3083 = vunpack.c.l.b16 %v2759
      %v3084 = vunpack.c.h.b16 %v2759
      %v3085 = vunpack.c.l.b16 %v2760
      %v3086 = vunpack.c.h.b16 %v2760
      %v3087 = vunpack.c.l.b16 %v2761
      %v3088 = vunpack.c.h.b16 %v2761
      %v3089 = vunpack.c.l.b16 %v2762
      %v3090 = vunpack.c.h.b16 %v2762
      %v3091 = vunpack.c.l.b16 %v2763
      %v3092 = vunpack.c.h.b16 %v2763
      %v3093 = vunpack.c.l.b16 %v2764
      %v3094 = vunpack.c.h.b16 %v2764
      %v3095 = vunpack.c.l.b16 %v2765
      %v3096 = vunpack.c.h.b16 %v2765
      %v3097 = vunpack.c.l.b16 %v2766
      %v3098 = vunpack.c.h.b16 %v2766
      %v3099 = vunpack.c.l.b16 %v2767
      %v3100 = vunpack.c.h.b16 %v2767
      %v3101 = vunpack.c.l.b16 %v2768
      %v3102 = vunpack.c.h.b16 %v2768
      %v3103 = vunpack.c.l.b16 %v2769
      %v3104 = vunpack.c.h.b16 %v2769
      %v3105 = vunpack.c.l.b16 %v2770
      %v3106 = vunpack.c.h.b16 %v2770
      %v3107 = vunpack.c.l.b16 %v2771
      %v3108 = vunpack.c.h.b16 %v2771
      %v3109 = vunpack.c.l.b16 %v2772
      %v3110 = vunpack.c.h.b16 %v2772
      %v3111 = vunpack.c.l.b16 %v2773
      %v3112 = vunpack.c.h.b16 %v2773
      %v3113 = vunpack.c.l.b16 %v2774
      %v3114 = vunpack.c.h.b16 %v2774
      %v3115 = vunpack.c.l.b16 %v2775
      %v3116 = vunpack.c.h.b16 %v2775
      %v3117 = vunpack.c.l.b16 %v2776
      %v3118 = vunpack.c.h.b16 %v2776
      %v3119 = vunpack.c.l.b16 %v2777
      %v3120 = vunpack.c.h.b16 %v2777
      %v3121 = vunpack.c.l.b16 %v2778
      %v3122 = vunpack.c.h.b16 %v2778
      %v3123 = vunpack.c.l.b16 %v2779
      %v3124 = vunpack.c.h.b16 %v2779
      %v3125 = vunpack.c.l.b16 %v2780
      %v3126 = vunpack.c.h.b16 %v2780
      %v3127 = vunpack.c.l.b16 %v2781
      %v3128 = vunpack.c.h.b16 %v2781
      %v3129 = vunpack.c.l.b16 %v2782
      %v3130 = vunpack.c.h.b16 %v2782
      %v3131 = vunpack.c.l.b16 %v2783
      %v3132 = vunpack.c.h.b16 %v2783
      %v3133 = vunpack.c.l.b16 %v2784
      %v3134 = vunpack.c.h.b16 %v2784
      %v3135 = vunpack.c.l.b16 %v2785
      %v3136 = vunpack.c.h.b16 %v2785
      %v3137 = vunpack.c.l.b16 %v2786
      %v3138 = vunpack.c.h.b16 %v2786
      %v3139 = vunpack.c.l.b16 %v2787
      %v3140 = vunpack.c.h.b16 %v2787
      %v3141 = vunpack.c.l.b16 %v2788
      %v3142 = vunpack.c.h.b16 %v2788
      %v3143 = vunpack.c.l.b16 %v2789
      %v3144 = vunpack.c.h.b16 %v2789
      %v3145 = vunpack.c.l.b16 %v2790
      %v3146 = vunpack.c.h.b16 %v2790
      %v3147 = vunpack.c.l.b16 %v2791
      %v3148 = vunpack.c.h.b16 %v2791
      %v3149 = vunpack.c.l.b16 %v2792
      %v3150 = vunpack.c.h.b16 %v2792
      %v3151 = vunpack.c.l.b16 %v2793
      %v3152 = vunpack.c.h.b16 %v2793
      %v3153 = vunpack.c.l.b16 %v2794
      %v3154 = vunpack.c.h.b16 %v2794
      %v3155 = vunpack.c.l.b16 %v2795
      %v3156 = vunpack.c.h.b16 %v2795
      %v3157 = vunpack.c.l.b16 %v2796
      %v3158 = vunpack.c.h.b16 %v2796
      %v3159 = vunpack.c.l.b16 %v2797
      %v3160 = vunpack.c.h.b16 %v2797
      %v3161 = vunpack.c.l.b16 %v2798
      %v3162 = vunpack.c.h.b16 %v2798
      %v3163 = vunpack.c.l.b16 %v2799
      %v3164 = vunpack.c.h.b16 %v2799
      %v3165 = vunpack.c.l.b16 %v2800
      %v3166 = vunpack.c.h.b16 %v2800
      %v3167 = vunpack.c.l.b16 %v2801
      %v3168 = vunpack.c.h.b16 %v2801
      %v3169 = vunpack.c.l.b16 %v2802
      %v3170 = vunpack.c.h.b16 %v2802
      %v3171 = vunpack.c.l.b16 %v2803
      %v3172 = vunpack.c.h.b16 %v2803
      %v3173 = vunpack.c.l.b16 %v2804
      %v3174 = vunpack.c.h.b16 %v2804
      %v3175 = vunpack.c.l.b16 %v2805
      %v3176 = vunpack.c.h.b16 %v2805
      %v3177 = vunpack.c.l.b16 %v2806
      %v3178 = vunpack.c.h.b16 %v2806
      %v3179 = vunpack.c.l.b16 %v2807
      %v3180 = vunpack.c.h.b16 %v2807
      %v3181 = vunpack.c.l.b16 %v2808
      %v3182 = vunpack.c.h.b16 %v2808
      %v3183 = vunpack.c.l.b16 %v2809
      %v3184 = vunpack.c.h.b16 %v2809
      %v3185 = vunpack.c.l.b16 %v2810
      %v3186 = vunpack.c.h.b16 %v2810
      %v3187 = vunpack.c.l.b16 %v2811
      %v3188 = vunpack.c.h.b16 %v2811
      %v3189 = vunpack.c.l.b16 %v2812
      %v3190 = vunpack.c.h.b16 %v2812
      %v3191 = vunpack.c.l.b16 %v2813
      %v3192 = vunpack.c.h.b16 %v2813
      %v3193 = vunpack.c.l.b16 %v2814
      %v3194 = vunpack.c.h.b16 %v2814
      %v3195 = vunpack.c.l.b16 %v2815
      %v3196 = vunpack.c.h.b16 %v2815
      %v3197 = vunpack.c.l.b16 %v2816
      %v3198 = vunpack.c.h.b16 %v2816
      %v3199 = vunpack.c.l.b16 %v2817
      %v3200 = vunpack.c.h.b16 %v2817
      %v3201 = vunpack.c.l.b16 %v2818
      %v3202 = vunpack.c.h.b16 %v2818
      %v3203 = vpack.c.b16 %v2955, %v2947
      %v3204 = vpack.c.b16 %v2956, %v2948
      %v3205 = vpack.c.b16 %v2957, %v2949
      %v3206 = vpack.c.b16 %v2958, %v2950
      %v3207 = vpack.c.b16 %v2959, %v2951
      %v3208 = vpack.c.b16 %v2960, %v2952
      %v3209 = vpack.c.b16 %v2961, %v2953
      %v3210 = vpack.c.b16 %v2962, %v2954
      %v3211 = vpack.c.b16 %v2971, %v2963
      %v3212 = vpack.c.b16 %v2972, %v2964
      %v3213 = vpack.c.b16 %v2973, %v2965
      %v3214 = vpack.c.b16 %v2974, %v2966
      %v3215 = vpack.c.b16 %v2975, %v2967
      %v3216 = vpack.c.b16 %v2976, %v2968
      %v3217 = vpack.c.b16 %v2977, %v2969
      %v3218 = vpack.c.b16 %v2978, %v2970
      %v3219 = vpack.c.b16 %v2987, %v2979
      %v3220 = vpack.c.b16 %v2988, %v2980
      %v3221 = vpack.c.b16 %v2989, %v2981
      %v3222 = vpack.c.b16 %v2990, %v2982
      %v3223 = vpack.c.b16 %v2991, %v2983
      %v3224 = vpack.c.b16 %v2992, %v2984
      %v3225 = vpack.c.b16 %v2993, %v2985
      %v3226 = vpack.c.b16 %v2994, %v2986
      %v3227 = vpack.c.b16 %v3003, %v2995
      %v3228 = vpack.c.b16 %v3004, %v2996
      %v3229 = vpack.c.b16 %v3005, %v2997
      %v3230 = vpack.c.b16 %v3006, %v2998
      %v3231 = vpack.c.b16 %v3007, %v2999
      %v3232 = vpack.c.b16 %v3008, %v3000
      %v3233 = vpack.c.b16 %v3009, %v3001
      %v3234 = vpack.c.b16 %v3010, %v3002
      %v3235 = vpack.c.b16 %v3019, %v3011
      %v3236 = vpack.c.b16 %v3020, %v3012
      %v3237 = vpack.c.b16 %v3021, %v3013
      %v3238 = vpack.c.b16 %v3022, %v3014
      %v3239 = vpack.c.b16 %v3023, %v3015
      %v3240 = vpack.c.b16 %v3024, %v3016
      %v3241 = vpack.c.b16 %v3025, %v3017
      %v3242 = vpack.c.b16 %v3026, %v3018
      %v3243 = vpack.c.b16 %v3035, %v3027
      %v3244 = vpack.c.b16 %v3036, %v3028
      %v3245 = vpack.c.b16 %v3037, %v3029
      %v3246 = vpack.c.b16 %v3038, %v3030
      %v3247 = vpack.c.b16 %v3039, %v3031
      %v3248 = vpack.c.b16 %v3040, %v3032
      %v3249 = vpack.c.b16 %v3041, %v3033
      %v3250 = vpack.c.b16 %v3042, %v3034
      %v3251 = vpack.c.b16 %v3051, %v3043
      %v3252 = vpack.c.b16 %v3052, %v3044
      %v3253 = vpack.c.b16 %v3053, %v3045
      %v3254 = vpack.c.b16 %v3054, %v3046
      %v3255 = vpack.c.b16 %v3055, %v3047
      %v3256 = vpack.c.b16 %v3056, %v3048
      %v3257 = vpack.c.b16 %v3057, %v3049
      %v3258 = vpack.c.b16 %v3058, %v3050
      %v3259 = vpack.c.b16 %v3067, %v3059
      %v3260 = vpack.c.b16 %v3068, %v3060
      %v3261 = vpack.c.b16 %v3069, %v3061
      %v3262 = vpack.c.b16 %v3070, %v3062
      %v3263 = vpack.c.b16 %v3071, %v3063
      %v3264 = vpack.c.b16 %v3072, %v3064
      %v3265 = vpack.c.b16 %v3073, %v3065
      %v3266 = vpack.c.b16 %v3074, %v3066
      %v3267 = vpack.c.b16 %v3083, %v3075
      %v3268 = vpack.c.b16 %v3084, %v3076
      %v3269 = vpack.c.b16 %v3085, %v3077
      %v3270 = vpack.c.b16 %v3086, %v3078
      %v3271 = vpack.c.b16 %v3087, %v3079
      %v3272 = vpack.c.b16 %v3088, %v3080
      %v3273 = vpack.c.b16 %v3089, %v3081
      %v3274 = vpack.c.b16 %v3090, %v3082
      %v3275 = vpack.c.b16 %v3099, %v3091
      %v3276 = vpack.c.b16 %v3100, %v3092
      %v3277 = vpack.c.b16 %v3101, %v3093
      %v3278 = vpack.c.b16 %v3102, %v3094
      %v3279 = vpack.c.b16 %v3103, %v3095
      %v3280 = vpack.c.b16 %v3104, %v3096
      %v3281 = vpack.c.b16 %v3105, %v3097
      %v3282 = vpack.c.b16 %v3106, %v3098
      %v3283 = vpack.c.b16 %v3115, %v3107
      %v3284 = vpack.c.b16 %v3116, %v3108
      %v3285 = vpack.c.b16 %v3117, %v3109
      %v3286 = vpack.c.b16 %v3118, %v3110
      %v3287 = vpack.c.b16 %v3119, %v3111
      %v3288 = vpack.c.b16 %v3120, %v3112
      %v3289 = vpack.c.b16 %v3121, %v3113
      %v3290 = vpack.c.b16 %v3122, %v3114
      %v3291 = vpack.c.b16 %v3131, %v3123
      %v3292 = vpack.c.b16 %v3132, %v3124
      %v3293 = vpack.c.b16 %v3133, %v3125
      %v3294 = vpack.c.b16 %v3134, %v3126
      %v3295 = vpack.c.b16 %v3135, %v3127
      %v3296 = vpack.c.b16 %v3136, %v3128
      %v3297 = vpack.c.b16 %v3137, %v3129
      %v3298 = vpack.c.b16 %v3138, %v3130
      %v3299 = vpack.c.b16 %v3147, %v3139
      %v3300 = vpack.c.b16 %v3148, %v3140
      %v3301 = vpack.c.b16 %v3149, %v3141
      %v3302 = vpack.c.b16 %v3150, %v3142
      %v3303 = vpack.c.b16 %v3151, %v3143
      %v3304 = vpack.c.b16 %v3152, %v3144
      %v3305 = vpack.c.b16 %v3153, %v3145
      %v3306 = vpack.c.b16 %v3154, %v3146
      %v3307 = vpack.c.b16 %v3163, %v3155
      %v3308 = vpack.c.b16 %v3164, %v3156
      %v3309 = vpack.c.b16 %v3165, %v3157
      %v3310 = vpack.c.b16 %v3166, %v3158
      %v3311 = vpack.c.b16 %v3167, %v3159
      %v3312 = vpack.c.b16 %v3168, %v3160
      %v3313 = vpack.c.b16 %v3169, %v3161
      %v3314 = vpack.c.b16 %v3170, %v3162
      %v3315 = vpack.c.b16 %v3179, %v3171
      %v3316 = vpack.c.b16 %v3180, %v3172
      %v3317 = vpack.c.b16 %v3181, %v3173
      %v3318 = vpack.c.b16 %v3182, %v3174
      %v3319 = vpack.c.b16 %v3183, %v3175
      %v3320 = vpack.c.b16 %v3184, %v3176
      %v3321 = vpack.c.b16 %v3185, %v3177
      %v3322 = vpack.c.b16 %v3186, %v3178
      %v3323 = vpack.c.b16 %v3195, %v3187
      %v3324 = vpack.c.b16 %v3196, %v3188
      %v3325 = vpack.c.b16 %v3197, %v3189
      %v3326 = vpack.c.b16 %v3198, %v3190
      %v3327 = vpack.c.b16 %v3199, %v3191
      %v3328 = vpack.c.b16 %v3200, %v3192
      %v3329 = vpack.c.b16 %v3201, %v3193
      %v3330 = vpack.c.b16 %v3202, %v3194
      %3459 = vmatpush.bf16.msra.mxu0 %v3259
      %3460 = vmatpush.bf16.msra.mxu0 %v3251
      %3461 = vmatpush.bf16.msra.mxu0 %v3243
      %3462 = vmatpush.bf16.msra.mxu0 %v3235
      %3463 = vmatpush.bf16.msra.mxu0 %v3227
      %3464 = vmatpush.bf16.msra.mxu0 %v3219
      %3465 = vmatpush.bf16.msra.mxu0 %v3211
      %3466 = vmatpush.bf16.msra.mxu0 %v3203
      %3467 = vmatmul.bf16.gmra.mxu0 %v2689
      %v3468 = vpop.f32.mrf.mxu0
      %v3469 = vadd.f32 0.0, %v3468
      %v3470 = vpop.f32.mrf.mxu0
      %3471 = vdwg.mxu0
      %3472 = vmatpush.bf16.msra.mxu0 %v3323
      %3473 = vmatpush.bf16.msra.mxu0 %v3315
      %3474 = vmatpush.bf16.msra.mxu0 %v3307
      %3475 = vmatpush.bf16.msra.mxu0 %v3299
      %3476 = vmatpush.bf16.msra.mxu0 %v3291
      %3477 = vmatpush.bf16.msra.mxu0 %v3283
      %3478 = vmatpush.bf16.msra.mxu0 %v3275
      %3479 = vmatpush.bf16.msra.mxu0 %v3267
      %3480 = vmatmul.bf16.gmra.mxu0 %v2690
      %v3481 = vpop.f32.mrf.mxu0
      %v3482 = vadd.f32 %v3469, %v3481
      %v3483 = vpop.f32.mrf.mxu0
      %3484 = vdwg.mxu0
      %3485 = vmatpush.bf16.msra.mxu0 %v3260
      %3486 = vmatpush.bf16.msra.mxu0 %v3252
      %3487 = vmatpush.bf16.msra.mxu0 %v3244
      %3488 = vmatpush.bf16.msra.mxu0 %v3236
      %3489 = vmatpush.bf16.msra.mxu0 %v3228
      %3490 = vmatpush.bf16.msra.mxu0 %v3220
      %3491 = vmatpush.bf16.msra.mxu0 %v3212
      %3492 = vmatpush.bf16.msra.mxu0 %v3204
      %3493 = vmatmul.bf16.gmra.mxu0 %v2689
      %v3494 = vpop.f32.mrf.mxu0
      %v3495 = vadd.f32 0.0, %v3494
      %v3496 = vpop.f32.mrf.mxu0
      %3497 = vdwg.mxu0
      %3498 = vmatpush.bf16.msra.mxu0 %v3324
      %3499 = vmatpush.bf16.msra.mxu0 %v3316
      %3500 = vmatpush.bf16.msra.mxu0 %v3308
      %3501 = vmatpush.bf16.msra.mxu0 %v3300
      %3502 = vmatpush.bf16.msra.mxu0 %v3292
      %3503 = vmatpush.bf16.msra.mxu0 %v3284
      %3504 = vmatpush.bf16.msra.mxu0 %v3276
      %3505 = vmatpush.bf16.msra.mxu0 %v3268
      %3506 = vmatmul.bf16.gmra.mxu0 %v2690
      %v3507 = vpop.f32.mrf.mxu0
      %v3508 = vadd.f32 %v3495, %v3507
      %v3509 = vpop.f32.mrf.mxu0
      %3510 = vdwg.mxu0
      %3511 = vmatpush.bf16.msra.mxu0 %v3261
      %3512 = vmatpush.bf16.msra.mxu0 %v3253
      %3513 = vmatpush.bf16.msra.mxu0 %v3245
      %3514 = vmatpush.bf16.msra.mxu0 %v3237
      %3515 = vmatpush.bf16.msra.mxu0 %v3229
      %3516 = vmatpush.bf16.msra.mxu0 %v3221
      %3517 = vmatpush.bf16.msra.mxu0 %v3213
      %3518 = vmatpush.bf16.msra.mxu0 %v3205
      %3519 = vmatmul.bf16.gmra.mxu0 %v2689
      %v3520 = vpop.f32.mrf.mxu0
      %v3521 = vadd.f32 0.0, %v3520
      %v3522 = vpop.f32.mrf.mxu0
      %3523 = vdwg.mxu0
      %3524 = vmatpush.bf16.msra.mxu0 %v3325
      %3525 = vmatpush.bf16.msra.mxu0 %v3317
      %3526 = vmatpush.bf16.msra.mxu0 %v3309
      %3527 = vmatpush.bf16.msra.mxu0 %v3301
      %3528 = vmatpush.bf16.msra.mxu0 %v3293
      %3529 = vmatpush.bf16.msra.mxu0 %v3285
      %3530 = vmatpush.bf16.msra.mxu0 %v3277
      %3531 = vmatpush.bf16.msra.mxu0 %v3269
      %3532 = vmatmul.bf16.gmra.mxu0 %v2690
      %v3533 = vpop.f32.mrf.mxu0
      %v3534 = vadd.f32 %v3521, %v3533
      %v3535 = vpop.f32.mrf.mxu0
      %3536 = vdwg.mxu0
      %3537 = vmatpush.bf16.msra.mxu0 %v3262
      %3538 = vmatpush.bf16.msra.mxu0 %v3254
      %3539 = vmatpush.bf16.msra.mxu0 %v3246
      %3540 = vmatpush.bf16.msra.mxu0 %v3238
      %3541 = vmatpush.bf16.msra.mxu0 %v3230
      %3542 = vmatpush.bf16.msra.mxu0 %v3222
      %3543 = vmatpush.bf16.msra.mxu0 %v3214
      %3544 = vmatpush.bf16.msra.mxu0 %v3206
      %3545 = vmatmul.bf16.gmra.mxu0 %v2689
      %v3546 = vpop.f32.mrf.mxu0
      %v3547 = vadd.f32 0.0, %v3546
      %v3548 = vpop.f32.mrf.mxu0
      %3549 = vdwg.mxu0
      %3550 = vmatpush.bf16.msra.mxu0 %v3326
      %3551 = vmatpush.bf16.msra.mxu0 %v3318
      %3552 = vmatpush.bf16.msra.mxu0 %v3310
      %3553 = vmatpush.bf16.msra.mxu0 %v3302
      %3554 = vmatpush.bf16.msra.mxu0 %v3294
      %3555 = vmatpush.bf16.msra.mxu0 %v3286
      %3556 = vmatpush.bf16.msra.mxu0 %v3278
      %3557 = vmatpush.bf16.msra.mxu0 %v3270
      %3558 = vmatmul.bf16.gmra.mxu0 %v2690
      %v3559 = vpop.f32.mrf.mxu0
      %v3560 = vadd.f32 %v3547, %v3559
      %v3561 = vpop.f32.mrf.mxu0
      %3562 = vdwg.mxu0
      %3563 = vmatpush.bf16.msra.mxu0 %v3263
      %3564 = vmatpush.bf16.msra.mxu0 %v3255
      %3565 = vmatpush.bf16.msra.mxu0 %v3247
      %3566 = vmatpush.bf16.msra.mxu0 %v3239
      %3567 = vmatpush.bf16.msra.mxu0 %v3231
      %3568 = vmatpush.bf16.msra.mxu0 %v3223
      %3569 = vmatpush.bf16.msra.mxu0 %v3215
      %3570 = vmatpush.bf16.msra.mxu0 %v3207
      %3571 = vmatmul.bf16.gmra.mxu0 %v2689
      %v3572 = vpop.f32.mrf.mxu0
      %v3573 = vadd.f32 0.0, %v3572
      %v3574 = vpop.f32.mrf.mxu0
      %3575 = vdwg.mxu0
      %3576 = vmatpush.bf16.msra.mxu0 %v3327
      %3577 = vmatpush.bf16.msra.mxu0 %v3319
      %3578 = vmatpush.bf16.msra.mxu0 %v3311
      %3579 = vmatpush.bf16.msra.mxu0 %v3303
      %3580 = vmatpush.bf16.msra.mxu0 %v3295
      %3581 = vmatpush.bf16.msra.mxu0 %v3287
      %3582 = vmatpush.bf16.msra.mxu0 %v3279
      %3583 = vmatpush.bf16.msra.mxu0 %v3271
      %3584 = vmatmul.bf16.gmra.mxu0 %v2690
      %v3585 = vpop.f32.mrf.mxu0
      %v3586 = vadd.f32 %v3573, %v3585
      %v3587 = vpop.f32.mrf.mxu0
      %3588 = vdwg.mxu0
      %3589 = vmatpush.bf16.msra.mxu0 %v3264
      %3590 = vmatpush.bf16.msra.mxu0 %v3256
      %3591 = vmatpush.bf16.msra.mxu0 %v3248
      %3592 = vmatpush.bf16.msra.mxu0 %v3240
      %3593 = vmatpush.bf16.msra.mxu0 %v3232
      %3594 = vmatpush.bf16.msra.mxu0 %v3224
      %3595 = vmatpush.bf16.msra.mxu0 %v3216
      %3596 = vmatpush.bf16.msra.mxu0 %v3208
      %3597 = vmatmul.bf16.gmra.mxu0 %v2689
      %v3598 = vpop.f32.mrf.mxu0
      %v3599 = vadd.f32 0.0, %v3598
      %v3600 = vpop.f32.mrf.mxu0
      %3601 = vdwg.mxu0
      %3602 = vmatpush.bf16.msra.mxu0 %v3328
      %3603 = vmatpush.bf16.msra.mxu0 %v3320
      %3604 = vmatpush.bf16.msra.mxu0 %v3312
      %3605 = vmatpush.bf16.msra.mxu0 %v3304
      %3606 = vmatpush.bf16.msra.mxu0 %v3296
      %3607 = vmatpush.bf16.msra.mxu0 %v3288
      %3608 = vmatpush.bf16.msra.mxu0 %v3280
      %3609 = vmatpush.bf16.msra.mxu0 %v3272
      %3610 = vmatmul.bf16.gmra.mxu0 %v2690
      %v3611 = vpop.f32.mrf.mxu0
      %v3612 = vadd.f32 %v3599, %v3611
      %v3613 = vpop.f32.mrf.mxu0
      %3614 = vdwg.mxu0
      %3615 = vmatpush.bf16.msra.mxu0 %v3265
      %3616 = vmatpush.bf16.msra.mxu0 %v3257
      %3617 = vmatpush.bf16.msra.mxu0 %v3249
      %3618 = vmatpush.bf16.msra.mxu0 %v3241
      %3619 = vmatpush.bf16.msra.mxu0 %v3233
      %3620 = vmatpush.bf16.msra.mxu0 %v3225
      %3621 = vmatpush.bf16.msra.mxu0 %v3217
      %3622 = vmatpush.bf16.msra.mxu0 %v3209
      %3623 = vmatmul.bf16.gmra.mxu0 %v2689
      %v3624 = vpop.f32.mrf.mxu0
      %v3625 = vadd.f32 0.0, %v3624
      %v3626 = vpop.f32.mrf.mxu0
      %3627 = vdwg.mxu0
      %3628 = vmatpush.bf16.msra.mxu0 %v3329
      %3629 = vmatpush.bf16.msra.mxu0 %v3321
      %3630 = vmatpush.bf16.msra.mxu0 %v3313
      %3631 = vmatpush.bf16.msra.mxu0 %v3305
      %3632 = vmatpush.bf16.msra.mxu0 %v3297
      %3633 = vmatpush.bf16.msra.mxu0 %v3289
      %3634 = vmatpush.bf16.msra.mxu0 %v3281
      %3635 = vmatpush.bf16.msra.mxu0 %v3273
      %3636 = vmatmul.bf16.gmra.mxu0 %v2690
      %v3637 = vpop.f32.mrf.mxu0
      %v3638 = vadd.f32 %v3625, %v3637
      %v3639 = vpop.f32.mrf.mxu0
      %3640 = vdwg.mxu0
      %3641 = vmatpush.bf16.msra.mxu0 %v3266
      %3642 = vmatpush.bf16.msra.mxu0 %v3258
      %3643 = vmatpush.bf16.msra.mxu0 %v3250
      %3644 = vmatpush.bf16.msra.mxu0 %v3242
      %3645 = vmatpush.bf16.msra.mxu0 %v3234
      %3646 = vmatpush.bf16.msra.mxu0 %v3226
      %3647 = vmatpush.bf16.msra.mxu0 %v3218
      %3648 = vmatpush.bf16.msra.mxu0 %v3210
      %3649 = vmatmul.bf16.gmra.mxu0 %v2689
      %v3650 = vpop.f32.mrf.mxu0
      %v3651 = vadd.f32 0.0, %v3650
      %v3652 = vpop.f32.mrf.mxu0
      %3653 = vdwg.mxu0
      %3654 = vmatpush.bf16.msra.mxu0 %v3330
      %3655 = vmatpush.bf16.msra.mxu0 %v3322
      %3656 = vmatpush.bf16.msra.mxu0 %v3314
      %3657 = vmatpush.bf16.msra.mxu0 %v3306
      %3658 = vmatpush.bf16.msra.mxu0 %v3298
      %3659 = vmatpush.bf16.msra.mxu0 %v3290
      %3660 = vmatpush.bf16.msra.mxu0 %v3282
      %3661 = vmatpush.bf16.msra.mxu0 %v3274
      %3662 = vmatmul.bf16.gmra.mxu0 %v2690
      %v3663 = vpop.f32.mrf.mxu0
      %v3664 = vadd.f32 %v3651, %v3663
      %v3665 = vpop.f32.mrf.mxu0
      %3666 = vdwg.mxu0
      %v3667 = vadd.f32 %v2679, %v3482
      %v3668 = vadd.f32 %v2680, %v3508
      %v3669 = vadd.f32 %v2681, %v3534
      %v3670 = vadd.f32 %v2682, %v3560
      %v3671 = vadd.f32 %v2683, %v3586
      %v3672 = vadd.f32 %v2684, %v3612
      %v3673 = vadd.f32 %v2685, %v3638
      %v3674 = vadd.f32 %v2686, %v3664
      %v3675 = vld [vmem:[#allocation7] sm:$0xff]
      %v3676 = vld [vmem:[#allocation7 + $0x8] sm:$0xff]
      %v3677 = vxor.u32 %v3667, 2147483648
      %v3678 = vxor.u32 %v3668, 2147483648
      %v3679 = vmul.f32 %v3677, 1.442695
      %v3680 = vpow.pop %v3679
      %v3681 = vmul.f32 %v3678, 1.442695
      %v3682 = vpow.pop %v3681
      %v3683 = vadd.f32 %v3680, 1.0
      %v3684 = vadd.f32 %v3682, 1.0
      %v3685 = vrcp.pop %v3683
      %v3686 = vmul.f32 %v3683, %v3685
      %v3687 = vsub.f32 1.0, %v3686
      %v3688 = vmul.f32 %v3685, %v3687
      %v3689 = vadd.f32 %v3685, %v3688
      %vm3690 = vweird.f32 %v3683
      %vm3691 = vweird.f32 %v3685
      %vm3692 = vmor %vm3690, %vm3691
      %v3693 = vsel %vm3692, %v3685, %v3689
      %v3694 = vand.u32 2147483647, %v3683
      %vm3695 = vcmp.eq.f32.partialorder %v3694, 8.507059e+37
      %v3696 = vand.u32 %v3683, 2147483648
      %v3697 = vor.u32 1.1754944e-38, %v3696
      %v3698 = vsel %vm3695, %v3697, %v3693
      %v3699 = vmul.f32 1.0, %v3698
      %v3700 = vrcp.pop %v3684
      %v3701 = vmul.f32 %v3684, %v3700
      %v3702 = vsub.f32 1.0, %v3701
      %v3703 = vmul.f32 %v3700, %v3702
      %v3704 = vadd.f32 %v3700, %v3703
      %vm3705 = vweird.f32 %v3684
      %vm3706 = vweird.f32 %v3700
      %vm3707 = vmor %vm3705, %vm3706
      %v3708 = vsel %vm3707, %v3700, %v3704
      %v3709 = vand.u32 2147483647, %v3684
      %vm3710 = vcmp.eq.f32.partialorder %v3709, 8.507059e+37
      %v3711 = vand.u32 %v3684, 2147483648
      %v3712 = vor.u32 1.1754944e-38, %v3711
      %v3713 = vsel %vm3710, %v3712, %v3708
      %v3714 = vmul.f32 1.0, %v3713
      %v3715 = vxor.u32 %v3669, 2147483648
      %v3716 = vxor.u32 %v3670, 2147483648
      %v3717 = vmul.f32 %v3715, 1.442695
      %v3718 = vpow.pop %v3717
      %v3719 = vmul.f32 %v3716, 1.442695
      %v3720 = vpow.pop %v3719
      %v3721 = vadd.f32 %v3718, 1.0
      %v3722 = vadd.f32 %v3720, 1.0
      %v3723 = vrcp.pop %v3721
      %v3724 = vmul.f32 %v3721, %v3723
      %v3725 = vsub.f32 1.0, %v3724
      %v3726 = vmul.f32 %v3723, %v3725
      %v3727 = vadd.f32 %v3723, %v3726
      %vm3728 = vweird.f32 %v3721
      %vm3729 = vweird.f32 %v3723
      %vm3730 = vmor %vm3728, %vm3729
      %v3731 = vsel %vm3730, %v3723, %v3727
      %v3732 = vand.u32 2147483647, %v3721
      %vm3733 = vcmp.eq.f32.partialorder %v3732, 8.507059e+37
      %v3734 = vand.u32 %v3721, 2147483648
      %v3735 = vor.u32 1.1754944e-38, %v3734
      %v3736 = vsel %vm3733, %v3735, %v3731
      %v3737 = vmul.f32 1.0, %v3736
      %v3738 = vrcp.pop %v3722
      %v3739 = vmul.f32 %v3722, %v3738
      %v3740 = vsub.f32 1.0, %v3739
      %v3741 = vmul.f32 %v3738, %v3740
      %v3742 = vadd.f32 %v3738, %v3741
      %vm3743 = vweird.f32 %v3722
      %vm3744 = vweird.f32 %v3738
      %vm3745 = vmor %vm3743, %vm3744
      %v3746 = vsel %vm3745, %v3738, %v3742
      %v3747 = vand.u32 2147483647, %v3722
      %vm3748 = vcmp.eq.f32.partialorder %v3747, 8.507059e+37
      %v3749 = vand.u32 %v3722, 2147483648
      %v3750 = vor.u32 1.1754944e-38, %v3749
      %v3751 = vsel %vm3748, %v3750, %v3746
      %v3752 = vmul.f32 1.0, %v3751
      %v3753 = vtanh.pop %v3671
      %v3754 = vtanh.pop %v3672
      %v3755 = vxor.u32 %v3673, 2147483648
      %v3756 = vxor.u32 %v3674, 2147483648
      %v3757 = vmul.f32 %v3755, 1.442695
      %v3758 = vpow.pop %v3757
      %v3759 = vmul.f32 %v3756, 1.442695
      %v3760 = vpow.pop %v3759
      %v3761 = vadd.f32 %v3758, 1.0
      %v3762 = vadd.f32 %v3760, 1.0
      %v3763 = vrcp.pop %v3761
      %v3764 = vmul.f32 %v3761, %v3763
      %v3765 = vsub.f32 1.0, %v3764
      %v3766 = vmul.f32 %v3763, %v3765
      %v3767 = vadd.f32 %v3763, %v3766
      %vm3768 = vweird.f32 %v3761
      %vm3769 = vweird.f32 %v3763
      %vm3770 = vmor %vm3768, %vm3769
      %v3771 = vsel %vm3770, %v3763, %v3767
      %v3772 = vand.u32 2147483647, %v3761
      %vm3773 = vcmp.eq.f32.partialorder %v3772, 8.507059e+37
      %v3774 = vand.u32 %v3761, 2147483648
      %v3775 = vor.u32 1.1754944e-38, %v3774
      %v3776 = vsel %vm3773, %v3775, %v3771
      %v3777 = vmul.f32 1.0, %v3776
      %v3778 = vrcp.pop %v3762
      %v3779 = vmul.f32 %v3762, %v3778
      %v3780 = vsub.f32 1.0, %v3779
      %v3781 = vmul.f32 %v3778, %v3780
      %v3782 = vadd.f32 %v3778, %v3781
      %vm3783 = vweird.f32 %v3762
      %vm3784 = vweird.f32 %v3778
      %vm3785 = vmor %vm3783, %vm3784
      %v3786 = vsel %vm3785, %v3778, %v3782
      %v3787 = vand.u32 2147483647, %v3762
      %vm3788 = vcmp.eq.f32.partialorder %v3787, 8.507059e+37
      %v3789 = vand.u32 %v3762, 2147483648
      %v3790 = vor.u32 1.1754944e-38, %v3789
      %v3791 = vsel %vm3788, %v3790, %v3786
      %v3792 = vmul.f32 1.0, %v3791
      %v3793 = vmul.f32 %v3737, %v3675
      %v3794 = vmul.f32 %v3752, %v3676
      %v3795 = vmul.f32 %v3699, %v3753
      %v3796 = vmul.f32 %v3714, %v3754
      %v3797 = vadd.f32 %v3793, %v3795
      %v3798 = vadd.f32 %v3794, %v3796
      %v3799 = vtanh.pop %v3797
      %v3800 = vtanh.pop %v3798
      %v3801 = vmul.f32 %v3777, %v3799
      %v3802 = vmul.f32 %v3792, %v3800
      %3803 = vst [vmem:[#allocation6] sm:$0xff] %v3801
      %3804 = vst [vmem:[#allocation6 + $0x8] sm:$0xff] %v3802
      %3805 = vst [vmem:[#allocation7] sm:$0xff] %v3797
      %3806 = vst [vmem:[#allocation7 + $0x8] sm:$0xff] %v3798
      %s3807 = smul.u32 %s2674, 2
      %s3808 = smul.addr %s3807, 8
      %s3809 = scalar_lea.vmem %s8, %s3808
      %3810 = vst [vmem:[%s3809] sm:$0xff] %v3801
      %3811 = vst [vmem:[%s3809 + $0x8] sm:$0xff] %v3802
    $region50: #{custom_bert_forward.2} parent=1 // loop_footer
      %s1532 = sadd.s32 1, %s1528
    $region51: #{custom_bert_forward.2} parent=1 // loop_footer_branch
      %1527 = sbr.rel target = $region47
    $region52: #{custom_bert_forward.2} parent=1 // loop_exit
      _
    // Predicated region
    $region53: #{custom_bert_forward.2} parent=1 // pred_check
      _
    $region54: #{custom_bert_forward.2} parent=1 // pred_check_branch
      %3813 = sbr.rel (0) target = $region56
    $region55: #{custom_bert_forward.2} parent=1 // pred_region
      _
    $region56: #{custom_bert_forward.2} parent=1 // pred_fallthru
      _
    // Predicated region
    $region57: #{custom_bert_forward.2} parent=1 // pred_check
      _
    $region58: #{custom_bert_forward.2} parent=1 // pred_check_branch
      %3815 = sbr.rel (0) target = $region60
    $region59: #{custom_bert_forward.2} parent=1 // pred_region
      _
    $region60: #{custom_bert_forward.2} parent=1 // pred_fallthru
      _
    // Predicated region
    $region61: #{custom_bert_forward.2} parent=1 // pred_check
      _
    $region62: #{custom_bert_forward.2} parent=1 // pred_check_branch
      %3817 = sbr.rel (0) target = $region64
    $region63: #{custom_bert_forward.2} parent=1 // pred_region
      _
    $region64: #{custom_bert_forward.2} parent=1 // pred_fallthru
      _
    // Predicated region
    $region65: #{custom_bert_forward.2} parent=1 // pred_check
      _
    $region66: #{custom_bert_forward.2} parent=1 // pred_check_branch
      %3819 = sbr.rel (0) target = $region68
    $region67: #{custom_bert_forward.2} parent=1 // pred_region
      _
    $region68: #{custom_bert_forward.2} parent=1 // pred_fallthru
      _
    %3820 = vsyncpa [#allocation9], 1
    %3821 = vsyncpa [#allocation11], 1
    %3822 = vsyncpa [#allocation14], 1

// kernel: custom_bert_forward.3
$region0: #{custom_bert_forward.3}
  #allocation0 [shape = 'u32[]', space=smem, size = 0x4, offset = 0x4, fixed_abs, tag = 'smem constant byte address 0x4 - core index']
  #allocation1 [shape = 'u32[72,128]{1,0:T(1,128)}', space=vmem, size = 0x9000, scoped, tag = 'internal scratch']
  #allocation2 [shape = 'f32[64,1024]{1,0:T(8,128)}', space=vmem, size = 0x40000, scoped, tag = 'scratch operand']
  #allocation3 [shape = 'f32[64,1024]{1,0:T(8,128)}', space=vmem, size = 0x40000, scoped, tag = 'scratch operand']
  #allocation4 [shape = 'f32[8,256]{1,0:T(8,128)}', space=vmem, size = 0x2000, scoped, tag = 'scratch operand']
  #allocation5 [shape = 'f32[8,256]{1,0:T(8,128)}', space=vmem, size = 0x2000, scoped, tag = 'scratch operand']
  #allocation6 [shape = 'f32[8,256]{1,0:T(8,128)}', space=vmem, size = 0x2000, scoped, tag = 'scratch operand']
  #allocation7 [shape = 'f32[8,256]{1,0:T(8,128)}', space=vmem, size = 0x2000, scoped, tag = 'scratch operand']
  %s0 = inlined_call_operand.vmem [shape: f32[64,256], index: 0, kind: input, shape index: {}]
  %s1 = inlined_call_operand.vmem [shape: f32[64,256], index: 1, kind: input, shape index: {}]
  %s2 = inlined_call_operand.hbm [shape: bf16[256,1024], index: 2, kind: input, shape index: {}]
  %s3 = inlined_call_operand.hbm [shape: bf16[256,1024], index: 3, kind: input, shape index: {}]
  %s4 = inlined_call_operand.hbm [shape: bf16[256,1024], index: 4, kind: input, shape index: {}]
  %s5 = inlined_call_operand.vmem [shape: f32[1,1024], index: 5, kind: input, shape index: {}]
  %s6 = inlined_call_operand.hbm [shape: bf16[256,1024], index: 6, kind: input, shape index: {}]
  %s7 = inlined_call_operand.hbm [shape: bf16[256,1024], index: 7, kind: input, shape index: {}]
  %s8 = inlined_call_operand.hbm [shape: bf16[256,1024], index: 8, kind: input, shape index: {}]
  %s9 = inlined_call_operand.vmem [shape: f32[1,1024], index: 9, kind: input, shape index: {}]
  %s10 = inlined_call_operand.hbm [shape: bf16[256,256], index: 10, kind: input, shape index: {}]
  %s11 = inlined_call_operand.hbm [shape: bf16[256,256], index: 11, kind: input, shape index: {}]
  %s12 = inlined_call_operand.vmem [shape: f32[1,256], index: 12, kind: input, shape index: {}]
  %s13 = inlined_call_operand.vmem [shape: bf16[256,128], index: 13, kind: input, shape index: {}]
  %s14 = inlined_call_operand.vmem [shape: f32[1,128], index: 14, kind: input, shape index: {}]
  %s15 = inlined_call_operand.vmem [shape: bf16[128,128], index: 15, kind: input, shape index: {}]
  %s16 = inlined_call_operand.hbm [shape: f32[1,128], index: 16, kind: input, shape index: {}]
  %s17 = inlined_call_operand.vmem [shape: f32[8,128], index: 17, kind: output, shape index: {}]
  %s18 = sld [smem:[#allocation0]]
  $region121: #{custom_bert_forward.3} parent=0
    _
  %s20 = ssub.s32 1, %s18
  %s21 = scalar_select 0, %s20, %s18
  $region1: #{custom_bert_forward.3} parent=0
    #allocation8 [shape = 'u8[524288]{0}', space=vmem, size = 0x80000, scoped, tag = 'input window, operand 2, single buffered']
    #allocation9 [shape = 's32[1]{0}', space=sflag, size = 0x4, scoped, tag = 'scoped memory for custom_bert_forward.3']
    #allocation10 [shape = 'u8[524288]{0}', space=vmem, size = 0x80000, scoped, tag = 'input window, operand 3, single buffered']
    #allocation11 [shape = 's32[1]{0}', space=sflag, size = 0x4, scoped, tag = 'scoped memory for custom_bert_forward.3']
    #allocation12 [shape = 'u8[524288]{0}', space=vmem, size = 0x80000, scoped, tag = 'input window, operand 4, single buffered']
    #allocation13 [shape = 'u8[524288]{0}', space=vmem, size = 0x80000, scoped, tag = 'input window, operand 6, single buffered']
    #allocation14 [shape = 's32[1]{0}', space=sflag, size = 0x4, scoped, tag = 'scoped memory for custom_bert_forward.3']
    #allocation15 [shape = 'u8[524288]{0}', space=vmem, size = 0x80000, scoped, tag = 'input window, operand 7, single buffered']
    #allocation16 [shape = 'u8[524288]{0}', space=vmem, size = 0x80000, scoped, tag = 'input window, operand 8, single buffered']
    #allocation17 [shape = 's32[1]{0}', space=sflag, size = 0x4, scoped, tag = 'scoped memory for custom_bert_forward.3']
    #allocation18 [shape = 'u8[131072]{0}', space=vmem, size = 0x20000, scoped, tag = 'input window, operand 10, single buffered']
    #allocation19 [shape = 'u8[131072]{0}', space=vmem, size = 0x20000, scoped, tag = 'input window, operand 11, single buffered']
    #allocation20 [shape = 's32[1]{0}', space=sflag, size = 0x4, scoped, tag = 'scoped memory for custom_bert_forward.3']
    #allocation21 [shape = 'u8[512]{0}', space=vmem, size = 0x400, scoped, tag = 'input window, operand 16, single buffered']
    %22 = vsyncpa [#allocation9], 0
    %23 = vsyncpa [#allocation11], 0
    %24 = vsyncpa [#allocation14], 0
    %25 = vsyncpa [#allocation17], 0
    %26 = vsyncpa [#allocation20], 0
    // Predicated region
    $region2: #{custom_bert_forward.3} parent=1 // pred_check
      _
    $region3: #{custom_bert_forward.3} parent=1 // pred_check_branch
      %28 = sbr.rel (0) target = $region5
    $region4: #{custom_bert_forward.3} parent=1 // pred_region
      _
    $region5: #{custom_bert_forward.3} parent=1 // pred_fallthru
      _
    // Predicated region
    $region6: #{custom_bert_forward.3} parent=1 // pred_check
      _
    $region7: #{custom_bert_forward.3} parent=1 // pred_check_branch
      %30 = sbr.rel (0) target = $region9
    $region8: #{custom_bert_forward.3} parent=1 // pred_region
      _
    $region9: #{custom_bert_forward.3} parent=1 // pred_fallthru
      _
    // Predicated region
    $region10: #{custom_bert_forward.3} parent=1 // pred_check
      _
    $region11: #{custom_bert_forward.3} parent=1 // pred_check_branch
      %32 = sbr.rel (0) target = $region13
    $region12: #{custom_bert_forward.3} parent=1 // pred_region
      %34 = vsyncadd [#allocation9], 0
      %s35 = sshll.u32 %s2, 4
      %s36 = int_to_ptr.hbm [resolvable:$true] %s35
      %s37 = sshll.u32 [#allocation8], 4
      %s38 = int_to_ptr.vmem [resolvable:$true] %s37
      %43 = dma.hbm_to_vmem [thread:$0]  %s36, 16384, %s38, [#allocation9], 512, 512, 32
    $region13: #{custom_bert_forward.3} parent=1 // pred_fallthru
      _
    // Predicated region
    $region14: #{custom_bert_forward.3} parent=1 // pred_check
      _
    $region15: #{custom_bert_forward.3} parent=1 // pred_check_branch
      %45 = sbr.rel (0) target = $region17
    $region16: #{custom_bert_forward.3} parent=1 // pred_region
      %47 = vsyncadd [#allocation11], 0
      %s48 = sshll.u32 %s3, 4
      %s49 = int_to_ptr.hbm [resolvable:$true] %s48
      %s50 = sshll.u32 [#allocation10], 4
      %s51 = int_to_ptr.vmem [resolvable:$true] %s50
      %56 = dma.hbm_to_vmem [thread:$0]  %s49, 16384, %s51, [#allocation11], 512, 512, 32
    $region17: #{custom_bert_forward.3} parent=1 // pred_fallthru
      _
    // Predicated region
    $region18: #{custom_bert_forward.3} parent=1 // pred_check
      _
    $region19: #{custom_bert_forward.3} parent=1 // pred_check_branch
      %58 = sbr.rel (0) target = $region21
    $region20: #{custom_bert_forward.3} parent=1 // pred_region
      %60 = vsyncadd [#allocation11], 0
      %s61 = sshll.u32 %s4, 4
      %s62 = int_to_ptr.hbm [resolvable:$true] %s61
      %s63 = sshll.u32 [#allocation12], 4
      %s64 = int_to_ptr.vmem [resolvable:$true] %s63
      %69 = dma.hbm_to_vmem [thread:$0]  %s62, 16384, %s64, [#allocation11], 512, 512, 32
    $region21: #{custom_bert_forward.3} parent=1 // pred_fallthru
      _
    // Predicated region
    $region22: #{custom_bert_forward.3} parent=1 // pred_check
      _
    $region23: #{custom_bert_forward.3} parent=1 // pred_check_branch
      %71 = sbr.rel (0) target = $region25
    $region24: #{custom_bert_forward.3} parent=1 // pred_region
      _
    $region25: #{custom_bert_forward.3} parent=1 // pred_fallthru
      _
    // Predicated region
    $region26: #{custom_bert_forward.3} parent=1 // pred_check
      _
    $region27: #{custom_bert_forward.3} parent=1 // pred_check_branch
      %73 = sbr.rel (0) target = $region29
    $region28: #{custom_bert_forward.3} parent=1 // pred_region
      %75 = vsyncadd [#allocation14], 0
      %s76 = sshll.u32 %s6, 4
      %s77 = int_to_ptr.hbm [resolvable:$true] %s76
      %s78 = sshll.u32 [#allocation13], 4
      %s79 = int_to_ptr.vmem [resolvable:$true] %s78
      %84 = dma.hbm_to_vmem [thread:$0]  %s77, 16384, %s79, [#allocation14], 512, 512, 32
    $region29: #{custom_bert_forward.3} parent=1 // pred_fallthru
      _
    // Predicated region
    $region30: #{custom_bert_forward.3} parent=1 // pred_check
      _
    $region31: #{custom_bert_forward.3} parent=1 // pred_check_branch
      %86 = sbr.rel (0) target = $region33
    $region32: #{custom_bert_forward.3} parent=1 // pred_region
      %88 = vsyncadd [#allocation14], 0
      %s89 = sshll.u32 %s7, 4
      %s90 = int_to_ptr.hbm [resolvable:$true] %s89
      %s91 = sshll.u32 [#allocation15], 4
      %s92 = int_to_ptr.vmem [resolvable:$true] %s91
      %97 = dma.hbm_to_vmem [thread:$0]  %s90, 16384, %s92, [#allocation14], 512, 512, 32
    $region33: #{custom_bert_forward.3} parent=1 // pred_fallthru
      _
    // Predicated region
    $region34: #{custom_bert_forward.3} parent=1 // pred_check
      _
    $region35: #{custom_bert_forward.3} parent=1 // pred_check_branch
      %99 = sbr.rel (0) target = $region37
    $region36: #{custom_bert_forward.3} parent=1 // pred_region
      %101 = vsyncadd [#allocation17], 0
      %s102 = sshll.u32 %s8, 4
      %s103 = int_to_ptr.hbm [resolvable:$true] %s102
      %s104 = sshll.u32 [#allocation16], 4
      %s105 = int_to_ptr.vmem [resolvable:$true] %s104
      %110 = dma.hbm_to_vmem [thread:$0]  %s103, 16384, %s105, [#allocation17], 512, 512, 32
    $region37: #{custom_bert_forward.3} parent=1 // pred_fallthru
      _
    // Predicated region
    $region38: #{custom_bert_forward.3} parent=1 // pred_check
      _
    $region39: #{custom_bert_forward.3} parent=1 // pred_check_branch
      %112 = sbr.rel (0) target = $region41
    $region40: #{custom_bert_forward.3} parent=1 // pred_region
      _
    $region41: #{custom_bert_forward.3} parent=1 // pred_fallthru
      _
    // Predicated region
    $region42: #{custom_bert_forward.3} parent=1 // pred_check
      _
    $region43: #{custom_bert_forward.3} parent=1 // pred_check_branch
      %114 = sbr.rel (0) target = $region45
    $region44: #{custom_bert_forward.3} parent=1 // pred_region
      %116 = vsyncadd [#allocation17], 0
      %s117 = sshll.u32 %s10, 4
      %s118 = int_to_ptr.hbm [resolvable:$true] %s117
      %s119 = sshll.u32 [#allocation18], 4
      %s120 = int_to_ptr.vmem [resolvable:$true] %s119
      %125 = dma.hbm_to_vmem [thread:$0]  %s118, 4096, %s120, [#allocation17], 128, 128, 8
    $region45: #{custom_bert_forward.3} parent=1 // pred_fallthru
      _
    // Predicated region
    $region46: #{custom_bert_forward.3} parent=1 // pred_check
      _
    $region47: #{custom_bert_forward.3} parent=1 // pred_check_branch
      %127 = sbr.rel (0) target = $region49
    $region48: #{custom_bert_forward.3} parent=1 // pred_region
      %129 = vsyncadd [#allocation20], 0
      %s130 = sshll.u32 %s11, 4
      %s131 = int_to_ptr.hbm [resolvable:$true] %s130
      %s132 = sshll.u32 [#allocation19], 4
      %s133 = int_to_ptr.vmem [resolvable:$true] %s132
      %138 = dma.hbm_to_vmem [thread:$0]  %s131, 4096, %s133, [#allocation20], 128, 128, 8
    $region49: #{custom_bert_forward.3} parent=1 // pred_fallthru
      _
    // Predicated region
    $region50: #{custom_bert_forward.3} parent=1 // pred_check
      _
    $region51: #{custom_bert_forward.3} parent=1 // pred_check_branch
      %140 = sbr.rel (0) target = $region53
    $region52: #{custom_bert_forward.3} parent=1 // pred_region
      _
    $region53: #{custom_bert_forward.3} parent=1 // pred_fallthru
      _
    // Predicated region
    $region54: #{custom_bert_forward.3} parent=1 // pred_check
      _
    $region55: #{custom_bert_forward.3} parent=1 // pred_check_branch
      %142 = sbr.rel (0) target = $region57
    $region56: #{custom_bert_forward.3} parent=1 // pred_region
      _
    $region57: #{custom_bert_forward.3} parent=1 // pred_fallthru
      _
    // Predicated region
    $region58: #{custom_bert_forward.3} parent=1 // pred_check
      _
    $region59: #{custom_bert_forward.3} parent=1 // pred_check_branch
      %144 = sbr.rel (0) target = $region61
    $region60: #{custom_bert_forward.3} parent=1 // pred_region
      _
    $region61: #{custom_bert_forward.3} parent=1 // pred_fallthru
      _
    // Predicated region
    $region62: #{custom_bert_forward.3} parent=1 // pred_check
      _
    $region63: #{custom_bert_forward.3} parent=1 // pred_check_branch
      %146 = sbr.rel (0) target = $region65
    $region64: #{custom_bert_forward.3} parent=1 // pred_region
      _
    $region65: #{custom_bert_forward.3} parent=1 // pred_fallthru
      _
    // Predicated region
    $region66: #{custom_bert_forward.3} parent=1 // pred_check
      _
    $region67: #{custom_bert_forward.3} parent=1 // pred_check_branch
      %148 = sbr.rel (0) target = $region69
    $region68: #{custom_bert_forward.3} parent=1 // pred_region
      %150 = vsyncadd [#allocation20], 0
      %s152 = sshll.u32 %s16, 4
      %s153 = int_to_ptr.hbm [resolvable:$true] %s152
      %s154 = sshll.u32 [#allocation21], 4
      %s155 = int_to_ptr.vmem [resolvable:$true] %s154
      %157 = dma.hbm_to_vmem [thread:$0]  %s153, 16, %s155, [#allocation20]
    $region69: #{custom_bert_forward.3} parent=1 // pred_fallthru
      _
    // Predicated region
    $region70: #{custom_bert_forward.3} parent=1 // pred_check
      _
    $region71: #{custom_bert_forward.3} parent=1 // pred_check_branch
      %159 = sbr.rel (0) target = $region73
    $region72: #{custom_bert_forward.3} parent=1 // pred_region
      %161 = dma.done [#allocation9], 16384
    $region73: #{custom_bert_forward.3} parent=1 // pred_fallthru
      _
    // Predicated region
    $region74: #{custom_bert_forward.3} parent=1 // pred_check
      _
    $region75: #{custom_bert_forward.3} parent=1 // pred_check_branch
      %163 = sbr.rel (0) target = $region77
    $region76: #{custom_bert_forward.3} parent=1 // pred_region
      %165 = dma.done [#allocation11], 16384
    $region77: #{custom_bert_forward.3} parent=1 // pred_fallthru
      _
    // Predicated region
    $region78: #{custom_bert_forward.3} parent=1 // pred_check
      _
    $region79: #{custom_bert_forward.3} parent=1 // pred_check_branch
      %167 = sbr.rel (0) target = $region81
    $region80: #{custom_bert_forward.3} parent=1 // pred_region
      %169 = dma.done [#allocation11], 16384
    $region81: #{custom_bert_forward.3} parent=1 // pred_fallthru
      _
    // Predicated region
    $region82: #{custom_bert_forward.3} parent=1 // pred_check
      _
    $region83: #{custom_bert_forward.3} parent=1 // pred_check_branch
      %171 = sbr.rel (0) target = $region85
    $region84: #{custom_bert_forward.3} parent=1 // pred_region
      %173 = dma.done [#allocation14], 16384
    $region85: #{custom_bert_forward.3} parent=1 // pred_fallthru
      _
    // Predicated region
    $region86: #{custom_bert_forward.3} parent=1 // pred_check
      _
    $region87: #{custom_bert_forward.3} parent=1 // pred_check_branch
      %175 = sbr.rel (0) target = $region89
    $region88: #{custom_bert_forward.3} parent=1 // pred_region
      %177 = dma.done [#allocation14], 16384
    $region89: #{custom_bert_forward.3} parent=1 // pred_fallthru
      _
    // Predicated region
    $region90: #{custom_bert_forward.3} parent=1 // pred_check
      _
    $region91: #{custom_bert_forward.3} parent=1 // pred_check_branch
      %179 = sbr.rel (0) target = $region93
    $region92: #{custom_bert_forward.3} parent=1 // pred_region
      %181 = dma.done [#allocation17], 16384
    $region93: #{custom_bert_forward.3} parent=1 // pred_fallthru
      _
    // Predicated region
    $region94: #{custom_bert_forward.3} parent=1 // pred_check
      _
    $region95: #{custom_bert_forward.3} parent=1 // pred_check_branch
      %183 = sbr.rel (0) target = $region97
    $region96: #{custom_bert_forward.3} parent=1 // pred_region
      %185 = dma.done [#allocation17], 4096
    $region97: #{custom_bert_forward.3} parent=1 // pred_fallthru
      _
    // Predicated region
    $region98: #{custom_bert_forward.3} parent=1 // pred_check
      _
    $region99: #{custom_bert_forward.3} parent=1 // pred_check_branch
      %187 = sbr.rel (0) target = $region101
    $region100: #{custom_bert_forward.3} parent=1 // pred_region
      %189 = dma.done [#allocation20], 4096
    $region101: #{custom_bert_forward.3} parent=1 // pred_fallthru
      _
    // Predicated region
    $region102: #{custom_bert_forward.3} parent=1 // pred_check
      _
    $region103: #{custom_bert_forward.3} parent=1 // pred_check_branch
      %191 = sbr.rel (0) target = $region105
    $region104: #{custom_bert_forward.3} parent=1 // pred_region
      %193 = dma.done [#allocation20], 16
    $region105: #{custom_bert_forward.3} parent=1 // pred_fallthru
      _
    %v194 = vld [vmem:[%s0] sm:$0xff]
    %v195 = vld [vmem:[%s0 + $0x8] sm:$0xff]
    %v196 = vld [vmem:[%s0 + $0x10] sm:$0xff]
    %v197 = vld [vmem:[%s0 + $0x18] sm:$0xff]
    %v198 = vld [vmem:[%s0 + $0x20] sm:$0xff]
    %v199 = vld [vmem:[%s0 + $0x28] sm:$0xff]
    %v200 = vld [vmem:[%s0 + $0x30] sm:$0xff]
    %v201 = vld [vmem:[%s0 + $0x38] sm:$0xff]
    %v202 = vld [vmem:[%s0 + $0x40] sm:$0xff]
    %v203 = vld [vmem:[%s0 + $0x48] sm:$0xff]
    %v204 = vld [vmem:[%s0 + $0x50] sm:$0xff]
    %v205 = vld [vmem:[%s0 + $0x58] sm:$0xff]
    %v206 = vld [vmem:[%s0 + $0x60] sm:$0xff]
    %v207 = vld [vmem:[%s0 + $0x68] sm:$0xff]
    %v208 = vld [vmem:[%s0 + $0x70] sm:$0xff]
    %v209 = vld [vmem:[%s0 + $0x78] sm:$0xff]
    %v210 = vpack.c.bf16 %v196, %v194
    %v211 = vpack.c.bf16 %v197, %v195
    %v212 = vpack.c.bf16 %v200, %v198
    %v213 = vpack.c.bf16 %v201, %v199
    %v214 = vpack.c.bf16 %v204, %v202
    %v215 = vpack.c.bf16 %v205, %v203
    %v216 = vpack.c.bf16 %v208, %v206
    %v217 = vpack.c.bf16 %v209, %v207
    %v218 = vld [vmem:[%s1] sm:$0xff]
    %v219 = vld [vmem:[%s1 + $0x8] sm:$0xff]
    %v220 = vld [vmem:[%s1 + $0x10] sm:$0xff]
    %v221 = vld [vmem:[%s1 + $0x18] sm:$0xff]
    %v222 = vld [vmem:[%s1 + $0x20] sm:$0xff]
    %v223 = vld [vmem:[%s1 + $0x28] sm:$0xff]
    %v224 = vld [vmem:[%s1 + $0x30] sm:$0xff]
    %v225 = vld [vmem:[%s1 + $0x38] sm:$0xff]
    %v226 = vld [vmem:[%s1 + $0x40] sm:$0xff]
    %v227 = vld [vmem:[%s1 + $0x48] sm:$0xff]
    %v228 = vld [vmem:[%s1 + $0x50] sm:$0xff]
    %v229 = vld [vmem:[%s1 + $0x58] sm:$0xff]
    %v230 = vld [vmem:[%s1 + $0x60] sm:$0xff]
    %v231 = vld [vmem:[%s1 + $0x68] sm:$0xff]
    %v232 = vld [vmem:[%s1 + $0x70] sm:$0xff]
    %v233 = vld [vmem:[%s1 + $0x78] sm:$0xff]
    %v234 = vpack.c.bf16 %v220, %v218
    %v235 = vpack.c.bf16 %v221, %v219
    %v236 = vpack.c.bf16 %v224, %v222
    %v237 = vpack.c.bf16 %v225, %v223
    %v238 = vpack.c.bf16 %v228, %v226
    %v239 = vpack.c.bf16 %v229, %v227
    %v240 = vpack.c.bf16 %v232, %v230
    %v241 = vpack.c.bf16 %v233, %v231
    %v242 = vld [vmem:[#allocation8] sm:$0xff]
    %v243 = vld [vmem:[#allocation8 + $0x8] sm:$0xff]
    %v244 = vld [vmem:[#allocation8 + $0x10] sm:$0xff]
    %v245 = vld [vmem:[#allocation8 + $0x18] sm:$0xff]
    %v246 = vld [vmem:[#allocation8 + $0x20] sm:$0xff]
    %v247 = vld [vmem:[#allocation8 + $0x28] sm:$0xff]
    %v248 = vld [vmem:[#allocation8 + $0x30] sm:$0xff]
    %v249 = vld [vmem:[#allocation8 + $0x38] sm:$0xff]
    %v250 = vld [vmem:[#allocation8 + $0x40] sm:$0xff]
    %v251 = vld [vmem:[#allocation8 + $0x48] sm:$0xff]
    %v252 = vld [vmem:[#allocation8 + $0x50] sm:$0xff]
    %v253 = vld [vmem:[#allocation8 + $0x58] sm:$0xff]
    %v254 = vld [vmem:[#allocation8 + $0x60] sm:$0xff]
    %v255 = vld [vmem:[#allocation8 + $0x68] sm:$0xff]
    %v256 = vld [vmem:[#allocation8 + $0x70] sm:$0xff]
    %v257 = vld [vmem:[#allocation8 + $0x78] sm:$0xff]
    %v258 = vld [vmem:[#allocation8 + $0x80] sm:$0xff]
    %v259 = vld [vmem:[#allocation8 + $0x88] sm:$0xff]
    %v260 = vld [vmem:[#allocation8 + $0x90] sm:$0xff]
    %v261 = vld [vmem:[#allocation8 + $0x98] sm:$0xff]
    %v262 = vld [vmem:[#allocation8 + $0xa0] sm:$0xff]
    %v263 = vld [vmem:[#allocation8 + $0xa8] sm:$0xff]
    %v264 = vld [vmem:[#allocation8 + $0xb0] sm:$0xff]
    %v265 = vld [vmem:[#allocation8 + $0xb8] sm:$0xff]
    %v266 = vld [vmem:[#allocation8 + $0xc0] sm:$0xff]
    %v267 = vld [vmem:[#allocation8 + $0xc8] sm:$0xff]
    %v268 = vld [vmem:[#allocation8 + $0xd0] sm:$0xff]
    %v269 = vld [vmem:[#allocation8 + $0xd8] sm:$0xff]
    %v270 = vld [vmem:[#allocation8 + $0xe0] sm:$0xff]
    %v271 = vld [vmem:[#allocation8 + $0xe8] sm:$0xff]
    %v272 = vld [vmem:[#allocation8 + $0xf0] sm:$0xff]
    %v273 = vld [vmem:[#allocation8 + $0xf8] sm:$0xff]
    %v274 = vld [vmem:[#allocation8 + $0x100] sm:$0xff]
    %v275 = vld [vmem:[#allocation8 + $0x108] sm:$0xff]
    %v276 = vld [vmem:[#allocation8 + $0x110] sm:$0xff]
    %v277 = vld [vmem:[#allocation8 + $0x118] sm:$0xff]
    %v278 = vld [vmem:[#allocation8 + $0x120] sm:$0xff]
    %v279 = vld [vmem:[#allocation8 + $0x128] sm:$0xff]
    %v280 = vld [vmem:[#allocation8 + $0x130] sm:$0xff]
    %v281 = vld [vmem:[#allocation8 + $0x138] sm:$0xff]
    %v282 = vld [vmem:[#allocation8 + $0x140] sm:$0xff]
    %v283 = vld [vmem:[#allocation8 + $0x148] sm:$0xff]
    %v284 = vld [vmem:[#allocation8 + $0x150] sm:$0xff]
    %v285 = vld [vmem:[#allocation8 + $0x158] sm:$0xff]
    %v286 = vld [vmem:[#allocation8 + $0x160] sm:$0xff]
    %v287 = vld [vmem:[#allocation8 + $0x168] sm:$0xff]
    %v288 = vld [vmem:[#allocation8 + $0x170] sm:$0xff]
    %v289 = vld [vmem:[#allocation8 + $0x178] sm:$0xff]
    %v290 = vld [vmem:[#allocation8 + $0x180] sm:$0xff]
    %v291 = vld [vmem:[#allocation8 + $0x188] sm:$0xff]
    %v292 = vld [vmem:[#allocation8 + $0x190] sm:$0xff]
    %v293 = vld [vmem:[#allocation8 + $0x198] sm:$0xff]
    %v294 = vld [vmem:[#allocation8 + $0x1a0] sm:$0xff]
    %v295 = vld [vmem:[#allocation8 + $0x1a8] sm:$0xff]
    %v296 = vld [vmem:[#allocation8 + $0x1b0] sm:$0xff]
    %v297 = vld [vmem:[#allocation8 + $0x1b8] sm:$0xff]
    %v298 = vld [vmem:[#allocation8 + $0x1c0] sm:$0xff]
    %v299 = vld [vmem:[#allocation8 + $0x1c8] sm:$0xff]
    %v300 = vld [vmem:[#allocation8 + $0x1d0] sm:$0xff]
    %v301 = vld [vmem:[#allocation8 + $0x1d8] sm:$0xff]
    %v302 = vld [vmem:[#allocation8 + $0x1e0] sm:$0xff]
    %v303 = vld [vmem:[#allocation8 + $0x1e8] sm:$0xff]
    %v304 = vld [vmem:[#allocation8 + $0x1f0] sm:$0xff]
    %v305 = vld [vmem:[#allocation8 + $0x1f8] sm:$0xff]
    %v306 = vld [vmem:[#allocation8 + $0x200] sm:$0xff]
    %v307 = vld [vmem:[#allocation8 + $0x208] sm:$0xff]
    %v308 = vld [vmem:[#allocation8 + $0x210] sm:$0xff]
    %v309 = vld [vmem:[#allocation8 + $0x218] sm:$0xff]
    %v310 = vld [vmem:[#allocation8 + $0x220] sm:$0xff]
    %v311 = vld [vmem:[#allocation8 + $0x228] sm:$0xff]
    %v312 = vld [vmem:[#allocation8 + $0x230] sm:$0xff]
    %v313 = vld [vmem:[#allocation8 + $0x238] sm:$0xff]
    %v314 = vld [vmem:[#allocation8 + $0x240] sm:$0xff]
    %v315 = vld [vmem:[#allocation8 + $0x248] sm:$0xff]
    %v316 = vld [vmem:[#allocation8 + $0x250] sm:$0xff]
    %v317 = vld [vmem:[#allocation8 + $0x258] sm:$0xff]
    %v318 = vld [vmem:[#allocation8 + $0x260] sm:$0xff]
    %v319 = vld [vmem:[#allocation8 + $0x268] sm:$0xff]
    %v320 = vld [vmem:[#allocation8 + $0x270] sm:$0xff]
    %v321 = vld [vmem:[#allocation8 + $0x278] sm:$0xff]
    %v322 = vld [vmem:[#allocation8 + $0x280] sm:$0xff]
    %v323 = vld [vmem:[#allocation8 + $0x288] sm:$0xff]
    %v324 = vld [vmem:[#allocation8 + $0x290] sm:$0xff]
    %v325 = vld [vmem:[#allocation8 + $0x298] sm:$0xff]
    %v326 = vld [vmem:[#allocation8 + $0x2a0] sm:$0xff]
    %v327 = vld [vmem:[#allocation8 + $0x2a8] sm:$0xff]
    %v328 = vld [vmem:[#allocation8 + $0x2b0] sm:$0xff]
    %v329 = vld [vmem:[#allocation8 + $0x2b8] sm:$0xff]
    %v330 = vld [vmem:[#allocation8 + $0x2c0] sm:$0xff]
    %v331 = vld [vmem:[#allocation8 + $0x2c8] sm:$0xff]
    %v332 = vld [vmem:[#allocation8 + $0x2d0] sm:$0xff]
    %v333 = vld [vmem:[#allocation8 + $0x2d8] sm:$0xff]
    %v334 = vld [vmem:[#allocation8 + $0x2e0] sm:$0xff]
    %v335 = vld [vmem:[#allocation8 + $0x2e8] sm:$0xff]
    %v336 = vld [vmem:[#allocation8 + $0x2f0] sm:$0xff]
    %v337 = vld [vmem:[#allocation8 + $0x2f8] sm:$0xff]
    %v338 = vld [vmem:[#allocation8 + $0x300] sm:$0xff]
    %v339 = vld [vmem:[#allocation8 + $0x308] sm:$0xff]
    %v340 = vld [vmem:[#allocation8 + $0x310] sm:$0xff]
    %v341 = vld [vmem:[#allocation8 + $0x318] sm:$0xff]
    %v342 = vld [vmem:[#allocation8 + $0x320] sm:$0xff]
    %v343 = vld [vmem:[#allocation8 + $0x328] sm:$0xff]
    %v344 = vld [vmem:[#allocation8 + $0x330] sm:$0xff]
    %v345 = vld [vmem:[#allocation8 + $0x338] sm:$0xff]
    %v346 = vld [vmem:[#allocation8 + $0x340] sm:$0xff]
    %v347 = vld [vmem:[#allocation8 + $0x348] sm:$0xff]
    %v348 = vld [vmem:[#allocation8 + $0x350] sm:$0xff]
    %v349 = vld [vmem:[#allocation8 + $0x358] sm:$0xff]
    %v350 = vld [vmem:[#allocation8 + $0x360] sm:$0xff]
    %v351 = vld [vmem:[#allocation8 + $0x368] sm:$0xff]
    %v352 = vld [vmem:[#allocation8 + $0x370] sm:$0xff]
    %v353 = vld [vmem:[#allocation8 + $0x378] sm:$0xff]
    %v354 = vld [vmem:[#allocation8 + $0x380] sm:$0xff]
    %v355 = vld [vmem:[#allocation8 + $0x388] sm:$0xff]
    %v356 = vld [vmem:[#allocation8 + $0x390] sm:$0xff]
    %v357 = vld [vmem:[#allocation8 + $0x398] sm:$0xff]
    %v358 = vld [vmem:[#allocation8 + $0x3a0] sm:$0xff]
    %v359 = vld [vmem:[#allocation8 + $0x3a8] sm:$0xff]
    %v360 = vld [vmem:[#allocation8 + $0x3b0] sm:$0xff]
    %v361 = vld [vmem:[#allocation8 + $0x3b8] sm:$0xff]
    %v362 = vld [vmem:[#allocation8 + $0x3c0] sm:$0xff]
    %v363 = vld [vmem:[#allocation8 + $0x3c8] sm:$0xff]
    %v364 = vld [vmem:[#allocation8 + $0x3d0] sm:$0xff]
    %v365 = vld [vmem:[#allocation8 + $0x3d8] sm:$0xff]
    %v366 = vld [vmem:[#allocation8 + $0x3e0] sm:$0xff]
    %v367 = vld [vmem:[#allocation8 + $0x3e8] sm:$0xff]
    %v368 = vld [vmem:[#allocation8 + $0x3f0] sm:$0xff]
    %v369 = vld [vmem:[#allocation8 + $0x3f8] sm:$0xff]
    %v370 = vld [vmem:[#allocation10] sm:$0xff]
    %v371 = vld [vmem:[#allocation10 + $0x8] sm:$0xff]
    %v372 = vld [vmem:[#allocation10 + $0x10] sm:$0xff]
    %v373 = vld [vmem:[#allocation10 + $0x18] sm:$0xff]
    %v374 = vld [vmem:[#allocation10 + $0x20] sm:$0xff]
    %v375 = vld [vmem:[#allocation10 + $0x28] sm:$0xff]
    %v376 = vld [vmem:[#allocation10 + $0x30] sm:$0xff]
    %v377 = vld [vmem:[#allocation10 + $0x38] sm:$0xff]
    %v378 = vld [vmem:[#allocation10 + $0x40] sm:$0xff]
    %v379 = vld [vmem:[#allocation10 + $0x48] sm:$0xff]
    %v380 = vld [vmem:[#allocation10 + $0x50] sm:$0xff]
    %v381 = vld [vmem:[#allocation10 + $0x58] sm:$0xff]
    %v382 = vld [vmem:[#allocation10 + $0x60] sm:$0xff]
    %v383 = vld [vmem:[#allocation10 + $0x68] sm:$0xff]
    %v384 = vld [vmem:[#allocation10 + $0x70] sm:$0xff]
    %v385 = vld [vmem:[#allocation10 + $0x78] sm:$0xff]
    %v386 = vld [vmem:[#allocation10 + $0x80] sm:$0xff]
    %v387 = vld [vmem:[#allocation10 + $0x88] sm:$0xff]
    %v388 = vld [vmem:[#allocation10 + $0x90] sm:$0xff]
    %v389 = vld [vmem:[#allocation10 + $0x98] sm:$0xff]
    %v390 = vld [vmem:[#allocation10 + $0xa0] sm:$0xff]
    %v391 = vld [vmem:[#allocation10 + $0xa8] sm:$0xff]
    %v392 = vld [vmem:[#allocation10 + $0xb0] sm:$0xff]
    %v393 = vld [vmem:[#allocation10 + $0xb8] sm:$0xff]
    %v394 = vld [vmem:[#allocation10 + $0xc0] sm:$0xff]
    %v395 = vld [vmem:[#allocation10 + $0xc8] sm:$0xff]
    %v396 = vld [vmem:[#allocation10 + $0xd0] sm:$0xff]
    %v397 = vld [vmem:[#allocation10 + $0xd8] sm:$0xff]
    %v398 = vld [vmem:[#allocation10 + $0xe0] sm:$0xff]
    %v399 = vld [vmem:[#allocation10 + $0xe8] sm:$0xff]
    %v400 = vld [vmem:[#allocation10 + $0xf0] sm:$0xff]
    %v401 = vld [vmem:[#allocation10 + $0xf8] sm:$0xff]
    %v402 = vld [vmem:[#allocation10 + $0x100] sm:$0xff]
    %v403 = vld [vmem:[#allocation10 + $0x108] sm:$0xff]
    %v404 = vld [vmem:[#allocation10 + $0x110] sm:$0xff]
    %v405 = vld [vmem:[#allocation10 + $0x118] sm:$0xff]
    %v406 = vld [vmem:[#allocation10 + $0x120] sm:$0xff]
    %v407 = vld [vmem:[#allocation10 + $0x128] sm:$0xff]
    %v408 = vld [vmem:[#allocation10 + $0x130] sm:$0xff]
    %v409 = vld [vmem:[#allocation10 + $0x138] sm:$0xff]
    %v410 = vld [vmem:[#allocation10 + $0x140] sm:$0xff]
    %v411 = vld [vmem:[#allocation10 + $0x148] sm:$0xff]
    %v412 = vld [vmem:[#allocation10 + $0x150] sm:$0xff]
    %v413 = vld [vmem:[#allocation10 + $0x158] sm:$0xff]
    %v414 = vld [vmem:[#allocation10 + $0x160] sm:$0xff]
    %v415 = vld [vmem:[#allocation10 + $0x168] sm:$0xff]
    %v416 = vld [vmem:[#allocation10 + $0x170] sm:$0xff]
    %v417 = vld [vmem:[#allocation10 + $0x178] sm:$0xff]
    %v418 = vld [vmem:[#allocation10 + $0x180] sm:$0xff]
    %v419 = vld [vmem:[#allocation10 + $0x188] sm:$0xff]
    %v420 = vld [vmem:[#allocation10 + $0x190] sm:$0xff]
    %v421 = vld [vmem:[#allocation10 + $0x198] sm:$0xff]
    %v422 = vld [vmem:[#allocation10 + $0x1a0] sm:$0xff]
    %v423 = vld [vmem:[#allocation10 + $0x1a8] sm:$0xff]
    %v424 = vld [vmem:[#allocation10 + $0x1b0] sm:$0xff]
    %v425 = vld [vmem:[#allocation10 + $0x1b8] sm:$0xff]
    %v426 = vld [vmem:[#allocation10 + $0x1c0] sm:$0xff]
    %v427 = vld [vmem:[#allocation10 + $0x1c8] sm:$0xff]
    %v428 = vld [vmem:[#allocation10 + $0x1d0] sm:$0xff]
    %v429 = vld [vmem:[#allocation10 + $0x1d8] sm:$0xff]
    %v430 = vld [vmem:[#allocation10 + $0x1e0] sm:$0xff]
    %v431 = vld [vmem:[#allocation10 + $0x1e8] sm:$0xff]
    %v432 = vld [vmem:[#allocation10 + $0x1f0] sm:$0xff]
    %v433 = vld [vmem:[#allocation10 + $0x1f8] sm:$0xff]
    %v434 = vld [vmem:[#allocation10 + $0x200] sm:$0xff]
    %v435 = vld [vmem:[#allocation10 + $0x208] sm:$0xff]
    %v436 = vld [vmem:[#allocation10 + $0x210] sm:$0xff]
    %v437 = vld [vmem:[#allocation10 + $0x218] sm:$0xff]
    %v438 = vld [vmem:[#allocation10 + $0x220] sm:$0xff]
    %v439 = vld [vmem:[#allocation10 + $0x228] sm:$0xff]
    %v440 = vld [vmem:[#allocation10 + $0x230] sm:$0xff]
    %v441 = vld [vmem:[#allocation10 + $0x238] sm:$0xff]
    %v442 = vld [vmem:[#allocation10 + $0x240] sm:$0xff]
    %v443 = vld [vmem:[#allocation10 + $0x248] sm:$0xff]
    %v444 = vld [vmem:[#allocation10 + $0x250] sm:$0xff]
    %v445 = vld [vmem:[#allocation10 + $0x258] sm:$0xff]
    %v446 = vld [vmem:[#allocation10 + $0x260] sm:$0xff]
    %v447 = vld [vmem:[#allocation10 + $0x268] sm:$0xff]
    %v448 = vld [vmem:[#allocation10 + $0x270] sm:$0xff]
    %v449 = vld [vmem:[#allocation10 + $0x278] sm:$0xff]
    %v450 = vld [vmem:[#allocation10 + $0x280] sm:$0xff]
    %v451 = vld [vmem:[#allocation10 + $0x288] sm:$0xff]
    %v452 = vld [vmem:[#allocation10 + $0x290] sm:$0xff]
    %v453 = vld [vmem:[#allocation10 + $0x298] sm:$0xff]
    %v454 = vld [vmem:[#allocation10 + $0x2a0] sm:$0xff]
    %v455 = vld [vmem:[#allocation10 + $0x2a8] sm:$0xff]
    %v456 = vld [vmem:[#allocation10 + $0x2b0] sm:$0xff]
    %v457 = vld [vmem:[#allocation10 + $0x2b8] sm:$0xff]
    %v458 = vld [vmem:[#allocation10 + $0x2c0] sm:$0xff]
    %v459 = vld [vmem:[#allocation10 + $0x2c8] sm:$0xff]
    %v460 = vld [vmem:[#allocation10 + $0x2d0] sm:$0xff]
    %v461 = vld [vmem:[#allocation10 + $0x2d8] sm:$0xff]
    %v462 = vld [vmem:[#allocation10 + $0x2e0] sm:$0xff]
    %v463 = vld [vmem:[#allocation10 + $0x2e8] sm:$0xff]
    %v464 = vld [vmem:[#allocation10 + $0x2f0] sm:$0xff]
    %v465 = vld [vmem:[#allocation10 + $0x2f8] sm:$0xff]
    %v466 = vld [vmem:[#allocation10 + $0x300] sm:$0xff]
    %v467 = vld [vmem:[#allocation10 + $0x308] sm:$0xff]
    %v468 = vld [vmem:[#allocation10 + $0x310] sm:$0xff]
    %v469 = vld [vmem:[#allocation10 + $0x318] sm:$0xff]
    %v470 = vld [vmem:[#allocation10 + $0x320] sm:$0xff]
    %v471 = vld [vmem:[#allocation10 + $0x328] sm:$0xff]
    %v472 = vld [vmem:[#allocation10 + $0x330] sm:$0xff]
    %v473 = vld [vmem:[#allocation10 + $0x338] sm:$0xff]
    %v474 = vld [vmem:[#allocation10 + $0x340] sm:$0xff]
    %v475 = vld [vmem:[#allocation10 + $0x348] sm:$0xff]
    %v476 = vld [vmem:[#allocation10 + $0x350] sm:$0xff]
    %v477 = vld [vmem:[#allocation10 + $0x358] sm:$0xff]
    %v478 = vld [vmem:[#allocation10 + $0x360] sm:$0xff]
    %v479 = vld [vmem:[#allocation10 + $0x368] sm:$0xff]
    %v480 = vld [vmem:[#allocation10 + $0x370] sm:$0xff]
    %v481 = vld [vmem:[#allocation10 + $0x378] sm:$0xff]
    %v482 = vld [vmem:[#allocation10 + $0x380] sm:$0xff]
    %v483 = vld [vmem:[#allocation10 + $0x388] sm:$0xff]
    %v484 = vld [vmem:[#allocation10 + $0x390] sm:$0xff]
    %v485 = vld [vmem:[#allocation10 + $0x398] sm:$0xff]
    %v486 = vld [vmem:[#allocation10 + $0x3a0] sm:$0xff]
    %v487 = vld [vmem:[#allocation10 + $0x3a8] sm:$0xff]
    %v488 = vld [vmem:[#allocation10 + $0x3b0] sm:$0xff]
    %v489 = vld [vmem:[#allocation10 + $0x3b8] sm:$0xff]
    %v490 = vld [vmem:[#allocation10 + $0x3c0] sm:$0xff]
    %v491 = vld [vmem:[#allocation10 + $0x3c8] sm:$0xff]
    %v492 = vld [vmem:[#allocation10 + $0x3d0] sm:$0xff]
    %v493 = vld [vmem:[#allocation10 + $0x3d8] sm:$0xff]
    %v494 = vld [vmem:[#allocation10 + $0x3e0] sm:$0xff]
    %v495 = vld [vmem:[#allocation10 + $0x3e8] sm:$0xff]
    %v496 = vld [vmem:[#allocation10 + $0x3f0] sm:$0xff]
    %v497 = vld [vmem:[#allocation10 + $0x3f8] sm:$0xff]
    %v626 = vunpack.c.l.b16 %v370
    %v627 = vunpack.c.h.b16 %v370
    %v628 = vunpack.c.l.b16 %v371
    %v629 = vunpack.c.h.b16 %v371
    %v630 = vunpack.c.l.b16 %v372
    %v631 = vunpack.c.h.b16 %v372
    %v632 = vunpack.c.l.b16 %v373
    %v633 = vunpack.c.h.b16 %v373
    %v634 = vunpack.c.l.b16 %v374
    %v635 = vunpack.c.h.b16 %v374
    %v636 = vunpack.c.l.b16 %v375
    %v637 = vunpack.c.h.b16 %v375
    %v638 = vunpack.c.l.b16 %v376
    %v639 = vunpack.c.h.b16 %v376
    %v640 = vunpack.c.l.b16 %v377
    %v641 = vunpack.c.h.b16 %v377
    %v642 = vunpack.c.l.b16 %v378
    %v643 = vunpack.c.h.b16 %v378
    %v644 = vunpack.c.l.b16 %v379
    %v645 = vunpack.c.h.b16 %v379
    %v646 = vunpack.c.l.b16 %v380
    %v647 = vunpack.c.h.b16 %v380
    %v648 = vunpack.c.l.b16 %v381
    %v649 = vunpack.c.h.b16 %v381
    %v650 = vunpack.c.l.b16 %v382
    %v651 = vunpack.c.h.b16 %v382
    %v652 = vunpack.c.l.b16 %v383
    %v653 = vunpack.c.h.b16 %v383
    %v654 = vunpack.c.l.b16 %v384
    %v655 = vunpack.c.h.b16 %v384
    %v656 = vunpack.c.l.b16 %v385
    %v657 = vunpack.c.h.b16 %v385
    %v658 = vunpack.c.l.b16 %v386
    %v659 = vunpack.c.h.b16 %v386
    %v660 = vunpack.c.l.b16 %v387
    %v661 = vunpack.c.h.b16 %v387
    %v662 = vunpack.c.l.b16 %v388
    %v663 = vunpack.c.h.b16 %v388
    %v664 = vunpack.c.l.b16 %v389
    %v665 = vunpack.c.h.b16 %v389
    %v666 = vunpack.c.l.b16 %v390
    %v667 = vunpack.c.h.b16 %v390
    %v668 = vunpack.c.l.b16 %v391
    %v669 = vunpack.c.h.b16 %v391
    %v670 = vunpack.c.l.b16 %v392
    %v671 = vunpack.c.h.b16 %v392
    %v672 = vunpack.c.l.b16 %v393
    %v673 = vunpack.c.h.b16 %v393
    %v674 = vunpack.c.l.b16 %v394
    %v675 = vunpack.c.h.b16 %v394
    %v676 = vunpack.c.l.b16 %v395
    %v677 = vunpack.c.h.b16 %v395
    %v678 = vunpack.c.l.b16 %v396
    %v679 = vunpack.c.h.b16 %v396
    %v680 = vunpack.c.l.b16 %v397
    %v681 = vunpack.c.h.b16 %v397
    %v682 = vunpack.c.l.b16 %v398
    %v683 = vunpack.c.h.b16 %v398
    %v684 = vunpack.c.l.b16 %v399
    %v685 = vunpack.c.h.b16 %v399
    %v686 = vunpack.c.l.b16 %v400
    %v687 = vunpack.c.h.b16 %v400
    %v688 = vunpack.c.l.b16 %v401
    %v689 = vunpack.c.h.b16 %v401
    %v690 = vunpack.c.l.b16 %v402
    %v691 = vunpack.c.h.b16 %v402
    %v692 = vunpack.c.l.b16 %v403
    %v693 = vunpack.c.h.b16 %v403
    %v694 = vunpack.c.l.b16 %v404
    %v695 = vunpack.c.h.b16 %v404
    %v696 = vunpack.c.l.b16 %v405
    %v697 = vunpack.c.h.b16 %v405
    %v698 = vunpack.c.l.b16 %v406
    %v699 = vunpack.c.h.b16 %v406
    %v700 = vunpack.c.l.b16 %v407
    %v701 = vunpack.c.h.b16 %v407
    %v702 = vunpack.c.l.b16 %v408
    %v703 = vunpack.c.h.b16 %v408
    %v704 = vunpack.c.l.b16 %v409
    %v705 = vunpack.c.h.b16 %v409
    %v706 = vunpack.c.l.b16 %v410
    %v707 = vunpack.c.h.b16 %v410
    %v708 = vunpack.c.l.b16 %v411
    %v709 = vunpack.c.h.b16 %v411
    %v710 = vunpack.c.l.b16 %v412
    %v711 = vunpack.c.h.b16 %v412
    %v712 = vunpack.c.l.b16 %v413
    %v713 = vunpack.c.h.b16 %v413
    %v714 = vunpack.c.l.b16 %v414
    %v715 = vunpack.c.h.b16 %v414
    %v716 = vunpack.c.l.b16 %v415
    %v717 = vunpack.c.h.b16 %v415
    %v718 = vunpack.c.l.b16 %v416
    %v719 = vunpack.c.h.b16 %v416
    %v720 = vunpack.c.l.b16 %v417
    %v721 = vunpack.c.h.b16 %v417
    %v722 = vunpack.c.l.b16 %v418
    %v723 = vunpack.c.h.b16 %v418
    %v724 = vunpack.c.l.b16 %v419
    %v725 = vunpack.c.h.b16 %v419
    %v726 = vunpack.c.l.b16 %v420
    %v727 = vunpack.c.h.b16 %v420
    %v728 = vunpack.c.l.b16 %v421
    %v729 = vunpack.c.h.b16 %v421
    %v730 = vunpack.c.l.b16 %v422
    %v731 = vunpack.c.h.b16 %v422
    %v732 = vunpack.c.l.b16 %v423
    %v733 = vunpack.c.h.b16 %v423
    %v734 = vunpack.c.l.b16 %v424
    %v735 = vunpack.c.h.b16 %v424
    %v736 = vunpack.c.l.b16 %v425
    %v737 = vunpack.c.h.b16 %v425
    %v738 = vunpack.c.l.b16 %v426
    %v739 = vunpack.c.h.b16 %v426
    %v740 = vunpack.c.l.b16 %v427
    %v741 = vunpack.c.h.b16 %v427
    %v742 = vunpack.c.l.b16 %v428
    %v743 = vunpack.c.h.b16 %v428
    %v744 = vunpack.c.l.b16 %v429
    %v745 = vunpack.c.h.b16 %v429
    %v746 = vunpack.c.l.b16 %v430
    %v747 = vunpack.c.h.b16 %v430
    %v748 = vunpack.c.l.b16 %v431
    %v749 = vunpack.c.h.b16 %v431
    %v750 = vunpack.c.l.b16 %v432
    %v751 = vunpack.c.h.b16 %v432
    %v752 = vunpack.c.l.b16 %v433
    %v753 = vunpack.c.h.b16 %v433
    %v754 = vunpack.c.l.b16 %v434
    %v755 = vunpack.c.h.b16 %v434
    %v756 = vunpack.c.l.b16 %v435
    %v757 = vunpack.c.h.b16 %v435
    %v758 = vunpack.c.l.b16 %v436
    %v759 = vunpack.c.h.b16 %v436
    %v760 = vunpack.c.l.b16 %v437
    %v761 = vunpack.c.h.b16 %v437
    %v762 = vunpack.c.l.b16 %v438
    %v763 = vunpack.c.h.b16 %v438
    %v764 = vunpack.c.l.b16 %v439
    %v765 = vunpack.c.h.b16 %v439
    %v766 = vunpack.c.l.b16 %v440
    %v767 = vunpack.c.h.b16 %v440
    %v768 = vunpack.c.l.b16 %v441
    %v769 = vunpack.c.h.b16 %v441
    %v770 = vunpack.c.l.b16 %v442
    %v771 = vunpack.c.h.b16 %v442
    %v772 = vunpack.c.l.b16 %v443
    %v773 = vunpack.c.h.b16 %v443
    %v774 = vunpack.c.l.b16 %v444
    %v775 = vunpack.c.h.b16 %v444
    %v776 = vunpack.c.l.b16 %v445
    %v777 = vunpack.c.h.b16 %v445
    %v778 = vunpack.c.l.b16 %v446
    %v779 = vunpack.c.h.b16 %v446
    %v780 = vunpack.c.l.b16 %v447
    %v781 = vunpack.c.h.b16 %v447
    %v782 = vunpack.c.l.b16 %v448
    %v783 = vunpack.c.h.b16 %v448
    %v784 = vunpack.c.l.b16 %v449
    %v785 = vunpack.c.h.b16 %v449
    %v786 = vunpack.c.l.b16 %v450
    %v787 = vunpack.c.h.b16 %v450
    %v788 = vunpack.c.l.b16 %v451
    %v789 = vunpack.c.h.b16 %v451
    %v790 = vunpack.c.l.b16 %v452
    %v791 = vunpack.c.h.b16 %v452
    %v792 = vunpack.c.l.b16 %v453
    %v793 = vunpack.c.h.b16 %v453
    %v794 = vunpack.c.l.b16 %v454
    %v795 = vunpack.c.h.b16 %v454
    %v796 = vunpack.c.l.b16 %v455
    %v797 = vunpack.c.h.b16 %v455
    %v798 = vunpack.c.l.b16 %v456
    %v799 = vunpack.c.h.b16 %v456
    %v800 = vunpack.c.l.b16 %v457
    %v801 = vunpack.c.h.b16 %v457
    %v802 = vunpack.c.l.b16 %v458
    %v803 = vunpack.c.h.b16 %v458
    %v804 = vunpack.c.l.b16 %v459
    %v805 = vunpack.c.h.b16 %v459
    %v806 = vunpack.c.l.b16 %v460
    %v807 = vunpack.c.h.b16 %v460
    %v808 = vunpack.c.l.b16 %v461
    %v809 = vunpack.c.h.b16 %v461
    %v810 = vunpack.c.l.b16 %v462
    %v811 = vunpack.c.h.b16 %v462
    %v812 = vunpack.c.l.b16 %v463
    %v813 = vunpack.c.h.b16 %v463
    %v814 = vunpack.c.l.b16 %v464
    %v815 = vunpack.c.h.b16 %v464
    %v816 = vunpack.c.l.b16 %v465
    %v817 = vunpack.c.h.b16 %v465
    %v818 = vunpack.c.l.b16 %v466
    %v819 = vunpack.c.h.b16 %v466
    %v820 = vunpack.c.l.b16 %v467
    %v821 = vunpack.c.h.b16 %v467
    %v822 = vunpack.c.l.b16 %v468
    %v823 = vunpack.c.h.b16 %v468
    %v824 = vunpack.c.l.b16 %v469
    %v825 = vunpack.c.h.b16 %v469
    %v826 = vunpack.c.l.b16 %v470
    %v827 = vunpack.c.h.b16 %v470
    %v828 = vunpack.c.l.b16 %v471
    %v829 = vunpack.c.h.b16 %v471
    %v830 = vunpack.c.l.b16 %v472
    %v831 = vunpack.c.h.b16 %v472
    %v832 = vunpack.c.l.b16 %v473
    %v833 = vunpack.c.h.b16 %v473
    %v834 = vunpack.c.l.b16 %v474
    %v835 = vunpack.c.h.b16 %v474
    %v836 = vunpack.c.l.b16 %v475
    %v837 = vunpack.c.h.b16 %v475
    %v838 = vunpack.c.l.b16 %v476
    %v839 = vunpack.c.h.b16 %v476
    %v840 = vunpack.c.l.b16 %v477
    %v841 = vunpack.c.h.b16 %v477
    %v842 = vunpack.c.l.b16 %v478
    %v843 = vunpack.c.h.b16 %v478
    %v844 = vunpack.c.l.b16 %v479
    %v845 = vunpack.c.h.b16 %v479
    %v846 = vunpack.c.l.b16 %v480
    %v847 = vunpack.c.h.b16 %v480
    %v848 = vunpack.c.l.b16 %v481
    %v849 = vunpack.c.h.b16 %v481
    %v850 = vunpack.c.l.b16 %v482
    %v851 = vunpack.c.h.b16 %v482
    %v852 = vunpack.c.l.b16 %v483
    %v853 = vunpack.c.h.b16 %v483
    %v854 = vunpack.c.l.b16 %v484
    %v855 = vunpack.c.h.b16 %v484
    %v856 = vunpack.c.l.b16 %v485
    %v857 = vunpack.c.h.b16 %v485
    %v858 = vunpack.c.l.b16 %v486
    %v859 = vunpack.c.h.b16 %v486
    %v860 = vunpack.c.l.b16 %v487
    %v861 = vunpack.c.h.b16 %v487
    %v862 = vunpack.c.l.b16 %v488
    %v863 = vunpack.c.h.b16 %v488
    %v864 = vunpack.c.l.b16 %v489
    %v865 = vunpack.c.h.b16 %v489
    %v866 = vunpack.c.l.b16 %v490
    %v867 = vunpack.c.h.b16 %v490
    %v868 = vunpack.c.l.b16 %v491
    %v869 = vunpack.c.h.b16 %v491
    %v870 = vunpack.c.l.b16 %v492
    %v871 = vunpack.c.h.b16 %v492
    %v872 = vunpack.c.l.b16 %v493
    %v873 = vunpack.c.h.b16 %v493
    %v874 = vunpack.c.l.b16 %v494
    %v875 = vunpack.c.h.b16 %v494
    %v876 = vunpack.c.l.b16 %v495
    %v877 = vunpack.c.h.b16 %v495
    %v878 = vunpack.c.l.b16 %v496
    %v879 = vunpack.c.h.b16 %v496
    %v880 = vunpack.c.l.b16 %v497
    %v881 = vunpack.c.h.b16 %v497
    %v882 = vpack.c.b16 %v634, %v626
    %v883 = vpack.c.b16 %v635, %v627
    %v884 = vpack.c.b16 %v636, %v628
    %v885 = vpack.c.b16 %v637, %v629
    %v886 = vpack.c.b16 %v638, %v630
    %v887 = vpack.c.b16 %v639, %v631
    %v888 = vpack.c.b16 %v640, %v632
    %v889 = vpack.c.b16 %v641, %v633
    %v890 = vpack.c.b16 %v650, %v642
    %v891 = vpack.c.b16 %v651, %v643
    %v892 = vpack.c.b16 %v652, %v644
    %v893 = vpack.c.b16 %v653, %v645
    %v894 = vpack.c.b16 %v654, %v646
    %v895 = vpack.c.b16 %v655, %v647
    %v896 = vpack.c.b16 %v656, %v648
    %v897 = vpack.c.b16 %v657, %v649
    %v898 = vpack.c.b16 %v666, %v658
    %v899 = vpack.c.b16 %v667, %v659
    %v900 = vpack.c.b16 %v668, %v660
    %v901 = vpack.c.b16 %v669, %v661
    %v902 = vpack.c.b16 %v670, %v662
    %v903 = vpack.c.b16 %v671, %v663
    %v904 = vpack.c.b16 %v672, %v664
    %v905 = vpack.c.b16 %v673, %v665
    %v906 = vpack.c.b16 %v682, %v674
    %v907 = vpack.c.b16 %v683, %v675
    %v908 = vpack.c.b16 %v684, %v676
    %v909 = vpack.c.b16 %v685, %v677
    %v910 = vpack.c.b16 %v686, %v678
    %v911 = vpack.c.b16 %v687, %v679
    %v912 = vpack.c.b16 %v688, %v680
    %v913 = vpack.c.b16 %v689, %v681
    %v914 = vpack.c.b16 %v698, %v690
    %v915 = vpack.c.b16 %v699, %v691
    %v916 = vpack.c.b16 %v700, %v692
    %v917 = vpack.c.b16 %v701, %v693
    %v918 = vpack.c.b16 %v702, %v694
    %v919 = vpack.c.b16 %v703, %v695
    %v920 = vpack.c.b16 %v704, %v696
    %v921 = vpack.c.b16 %v705, %v697
    %v922 = vpack.c.b16 %v714, %v706
    %v923 = vpack.c.b16 %v715, %v707
    %v924 = vpack.c.b16 %v716, %v708
    %v925 = vpack.c.b16 %v717, %v709
    %v926 = vpack.c.b16 %v718, %v710
    %v927 = vpack.c.b16 %v719, %v711
    %v928 = vpack.c.b16 %v720, %v712
    %v929 = vpack.c.b16 %v721, %v713
    %v930 = vpack.c.b16 %v730, %v722
    %v931 = vpack.c.b16 %v731, %v723
    %v932 = vpack.c.b16 %v732, %v724
    %v933 = vpack.c.b16 %v733, %v725
    %v934 = vpack.c.b16 %v734, %v726
    %v935 = vpack.c.b16 %v735, %v727
    %v936 = vpack.c.b16 %v736, %v728
    %v937 = vpack.c.b16 %v737, %v729
    %v938 = vpack.c.b16 %v746, %v738
    %v939 = vpack.c.b16 %v747, %v739
    %v940 = vpack.c.b16 %v748, %v740
    %v941 = vpack.c.b16 %v749, %v741
    %v942 = vpack.c.b16 %v750, %v742
    %v943 = vpack.c.b16 %v751, %v743
    %v944 = vpack.c.b16 %v752, %v744
    %v945 = vpack.c.b16 %v753, %v745
    %v946 = vpack.c.b16 %v762, %v754
    %v947 = vpack.c.b16 %v763, %v755
    %v948 = vpack.c.b16 %v764, %v756
    %v949 = vpack.c.b16 %v765, %v757
    %v950 = vpack.c.b16 %v766, %v758
    %v951 = vpack.c.b16 %v767, %v759
    %v952 = vpack.c.b16 %v768, %v760
    %v953 = vpack.c.b16 %v769, %v761
    %v954 = vpack.c.b16 %v778, %v770
    %v955 = vpack.c.b16 %v779, %v771
    %v956 = vpack.c.b16 %v780, %v772
    %v957 = vpack.c.b16 %v781, %v773
    %v958 = vpack.c.b16 %v782, %v774
    %v959 = vpack.c.b16 %v783, %v775
    %v960 = vpack.c.b16 %v784, %v776
    %v961 = vpack.c.b16 %v785, %v777
    %v962 = vpack.c.b16 %v794, %v786
    %v963 = vpack.c.b16 %v795, %v787
    %v964 = vpack.c.b16 %v796, %v788
    %v965 = vpack.c.b16 %v797, %v789
    %v966 = vpack.c.b16 %v798, %v790
    %v967 = vpack.c.b16 %v799, %v791
    %v968 = vpack.c.b16 %v800, %v792
    %v969 = vpack.c.b16 %v801, %v793
    %v970 = vpack.c.b16 %v810, %v802
    %v971 = vpack.c.b16 %v811, %v803
    %v972 = vpack.c.b16 %v812, %v804
    %v973 = vpack.c.b16 %v813, %v805
    %v974 = vpack.c.b16 %v814, %v806
    %v975 = vpack.c.b16 %v815, %v807
    %v976 = vpack.c.b16 %v816, %v808
    %v977 = vpack.c.b16 %v817, %v809
    %v978 = vpack.c.b16 %v826, %v818
    %v979 = vpack.c.b16 %v827, %v819
    %v980 = vpack.c.b16 %v828, %v820
    %v981 = vpack.c.b16 %v829, %v821
    %v982 = vpack.c.b16 %v830, %v822
    %v983 = vpack.c.b16 %v831, %v823
    %v984 = vpack.c.b16 %v832, %v824
    %v985 = vpack.c.b16 %v833, %v825
    %v986 = vpack.c.b16 %v842, %v834
    %v987 = vpack.c.b16 %v843, %v835
    %v988 = vpack.c.b16 %v844, %v836
    %v989 = vpack.c.b16 %v845, %v837
    %v990 = vpack.c.b16 %v846, %v838
    %v991 = vpack.c.b16 %v847, %v839
    %v992 = vpack.c.b16 %v848, %v840
    %v993 = vpack.c.b16 %v849, %v841
    %v994 = vpack.c.b16 %v858, %v850
    %v995 = vpack.c.b16 %v859, %v851
    %v996 = vpack.c.b16 %v860, %v852
    %v997 = vpack.c.b16 %v861, %v853
    %v998 = vpack.c.b16 %v862, %v854
    %v999 = vpack.c.b16 %v863, %v855
    %v1000 = vpack.c.b16 %v864, %v856
    %v1001 = vpack.c.b16 %v865, %v857
    %v1002 = vpack.c.b16 %v874, %v866
    %v1003 = vpack.c.b16 %v875, %v867
    %v1004 = vpack.c.b16 %v876, %v868
    %v1005 = vpack.c.b16 %v877, %v869
    %v1006 = vpack.c.b16 %v878, %v870
    %v1007 = vpack.c.b16 %v879, %v871
    %v1008 = vpack.c.b16 %v880, %v872
    %v1009 = vpack.c.b16 %v881, %v873
    %1138 = vmatpush.bf16.msra.mxu0 %v938
    %1139 = vmatpush.bf16.msra.mxu0 %v930
    %1140 = vmatpush.bf16.msra.mxu0 %v922
    %1141 = vmatpush.bf16.msra.mxu0 %v914
    %1142 = vmatpush.bf16.msra.mxu0 %v906
    %1143 = vmatpush.bf16.msra.mxu0 %v898
    %1144 = vmatpush.bf16.msra.mxu0 %v890
    %1145 = vmatpush.bf16.msra.mxu0 %v882
    %1146 = vmatmul.bf16.gmra.mxu0 %v234
    %v1147 = vpop.f32.mrf.mxu0
    %v1148 = vadd.f32 0.0, %v1147
    %v1149 = vpop.f32.mrf.mxu0
    %v1150 = vadd.f32 0.0, %v1149
    %1151 = vmatmul.bf16.gmra.mxu0 %v236
    %v1152 = vpop.f32.mrf.mxu0
    %v1153 = vadd.f32 0.0, %v1152
    %v1154 = vpop.f32.mrf.mxu0
    %v1155 = vadd.f32 0.0, %v1154
    %1156 = vmatmul.bf16.gmra.mxu0 %v238
    %v1157 = vpop.f32.mrf.mxu0
    %v1158 = vadd.f32 0.0, %v1157
    %v1159 = vpop.f32.mrf.mxu0
    %v1160 = vadd.f32 0.0, %v1159
    %1161 = vmatmul.bf16.gmra.mxu0 %v240
    %v1162 = vpop.f32.mrf.mxu0
    %v1163 = vadd.f32 0.0, %v1162
    %v1164 = vpop.f32.mrf.mxu0
    %v1165 = vadd.f32 0.0, %v1164
    %1166 = vdwg.mxu0
    %1167 = vmatpush.bf16.msra.mxu0 %v1002
    %1168 = vmatpush.bf16.msra.mxu0 %v994
    %1169 = vmatpush.bf16.msra.mxu0 %v986
    %1170 = vmatpush.bf16.msra.mxu0 %v978
    %1171 = vmatpush.bf16.msra.mxu0 %v970
    %1172 = vmatpush.bf16.msra.mxu0 %v962
    %1173 = vmatpush.bf16.msra.mxu0 %v954
    %1174 = vmatpush.bf16.msra.mxu0 %v946
    %1175 = vmatmul.bf16.gmra.mxu0 %v235
    %v1176 = vpop.f32.mrf.mxu0
    %v1177 = vadd.f32 %v1148, %v1176
    %v1178 = vpop.f32.mrf.mxu0
    %v1179 = vadd.f32 %v1150, %v1178
    %1180 = vmatmul.bf16.gmra.mxu0 %v237
    %v1181 = vpop.f32.mrf.mxu0
    %v1182 = vadd.f32 %v1153, %v1181
    %v1183 = vpop.f32.mrf.mxu0
    %v1184 = vadd.f32 %v1155, %v1183
    %1185 = vmatmul.bf16.gmra.mxu0 %v239
    %v1186 = vpop.f32.mrf.mxu0
    %v1187 = vadd.f32 %v1158, %v1186
    %v1188 = vpop.f32.mrf.mxu0
    %v1189 = vadd.f32 %v1160, %v1188
    %1190 = vmatmul.bf16.gmra.mxu0 %v241
    %v1191 = vpop.f32.mrf.mxu0
    %v1192 = vadd.f32 %v1163, %v1191
    %v1193 = vpop.f32.mrf.mxu0
    %v1194 = vadd.f32 %v1165, %v1193
    %1195 = vdwg.mxu0
    %1196 = vmatpush.bf16.msra.mxu0 %v939
    %1197 = vmatpush.bf16.msra.mxu0 %v931
    %1198 = vmatpush.bf16.msra.mxu0 %v923
    %1199 = vmatpush.bf16.msra.mxu0 %v915
    %1200 = vmatpush.bf16.msra.mxu0 %v907
    %1201 = vmatpush.bf16.msra.mxu0 %v899
    %1202 = vmatpush.bf16.msra.mxu0 %v891
    %1203 = vmatpush.bf16.msra.mxu0 %v883
    %1204 = vmatmul.bf16.gmra.mxu0 %v234
    %v1205 = vpop.f32.mrf.mxu0
    %v1206 = vadd.f32 0.0, %v1205
    %v1207 = vpop.f32.mrf.mxu0
    %v1208 = vadd.f32 0.0, %v1207
    %1209 = vmatmul.bf16.gmra.mxu0 %v236
    %v1210 = vpop.f32.mrf.mxu0
    %v1211 = vadd.f32 0.0, %v1210
    %v1212 = vpop.f32.mrf.mxu0
    %v1213 = vadd.f32 0.0, %v1212
    %1214 = vmatmul.bf16.gmra.mxu0 %v238
    %v1215 = vpop.f32.mrf.mxu0
    %v1216 = vadd.f32 0.0, %v1215
    %v1217 = vpop.f32.mrf.mxu0
    %v1218 = vadd.f32 0.0, %v1217
    %1219 = vmatmul.bf16.gmra.mxu0 %v240
    %v1220 = vpop.f32.mrf.mxu0
    %v1221 = vadd.f32 0.0, %v1220
    %v1222 = vpop.f32.mrf.mxu0
    %v1223 = vadd.f32 0.0, %v1222
    %1224 = vdwg.mxu0
    %1225 = vmatpush.bf16.msra.mxu0 %v1003
    %1226 = vmatpush.bf16.msra.mxu0 %v995
    %1227 = vmatpush.bf16.msra.mxu0 %v987
    %1228 = vmatpush.bf16.msra.mxu0 %v979
    %1229 = vmatpush.bf16.msra.mxu0 %v971
    %1230 = vmatpush.bf16.msra.mxu0 %v963
    %1231 = vmatpush.bf16.msra.mxu0 %v955
    %1232 = vmatpush.bf16.msra.mxu0 %v947
    %1233 = vmatmul.bf16.gmra.mxu0 %v235
    %v1234 = vpop.f32.mrf.mxu0
    %v1235 = vadd.f32 %v1206, %v1234
    %v1236 = vpop.f32.mrf.mxu0
    %v1237 = vadd.f32 %v1208, %v1236
    %1238 = vmatmul.bf16.gmra.mxu0 %v237
    %v1239 = vpop.f32.mrf.mxu0
    %v1240 = vadd.f32 %v1211, %v1239
    %v1241 = vpop.f32.mrf.mxu0
    %v1242 = vadd.f32 %v1213, %v1241
    %1243 = vmatmul.bf16.gmra.mxu0 %v239
    %v1244 = vpop.f32.mrf.mxu0
    %v1245 = vadd.f32 %v1216, %v1244
    %v1246 = vpop.f32.mrf.mxu0
    %v1247 = vadd.f32 %v1218, %v1246
    %1248 = vmatmul.bf16.gmra.mxu0 %v241
    %v1249 = vpop.f32.mrf.mxu0
    %v1250 = vadd.f32 %v1221, %v1249
    %v1251 = vpop.f32.mrf.mxu0
    %v1252 = vadd.f32 %v1223, %v1251
    %1253 = vdwg.mxu0
    %1254 = vmatpush.bf16.msra.mxu0 %v940
    %1255 = vmatpush.bf16.msra.mxu0 %v932
    %1256 = vmatpush.bf16.msra.mxu0 %v924
    %1257 = vmatpush.bf16.msra.mxu0 %v916
    %1258 = vmatpush.bf16.msra.mxu0 %v908
    %1259 = vmatpush.bf16.msra.mxu0 %v900
    %1260 = vmatpush.bf16.msra.mxu0 %v892
    %1261 = vmatpush.bf16.msra.mxu0 %v884
    %1262 = vmatmul.bf16.gmra.mxu0 %v234
    %v1263 = vpop.f32.mrf.mxu0
    %v1264 = vadd.f32 0.0, %v1263
    %v1265 = vpop.f32.mrf.mxu0
    %v1266 = vadd.f32 0.0, %v1265
    %1267 = vmatmul.bf16.gmra.mxu0 %v236
    %v1268 = vpop.f32.mrf.mxu0
    %v1269 = vadd.f32 0.0, %v1268
    %v1270 = vpop.f32.mrf.mxu0
    %v1271 = vadd.f32 0.0, %v1270
    %1272 = vmatmul.bf16.gmra.mxu0 %v238
    %v1273 = vpop.f32.mrf.mxu0
    %v1274 = vadd.f32 0.0, %v1273
    %v1275 = vpop.f32.mrf.mxu0
    %v1276 = vadd.f32 0.0, %v1275
    %1277 = vmatmul.bf16.gmra.mxu0 %v240
    %v1278 = vpop.f32.mrf.mxu0
    %v1279 = vadd.f32 0.0, %v1278
    %v1280 = vpop.f32.mrf.mxu0
    %v1281 = vadd.f32 0.0, %v1280
    %1282 = vdwg.mxu0
    %1283 = vmatpush.bf16.msra.mxu0 %v1004
    %1284 = vmatpush.bf16.msra.mxu0 %v996
    %1285 = vmatpush.bf16.msra.mxu0 %v988
    %1286 = vmatpush.bf16.msra.mxu0 %v980
    %1287 = vmatpush.bf16.msra.mxu0 %v972
    %1288 = vmatpush.bf16.msra.mxu0 %v964
    %1289 = vmatpush.bf16.msra.mxu0 %v956
    %1290 = vmatpush.bf16.msra.mxu0 %v948
    %1291 = vmatmul.bf16.gmra.mxu0 %v235
    %v1292 = vpop.f32.mrf.mxu0
    %v1293 = vadd.f32 %v1264, %v1292
    %v1294 = vpop.f32.mrf.mxu0
    %v1295 = vadd.f32 %v1266, %v1294
    %1296 = vmatmul.bf16.gmra.mxu0 %v237
    %v1297 = vpop.f32.mrf.mxu0
    %v1298 = vadd.f32 %v1269, %v1297
    %v1299 = vpop.f32.mrf.mxu0
    %v1300 = vadd.f32 %v1271, %v1299
    %1301 = vmatmul.bf16.gmra.mxu0 %v239
    %v1302 = vpop.f32.mrf.mxu0
    %v1303 = vadd.f32 %v1274, %v1302
    %v1304 = vpop.f32.mrf.mxu0
    %v1305 = vadd.f32 %v1276, %v1304
    %1306 = vmatmul.bf16.gmra.mxu0 %v241
    %v1307 = vpop.f32.mrf.mxu0
    %v1308 = vadd.f32 %v1279, %v1307
    %v1309 = vpop.f32.mrf.mxu0
    %v1310 = vadd.f32 %v1281, %v1309
    %1311 = vdwg.mxu0
    %1312 = vmatpush.bf16.msra.mxu0 %v941
    %1313 = vmatpush.bf16.msra.mxu0 %v933
    %1314 = vmatpush.bf16.msra.mxu0 %v925
    %1315 = vmatpush.bf16.msra.mxu0 %v917
    %1316 = vmatpush.bf16.msra.mxu0 %v909
    %1317 = vmatpush.bf16.msra.mxu0 %v901
    %1318 = vmatpush.bf16.msra.mxu0 %v893
    %1319 = vmatpush.bf16.msra.mxu0 %v885
    %1320 = vmatmul.bf16.gmra.mxu0 %v234
    %v1321 = vpop.f32.mrf.mxu0
    %v1322 = vadd.f32 0.0, %v1321
    %v1323 = vpop.f32.mrf.mxu0
    %v1324 = vadd.f32 0.0, %v1323
    %1325 = vmatmul.bf16.gmra.mxu0 %v236
    %v1326 = vpop.f32.mrf.mxu0
    %v1327 = vadd.f32 0.0, %v1326
    %v1328 = vpop.f32.mrf.mxu0
    %v1329 = vadd.f32 0.0, %v1328
    %1330 = vmatmul.bf16.gmra.mxu0 %v238
    %v1331 = vpop.f32.mrf.mxu0
    %v1332 = vadd.f32 0.0, %v1331
    %v1333 = vpop.f32.mrf.mxu0
    %v1334 = vadd.f32 0.0, %v1333
    %1335 = vmatmul.bf16.gmra.mxu0 %v240
    %v1336 = vpop.f32.mrf.mxu0
    %v1337 = vadd.f32 0.0, %v1336
    %v1338 = vpop.f32.mrf.mxu0
    %v1339 = vadd.f32 0.0, %v1338
    %1340 = vdwg.mxu0
    %1341 = vmatpush.bf16.msra.mxu0 %v1005
    %1342 = vmatpush.bf16.msra.mxu0 %v997
    %1343 = vmatpush.bf16.msra.mxu0 %v989
    %1344 = vmatpush.bf16.msra.mxu0 %v981
    %1345 = vmatpush.bf16.msra.mxu0 %v973
    %1346 = vmatpush.bf16.msra.mxu0 %v965
    %1347 = vmatpush.bf16.msra.mxu0 %v957
    %1348 = vmatpush.bf16.msra.mxu0 %v949
    %1349 = vmatmul.bf16.gmra.mxu0 %v235
    %v1350 = vpop.f32.mrf.mxu0
    %v1351 = vadd.f32 %v1322, %v1350
    %v1352 = vpop.f32.mrf.mxu0
    %v1353 = vadd.f32 %v1324, %v1352
    %1354 = vmatmul.bf16.gmra.mxu0 %v237
    %v1355 = vpop.f32.mrf.mxu0
    %v1356 = vadd.f32 %v1327, %v1355
    %v1357 = vpop.f32.mrf.mxu0
    %v1358 = vadd.f32 %v1329, %v1357
    %1359 = vmatmul.bf16.gmra.mxu0 %v239
    %v1360 = vpop.f32.mrf.mxu0
    %v1361 = vadd.f32 %v1332, %v1360
    %v1362 = vpop.f32.mrf.mxu0
    %v1363 = vadd.f32 %v1334, %v1362
    %1364 = vmatmul.bf16.gmra.mxu0 %v241
    %v1365 = vpop.f32.mrf.mxu0
    %v1366 = vadd.f32 %v1337, %v1365
    %v1367 = vpop.f32.mrf.mxu0
    %v1368 = vadd.f32 %v1339, %v1367
    %1369 = vdwg.mxu0
    %1370 = vmatpush.bf16.msra.mxu0 %v942
    %1371 = vmatpush.bf16.msra.mxu0 %v934
    %1372 = vmatpush.bf16.msra.mxu0 %v926
    %1373 = vmatpush.bf16.msra.mxu0 %v918
    %1374 = vmatpush.bf16.msra.mxu0 %v910
    %1375 = vmatpush.bf16.msra.mxu0 %v902
    %1376 = vmatpush.bf16.msra.mxu0 %v894
    %1377 = vmatpush.bf16.msra.mxu0 %v886
    %1378 = vmatmul.bf16.gmra.mxu0 %v234
    %v1379 = vpop.f32.mrf.mxu0
    %v1380 = vadd.f32 0.0, %v1379
    %v1381 = vpop.f32.mrf.mxu0
    %v1382 = vadd.f32 0.0, %v1381
    %1383 = vmatmul.bf16.gmra.mxu0 %v236
    %v1384 = vpop.f32.mrf.mxu0
    %v1385 = vadd.f32 0.0, %v1384
    %v1386 = vpop.f32.mrf.mxu0
    %v1387 = vadd.f32 0.0, %v1386
    %1388 = vmatmul.bf16.gmra.mxu0 %v238
    %v1389 = vpop.f32.mrf.mxu0
    %v1390 = vadd.f32 0.0, %v1389
    %v1391 = vpop.f32.mrf.mxu0
    %v1392 = vadd.f32 0.0, %v1391
    %1393 = vmatmul.bf16.gmra.mxu0 %v240
    %v1394 = vpop.f32.mrf.mxu0
    %v1395 = vadd.f32 0.0, %v1394
    %v1396 = vpop.f32.mrf.mxu0
    %v1397 = vadd.f32 0.0, %v1396
    %1398 = vdwg.mxu0
    %1399 = vmatpush.bf16.msra.mxu0 %v1006
    %1400 = vmatpush.bf16.msra.mxu0 %v998
    %1401 = vmatpush.bf16.msra.mxu0 %v990
    %1402 = vmatpush.bf16.msra.mxu0 %v982
    %1403 = vmatpush.bf16.msra.mxu0 %v974
    %1404 = vmatpush.bf16.msra.mxu0 %v966
    %1405 = vmatpush.bf16.msra.mxu0 %v958
    %1406 = vmatpush.bf16.msra.mxu0 %v950
    %1407 = vmatmul.bf16.gmra.mxu0 %v235
    %v1408 = vpop.f32.mrf.mxu0
    %v1409 = vadd.f32 %v1380, %v1408
    %v1410 = vpop.f32.mrf.mxu0
    %v1411 = vadd.f32 %v1382, %v1410
    %1412 = vmatmul.bf16.gmra.mxu0 %v237
    %v1413 = vpop.f32.mrf.mxu0
    %v1414 = vadd.f32 %v1385, %v1413
    %v1415 = vpop.f32.mrf.mxu0
    %v1416 = vadd.f32 %v1387, %v1415
    %1417 = vmatmul.bf16.gmra.mxu0 %v239
    %v1418 = vpop.f32.mrf.mxu0
    %v1419 = vadd.f32 %v1390, %v1418
    %v1420 = vpop.f32.mrf.mxu0
    %v1421 = vadd.f32 %v1392, %v1420
    %1422 = vmatmul.bf16.gmra.mxu0 %v241
    %v1423 = vpop.f32.mrf.mxu0
    %v1424 = vadd.f32 %v1395, %v1423
    %v1425 = vpop.f32.mrf.mxu0
    %v1426 = vadd.f32 %v1397, %v1425
    %1427 = vdwg.mxu0
    %1428 = vmatpush.bf16.msra.mxu0 %v943
    %1429 = vmatpush.bf16.msra.mxu0 %v935
    %1430 = vmatpush.bf16.msra.mxu0 %v927
    %1431 = vmatpush.bf16.msra.mxu0 %v919
    %1432 = vmatpush.bf16.msra.mxu0 %v911
    %1433 = vmatpush.bf16.msra.mxu0 %v903
    %1434 = vmatpush.bf16.msra.mxu0 %v895
    %1435 = vmatpush.bf16.msra.mxu0 %v887
    %1436 = vmatmul.bf16.gmra.mxu0 %v234
    %v1437 = vpop.f32.mrf.mxu0
    %v1438 = vadd.f32 0.0, %v1437
    %v1439 = vpop.f32.mrf.mxu0
    %v1440 = vadd.f32 0.0, %v1439
    %1441 = vmatmul.bf16.gmra.mxu0 %v236
    %v1442 = vpop.f32.mrf.mxu0
    %v1443 = vadd.f32 0.0, %v1442
    %v1444 = vpop.f32.mrf.mxu0
    %v1445 = vadd.f32 0.0, %v1444
    %1446 = vmatmul.bf16.gmra.mxu0 %v238
    %v1447 = vpop.f32.mrf.mxu0
    %v1448 = vadd.f32 0.0, %v1447
    %v1449 = vpop.f32.mrf.mxu0
    %v1450 = vadd.f32 0.0, %v1449
    %1451 = vmatmul.bf16.gmra.mxu0 %v240
    %v1452 = vpop.f32.mrf.mxu0
    %v1453 = vadd.f32 0.0, %v1452
    %v1454 = vpop.f32.mrf.mxu0
    %v1455 = vadd.f32 0.0, %v1454
    %1456 = vdwg.mxu0
    %1457 = vmatpush.bf16.msra.mxu0 %v1007
    %1458 = vmatpush.bf16.msra.mxu0 %v999
    %1459 = vmatpush.bf16.msra.mxu0 %v991
    %1460 = vmatpush.bf16.msra.mxu0 %v983
    %1461 = vmatpush.bf16.msra.mxu0 %v975
    %1462 = vmatpush.bf16.msra.mxu0 %v967
    %1463 = vmatpush.bf16.msra.mxu0 %v959
    %1464 = vmatpush.bf16.msra.mxu0 %v951
    %1465 = vmatmul.bf16.gmra.mxu0 %v235
    %v1466 = vpop.f32.mrf.mxu0
    %v1467 = vadd.f32 %v1438, %v1466
    %v1468 = vpop.f32.mrf.mxu0
    %v1469 = vadd.f32 %v1440, %v1468
    %1470 = vmatmul.bf16.gmra.mxu0 %v237
    %v1471 = vpop.f32.mrf.mxu0
    %v1472 = vadd.f32 %v1443, %v1471
    %v1473 = vpop.f32.mrf.mxu0
    %v1474 = vadd.f32 %v1445, %v1473
    %1475 = vmatmul.bf16.gmra.mxu0 %v239
    %v1476 = vpop.f32.mrf.mxu0
    %v1477 = vadd.f32 %v1448, %v1476
    %v1478 = vpop.f32.mrf.mxu0
    %v1479 = vadd.f32 %v1450, %v1478
    %1480 = vmatmul.bf16.gmra.mxu0 %v241
    %v1481 = vpop.f32.mrf.mxu0
    %v1482 = vadd.f32 %v1453, %v1481
    %v1483 = vpop.f32.mrf.mxu0
    %v1484 = vadd.f32 %v1455, %v1483
    %1485 = vdwg.mxu0
    %1486 = vmatpush.bf16.msra.mxu0 %v944
    %1487 = vmatpush.bf16.msra.mxu0 %v936
    %1488 = vmatpush.bf16.msra.mxu0 %v928
    %1489 = vmatpush.bf16.msra.mxu0 %v920
    %1490 = vmatpush.bf16.msra.mxu0 %v912
    %1491 = vmatpush.bf16.msra.mxu0 %v904
    %1492 = vmatpush.bf16.msra.mxu0 %v896
    %1493 = vmatpush.bf16.msra.mxu0 %v888
    %1494 = vmatmul.bf16.gmra.mxu0 %v234
    %v1495 = vpop.f32.mrf.mxu0
    %v1496 = vadd.f32 0.0, %v1495
    %v1497 = vpop.f32.mrf.mxu0
    %v1498 = vadd.f32 0.0, %v1497
    %1499 = vmatmul.bf16.gmra.mxu0 %v236
    %v1500 = vpop.f32.mrf.mxu0
    %v1501 = vadd.f32 0.0, %v1500
    %v1502 = vpop.f32.mrf.mxu0
    %v1503 = vadd.f32 0.0, %v1502
    %1504 = vmatmul.bf16.gmra.mxu0 %v238
    %v1505 = vpop.f32.mrf.mxu0
    %v1506 = vadd.f32 0.0, %v1505
    %v1507 = vpop.f32.mrf.mxu0
    %v1508 = vadd.f32 0.0, %v1507
    %1509 = vmatmul.bf16.gmra.mxu0 %v240
    %v1510 = vpop.f32.mrf.mxu0
    %v1511 = vadd.f32 0.0, %v1510
    %v1512 = vpop.f32.mrf.mxu0
    %v1513 = vadd.f32 0.0, %v1512
    %1514 = vdwg.mxu0
    %1515 = vmatpush.bf16.msra.mxu0 %v1008
    %1516 = vmatpush.bf16.msra.mxu0 %v1000
    %1517 = vmatpush.bf16.msra.mxu0 %v992
    %1518 = vmatpush.bf16.msra.mxu0 %v984
    %1519 = vmatpush.bf16.msra.mxu0 %v976
    %1520 = vmatpush.bf16.msra.mxu0 %v968
    %1521 = vmatpush.bf16.msra.mxu0 %v960
    %1522 = vmatpush.bf16.msra.mxu0 %v952
    %1523 = vmatmul.bf16.gmra.mxu0 %v235
    %v1524 = vpop.f32.mrf.mxu0
    %v1525 = vadd.f32 %v1496, %v1524
    %v1526 = vpop.f32.mrf.mxu0
    %v1527 = vadd.f32 %v1498, %v1526
    %1528 = vmatmul.bf16.gmra.mxu0 %v237
    %v1529 = vpop.f32.mrf.mxu0
    %v1530 = vadd.f32 %v1501, %v1529
    %v1531 = vpop.f32.mrf.mxu0
    %v1532 = vadd.f32 %v1503, %v1531
    %1533 = vmatmul.bf16.gmra.mxu0 %v239
    %v1534 = vpop.f32.mrf.mxu0
    %v1535 = vadd.f32 %v1506, %v1534
    %v1536 = vpop.f32.mrf.mxu0
    %v1537 = vadd.f32 %v1508, %v1536
    %1538 = vmatmul.bf16.gmra.mxu0 %v241
    %v1539 = vpop.f32.mrf.mxu0
    %v1540 = vadd.f32 %v1511, %v1539
    %v1541 = vpop.f32.mrf.mxu0
    %v1542 = vadd.f32 %v1513, %v1541
    %1543 = vdwg.mxu0
    %1544 = vmatpush.bf16.msra.mxu0 %v945
    %1545 = vmatpush.bf16.msra.mxu0 %v937
    %1546 = vmatpush.bf16.msra.mxu0 %v929
    %1547 = vmatpush.bf16.msra.mxu0 %v921
    %1548 = vmatpush.bf16.msra.mxu0 %v913
    %1549 = vmatpush.bf16.msra.mxu0 %v905
    %1550 = vmatpush.bf16.msra.mxu0 %v897
    %1551 = vmatpush.bf16.msra.mxu0 %v889
    %1552 = vmatmul.bf16.gmra.mxu0 %v234
    %v1553 = vpop.f32.mrf.mxu0
    %v1554 = vadd.f32 0.0, %v1553
    %v1555 = vpop.f32.mrf.mxu0
    %v1556 = vadd.f32 0.0, %v1555
    %1557 = vmatmul.bf16.gmra.mxu0 %v236
    %v1558 = vpop.f32.mrf.mxu0
    %v1559 = vadd.f32 0.0, %v1558
    %v1560 = vpop.f32.mrf.mxu0
    %v1561 = vadd.f32 0.0, %v1560
    %1562 = vmatmul.bf16.gmra.mxu0 %v238
    %v1563 = vpop.f32.mrf.mxu0
    %v1564 = vadd.f32 0.0, %v1563
    %v1565 = vpop.f32.mrf.mxu0
    %v1566 = vadd.f32 0.0, %v1565
    %1567 = vmatmul.bf16.gmra.mxu0 %v240
    %v1568 = vpop.f32.mrf.mxu0
    %v1569 = vadd.f32 0.0, %v1568
    %v1570 = vpop.f32.mrf.mxu0
    %v1571 = vadd.f32 0.0, %v1570
    %1572 = vdwg.mxu0
    %1573 = vmatpush.bf16.msra.mxu0 %v1009
    %1574 = vmatpush.bf16.msra.mxu0 %v1001
    %1575 = vmatpush.bf16.msra.mxu0 %v993
    %1576 = vmatpush.bf16.msra.mxu0 %v985
    %1577 = vmatpush.bf16.msra.mxu0 %v977
    %1578 = vmatpush.bf16.msra.mxu0 %v969
    %1579 = vmatpush.bf16.msra.mxu0 %v961
    %1580 = vmatpush.bf16.msra.mxu0 %v953
    %1581 = vmatmul.bf16.gmra.mxu0 %v235
    %v1582 = vpop.f32.mrf.mxu0
    %v1583 = vadd.f32 %v1554, %v1582
    %v1584 = vpop.f32.mrf.mxu0
    %v1585 = vadd.f32 %v1556, %v1584
    %1586 = vmatmul.bf16.gmra.mxu0 %v237
    %v1587 = vpop.f32.mrf.mxu0
    %v1588 = vadd.f32 %v1559, %v1587
    %v1589 = vpop.f32.mrf.mxu0
    %v1590 = vadd.f32 %v1561, %v1589
    %1591 = vmatmul.bf16.gmra.mxu0 %v239
    %v1592 = vpop.f32.mrf.mxu0
    %v1593 = vadd.f32 %v1564, %v1592
    %v1594 = vpop.f32.mrf.mxu0
    %v1595 = vadd.f32 %v1566, %v1594
    %1596 = vmatmul.bf16.gmra.mxu0 %v241
    %v1597 = vpop.f32.mrf.mxu0
    %v1598 = vadd.f32 %v1569, %v1597
    %v1599 = vpop.f32.mrf.mxu0
    %v1600 = vadd.f32 %v1571, %v1599
    %1601 = vdwg.mxu0
    %v1730 = vunpack.c.l.b16 %v242
    %v1731 = vunpack.c.h.b16 %v242
    %v1732 = vunpack.c.l.b16 %v243
    %v1733 = vunpack.c.h.b16 %v243
    %v1734 = vunpack.c.l.b16 %v244
    %v1735 = vunpack.c.h.b16 %v244
    %v1736 = vunpack.c.l.b16 %v245
    %v1737 = vunpack.c.h.b16 %v245
    %v1738 = vunpack.c.l.b16 %v246
    %v1739 = vunpack.c.h.b16 %v246
    %v1740 = vunpack.c.l.b16 %v247
    %v1741 = vunpack.c.h.b16 %v247
    %v1742 = vunpack.c.l.b16 %v248
    %v1743 = vunpack.c.h.b16 %v248
    %v1744 = vunpack.c.l.b16 %v249
    %v1745 = vunpack.c.h.b16 %v249
    %v1746 = vunpack.c.l.b16 %v250
    %v1747 = vunpack.c.h.b16 %v250
    %v1748 = vunpack.c.l.b16 %v251
    %v1749 = vunpack.c.h.b16 %v251
    %v1750 = vunpack.c.l.b16 %v252
    %v1751 = vunpack.c.h.b16 %v252
    %v1752 = vunpack.c.l.b16 %v253
    %v1753 = vunpack.c.h.b16 %v253
    %v1754 = vunpack.c.l.b16 %v254
    %v1755 = vunpack.c.h.b16 %v254
    %v1756 = vunpack.c.l.b16 %v255
    %v1757 = vunpack.c.h.b16 %v255
    %v1758 = vunpack.c.l.b16 %v256
    %v1759 = vunpack.c.h.b16 %v256
    %v1760 = vunpack.c.l.b16 %v257
    %v1761 = vunpack.c.h.b16 %v257
    %v1762 = vunpack.c.l.b16 %v258
    %v1763 = vunpack.c.h.b16 %v258
    %v1764 = vunpack.c.l.b16 %v259
    %v1765 = vunpack.c.h.b16 %v259
    %v1766 = vunpack.c.l.b16 %v260
    %v1767 = vunpack.c.h.b16 %v260
    %v1768 = vunpack.c.l.b16 %v261
    %v1769 = vunpack.c.h.b16 %v261
    %v1770 = vunpack.c.l.b16 %v262
    %v1771 = vunpack.c.h.b16 %v262
    %v1772 = vunpack.c.l.b16 %v263
    %v1773 = vunpack.c.h.b16 %v263
    %v1774 = vunpack.c.l.b16 %v264
    %v1775 = vunpack.c.h.b16 %v264
    %v1776 = vunpack.c.l.b16 %v265
    %v1777 = vunpack.c.h.b16 %v265
    %v1778 = vunpack.c.l.b16 %v266
    %v1779 = vunpack.c.h.b16 %v266
    %v1780 = vunpack.c.l.b16 %v267
    %v1781 = vunpack.c.h.b16 %v267
    %v1782 = vunpack.c.l.b16 %v268
    %v1783 = vunpack.c.h.b16 %v268
    %v1784 = vunpack.c.l.b16 %v269
    %v1785 = vunpack.c.h.b16 %v269
    %v1786 = vunpack.c.l.b16 %v270
    %v1787 = vunpack.c.h.b16 %v270
    %v1788 = vunpack.c.l.b16 %v271
    %v1789 = vunpack.c.h.b16 %v271
    %v1790 = vunpack.c.l.b16 %v272
    %v1791 = vunpack.c.h.b16 %v272
    %v1792 = vunpack.c.l.b16 %v273
    %v1793 = vunpack.c.h.b16 %v273
    %v1794 = vunpack.c.l.b16 %v274
    %v1795 = vunpack.c.h.b16 %v274
    %v1796 = vunpack.c.l.b16 %v275
    %v1797 = vunpack.c.h.b16 %v275
    %v1798 = vunpack.c.l.b16 %v276
    %v1799 = vunpack.c.h.b16 %v276
    %v1800 = vunpack.c.l.b16 %v277
    %v1801 = vunpack.c.h.b16 %v277
    %v1802 = vunpack.c.l.b16 %v278
    %v1803 = vunpack.c.h.b16 %v278
    %v1804 = vunpack.c.l.b16 %v279
    %v1805 = vunpack.c.h.b16 %v279
    %v1806 = vunpack.c.l.b16 %v280
    %v1807 = vunpack.c.h.b16 %v280
    %v1808 = vunpack.c.l.b16 %v281
    %v1809 = vunpack.c.h.b16 %v281
    %v1810 = vunpack.c.l.b16 %v282
    %v1811 = vunpack.c.h.b16 %v282
    %v1812 = vunpack.c.l.b16 %v283
    %v1813 = vunpack.c.h.b16 %v283
    %v1814 = vunpack.c.l.b16 %v284
    %v1815 = vunpack.c.h.b16 %v284
    %v1816 = vunpack.c.l.b16 %v285
    %v1817 = vunpack.c.h.b16 %v285
    %v1818 = vunpack.c.l.b16 %v286
    %v1819 = vunpack.c.h.b16 %v286
    %v1820 = vunpack.c.l.b16 %v287
    %v1821 = vunpack.c.h.b16 %v287
    %v1822 = vunpack.c.l.b16 %v288
    %v1823 = vunpack.c.h.b16 %v288
    %v1824 = vunpack.c.l.b16 %v289
    %v1825 = vunpack.c.h.b16 %v289
    %v1826 = vunpack.c.l.b16 %v290
    %v1827 = vunpack.c.h.b16 %v290
    %v1828 = vunpack.c.l.b16 %v291
    %v1829 = vunpack.c.h.b16 %v291
    %v1830 = vunpack.c.l.b16 %v292
    %v1831 = vunpack.c.h.b16 %v292
    %v1832 = vunpack.c.l.b16 %v293
    %v1833 = vunpack.c.h.b16 %v293
    %v1834 = vunpack.c.l.b16 %v294
    %v1835 = vunpack.c.h.b16 %v294
    %v1836 = vunpack.c.l.b16 %v295
    %v1837 = vunpack.c.h.b16 %v295
    %v1838 = vunpack.c.l.b16 %v296
    %v1839 = vunpack.c.h.b16 %v296
    %v1840 = vunpack.c.l.b16 %v297
    %v1841 = vunpack.c.h.b16 %v297
    %v1842 = vunpack.c.l.b16 %v298
    %v1843 = vunpack.c.h.b16 %v298
    %v1844 = vunpack.c.l.b16 %v299
    %v1845 = vunpack.c.h.b16 %v299
    %v1846 = vunpack.c.l.b16 %v300
    %v1847 = vunpack.c.h.b16 %v300
    %v1848 = vunpack.c.l.b16 %v301
    %v1849 = vunpack.c.h.b16 %v301
    %v1850 = vunpack.c.l.b16 %v302
    %v1851 = vunpack.c.h.b16 %v302
    %v1852 = vunpack.c.l.b16 %v303
    %v1853 = vunpack.c.h.b16 %v303
    %v1854 = vunpack.c.l.b16 %v304
    %v1855 = vunpack.c.h.b16 %v304
    %v1856 = vunpack.c.l.b16 %v305
    %v1857 = vunpack.c.h.b16 %v305
    %v1858 = vunpack.c.l.b16 %v306
    %v1859 = vunpack.c.h.b16 %v306
    %v1860 = vunpack.c.l.b16 %v307
    %v1861 = vunpack.c.h.b16 %v307
    %v1862 = vunpack.c.l.b16 %v308
    %v1863 = vunpack.c.h.b16 %v308
    %v1864 = vunpack.c.l.b16 %v309
    %v1865 = vunpack.c.h.b16 %v309
    %v1866 = vunpack.c.l.b16 %v310
    %v1867 = vunpack.c.h.b16 %v310
    %v1868 = vunpack.c.l.b16 %v311
    %v1869 = vunpack.c.h.b16 %v311
    %v1870 = vunpack.c.l.b16 %v312
    %v1871 = vunpack.c.h.b16 %v312
    %v1872 = vunpack.c.l.b16 %v313
    %v1873 = vunpack.c.h.b16 %v313
    %v1874 = vunpack.c.l.b16 %v314
    %v1875 = vunpack.c.h.b16 %v314
    %v1876 = vunpack.c.l.b16 %v315
    %v1877 = vunpack.c.h.b16 %v315
    %v1878 = vunpack.c.l.b16 %v316
    %v1879 = vunpack.c.h.b16 %v316
    %v1880 = vunpack.c.l.b16 %v317
    %v1881 = vunpack.c.h.b16 %v317
    %v1882 = vunpack.c.l.b16 %v318
    %v1883 = vunpack.c.h.b16 %v318
    %v1884 = vunpack.c.l.b16 %v319
    %v1885 = vunpack.c.h.b16 %v319
    %v1886 = vunpack.c.l.b16 %v320
    %v1887 = vunpack.c.h.b16 %v320
    %v1888 = vunpack.c.l.b16 %v321
    %v1889 = vunpack.c.h.b16 %v321
    %v1890 = vunpack.c.l.b16 %v322
    %v1891 = vunpack.c.h.b16 %v322
    %v1892 = vunpack.c.l.b16 %v323
    %v1893 = vunpack.c.h.b16 %v323
    %v1894 = vunpack.c.l.b16 %v324
    %v1895 = vunpack.c.h.b16 %v324
    %v1896 = vunpack.c.l.b16 %v325
    %v1897 = vunpack.c.h.b16 %v325
    %v1898 = vunpack.c.l.b16 %v326
    %v1899 = vunpack.c.h.b16 %v326
    %v1900 = vunpack.c.l.b16 %v327
    %v1901 = vunpack.c.h.b16 %v327
    %v1902 = vunpack.c.l.b16 %v328
    %v1903 = vunpack.c.h.b16 %v328
    %v1904 = vunpack.c.l.b16 %v329
    %v1905 = vunpack.c.h.b16 %v329
    %v1906 = vunpack.c.l.b16 %v330
    %v1907 = vunpack.c.h.b16 %v330
    %v1908 = vunpack.c.l.b16 %v331
    %v1909 = vunpack.c.h.b16 %v331
    %v1910 = vunpack.c.l.b16 %v332
    %v1911 = vunpack.c.h.b16 %v332
    %v1912 = vunpack.c.l.b16 %v333
    %v1913 = vunpack.c.h.b16 %v333
    %v1914 = vunpack.c.l.b16 %v334
    %v1915 = vunpack.c.h.b16 %v334
    %v1916 = vunpack.c.l.b16 %v335
    %v1917 = vunpack.c.h.b16 %v335
    %v1918 = vunpack.c.l.b16 %v336
    %v1919 = vunpack.c.h.b16 %v336
    %v1920 = vunpack.c.l.b16 %v337
    %v1921 = vunpack.c.h.b16 %v337
    %v1922 = vunpack.c.l.b16 %v338
    %v1923 = vunpack.c.h.b16 %v338
    %v1924 = vunpack.c.l.b16 %v339
    %v1925 = vunpack.c.h.b16 %v339
    %v1926 = vunpack.c.l.b16 %v340
    %v1927 = vunpack.c.h.b16 %v340
    %v1928 = vunpack.c.l.b16 %v341
    %v1929 = vunpack.c.h.b16 %v341
    %v1930 = vunpack.c.l.b16 %v342
    %v1931 = vunpack.c.h.b16 %v342
    %v1932 = vunpack.c.l.b16 %v343
    %v1933 = vunpack.c.h.b16 %v343
    %v1934 = vunpack.c.l.b16 %v344
    %v1935 = vunpack.c.h.b16 %v344
    %v1936 = vunpack.c.l.b16 %v345
    %v1937 = vunpack.c.h.b16 %v345
    %v1938 = vunpack.c.l.b16 %v346
    %v1939 = vunpack.c.h.b16 %v346
    %v1940 = vunpack.c.l.b16 %v347
    %v1941 = vunpack.c.h.b16 %v347
    %v1942 = vunpack.c.l.b16 %v348
    %v1943 = vunpack.c.h.b16 %v348
    %v1944 = vunpack.c.l.b16 %v349
    %v1945 = vunpack.c.h.b16 %v349
    %v1946 = vunpack.c.l.b16 %v350
    %v1947 = vunpack.c.h.b16 %v350
    %v1948 = vunpack.c.l.b16 %v351
    %v1949 = vunpack.c.h.b16 %v351
    %v1950 = vunpack.c.l.b16 %v352
    %v1951 = vunpack.c.h.b16 %v352
    %v1952 = vunpack.c.l.b16 %v353
    %v1953 = vunpack.c.h.b16 %v353
    %v1954 = vunpack.c.l.b16 %v354
    %v1955 = vunpack.c.h.b16 %v354
    %v1956 = vunpack.c.l.b16 %v355
    %v1957 = vunpack.c.h.b16 %v355
    %v1958 = vunpack.c.l.b16 %v356
    %v1959 = vunpack.c.h.b16 %v356
    %v1960 = vunpack.c.l.b16 %v357
    %v1961 = vunpack.c.h.b16 %v357
    %v1962 = vunpack.c.l.b16 %v358
    %v1963 = vunpack.c.h.b16 %v358
    %v1964 = vunpack.c.l.b16 %v359
    %v1965 = vunpack.c.h.b16 %v359
    %v1966 = vunpack.c.l.b16 %v360
    %v1967 = vunpack.c.h.b16 %v360
    %v1968 = vunpack.c.l.b16 %v361
    %v1969 = vunpack.c.h.b16 %v361
    %v1970 = vunpack.c.l.b16 %v362
    %v1971 = vunpack.c.h.b16 %v362
    %v1972 = vunpack.c.l.b16 %v363
    %v1973 = vunpack.c.h.b16 %v363
    %v1974 = vunpack.c.l.b16 %v364
    %v1975 = vunpack.c.h.b16 %v364
    %v1976 = vunpack.c.l.b16 %v365
    %v1977 = vunpack.c.h.b16 %v365
    %v1978 = vunpack.c.l.b16 %v366
    %v1979 = vunpack.c.h.b16 %v366
    %v1980 = vunpack.c.l.b16 %v367
    %v1981 = vunpack.c.h.b16 %v367
    %v1982 = vunpack.c.l.b16 %v368
    %v1983 = vunpack.c.h.b16 %v368
    %v1984 = vunpack.c.l.b16 %v369
    %v1985 = vunpack.c.h.b16 %v369
    %v1986 = vpack.c.b16 %v1738, %v1730
    %v1987 = vpack.c.b16 %v1739, %v1731
    %v1988 = vpack.c.b16 %v1740, %v1732
    %v1989 = vpack.c.b16 %v1741, %v1733
    %v1990 = vpack.c.b16 %v1742, %v1734
    %v1991 = vpack.c.b16 %v1743, %v1735
    %v1992 = vpack.c.b16 %v1744, %v1736
    %v1993 = vpack.c.b16 %v1745, %v1737
    %v1994 = vpack.c.b16 %v1754, %v1746
    %v1995 = vpack.c.b16 %v1755, %v1747
    %v1996 = vpack.c.b16 %v1756, %v1748
    %v1997 = vpack.c.b16 %v1757, %v1749
    %v1998 = vpack.c.b16 %v1758, %v1750
    %v1999 = vpack.c.b16 %v1759, %v1751
    %v2000 = vpack.c.b16 %v1760, %v1752
    %v2001 = vpack.c.b16 %v1761, %v1753
    %v2002 = vpack.c.b16 %v1770, %v1762
    %v2003 = vpack.c.b16 %v1771, %v1763
    %v2004 = vpack.c.b16 %v1772, %v1764
    %v2005 = vpack.c.b16 %v1773, %v1765
    %v2006 = vpack.c.b16 %v1774, %v1766
    %v2007 = vpack.c.b16 %v1775, %v1767
    %v2008 = vpack.c.b16 %v1776, %v1768
    %v2009 = vpack.c.b16 %v1777, %v1769
    %v2010 = vpack.c.b16 %v1786, %v1778
    %v2011 = vpack.c.b16 %v1787, %v1779
    %v2012 = vpack.c.b16 %v1788, %v1780
    %v2013 = vpack.c.b16 %v1789, %v1781
    %v2014 = vpack.c.b16 %v1790, %v1782
    %v2015 = vpack.c.b16 %v1791, %v1783
    %v2016 = vpack.c.b16 %v1792, %v1784
    %v2017 = vpack.c.b16 %v1793, %v1785
    %v2018 = vpack.c.b16 %v1802, %v1794
    %v2019 = vpack.c.b16 %v1803, %v1795
    %v2020 = vpack.c.b16 %v1804, %v1796
    %v2021 = vpack.c.b16 %v1805, %v1797
    %v2022 = vpack.c.b16 %v1806, %v1798
    %v2023 = vpack.c.b16 %v1807, %v1799
    %v2024 = vpack.c.b16 %v1808, %v1800
    %v2025 = vpack.c.b16 %v1809, %v1801
    %v2026 = vpack.c.b16 %v1818, %v1810
    %v2027 = vpack.c.b16 %v1819, %v1811
    %v2028 = vpack.c.b16 %v1820, %v1812
    %v2029 = vpack.c.b16 %v1821, %v1813
    %v2030 = vpack.c.b16 %v1822, %v1814
    %v2031 = vpack.c.b16 %v1823, %v1815
    %v2032 = vpack.c.b16 %v1824, %v1816
    %v2033 = vpack.c.b16 %v1825, %v1817
    %v2034 = vpack.c.b16 %v1834, %v1826
    %v2035 = vpack.c.b16 %v1835, %v1827
    %v2036 = vpack.c.b16 %v1836, %v1828
    %v2037 = vpack.c.b16 %v1837, %v1829
    %v2038 = vpack.c.b16 %v1838, %v1830
    %v2039 = vpack.c.b16 %v1839, %v1831
    %v2040 = vpack.c.b16 %v1840, %v1832
    %v2041 = vpack.c.b16 %v1841, %v1833
    %v2042 = vpack.c.b16 %v1850, %v1842
    %v2043 = vpack.c.b16 %v1851, %v1843
    %v2044 = vpack.c.b16 %v1852, %v1844
    %v2045 = vpack.c.b16 %v1853, %v1845
    %v2046 = vpack.c.b16 %v1854, %v1846
    %v2047 = vpack.c.b16 %v1855, %v1847
    %v2048 = vpack.c.b16 %v1856, %v1848
    %v2049 = vpack.c.b16 %v1857, %v1849
    %v2050 = vpack.c.b16 %v1866, %v1858
    %v2051 = vpack.c.b16 %v1867, %v1859
    %v2052 = vpack.c.b16 %v1868, %v1860
    %v2053 = vpack.c.b16 %v1869, %v1861
    %v2054 = vpack.c.b16 %v1870, %v1862
    %v2055 = vpack.c.b16 %v1871, %v1863
    %v2056 = vpack.c.b16 %v1872, %v1864
    %v2057 = vpack.c.b16 %v1873, %v1865
    %v2058 = vpack.c.b16 %v1882, %v1874
    %v2059 = vpack.c.b16 %v1883, %v1875
    %v2060 = vpack.c.b16 %v1884, %v1876
    %v2061 = vpack.c.b16 %v1885, %v1877
    %v2062 = vpack.c.b16 %v1886, %v1878
    %v2063 = vpack.c.b16 %v1887, %v1879
    %v2064 = vpack.c.b16 %v1888, %v1880
    %v2065 = vpack.c.b16 %v1889, %v1881
    %v2066 = vpack.c.b16 %v1898, %v1890
    %v2067 = vpack.c.b16 %v1899, %v1891
    %v2068 = vpack.c.b16 %v1900, %v1892
    %v2069 = vpack.c.b16 %v1901, %v1893
    %v2070 = vpack.c.b16 %v1902, %v1894
    %v2071 = vpack.c.b16 %v1903, %v1895
    %v2072 = vpack.c.b16 %v1904, %v1896
    %v2073 = vpack.c.b16 %v1905, %v1897
    %v2074 = vpack.c.b16 %v1914, %v1906
    %v2075 = vpack.c.b16 %v1915, %v1907
    %v2076 = vpack.c.b16 %v1916, %v1908
    %v2077 = vpack.c.b16 %v1917, %v1909
    %v2078 = vpack.c.b16 %v1918, %v1910
    %v2079 = vpack.c.b16 %v1919, %v1911
    %v2080 = vpack.c.b16 %v1920, %v1912
    %v2081 = vpack.c.b16 %v1921, %v1913
    %v2082 = vpack.c.b16 %v1930, %v1922
    %v2083 = vpack.c.b16 %v1931, %v1923
    %v2084 = vpack.c.b16 %v1932, %v1924
    %v2085 = vpack.c.b16 %v1933, %v1925
    %v2086 = vpack.c.b16 %v1934, %v1926
    %v2087 = vpack.c.b16 %v1935, %v1927
    %v2088 = vpack.c.b16 %v1936, %v1928
    %v2089 = vpack.c.b16 %v1937, %v1929
    %v2090 = vpack.c.b16 %v1946, %v1938
    %v2091 = vpack.c.b16 %v1947, %v1939
    %v2092 = vpack.c.b16 %v1948, %v1940
    %v2093 = vpack.c.b16 %v1949, %v1941
    %v2094 = vpack.c.b16 %v1950, %v1942
    %v2095 = vpack.c.b16 %v1951, %v1943
    %v2096 = vpack.c.b16 %v1952, %v1944
    %v2097 = vpack.c.b16 %v1953, %v1945
    %v2098 = vpack.c.b16 %v1962, %v1954
    %v2099 = vpack.c.b16 %v1963, %v1955
    %v2100 = vpack.c.b16 %v1964, %v1956
    %v2101 = vpack.c.b16 %v1965, %v1957
    %v2102 = vpack.c.b16 %v1966, %v1958
    %v2103 = vpack.c.b16 %v1967, %v1959
    %v2104 = vpack.c.b16 %v1968, %v1960
    %v2105 = vpack.c.b16 %v1969, %v1961
    %v2106 = vpack.c.b16 %v1978, %v1970
    %v2107 = vpack.c.b16 %v1979, %v1971
    %v2108 = vpack.c.b16 %v1980, %v1972
    %v2109 = vpack.c.b16 %v1981, %v1973
    %v2110 = vpack.c.b16 %v1982, %v1974
    %v2111 = vpack.c.b16 %v1983, %v1975
    %v2112 = vpack.c.b16 %v1984, %v1976
    %v2113 = vpack.c.b16 %v1985, %v1977
    %2242 = vmatpush.bf16.msra.mxu0 %v2042
    %2243 = vmatpush.bf16.msra.mxu0 %v2034
    %2244 = vmatpush.bf16.msra.mxu0 %v2026
    %2245 = vmatpush.bf16.msra.mxu0 %v2018
    %2246 = vmatpush.bf16.msra.mxu0 %v2010
    %2247 = vmatpush.bf16.msra.mxu0 %v2002
    %2248 = vmatpush.bf16.msra.mxu0 %v1994
    %2249 = vmatpush.bf16.msra.mxu0 %v1986
    %2250 = vmatmul.bf16.gmra.mxu0 %v210
    %v2251 = vpop.f32.mrf.mxu0
    %v2252 = vadd.f32 %v1177, %v2251
    %v2253 = vpop.f32.mrf.mxu0
    %v2254 = vadd.f32 %v1179, %v2253
    %2255 = vmatmul.bf16.gmra.mxu0 %v212
    %v2256 = vpop.f32.mrf.mxu0
    %v2257 = vadd.f32 %v1182, %v2256
    %v2258 = vpop.f32.mrf.mxu0
    %v2259 = vadd.f32 %v1184, %v2258
    %2260 = vmatmul.bf16.gmra.mxu0 %v214
    %v2261 = vpop.f32.mrf.mxu0
    %v2262 = vadd.f32 %v1187, %v2261
    %v2263 = vpop.f32.mrf.mxu0
    %v2264 = vadd.f32 %v1189, %v2263
    %2265 = vmatmul.bf16.gmra.mxu0 %v216
    %v2266 = vpop.f32.mrf.mxu0
    %v2267 = vadd.f32 %v1192, %v2266
    %v2268 = vpop.f32.mrf.mxu0
    %v2269 = vadd.f32 %v1194, %v2268
    %2270 = vdwg.mxu0
    %2271 = vmatpush.bf16.msra.mxu0 %v2106
    %2272 = vmatpush.bf16.msra.mxu0 %v2098
    %2273 = vmatpush.bf16.msra.mxu0 %v2090
    %2274 = vmatpush.bf16.msra.mxu0 %v2082
    %2275 = vmatpush.bf16.msra.mxu0 %v2074
    %2276 = vmatpush.bf16.msra.mxu0 %v2066
    %2277 = vmatpush.bf16.msra.mxu0 %v2058
    %2278 = vmatpush.bf16.msra.mxu0 %v2050
    %2279 = vmatmul.bf16.gmra.mxu0 %v211
    %v2280 = vpop.f32.mrf.mxu0
    %v2281 = vadd.f32 %v2252, %v2280
    %v2282 = vpop.f32.mrf.mxu0
    %v2283 = vadd.f32 %v2254, %v2282
    %2284 = vmatmul.bf16.gmra.mxu0 %v213
    %v2285 = vpop.f32.mrf.mxu0
    %v2286 = vadd.f32 %v2257, %v2285
    %v2287 = vpop.f32.mrf.mxu0
    %v2288 = vadd.f32 %v2259, %v2287
    %2289 = vmatmul.bf16.gmra.mxu0 %v215
    %v2290 = vpop.f32.mrf.mxu0
    %v2291 = vadd.f32 %v2262, %v2290
    %v2292 = vpop.f32.mrf.mxu0
    %v2293 = vadd.f32 %v2264, %v2292
    %2294 = vmatmul.bf16.gmra.mxu0 %v217
    %v2295 = vpop.f32.mrf.mxu0
    %v2296 = vadd.f32 %v2267, %v2295
    %v2297 = vpop.f32.mrf.mxu0
    %v2298 = vadd.f32 %v2269, %v2297
    %2299 = vdwg.mxu0
    %2300 = vmatpush.bf16.msra.mxu0 %v2043
    %2301 = vmatpush.bf16.msra.mxu0 %v2035
    %2302 = vmatpush.bf16.msra.mxu0 %v2027
    %2303 = vmatpush.bf16.msra.mxu0 %v2019
    %2304 = vmatpush.bf16.msra.mxu0 %v2011
    %2305 = vmatpush.bf16.msra.mxu0 %v2003
    %2306 = vmatpush.bf16.msra.mxu0 %v1995
    %2307 = vmatpush.bf16.msra.mxu0 %v1987
    %2308 = vmatmul.bf16.gmra.mxu0 %v210
    %v2309 = vpop.f32.mrf.mxu0
    %v2310 = vadd.f32 %v1235, %v2309
    %v2311 = vpop.f32.mrf.mxu0
    %v2312 = vadd.f32 %v1237, %v2311
    %2313 = vmatmul.bf16.gmra.mxu0 %v212
    %v2314 = vpop.f32.mrf.mxu0
    %v2315 = vadd.f32 %v1240, %v2314
    %v2316 = vpop.f32.mrf.mxu0
    %v2317 = vadd.f32 %v1242, %v2316
    %2318 = vmatmul.bf16.gmra.mxu0 %v214
    %v2319 = vpop.f32.mrf.mxu0
    %v2320 = vadd.f32 %v1245, %v2319
    %v2321 = vpop.f32.mrf.mxu0
    %v2322 = vadd.f32 %v1247, %v2321
    %2323 = vmatmul.bf16.gmra.mxu0 %v216
    %v2324 = vpop.f32.mrf.mxu0
    %v2325 = vadd.f32 %v1250, %v2324
    %v2326 = vpop.f32.mrf.mxu0
    %v2327 = vadd.f32 %v1252, %v2326
    %2328 = vdwg.mxu0
    %2329 = vmatpush.bf16.msra.mxu0 %v2107
    %2330 = vmatpush.bf16.msra.mxu0 %v2099
    %2331 = vmatpush.bf16.msra.mxu0 %v2091
    %2332 = vmatpush.bf16.msra.mxu0 %v2083
    %2333 = vmatpush.bf16.msra.mxu0 %v2075
    %2334 = vmatpush.bf16.msra.mxu0 %v2067
    %2335 = vmatpush.bf16.msra.mxu0 %v2059
    %2336 = vmatpush.bf16.msra.mxu0 %v2051
    %2337 = vmatmul.bf16.gmra.mxu0 %v211
    %v2338 = vpop.f32.mrf.mxu0
    %v2339 = vadd.f32 %v2310, %v2338
    %v2340 = vpop.f32.mrf.mxu0
    %v2341 = vadd.f32 %v2312, %v2340
    %2342 = vmatmul.bf16.gmra.mxu0 %v213
    %v2343 = vpop.f32.mrf.mxu0
    %v2344 = vadd.f32 %v2315, %v2343
    %v2345 = vpop.f32.mrf.mxu0
    %v2346 = vadd.f32 %v2317, %v2345
    %2347 = vmatmul.bf16.gmra.mxu0 %v215
    %v2348 = vpop.f32.mrf.mxu0
    %v2349 = vadd.f32 %v2320, %v2348
    %v2350 = vpop.f32.mrf.mxu0
    %v2351 = vadd.f32 %v2322, %v2350
    %2352 = vmatmul.bf16.gmra.mxu0 %v217
    %v2353 = vpop.f32.mrf.mxu0
    %v2354 = vadd.f32 %v2325, %v2353
    %v2355 = vpop.f32.mrf.mxu0
    %v2356 = vadd.f32 %v2327, %v2355
    %2357 = vdwg.mxu0
    %2358 = vmatpush.bf16.msra.mxu0 %v2044
    %2359 = vmatpush.bf16.msra.mxu0 %v2036
    %2360 = vmatpush.bf16.msra.mxu0 %v2028
    %2361 = vmatpush.bf16.msra.mxu0 %v2020
    %2362 = vmatpush.bf16.msra.mxu0 %v2012
    %2363 = vmatpush.bf16.msra.mxu0 %v2004
    %2364 = vmatpush.bf16.msra.mxu0 %v1996
    %2365 = vmatpush.bf16.msra.mxu0 %v1988
    %2366 = vmatmul.bf16.gmra.mxu0 %v210
    %v2367 = vpop.f32.mrf.mxu0
    %v2368 = vadd.f32 %v1293, %v2367
    %v2369 = vpop.f32.mrf.mxu0
    %v2370 = vadd.f32 %v1295, %v2369
    %2371 = vmatmul.bf16.gmra.mxu0 %v212
    %v2372 = vpop.f32.mrf.mxu0
    %v2373 = vadd.f32 %v1298, %v2372
    %v2374 = vpop.f32.mrf.mxu0
    %v2375 = vadd.f32 %v1300, %v2374
    %2376 = vmatmul.bf16.gmra.mxu0 %v214
    %v2377 = vpop.f32.mrf.mxu0
    %v2378 = vadd.f32 %v1303, %v2377
    %v2379 = vpop.f32.mrf.mxu0
    %v2380 = vadd.f32 %v1305, %v2379
    %2381 = vmatmul.bf16.gmra.mxu0 %v216
    %v2382 = vpop.f32.mrf.mxu0
    %v2383 = vadd.f32 %v1308, %v2382
    %v2384 = vpop.f32.mrf.mxu0
    %v2385 = vadd.f32 %v1310, %v2384
    %2386 = vdwg.mxu0
    %2387 = vmatpush.bf16.msra.mxu0 %v2108
    %2388 = vmatpush.bf16.msra.mxu0 %v2100
    %2389 = vmatpush.bf16.msra.mxu0 %v2092
    %2390 = vmatpush.bf16.msra.mxu0 %v2084
    %2391 = vmatpush.bf16.msra.mxu0 %v2076
    %2392 = vmatpush.bf16.msra.mxu0 %v2068
    %2393 = vmatpush.bf16.msra.mxu0 %v2060
    %2394 = vmatpush.bf16.msra.mxu0 %v2052
    %2395 = vmatmul.bf16.gmra.mxu0 %v211
    %v2396 = vpop.f32.mrf.mxu0
    %v2397 = vadd.f32 %v2368, %v2396
    %v2398 = vpop.f32.mrf.mxu0
    %v2399 = vadd.f32 %v2370, %v2398
    %2400 = vmatmul.bf16.gmra.mxu0 %v213
    %v2401 = vpop.f32.mrf.mxu0
    %v2402 = vadd.f32 %v2373, %v2401
    %v2403 = vpop.f32.mrf.mxu0
    %v2404 = vadd.f32 %v2375, %v2403
    %2405 = vmatmul.bf16.gmra.mxu0 %v215
    %v2406 = vpop.f32.mrf.mxu0
    %v2407 = vadd.f32 %v2378, %v2406
    %v2408 = vpop.f32.mrf.mxu0
    %v2409 = vadd.f32 %v2380, %v2408
    %2410 = vmatmul.bf16.gmra.mxu0 %v217
    %v2411 = vpop.f32.mrf.mxu0
    %v2412 = vadd.f32 %v2383, %v2411
    %v2413 = vpop.f32.mrf.mxu0
    %v2414 = vadd.f32 %v2385, %v2413
    %2415 = vdwg.mxu0
    %2416 = vmatpush.bf16.msra.mxu0 %v2045
    %2417 = vmatpush.bf16.msra.mxu0 %v2037
    %2418 = vmatpush.bf16.msra.mxu0 %v2029
    %2419 = vmatpush.bf16.msra.mxu0 %v2021
    %2420 = vmatpush.bf16.msra.mxu0 %v2013
    %2421 = vmatpush.bf16.msra.mxu0 %v2005
    %2422 = vmatpush.bf16.msra.mxu0 %v1997
    %2423 = vmatpush.bf16.msra.mxu0 %v1989
    %2424 = vmatmul.bf16.gmra.mxu0 %v210
    %v2425 = vpop.f32.mrf.mxu0
    %v2426 = vadd.f32 %v1351, %v2425
    %v2427 = vpop.f32.mrf.mxu0
    %v2428 = vadd.f32 %v1353, %v2427
    %2429 = vmatmul.bf16.gmra.mxu0 %v212
    %v2430 = vpop.f32.mrf.mxu0
    %v2431 = vadd.f32 %v1356, %v2430
    %v2432 = vpop.f32.mrf.mxu0
    %v2433 = vadd.f32 %v1358, %v2432
    %2434 = vmatmul.bf16.gmra.mxu0 %v214
    %v2435 = vpop.f32.mrf.mxu0
    %v2436 = vadd.f32 %v1361, %v2435
    %v2437 = vpop.f32.mrf.mxu0
    %v2438 = vadd.f32 %v1363, %v2437
    %2439 = vmatmul.bf16.gmra.mxu0 %v216
    %v2440 = vpop.f32.mrf.mxu0
    %v2441 = vadd.f32 %v1366, %v2440
    %v2442 = vpop.f32.mrf.mxu0
    %v2443 = vadd.f32 %v1368, %v2442
    %2444 = vdwg.mxu0
    %2445 = vmatpush.bf16.msra.mxu0 %v2109
    %2446 = vmatpush.bf16.msra.mxu0 %v2101
    %2447 = vmatpush.bf16.msra.mxu0 %v2093
    %2448 = vmatpush.bf16.msra.mxu0 %v2085
    %2449 = vmatpush.bf16.msra.mxu0 %v2077
    %2450 = vmatpush.bf16.msra.mxu0 %v2069
    %2451 = vmatpush.bf16.msra.mxu0 %v2061
    %2452 = vmatpush.bf16.msra.mxu0 %v2053
    %2453 = vmatmul.bf16.gmra.mxu0 %v211
    %v2454 = vpop.f32.mrf.mxu0
    %v2455 = vadd.f32 %v2426, %v2454
    %v2456 = vpop.f32.mrf.mxu0
    %v2457 = vadd.f32 %v2428, %v2456
    %2458 = vmatmul.bf16.gmra.mxu0 %v213
    %v2459 = vpop.f32.mrf.mxu0
    %v2460 = vadd.f32 %v2431, %v2459
    %v2461 = vpop.f32.mrf.mxu0
    %v2462 = vadd.f32 %v2433, %v2461
    %2463 = vmatmul.bf16.gmra.mxu0 %v215
    %v2464 = vpop.f32.mrf.mxu0
    %v2465 = vadd.f32 %v2436, %v2464
    %v2466 = vpop.f32.mrf.mxu0
    %v2467 = vadd.f32 %v2438, %v2466
    %2468 = vmatmul.bf16.gmra.mxu0 %v217
    %v2469 = vpop.f32.mrf.mxu0
    %v2470 = vadd.f32 %v2441, %v2469
    %v2471 = vpop.f32.mrf.mxu0
    %v2472 = vadd.f32 %v2443, %v2471
    %2473 = vdwg.mxu0
    %2474 = vmatpush.bf16.msra.mxu0 %v2046
    %2475 = vmatpush.bf16.msra.mxu0 %v2038
    %2476 = vmatpush.bf16.msra.mxu0 %v2030
    %2477 = vmatpush.bf16.msra.mxu0 %v2022
    %2478 = vmatpush.bf16.msra.mxu0 %v2014
    %2479 = vmatpush.bf16.msra.mxu0 %v2006
    %2480 = vmatpush.bf16.msra.mxu0 %v1998
    %2481 = vmatpush.bf16.msra.mxu0 %v1990
    %2482 = vmatmul.bf16.gmra.mxu0 %v210
    %v2483 = vpop.f32.mrf.mxu0
    %v2484 = vadd.f32 %v1409, %v2483
    %v2485 = vpop.f32.mrf.mxu0
    %v2486 = vadd.f32 %v1411, %v2485
    %2487 = vmatmul.bf16.gmra.mxu0 %v212
    %v2488 = vpop.f32.mrf.mxu0
    %v2489 = vadd.f32 %v1414, %v2488
    %v2490 = vpop.f32.mrf.mxu0
    %v2491 = vadd.f32 %v1416, %v2490
    %2492 = vmatmul.bf16.gmra.mxu0 %v214
    %v2493 = vpop.f32.mrf.mxu0
    %v2494 = vadd.f32 %v1419, %v2493
    %v2495 = vpop.f32.mrf.mxu0
    %v2496 = vadd.f32 %v1421, %v2495
    %2497 = vmatmul.bf16.gmra.mxu0 %v216
    %v2498 = vpop.f32.mrf.mxu0
    %v2499 = vadd.f32 %v1424, %v2498
    %v2500 = vpop.f32.mrf.mxu0
    %v2501 = vadd.f32 %v1426, %v2500
    %2502 = vdwg.mxu0
    %2503 = vmatpush.bf16.msra.mxu0 %v2110
    %2504 = vmatpush.bf16.msra.mxu0 %v2102
    %2505 = vmatpush.bf16.msra.mxu0 %v2094
    %2506 = vmatpush.bf16.msra.mxu0 %v2086
    %2507 = vmatpush.bf16.msra.mxu0 %v2078
    %2508 = vmatpush.bf16.msra.mxu0 %v2070
    %2509 = vmatpush.bf16.msra.mxu0 %v2062
    %2510 = vmatpush.bf16.msra.mxu0 %v2054
    %2511 = vmatmul.bf16.gmra.mxu0 %v211
    %v2512 = vpop.f32.mrf.mxu0
    %v2513 = vadd.f32 %v2484, %v2512
    %v2514 = vpop.f32.mrf.mxu0
    %v2515 = vadd.f32 %v2486, %v2514
    %2516 = vmatmul.bf16.gmra.mxu0 %v213
    %v2517 = vpop.f32.mrf.mxu0
    %v2518 = vadd.f32 %v2489, %v2517
    %v2519 = vpop.f32.mrf.mxu0
    %v2520 = vadd.f32 %v2491, %v2519
    %2521 = vmatmul.bf16.gmra.mxu0 %v215
    %v2522 = vpop.f32.mrf.mxu0
    %v2523 = vadd.f32 %v2494, %v2522
    %v2524 = vpop.f32.mrf.mxu0
    %v2525 = vadd.f32 %v2496, %v2524
    %2526 = vmatmul.bf16.gmra.mxu0 %v217
    %v2527 = vpop.f32.mrf.mxu0
    %v2528 = vadd.f32 %v2499, %v2527
    %v2529 = vpop.f32.mrf.mxu0
    %v2530 = vadd.f32 %v2501, %v2529
    %2531 = vdwg.mxu0
    %2532 = vmatpush.bf16.msra.mxu0 %v2047
    %2533 = vmatpush.bf16.msra.mxu0 %v2039
    %2534 = vmatpush.bf16.msra.mxu0 %v2031
    %2535 = vmatpush.bf16.msra.mxu0 %v2023
    %2536 = vmatpush.bf16.msra.mxu0 %v2015
    %2537 = vmatpush.bf16.msra.mxu0 %v2007
    %2538 = vmatpush.bf16.msra.mxu0 %v1999
    %2539 = vmatpush.bf16.msra.mxu0 %v1991
    %2540 = vmatmul.bf16.gmra.mxu0 %v210
    %v2541 = vpop.f32.mrf.mxu0
    %v2542 = vadd.f32 %v1467, %v2541
    %v2543 = vpop.f32.mrf.mxu0
    %v2544 = vadd.f32 %v1469, %v2543
    %2545 = vmatmul.bf16.gmra.mxu0 %v212
    %v2546 = vpop.f32.mrf.mxu0
    %v2547 = vadd.f32 %v1472, %v2546
    %v2548 = vpop.f32.mrf.mxu0
    %v2549 = vadd.f32 %v1474, %v2548
    %2550 = vmatmul.bf16.gmra.mxu0 %v214
    %v2551 = vpop.f32.mrf.mxu0
    %v2552 = vadd.f32 %v1477, %v2551
    %v2553 = vpop.f32.mrf.mxu0
    %v2554 = vadd.f32 %v1479, %v2553
    %2555 = vmatmul.bf16.gmra.mxu0 %v216
    %v2556 = vpop.f32.mrf.mxu0
    %v2557 = vadd.f32 %v1482, %v2556
    %v2558 = vpop.f32.mrf.mxu0
    %v2559 = vadd.f32 %v1484, %v2558
    %2560 = vdwg.mxu0
    %2561 = vmatpush.bf16.msra.mxu0 %v2111
    %2562 = vmatpush.bf16.msra.mxu0 %v2103
    %2563 = vmatpush.bf16.msra.mxu0 %v2095
    %2564 = vmatpush.bf16.msra.mxu0 %v2087
    %2565 = vmatpush.bf16.msra.mxu0 %v2079
    %2566 = vmatpush.bf16.msra.mxu0 %v2071
    %2567 = vmatpush.bf16.msra.mxu0 %v2063
    %2568 = vmatpush.bf16.msra.mxu0 %v2055
    %2569 = vmatmul.bf16.gmra.mxu0 %v211
    %v2570 = vpop.f32.mrf.mxu0
    %v2571 = vadd.f32 %v2542, %v2570
    %v2572 = vpop.f32.mrf.mxu0
    %v2573 = vadd.f32 %v2544, %v2572
    %2574 = vmatmul.bf16.gmra.mxu0 %v213
    %v2575 = vpop.f32.mrf.mxu0
    %v2576 = vadd.f32 %v2547, %v2575
    %v2577 = vpop.f32.mrf.mxu0
    %v2578 = vadd.f32 %v2549, %v2577
    %2579 = vmatmul.bf16.gmra.mxu0 %v215
    %v2580 = vpop.f32.mrf.mxu0
    %v2581 = vadd.f32 %v2552, %v2580
    %v2582 = vpop.f32.mrf.mxu0
    %v2583 = vadd.f32 %v2554, %v2582
    %2584 = vmatmul.bf16.gmra.mxu0 %v217
    %v2585 = vpop.f32.mrf.mxu0
    %v2586 = vadd.f32 %v2557, %v2585
    %v2587 = vpop.f32.mrf.mxu0
    %v2588 = vadd.f32 %v2559, %v2587
    %2589 = vdwg.mxu0
    %2590 = vmatpush.bf16.msra.mxu0 %v2048
    %2591 = vmatpush.bf16.msra.mxu0 %v2040
    %2592 = vmatpush.bf16.msra.mxu0 %v2032
    %2593 = vmatpush.bf16.msra.mxu0 %v2024
    %2594 = vmatpush.bf16.msra.mxu0 %v2016
    %2595 = vmatpush.bf16.msra.mxu0 %v2008
    %2596 = vmatpush.bf16.msra.mxu0 %v2000
    %2597 = vmatpush.bf16.msra.mxu0 %v1992
    %2598 = vmatmul.bf16.gmra.mxu0 %v210
    %v2599 = vpop.f32.mrf.mxu0
    %v2600 = vadd.f32 %v1525, %v2599
    %v2601 = vpop.f32.mrf.mxu0
    %v2602 = vadd.f32 %v1527, %v2601
    %2603 = vmatmul.bf16.gmra.mxu0 %v212
    %v2604 = vpop.f32.mrf.mxu0
    %v2605 = vadd.f32 %v1530, %v2604
    %v2606 = vpop.f32.mrf.mxu0
    %v2607 = vadd.f32 %v1532, %v2606
    %2608 = vmatmul.bf16.gmra.mxu0 %v214
    %v2609 = vpop.f32.mrf.mxu0
    %v2610 = vadd.f32 %v1535, %v2609
    %v2611 = vpop.f32.mrf.mxu0
    %v2612 = vadd.f32 %v1537, %v2611
    %2613 = vmatmul.bf16.gmra.mxu0 %v216
    %v2614 = vpop.f32.mrf.mxu0
    %v2615 = vadd.f32 %v1540, %v2614
    %v2616 = vpop.f32.mrf.mxu0
    %v2617 = vadd.f32 %v1542, %v2616
    %2618 = vdwg.mxu0
    %2619 = vmatpush.bf16.msra.mxu0 %v2112
    %2620 = vmatpush.bf16.msra.mxu0 %v2104
    %2621 = vmatpush.bf16.msra.mxu0 %v2096
    %2622 = vmatpush.bf16.msra.mxu0 %v2088
    %2623 = vmatpush.bf16.msra.mxu0 %v2080
    %2624 = vmatpush.bf16.msra.mxu0 %v2072
    %2625 = vmatpush.bf16.msra.mxu0 %v2064
    %2626 = vmatpush.bf16.msra.mxu0 %v2056
    %2627 = vmatmul.bf16.gmra.mxu0 %v211
    %v2628 = vpop.f32.mrf.mxu0
    %v2629 = vadd.f32 %v2600, %v2628
    %v2630 = vpop.f32.mrf.mxu0
    %v2631 = vadd.f32 %v2602, %v2630
    %2632 = vmatmul.bf16.gmra.mxu0 %v213
    %v2633 = vpop.f32.mrf.mxu0
    %v2634 = vadd.f32 %v2605, %v2633
    %v2635 = vpop.f32.mrf.mxu0
    %v2636 = vadd.f32 %v2607, %v2635
    %2637 = vmatmul.bf16.gmra.mxu0 %v215
    %v2638 = vpop.f32.mrf.mxu0
    %v2639 = vadd.f32 %v2610, %v2638
    %v2640 = vpop.f32.mrf.mxu0
    %v2641 = vadd.f32 %v2612, %v2640
    %2642 = vmatmul.bf16.gmra.mxu0 %v217
    %v2643 = vpop.f32.mrf.mxu0
    %v2644 = vadd.f32 %v2615, %v2643
    %v2645 = vpop.f32.mrf.mxu0
    %v2646 = vadd.f32 %v2617, %v2645
    %2647 = vdwg.mxu0
    %2648 = vmatpush.bf16.msra.mxu0 %v2049
    %2649 = vmatpush.bf16.msra.mxu0 %v2041
    %2650 = vmatpush.bf16.msra.mxu0 %v2033
    %2651 = vmatpush.bf16.msra.mxu0 %v2025
    %2652 = vmatpush.bf16.msra.mxu0 %v2017
    %2653 = vmatpush.bf16.msra.mxu0 %v2009
    %2654 = vmatpush.bf16.msra.mxu0 %v2001
    %2655 = vmatpush.bf16.msra.mxu0 %v1993
    %2656 = vmatmul.bf16.gmra.mxu0 %v210
    %v2657 = vpop.f32.mrf.mxu0
    %v2658 = vadd.f32 %v1583, %v2657
    %v2659 = vpop.f32.mrf.mxu0
    %v2660 = vadd.f32 %v1585, %v2659
    %2661 = vmatmul.bf16.gmra.mxu0 %v212
    %v2662 = vpop.f32.mrf.mxu0
    %v2663 = vadd.f32 %v1588, %v2662
    %v2664 = vpop.f32.mrf.mxu0
    %v2665 = vadd.f32 %v1590, %v2664
    %2666 = vmatmul.bf16.gmra.mxu0 %v214
    %v2667 = vpop.f32.mrf.mxu0
    %v2668 = vadd.f32 %v1593, %v2667
    %v2669 = vpop.f32.mrf.mxu0
    %v2670 = vadd.f32 %v1595, %v2669
    %2671 = vmatmul.bf16.gmra.mxu0 %v216
    %v2672 = vpop.f32.mrf.mxu0
    %v2673 = vadd.f32 %v1598, %v2672
    %v2674 = vpop.f32.mrf.mxu0
    %v2675 = vadd.f32 %v1600, %v2674
    %2676 = vdwg.mxu0
    %2677 = vmatpush.bf16.msra.mxu0 %v2113
    %2678 = vmatpush.bf16.msra.mxu0 %v2105
    %2679 = vmatpush.bf16.msra.mxu0 %v2097
    %2680 = vmatpush.bf16.msra.mxu0 %v2089
    %2681 = vmatpush.bf16.msra.mxu0 %v2081
    %2682 = vmatpush.bf16.msra.mxu0 %v2073
    %2683 = vmatpush.bf16.msra.mxu0 %v2065
    %2684 = vmatpush.bf16.msra.mxu0 %v2057
    %2685 = vmatmul.bf16.gmra.mxu0 %v211
    %v2686 = vpop.f32.mrf.mxu0
    %v2687 = vadd.f32 %v2658, %v2686
    %v2688 = vpop.f32.mrf.mxu0
    %v2689 = vadd.f32 %v2660, %v2688
    %2690 = vmatmul.bf16.gmra.mxu0 %v213
    %v2691 = vpop.f32.mrf.mxu0
    %v2692 = vadd.f32 %v2663, %v2691
    %v2693 = vpop.f32.mrf.mxu0
    %v2694 = vadd.f32 %v2665, %v2693
    %2695 = vmatmul.bf16.gmra.mxu0 %v215
    %v2696 = vpop.f32.mrf.mxu0
    %v2697 = vadd.f32 %v2668, %v2696
    %v2698 = vpop.f32.mrf.mxu0
    %v2699 = vadd.f32 %v2670, %v2698
    %2700 = vmatmul.bf16.gmra.mxu0 %v217
    %v2701 = vpop.f32.mrf.mxu0
    %v2702 = vadd.f32 %v2673, %v2701
    %v2703 = vpop.f32.mrf.mxu0
    %v2704 = vadd.f32 %v2675, %v2703
    %2705 = vdwg.mxu0
    %v2706 = vld [vmem:[%s5] sm:$0xff]
    %v2708 = vperm.slane %v2706, 0
    %v2709 = vperm.slane %v2706, 1
    %v2710 = vperm.slane %v2706, 2
    %v2711 = vperm.slane %v2706, 3
    %v2712 = vperm.slane %v2706, 4
    %v2713 = vperm.slane %v2706, 5
    %v2714 = vperm.slane %v2706, 6
    %v2715 = vperm.slane %v2706, 7
    %v2724 = vadd.f32 %v2281, %v2708
    %v2725 = vadd.f32 %v2339, %v2709
    %v2726 = vadd.f32 %v2397, %v2710
    %v2727 = vadd.f32 %v2455, %v2711
    %v2728 = vadd.f32 %v2513, %v2712
    %v2729 = vadd.f32 %v2571, %v2713
    %v2730 = vadd.f32 %v2629, %v2714
    %v2731 = vadd.f32 %v2687, %v2715
    %v2732 = vadd.f32 %v2283, %v2708
    %v2733 = vadd.f32 %v2341, %v2709
    %v2734 = vadd.f32 %v2399, %v2710
    %v2735 = vadd.f32 %v2457, %v2711
    %v2736 = vadd.f32 %v2515, %v2712
    %v2737 = vadd.f32 %v2573, %v2713
    %v2738 = vadd.f32 %v2631, %v2714
    %v2739 = vadd.f32 %v2689, %v2715
    %v2740 = vadd.f32 %v2286, %v2708
    %v2741 = vadd.f32 %v2344, %v2709
    %v2742 = vadd.f32 %v2402, %v2710
    %v2743 = vadd.f32 %v2460, %v2711
    %v2744 = vadd.f32 %v2518, %v2712
    %v2745 = vadd.f32 %v2576, %v2713
    %v2746 = vadd.f32 %v2634, %v2714
    %v2747 = vadd.f32 %v2692, %v2715
    %v2748 = vadd.f32 %v2288, %v2708
    %v2749 = vadd.f32 %v2346, %v2709
    %v2750 = vadd.f32 %v2404, %v2710
    %v2751 = vadd.f32 %v2462, %v2711
    %v2752 = vadd.f32 %v2520, %v2712
    %v2753 = vadd.f32 %v2578, %v2713
    %v2754 = vadd.f32 %v2636, %v2714
    %v2755 = vadd.f32 %v2694, %v2715
    %v2756 = vadd.f32 %v2291, %v2708
    %v2757 = vadd.f32 %v2349, %v2709
    %v2758 = vadd.f32 %v2407, %v2710
    %v2759 = vadd.f32 %v2465, %v2711
    %v2760 = vadd.f32 %v2523, %v2712
    %v2761 = vadd.f32 %v2581, %v2713
    %v2762 = vadd.f32 %v2639, %v2714
    %v2763 = vadd.f32 %v2697, %v2715
    %v2764 = vadd.f32 %v2293, %v2708
    %v2765 = vadd.f32 %v2351, %v2709
    %v2766 = vadd.f32 %v2409, %v2710
    %v2767 = vadd.f32 %v2467, %v2711
    %v2768 = vadd.f32 %v2525, %v2712
    %v2769 = vadd.f32 %v2583, %v2713
    %v2770 = vadd.f32 %v2641, %v2714
    %v2771 = vadd.f32 %v2699, %v2715
    %v2772 = vadd.f32 %v2296, %v2708
    %v2773 = vadd.f32 %v2354, %v2709
    %v2774 = vadd.f32 %v2412, %v2710
    %v2775 = vadd.f32 %v2470, %v2711
    %v2776 = vadd.f32 %v2528, %v2712
    %v2777 = vadd.f32 %v2586, %v2713
    %v2778 = vadd.f32 %v2644, %v2714
    %v2779 = vadd.f32 %v2702, %v2715
    %v2780 = vadd.f32 %v2298, %v2708
    %v2781 = vadd.f32 %v2356, %v2709
    %v2782 = vadd.f32 %v2414, %v2710
    %v2783 = vadd.f32 %v2472, %v2711
    %v2784 = vadd.f32 %v2530, %v2712
    %v2785 = vadd.f32 %v2588, %v2713
    %v2786 = vadd.f32 %v2646, %v2714
    %v2787 = vadd.f32 %v2704, %v2715
    %2788 = vst [vmem:[#allocation2] sm:$0xff] %v2724
    %2789 = vst [vmem:[#allocation2 + $0x8] sm:$0xff] %v2725
    %2790 = vst [vmem:[#allocation2 + $0x10] sm:$0xff] %v2726
    %2791 = vst [vmem:[#allocation2 + $0x18] sm:$0xff] %v2727
    %2792 = vst [vmem:[#allocation2 + $0x20] sm:$0xff] %v2728
    %2793 = vst [vmem:[#allocation2 + $0x28] sm:$0xff] %v2729
    %2794 = vst [vmem:[#allocation2 + $0x30] sm:$0xff] %v2730
    %2795 = vst [vmem:[#allocation2 + $0x38] sm:$0xff] %v2731
    %2796 = vst [vmem:[#allocation2 + $0x40] sm:$0xff] %v2732
    %2797 = vst [vmem:[#allocation2 + $0x48] sm:$0xff] %v2733
    %2798 = vst [vmem:[#allocation2 + $0x50] sm:$0xff] %v2734
    %2799 = vst [vmem:[#allocation2 + $0x58] sm:$0xff] %v2735
    %2800 = vst [vmem:[#allocation2 + $0x60] sm:$0xff] %v2736
    %2801 = vst [vmem:[#allocation2 + $0x68] sm:$0xff] %v2737
    %2802 = vst [vmem:[#allocation2 + $0x70] sm:$0xff] %v2738
    %2803 = vst [vmem:[#allocation2 + $0x78] sm:$0xff] %v2739
    %2804 = vst [vmem:[#allocation2 + $0x80] sm:$0xff] %v2740
    %2805 = vst [vmem:[#allocation2 + $0x88] sm:$0xff] %v2741
    %2806 = vst [vmem:[#allocation2 + $0x90] sm:$0xff] %v2742
    %2807 = vst [vmem:[#allocation2 + $0x98] sm:$0xff] %v2743
    %2808 = vst [vmem:[#allocation2 + $0xa0] sm:$0xff] %v2744
    %2809 = vst [vmem:[#allocation2 + $0xa8] sm:$0xff] %v2745
    %2810 = vst [vmem:[#allocation2 + $0xb0] sm:$0xff] %v2746
    %2811 = vst [vmem:[#allocation2 + $0xb8] sm:$0xff] %v2747
    %2812 = vst [vmem:[#allocation2 + $0xc0] sm:$0xff] %v2748
    %2813 = vst [vmem:[#allocation2 + $0xc8] sm:$0xff] %v2749
    %2814 = vst [vmem:[#allocation2 + $0xd0] sm:$0xff] %v2750
    %2815 = vst [vmem:[#allocation2 + $0xd8] sm:$0xff] %v2751
    %2816 = vst [vmem:[#allocation2 + $0xe0] sm:$0xff] %v2752
    %2817 = vst [vmem:[#allocation2 + $0xe8] sm:$0xff] %v2753
    %2818 = vst [vmem:[#allocation2 + $0xf0] sm:$0xff] %v2754
    %2819 = vst [vmem:[#allocation2 + $0xf8] sm:$0xff] %v2755
    %2820 = vst [vmem:[#allocation2 + $0x100] sm:$0xff] %v2756
    %2821 = vst [vmem:[#allocation2 + $0x108] sm:$0xff] %v2757
    %2822 = vst [vmem:[#allocation2 + $0x110] sm:$0xff] %v2758
    %2823 = vst [vmem:[#allocation2 + $0x118] sm:$0xff] %v2759
    %2824 = vst [vmem:[#allocation2 + $0x120] sm:$0xff] %v2760
    %2825 = vst [vmem:[#allocation2 + $0x128] sm:$0xff] %v2761
    %2826 = vst [vmem:[#allocation2 + $0x130] sm:$0xff] %v2762
    %2827 = vst [vmem:[#allocation2 + $0x138] sm:$0xff] %v2763
    %2828 = vst [vmem:[#allocation2 + $0x140] sm:$0xff] %v2764
    %2829 = vst [vmem:[#allocation2 + $0x148] sm:$0xff] %v2765
    %2830 = vst [vmem:[#allocation2 + $0x150] sm:$0xff] %v2766
    %2831 = vst [vmem:[#allocation2 + $0x158] sm:$0xff] %v2767
    %2832 = vst [vmem:[#allocation2 + $0x160] sm:$0xff] %v2768
    %2833 = vst [vmem:[#allocation2 + $0x168] sm:$0xff] %v2769
    %2834 = vst [vmem:[#allocation2 + $0x170] sm:$0xff] %v2770
    %2835 = vst [vmem:[#allocation2 + $0x178] sm:$0xff] %v2771
    %2836 = vst [vmem:[#allocation2 + $0x180] sm:$0xff] %v2772
    %2837 = vst [vmem:[#allocation2 + $0x188] sm:$0xff] %v2773
    %2838 = vst [vmem:[#allocation2 + $0x190] sm:$0xff] %v2774
    %2839 = vst [vmem:[#allocation2 + $0x198] sm:$0xff] %v2775
    %2840 = vst [vmem:[#allocation2 + $0x1a0] sm:$0xff] %v2776
    %2841 = vst [vmem:[#allocation2 + $0x1a8] sm:$0xff] %v2777
    %2842 = vst [vmem:[#allocation2 + $0x1b0] sm:$0xff] %v2778
    %2843 = vst [vmem:[#allocation2 + $0x1b8] sm:$0xff] %v2779
    %2844 = vst [vmem:[#allocation2 + $0x1c0] sm:$0xff] %v2780
    %2845 = vst [vmem:[#allocation2 + $0x1c8] sm:$0xff] %v2781
    %2846 = vst [vmem:[#allocation2 + $0x1d0] sm:$0xff] %v2782
    %2847 = vst [vmem:[#allocation2 + $0x1d8] sm:$0xff] %v2783
    %2848 = vst [vmem:[#allocation2 + $0x1e0] sm:$0xff] %v2784
    %2849 = vst [vmem:[#allocation2 + $0x1e8] sm:$0xff] %v2785
    %2850 = vst [vmem:[#allocation2 + $0x1f0] sm:$0xff] %v2786
    %2851 = vst [vmem:[#allocation2 + $0x1f8] sm:$0xff] %v2787
    %v2852 = vld [vmem:[#allocation13] sm:$0xff]
    %v2853 = vld [vmem:[#allocation13 + $0x8] sm:$0xff]
    %v2854 = vld [vmem:[#allocation13 + $0x10] sm:$0xff]
    %v2855 = vld [vmem:[#allocation13 + $0x18] sm:$0xff]
    %v2856 = vld [vmem:[#allocation13 + $0x20] sm:$0xff]
    %v2857 = vld [vmem:[#allocation13 + $0x28] sm:$0xff]
    %v2858 = vld [vmem:[#allocation13 + $0x30] sm:$0xff]
    %v2859 = vld [vmem:[#allocation13 + $0x38] sm:$0xff]
    %v2860 = vld [vmem:[#allocation13 + $0x40] sm:$0xff]
    %v2861 = vld [vmem:[#allocation13 + $0x48] sm:$0xff]
    %v2862 = vld [vmem:[#allocation13 + $0x50] sm:$0xff]
    %v2863 = vld [vmem:[#allocation13 + $0x58] sm:$0xff]
    %v2864 = vld [vmem:[#allocation13 + $0x60] sm:$0xff]
    %v2865 = vld [vmem:[#allocation13 + $0x68] sm:$0xff]
    %v2866 = vld [vmem:[#allocation13 + $0x70] sm:$0xff]
    %v2867 = vld [vmem:[#allocation13 + $0x78] sm:$0xff]
    %v2868 = vld [vmem:[#allocation13 + $0x80] sm:$0xff]
    %v2869 = vld [vmem:[#allocation13 + $0x88] sm:$0xff]
    %v2870 = vld [vmem:[#allocation13 + $0x90] sm:$0xff]
    %v2871 = vld [vmem:[#allocation13 + $0x98] sm:$0xff]
    %v2872 = vld [vmem:[#allocation13 + $0xa0] sm:$0xff]
    %v2873 = vld [vmem:[#allocation13 + $0xa8] sm:$0xff]
    %v2874 = vld [vmem:[#allocation13 + $0xb0] sm:$0xff]
    %v2875 = vld [vmem:[#allocation13 + $0xb8] sm:$0xff]
    %v2876 = vld [vmem:[#allocation13 + $0xc0] sm:$0xff]
    %v2877 = vld [vmem:[#allocation13 + $0xc8] sm:$0xff]
    %v2878 = vld [vmem:[#allocation13 + $0xd0] sm:$0xff]
    %v2879 = vld [vmem:[#allocation13 + $0xd8] sm:$0xff]
    %v2880 = vld [vmem:[#allocation13 + $0xe0] sm:$0xff]
    %v2881 = vld [vmem:[#allocation13 + $0xe8] sm:$0xff]
    %v2882 = vld [vmem:[#allocation13 + $0xf0] sm:$0xff]
    %v2883 = vld [vmem:[#allocation13 + $0xf8] sm:$0xff]
    %v2884 = vld [vmem:[#allocation13 + $0x100] sm:$0xff]
    %v2885 = vld [vmem:[#allocation13 + $0x108] sm:$0xff]
    %v2886 = vld [vmem:[#allocation13 + $0x110] sm:$0xff]
    %v2887 = vld [vmem:[#allocation13 + $0x118] sm:$0xff]
    %v2888 = vld [vmem:[#allocation13 + $0x120] sm:$0xff]
    %v2889 = vld [vmem:[#allocation13 + $0x128] sm:$0xff]
    %v2890 = vld [vmem:[#allocation13 + $0x130] sm:$0xff]
    %v2891 = vld [vmem:[#allocation13 + $0x138] sm:$0xff]
    %v2892 = vld [vmem:[#allocation13 + $0x140] sm:$0xff]
    %v2893 = vld [vmem:[#allocation13 + $0x148] sm:$0xff]
    %v2894 = vld [vmem:[#allocation13 + $0x150] sm:$0xff]
    %v2895 = vld [vmem:[#allocation13 + $0x158] sm:$0xff]
    %v2896 = vld [vmem:[#allocation13 + $0x160] sm:$0xff]
    %v2897 = vld [vmem:[#allocation13 + $0x168] sm:$0xff]
    %v2898 = vld [vmem:[#allocation13 + $0x170] sm:$0xff]
    %v2899 = vld [vmem:[#allocation13 + $0x178] sm:$0xff]
    %v2900 = vld [vmem:[#allocation13 + $0x180] sm:$0xff]
    %v2901 = vld [vmem:[#allocation13 + $0x188] sm:$0xff]
    %v2902 = vld [vmem:[#allocation13 + $0x190] sm:$0xff]
    %v2903 = vld [vmem:[#allocation13 + $0x198] sm:$0xff]
    %v2904 = vld [vmem:[#allocation13 + $0x1a0] sm:$0xff]
    %v2905 = vld [vmem:[#allocation13 + $0x1a8] sm:$0xff]
    %v2906 = vld [vmem:[#allocation13 + $0x1b0] sm:$0xff]
    %v2907 = vld [vmem:[#allocation13 + $0x1b8] sm:$0xff]
    %v2908 = vld [vmem:[#allocation13 + $0x1c0] sm:$0xff]
    %v2909 = vld [vmem:[#allocation13 + $0x1c8] sm:$0xff]
    %v2910 = vld [vmem:[#allocation13 + $0x1d0] sm:$0xff]
    %v2911 = vld [vmem:[#allocation13 + $0x1d8] sm:$0xff]
    %v2912 = vld [vmem:[#allocation13 + $0x1e0] sm:$0xff]
    %v2913 = vld [vmem:[#allocation13 + $0x1e8] sm:$0xff]
    %v2914 = vld [vmem:[#allocation13 + $0x1f0] sm:$0xff]
    %v2915 = vld [vmem:[#allocation13 + $0x1f8] sm:$0xff]
    %v2916 = vld [vmem:[#allocation13 + $0x200] sm:$0xff]
    %v2917 = vld [vmem:[#allocation13 + $0x208] sm:$0xff]
    %v2918 = vld [vmem:[#allocation13 + $0x210] sm:$0xff]
    %v2919 = vld [vmem:[#allocation13 + $0x218] sm:$0xff]
    %v2920 = vld [vmem:[#allocation13 + $0x220] sm:$0xff]
    %v2921 = vld [vmem:[#allocation13 + $0x228] sm:$0xff]
    %v2922 = vld [vmem:[#allocation13 + $0x230] sm:$0xff]
    %v2923 = vld [vmem:[#allocation13 + $0x238] sm:$0xff]
    %v2924 = vld [vmem:[#allocation13 + $0x240] sm:$0xff]
    %v2925 = vld [vmem:[#allocation13 + $0x248] sm:$0xff]
    %v2926 = vld [vmem:[#allocation13 + $0x250] sm:$0xff]
    %v2927 = vld [vmem:[#allocation13 + $0x258] sm:$0xff]
    %v2928 = vld [vmem:[#allocation13 + $0x260] sm:$0xff]
    %v2929 = vld [vmem:[#allocation13 + $0x268] sm:$0xff]
    %v2930 = vld [vmem:[#allocation13 + $0x270] sm:$0xff]
    %v2931 = vld [vmem:[#allocation13 + $0x278] sm:$0xff]
    %v2932 = vld [vmem:[#allocation13 + $0x280] sm:$0xff]
    %v2933 = vld [vmem:[#allocation13 + $0x288] sm:$0xff]
    %v2934 = vld [vmem:[#allocation13 + $0x290] sm:$0xff]
    %v2935 = vld [vmem:[#allocation13 + $0x298] sm:$0xff]
    %v2936 = vld [vmem:[#allocation13 + $0x2a0] sm:$0xff]
    %v2937 = vld [vmem:[#allocation13 + $0x2a8] sm:$0xff]
    %v2938 = vld [vmem:[#allocation13 + $0x2b0] sm:$0xff]
    %v2939 = vld [vmem:[#allocation13 + $0x2b8] sm:$0xff]
    %v2940 = vld [vmem:[#allocation13 + $0x2c0] sm:$0xff]
    %v2941 = vld [vmem:[#allocation13 + $0x2c8] sm:$0xff]
    %v2942 = vld [vmem:[#allocation13 + $0x2d0] sm:$0xff]
    %v2943 = vld [vmem:[#allocation13 + $0x2d8] sm:$0xff]
    %v2944 = vld [vmem:[#allocation13 + $0x2e0] sm:$0xff]
    %v2945 = vld [vmem:[#allocation13 + $0x2e8] sm:$0xff]
    %v2946 = vld [vmem:[#allocation13 + $0x2f0] sm:$0xff]
    %v2947 = vld [vmem:[#allocation13 + $0x2f8] sm:$0xff]
    %v2948 = vld [vmem:[#allocation13 + $0x300] sm:$0xff]
    %v2949 = vld [vmem:[#allocation13 + $0x308] sm:$0xff]
    %v2950 = vld [vmem:[#allocation13 + $0x310] sm:$0xff]
    %v2951 = vld [vmem:[#allocation13 + $0x318] sm:$0xff]
    %v2952 = vld [vmem:[#allocation13 + $0x320] sm:$0xff]
    %v2953 = vld [vmem:[#allocation13 + $0x328] sm:$0xff]
    %v2954 = vld [vmem:[#allocation13 + $0x330] sm:$0xff]
    %v2955 = vld [vmem:[#allocation13 + $0x338] sm:$0xff]
    %v2956 = vld [vmem:[#allocation13 + $0x340] sm:$0xff]
    %v2957 = vld [vmem:[#allocation13 + $0x348] sm:$0xff]
    %v2958 = vld [vmem:[#allocation13 + $0x350] sm:$0xff]
    %v2959 = vld [vmem:[#allocation13 + $0x358] sm:$0xff]
    %v2960 = vld [vmem:[#allocation13 + $0x360] sm:$0xff]
    %v2961 = vld [vmem:[#allocation13 + $0x368] sm:$0xff]
    %v2962 = vld [vmem:[#allocation13 + $0x370] sm:$0xff]
    %v2963 = vld [vmem:[#allocation13 + $0x378] sm:$0xff]
    %v2964 = vld [vmem:[#allocation13 + $0x380] sm:$0xff]
    %v2965 = vld [vmem:[#allocation13 + $0x388] sm:$0xff]
    %v2966 = vld [vmem:[#allocation13 + $0x390] sm:$0xff]
    %v2967 = vld [vmem:[#allocation13 + $0x398] sm:$0xff]
    %v2968 = vld [vmem:[#allocation13 + $0x3a0] sm:$0xff]
    %v2969 = vld [vmem:[#allocation13 + $0x3a8] sm:$0xff]
    %v2970 = vld [vmem:[#allocation13 + $0x3b0] sm:$0xff]
    %v2971 = vld [vmem:[#allocation13 + $0x3b8] sm:$0xff]
    %v2972 = vld [vmem:[#allocation13 + $0x3c0] sm:$0xff]
    %v2973 = vld [vmem:[#allocation13 + $0x3c8] sm:$0xff]
    %v2974 = vld [vmem:[#allocation13 + $0x3d0] sm:$0xff]
    %v2975 = vld [vmem:[#allocation13 + $0x3d8] sm:$0xff]
    %v2976 = vld [vmem:[#allocation13 + $0x3e0] sm:$0xff]
    %v2977 = vld [vmem:[#allocation13 + $0x3e8] sm:$0xff]
    %v2978 = vld [vmem:[#allocation13 + $0x3f0] sm:$0xff]
    %v2979 = vld [vmem:[#allocation13 + $0x3f8] sm:$0xff]
    %v2980 = vld [vmem:[#allocation15] sm:$0xff]
    %v2981 = vld [vmem:[#allocation15 + $0x8] sm:$0xff]
    %v2982 = vld [vmem:[#allocation15 + $0x10] sm:$0xff]
    %v2983 = vld [vmem:[#allocation15 + $0x18] sm:$0xff]
    %v2984 = vld [vmem:[#allocation15 + $0x20] sm:$0xff]
    %v2985 = vld [vmem:[#allocation15 + $0x28] sm:$0xff]
    %v2986 = vld [vmem:[#allocation15 + $0x30] sm:$0xff]
    %v2987 = vld [vmem:[#allocation15 + $0x38] sm:$0xff]
    %v2988 = vld [vmem:[#allocation15 + $0x40] sm:$0xff]
    %v2989 = vld [vmem:[#allocation15 + $0x48] sm:$0xff]
    %v2990 = vld [vmem:[#allocation15 + $0x50] sm:$0xff]
    %v2991 = vld [vmem:[#allocation15 + $0x58] sm:$0xff]
    %v2992 = vld [vmem:[#allocation15 + $0x60] sm:$0xff]
    %v2993 = vld [vmem:[#allocation15 + $0x68] sm:$0xff]
    %v2994 = vld [vmem:[#allocation15 + $0x70] sm:$0xff]
    %v2995 = vld [vmem:[#allocation15 + $0x78] sm:$0xff]
    %v2996 = vld [vmem:[#allocation15 + $0x80] sm:$0xff]
    %v2997 = vld [vmem:[#allocation15 + $0x88] sm:$0xff]
    %v2998 = vld [vmem:[#allocation15 + $0x90] sm:$0xff]
    %v2999 = vld [vmem:[#allocation15 + $0x98] sm:$0xff]
    %v3000 = vld [vmem:[#allocation15 + $0xa0] sm:$0xff]
    %v3001 = vld [vmem:[#allocation15 + $0xa8] sm:$0xff]
    %v3002 = vld [vmem:[#allocation15 + $0xb0] sm:$0xff]
    %v3003 = vld [vmem:[#allocation15 + $0xb8] sm:$0xff]
    %v3004 = vld [vmem:[#allocation15 + $0xc0] sm:$0xff]
    %v3005 = vld [vmem:[#allocation15 + $0xc8] sm:$0xff]
    %v3006 = vld [vmem:[#allocation15 + $0xd0] sm:$0xff]
    %v3007 = vld [vmem:[#allocation15 + $0xd8] sm:$0xff]
    %v3008 = vld [vmem:[#allocation15 + $0xe0] sm:$0xff]
    %v3009 = vld [vmem:[#allocation15 + $0xe8] sm:$0xff]
    %v3010 = vld [vmem:[#allocation15 + $0xf0] sm:$0xff]
    %v3011 = vld [vmem:[#allocation15 + $0xf8] sm:$0xff]
    %v3012 = vld [vmem:[#allocation15 + $0x100] sm:$0xff]
    %v3013 = vld [vmem:[#allocation15 + $0x108] sm:$0xff]
    %v3014 = vld [vmem:[#allocation15 + $0x110] sm:$0xff]
    %v3015 = vld [vmem:[#allocation15 + $0x118] sm:$0xff]
    %v3016 = vld [vmem:[#allocation15 + $0x120] sm:$0xff]
    %v3017 = vld [vmem:[#allocation15 + $0x128] sm:$0xff]
    %v3018 = vld [vmem:[#allocation15 + $0x130] sm:$0xff]
    %v3019 = vld [vmem:[#allocation15 + $0x138] sm:$0xff]
    %v3020 = vld [vmem:[#allocation15 + $0x140] sm:$0xff]
    %v3021 = vld [vmem:[#allocation15 + $0x148] sm:$0xff]
    %v3022 = vld [vmem:[#allocation15 + $0x150] sm:$0xff]
    %v3023 = vld [vmem:[#allocation15 + $0x158] sm:$0xff]
    %v3024 = vld [vmem:[#allocation15 + $0x160] sm:$0xff]
    %v3025 = vld [vmem:[#allocation15 + $0x168] sm:$0xff]
    %v3026 = vld [vmem:[#allocation15 + $0x170] sm:$0xff]
    %v3027 = vld [vmem:[#allocation15 + $0x178] sm:$0xff]
    %v3028 = vld [vmem:[#allocation15 + $0x180] sm:$0xff]
    %v3029 = vld [vmem:[#allocation15 + $0x188] sm:$0xff]
    %v3030 = vld [vmem:[#allocation15 + $0x190] sm:$0xff]
    %v3031 = vld [vmem:[#allocation15 + $0x198] sm:$0xff]
    %v3032 = vld [vmem:[#allocation15 + $0x1a0] sm:$0xff]
    %v3033 = vld [vmem:[#allocation15 + $0x1a8] sm:$0xff]
    %v3034 = vld [vmem:[#allocation15 + $0x1b0] sm:$0xff]
    %v3035 = vld [vmem:[#allocation15 + $0x1b8] sm:$0xff]
    %v3036 = vld [vmem:[#allocation15 + $0x1c0] sm:$0xff]
    %v3037 = vld [vmem:[#allocation15 + $0x1c8] sm:$0xff]
    %v3038 = vld [vmem:[#allocation15 + $0x1d0] sm:$0xff]
    %v3039 = vld [vmem:[#allocation15 + $0x1d8] sm:$0xff]
    %v3040 = vld [vmem:[#allocation15 + $0x1e0] sm:$0xff]
    %v3041 = vld [vmem:[#allocation15 + $0x1e8] sm:$0xff]
    %v3042 = vld [vmem:[#allocation15 + $0x1f0] sm:$0xff]
    %v3043 = vld [vmem:[#allocation15 + $0x1f8] sm:$0xff]
    %v3044 = vld [vmem:[#allocation15 + $0x200] sm:$0xff]
    %v3045 = vld [vmem:[#allocation15 + $0x208] sm:$0xff]
    %v3046 = vld [vmem:[#allocation15 + $0x210] sm:$0xff]
    %v3047 = vld [vmem:[#allocation15 + $0x218] sm:$0xff]
    %v3048 = vld [vmem:[#allocation15 + $0x220] sm:$0xff]
    %v3049 = vld [vmem:[#allocation15 + $0x228] sm:$0xff]
    %v3050 = vld [vmem:[#allocation15 + $0x230] sm:$0xff]
    %v3051 = vld [vmem:[#allocation15 + $0x238] sm:$0xff]
    %v3052 = vld [vmem:[#allocation15 + $0x240] sm:$0xff]
    %v3053 = vld [vmem:[#allocation15 + $0x248] sm:$0xff]
    %v3054 = vld [vmem:[#allocation15 + $0x250] sm:$0xff]
    %v3055 = vld [vmem:[#allocation15 + $0x258] sm:$0xff]
    %v3056 = vld [vmem:[#allocation15 + $0x260] sm:$0xff]
    %v3057 = vld [vmem:[#allocation15 + $0x268] sm:$0xff]
    %v3058 = vld [vmem:[#allocation15 + $0x270] sm:$0xff]
    %v3059 = vld [vmem:[#allocation15 + $0x278] sm:$0xff]
    %v3060 = vld [vmem:[#allocation15 + $0x280] sm:$0xff]
    %v3061 = vld [vmem:[#allocation15 + $0x288] sm:$0xff]
    %v3062 = vld [vmem:[#allocation15 + $0x290] sm:$0xff]
    %v3063 = vld [vmem:[#allocation15 + $0x298] sm:$0xff]
    %v3064 = vld [vmem:[#allocation15 + $0x2a0] sm:$0xff]
    %v3065 = vld [vmem:[#allocation15 + $0x2a8] sm:$0xff]
    %v3066 = vld [vmem:[#allocation15 + $0x2b0] sm:$0xff]
    %v3067 = vld [vmem:[#allocation15 + $0x2b8] sm:$0xff]
    %v3068 = vld [vmem:[#allocation15 + $0x2c0] sm:$0xff]
    %v3069 = vld [vmem:[#allocation15 + $0x2c8] sm:$0xff]
    %v3070 = vld [vmem:[#allocation15 + $0x2d0] sm:$0xff]
    %v3071 = vld [vmem:[#allocation15 + $0x2d8] sm:$0xff]
    %v3072 = vld [vmem:[#allocation15 + $0x2e0] sm:$0xff]
    %v3073 = vld [vmem:[#allocation15 + $0x2e8] sm:$0xff]
    %v3074 = vld [vmem:[#allocation15 + $0x2f0] sm:$0xff]
    %v3075 = vld [vmem:[#allocation15 + $0x2f8] sm:$0xff]
    %v3076 = vld [vmem:[#allocation15 + $0x300] sm:$0xff]
    %v3077 = vld [vmem:[#allocation15 + $0x308] sm:$0xff]
    %v3078 = vld [vmem:[#allocation15 + $0x310] sm:$0xff]
    %v3079 = vld [vmem:[#allocation15 + $0x318] sm:$0xff]
    %v3080 = vld [vmem:[#allocation15 + $0x320] sm:$0xff]
    %v3081 = vld [vmem:[#allocation15 + $0x328] sm:$0xff]
    %v3082 = vld [vmem:[#allocation15 + $0x330] sm:$0xff]
    %v3083 = vld [vmem:[#allocation15 + $0x338] sm:$0xff]
    %v3084 = vld [vmem:[#allocation15 + $0x340] sm:$0xff]
    %v3085 = vld [vmem:[#allocation15 + $0x348] sm:$0xff]
    %v3086 = vld [vmem:[#allocation15 + $0x350] sm:$0xff]
    %v3087 = vld [vmem:[#allocation15 + $0x358] sm:$0xff]
    %v3088 = vld [vmem:[#allocation15 + $0x360] sm:$0xff]
    %v3089 = vld [vmem:[#allocation15 + $0x368] sm:$0xff]
    %v3090 = vld [vmem:[#allocation15 + $0x370] sm:$0xff]
    %v3091 = vld [vmem:[#allocation15 + $0x378] sm:$0xff]
    %v3092 = vld [vmem:[#allocation15 + $0x380] sm:$0xff]
    %v3093 = vld [vmem:[#allocation15 + $0x388] sm:$0xff]
    %v3094 = vld [vmem:[#allocation15 + $0x390] sm:$0xff]
    %v3095 = vld [vmem:[#allocation15 + $0x398] sm:$0xff]
    %v3096 = vld [vmem:[#allocation15 + $0x3a0] sm:$0xff]
    %v3097 = vld [vmem:[#allocation15 + $0x3a8] sm:$0xff]
    %v3098 = vld [vmem:[#allocation15 + $0x3b0] sm:$0xff]
    %v3099 = vld [vmem:[#allocation15 + $0x3b8] sm:$0xff]
    %v3100 = vld [vmem:[#allocation15 + $0x3c0] sm:$0xff]
    %v3101 = vld [vmem:[#allocation15 + $0x3c8] sm:$0xff]
    %v3102 = vld [vmem:[#allocation15 + $0x3d0] sm:$0xff]
    %v3103 = vld [vmem:[#allocation15 + $0x3d8] sm:$0xff]
    %v3104 = vld [vmem:[#allocation15 + $0x3e0] sm:$0xff]
    %v3105 = vld [vmem:[#allocation15 + $0x3e8] sm:$0xff]
    %v3106 = vld [vmem:[#allocation15 + $0x3f0] sm:$0xff]
    %v3107 = vld [vmem:[#allocation15 + $0x3f8] sm:$0xff]
    %v3236 = vunpack.c.l.b16 %v2980
    %v3237 = vunpack.c.h.b16 %v2980
    %v3238 = vunpack.c.l.b16 %v2981
    %v3239 = vunpack.c.h.b16 %v2981
    %v3240 = vunpack.c.l.b16 %v2982
    %v3241 = vunpack.c.h.b16 %v2982
    %v3242 = vunpack.c.l.b16 %v2983
    %v3243 = vunpack.c.h.b16 %v2983
    %v3244 = vunpack.c.l.b16 %v2984
    %v3245 = vunpack.c.h.b16 %v2984
    %v3246 = vunpack.c.l.b16 %v2985
    %v3247 = vunpack.c.h.b16 %v2985
    %v3248 = vunpack.c.l.b16 %v2986
    %v3249 = vunpack.c.h.b16 %v2986
    %v3250 = vunpack.c.l.b16 %v2987
    %v3251 = vunpack.c.h.b16 %v2987
    %v3252 = vunpack.c.l.b16 %v2988
    %v3253 = vunpack.c.h.b16 %v2988
    %v3254 = vunpack.c.l.b16 %v2989
    %v3255 = vunpack.c.h.b16 %v2989
    %v3256 = vunpack.c.l.b16 %v2990
    %v3257 = vunpack.c.h.b16 %v2990
    %v3258 = vunpack.c.l.b16 %v2991
    %v3259 = vunpack.c.h.b16 %v2991
    %v3260 = vunpack.c.l.b16 %v2992
    %v3261 = vunpack.c.h.b16 %v2992
    %v3262 = vunpack.c.l.b16 %v2993
    %v3263 = vunpack.c.h.b16 %v2993
    %v3264 = vunpack.c.l.b16 %v2994
    %v3265 = vunpack.c.h.b16 %v2994
    %v3266 = vunpack.c.l.b16 %v2995
    %v3267 = vunpack.c.h.b16 %v2995
    %v3268 = vunpack.c.l.b16 %v2996
    %v3269 = vunpack.c.h.b16 %v2996
    %v3270 = vunpack.c.l.b16 %v2997
    %v3271 = vunpack.c.h.b16 %v2997
    %v3272 = vunpack.c.l.b16 %v2998
    %v3273 = vunpack.c.h.b16 %v2998
    %v3274 = vunpack.c.l.b16 %v2999
    %v3275 = vunpack.c.h.b16 %v2999
    %v3276 = vunpack.c.l.b16 %v3000
    %v3277 = vunpack.c.h.b16 %v3000
    %v3278 = vunpack.c.l.b16 %v3001
    %v3279 = vunpack.c.h.b16 %v3001
    %v3280 = vunpack.c.l.b16 %v3002
    %v3281 = vunpack.c.h.b16 %v3002
    %v3282 = vunpack.c.l.b16 %v3003
    %v3283 = vunpack.c.h.b16 %v3003
    %v3284 = vunpack.c.l.b16 %v3004
    %v3285 = vunpack.c.h.b16 %v3004
    %v3286 = vunpack.c.l.b16 %v3005
    %v3287 = vunpack.c.h.b16 %v3005
    %v3288 = vunpack.c.l.b16 %v3006
    %v3289 = vunpack.c.h.b16 %v3006
    %v3290 = vunpack.c.l.b16 %v3007
    %v3291 = vunpack.c.h.b16 %v3007
    %v3292 = vunpack.c.l.b16 %v3008
    %v3293 = vunpack.c.h.b16 %v3008
    %v3294 = vunpack.c.l.b16 %v3009
    %v3295 = vunpack.c.h.b16 %v3009
    %v3296 = vunpack.c.l.b16 %v3010
    %v3297 = vunpack.c.h.b16 %v3010
    %v3298 = vunpack.c.l.b16 %v3011
    %v3299 = vunpack.c.h.b16 %v3011
    %v3300 = vunpack.c.l.b16 %v3012
    %v3301 = vunpack.c.h.b16 %v3012
    %v3302 = vunpack.c.l.b16 %v3013
    %v3303 = vunpack.c.h.b16 %v3013
    %v3304 = vunpack.c.l.b16 %v3014
    %v3305 = vunpack.c.h.b16 %v3014
    %v3306 = vunpack.c.l.b16 %v3015
    %v3307 = vunpack.c.h.b16 %v3015
    %v3308 = vunpack.c.l.b16 %v3016
    %v3309 = vunpack.c.h.b16 %v3016
    %v3310 = vunpack.c.l.b16 %v3017
    %v3311 = vunpack.c.h.b16 %v3017
    %v3312 = vunpack.c.l.b16 %v3018
    %v3313 = vunpack.c.h.b16 %v3018
    %v3314 = vunpack.c.l.b16 %v3019
    %v3315 = vunpack.c.h.b16 %v3019
    %v3316 = vunpack.c.l.b16 %v3020
    %v3317 = vunpack.c.h.b16 %v3020
    %v3318 = vunpack.c.l.b16 %v3021
    %v3319 = vunpack.c.h.b16 %v3021
    %v3320 = vunpack.c.l.b16 %v3022
    %v3321 = vunpack.c.h.b16 %v3022
    %v3322 = vunpack.c.l.b16 %v3023
    %v3323 = vunpack.c.h.b16 %v3023
    %v3324 = vunpack.c.l.b16 %v3024
    %v3325 = vunpack.c.h.b16 %v3024
    %v3326 = vunpack.c.l.b16 %v3025
    %v3327 = vunpack.c.h.b16 %v3025
    %v3328 = vunpack.c.l.b16 %v3026
    %v3329 = vunpack.c.h.b16 %v3026
    %v3330 = vunpack.c.l.b16 %v3027
    %v3331 = vunpack.c.h.b16 %v3027
    %v3332 = vunpack.c.l.b16 %v3028
    %v3333 = vunpack.c.h.b16 %v3028
    %v3334 = vunpack.c.l.b16 %v3029
    %v3335 = vunpack.c.h.b16 %v3029
    %v3336 = vunpack.c.l.b16 %v3030
    %v3337 = vunpack.c.h.b16 %v3030
    %v3338 = vunpack.c.l.b16 %v3031
    %v3339 = vunpack.c.h.b16 %v3031
    %v3340 = vunpack.c.l.b16 %v3032
    %v3341 = vunpack.c.h.b16 %v3032
    %v3342 = vunpack.c.l.b16 %v3033
    %v3343 = vunpack.c.h.b16 %v3033
    %v3344 = vunpack.c.l.b16 %v3034
    %v3345 = vunpack.c.h.b16 %v3034
    %v3346 = vunpack.c.l.b16 %v3035
    %v3347 = vunpack.c.h.b16 %v3035
    %v3348 = vunpack.c.l.b16 %v3036
    %v3349 = vunpack.c.h.b16 %v3036
    %v3350 = vunpack.c.l.b16 %v3037
    %v3351 = vunpack.c.h.b16 %v3037
    %v3352 = vunpack.c.l.b16 %v3038
    %v3353 = vunpack.c.h.b16 %v3038
    %v3354 = vunpack.c.l.b16 %v3039
    %v3355 = vunpack.c.h.b16 %v3039
    %v3356 = vunpack.c.l.b16 %v3040
    %v3357 = vunpack.c.h.b16 %v3040
    %v3358 = vunpack.c.l.b16 %v3041
    %v3359 = vunpack.c.h.b16 %v3041
    %v3360 = vunpack.c.l.b16 %v3042
    %v3361 = vunpack.c.h.b16 %v3042
    %v3362 = vunpack.c.l.b16 %v3043
    %v3363 = vunpack.c.h.b16 %v3043
    %v3364 = vunpack.c.l.b16 %v3044
    %v3365 = vunpack.c.h.b16 %v3044
    %v3366 = vunpack.c.l.b16 %v3045
    %v3367 = vunpack.c.h.b16 %v3045
    %v3368 = vunpack.c.l.b16 %v3046
    %v3369 = vunpack.c.h.b16 %v3046
    %v3370 = vunpack.c.l.b16 %v3047
    %v3371 = vunpack.c.h.b16 %v3047
    %v3372 = vunpack.c.l.b16 %v3048
    %v3373 = vunpack.c.h.b16 %v3048
    %v3374 = vunpack.c.l.b16 %v3049
    %v3375 = vunpack.c.h.b16 %v3049
    %v3376 = vunpack.c.l.b16 %v3050
    %v3377 = vunpack.c.h.b16 %v3050
    %v3378 = vunpack.c.l.b16 %v3051
    %v3379 = vunpack.c.h.b16 %v3051
    %v3380 = vunpack.c.l.b16 %v3052
    %v3381 = vunpack.c.h.b16 %v3052
    %v3382 = vunpack.c.l.b16 %v3053
    %v3383 = vunpack.c.h.b16 %v3053
    %v3384 = vunpack.c.l.b16 %v3054
    %v3385 = vunpack.c.h.b16 %v3054
    %v3386 = vunpack.c.l.b16 %v3055
    %v3387 = vunpack.c.h.b16 %v3055
    %v3388 = vunpack.c.l.b16 %v3056
    %v3389 = vunpack.c.h.b16 %v3056
    %v3390 = vunpack.c.l.b16 %v3057
    %v3391 = vunpack.c.h.b16 %v3057
    %v3392 = vunpack.c.l.b16 %v3058
    %v3393 = vunpack.c.h.b16 %v3058
    %v3394 = vunpack.c.l.b16 %v3059
    %v3395 = vunpack.c.h.b16 %v3059
    %v3396 = vunpack.c.l.b16 %v3060
    %v3397 = vunpack.c.h.b16 %v3060
    %v3398 = vunpack.c.l.b16 %v3061
    %v3399 = vunpack.c.h.b16 %v3061
    %v3400 = vunpack.c.l.b16 %v3062
    %v3401 = vunpack.c.h.b16 %v3062
    %v3402 = vunpack.c.l.b16 %v3063
    %v3403 = vunpack.c.h.b16 %v3063
    %v3404 = vunpack.c.l.b16 %v3064
    %v3405 = vunpack.c.h.b16 %v3064
    %v3406 = vunpack.c.l.b16 %v3065
    %v3407 = vunpack.c.h.b16 %v3065
    %v3408 = vunpack.c.l.b16 %v3066
    %v3409 = vunpack.c.h.b16 %v3066
    %v3410 = vunpack.c.l.b16 %v3067
    %v3411 = vunpack.c.h.b16 %v3067
    %v3412 = vunpack.c.l.b16 %v3068
    %v3413 = vunpack.c.h.b16 %v3068
    %v3414 = vunpack.c.l.b16 %v3069
    %v3415 = vunpack.c.h.b16 %v3069
    %v3416 = vunpack.c.l.b16 %v3070
    %v3417 = vunpack.c.h.b16 %v3070
    %v3418 = vunpack.c.l.b16 %v3071
    %v3419 = vunpack.c.h.b16 %v3071
    %v3420 = vunpack.c.l.b16 %v3072
    %v3421 = vunpack.c.h.b16 %v3072
    %v3422 = vunpack.c.l.b16 %v3073
    %v3423 = vunpack.c.h.b16 %v3073
    %v3424 = vunpack.c.l.b16 %v3074
    %v3425 = vunpack.c.h.b16 %v3074
    %v3426 = vunpack.c.l.b16 %v3075
    %v3427 = vunpack.c.h.b16 %v3075
    %v3428 = vunpack.c.l.b16 %v3076
    %v3429 = vunpack.c.h.b16 %v3076
    %v3430 = vunpack.c.l.b16 %v3077
    %v3431 = vunpack.c.h.b16 %v3077
    %v3432 = vunpack.c.l.b16 %v3078
    %v3433 = vunpack.c.h.b16 %v3078
    %v3434 = vunpack.c.l.b16 %v3079
    %v3435 = vunpack.c.h.b16 %v3079
    %v3436 = vunpack.c.l.b16 %v3080
    %v3437 = vunpack.c.h.b16 %v3080
    %v3438 = vunpack.c.l.b16 %v3081
    %v3439 = vunpack.c.h.b16 %v3081
    %v3440 = vunpack.c.l.b16 %v3082
    %v3441 = vunpack.c.h.b16 %v3082
    %v3442 = vunpack.c.l.b16 %v3083
    %v3443 = vunpack.c.h.b16 %v3083
    %v3444 = vunpack.c.l.b16 %v3084
    %v3445 = vunpack.c.h.b16 %v3084
    %v3446 = vunpack.c.l.b16 %v3085
    %v3447 = vunpack.c.h.b16 %v3085
    %v3448 = vunpack.c.l.b16 %v3086
    %v3449 = vunpack.c.h.b16 %v3086
    %v3450 = vunpack.c.l.b16 %v3087
    %v3451 = vunpack.c.h.b16 %v3087
    %v3452 = vunpack.c.l.b16 %v3088
    %v3453 = vunpack.c.h.b16 %v3088
    %v3454 = vunpack.c.l.b16 %v3089
    %v3455 = vunpack.c.h.b16 %v3089
    %v3456 = vunpack.c.l.b16 %v3090
    %v3457 = vunpack.c.h.b16 %v3090
    %v3458 = vunpack.c.l.b16 %v3091
    %v3459 = vunpack.c.h.b16 %v3091
    %v3460 = vunpack.c.l.b16 %v3092
    %v3461 = vunpack.c.h.b16 %v3092
    %v3462 = vunpack.c.l.b16 %v3093
    %v3463 = vunpack.c.h.b16 %v3093
    %v3464 = vunpack.c.l.b16 %v3094
    %v3465 = vunpack.c.h.b16 %v3094
    %v3466 = vunpack.c.l.b16 %v3095
    %v3467 = vunpack.c.h.b16 %v3095
    %v3468 = vunpack.c.l.b16 %v3096
    %v3469 = vunpack.c.h.b16 %v3096
    %v3470 = vunpack.c.l.b16 %v3097
    %v3471 = vunpack.c.h.b16 %v3097
    %v3472 = vunpack.c.l.b16 %v3098
    %v3473 = vunpack.c.h.b16 %v3098
    %v3474 = vunpack.c.l.b16 %v3099
    %v3475 = vunpack.c.h.b16 %v3099
    %v3476 = vunpack.c.l.b16 %v3100
    %v3477 = vunpack.c.h.b16 %v3100
    %v3478 = vunpack.c.l.b16 %v3101
    %v3479 = vunpack.c.h.b16 %v3101
    %v3480 = vunpack.c.l.b16 %v3102
    %v3481 = vunpack.c.h.b16 %v3102
    %v3482 = vunpack.c.l.b16 %v3103
    %v3483 = vunpack.c.h.b16 %v3103
    %v3484 = vunpack.c.l.b16 %v3104
    %v3485 = vunpack.c.h.b16 %v3104
    %v3486 = vunpack.c.l.b16 %v3105
    %v3487 = vunpack.c.h.b16 %v3105
    %v3488 = vunpack.c.l.b16 %v3106
    %v3489 = vunpack.c.h.b16 %v3106
    %v3490 = vunpack.c.l.b16 %v3107
    %v3491 = vunpack.c.h.b16 %v3107
    %v3492 = vpack.c.b16 %v3244, %v3236
    %v3493 = vpack.c.b16 %v3245, %v3237
    %v3494 = vpack.c.b16 %v3246, %v3238
    %v3495 = vpack.c.b16 %v3247, %v3239
    %v3496 = vpack.c.b16 %v3248, %v3240
    %v3497 = vpack.c.b16 %v3249, %v3241
    %v3498 = vpack.c.b16 %v3250, %v3242
    %v3499 = vpack.c.b16 %v3251, %v3243
    %v3500 = vpack.c.b16 %v3260, %v3252
    %v3501 = vpack.c.b16 %v3261, %v3253
    %v3502 = vpack.c.b16 %v3262, %v3254
    %v3503 = vpack.c.b16 %v3263, %v3255
    %v3504 = vpack.c.b16 %v3264, %v3256
    %v3505 = vpack.c.b16 %v3265, %v3257
    %v3506 = vpack.c.b16 %v3266, %v3258
    %v3507 = vpack.c.b16 %v3267, %v3259
    %v3508 = vpack.c.b16 %v3276, %v3268
    %v3509 = vpack.c.b16 %v3277, %v3269
    %v3510 = vpack.c.b16 %v3278, %v3270
    %v3511 = vpack.c.b16 %v3279, %v3271
    %v3512 = vpack.c.b16 %v3280, %v3272
    %v3513 = vpack.c.b16 %v3281, %v3273
    %v3514 = vpack.c.b16 %v3282, %v3274
    %v3515 = vpack.c.b16 %v3283, %v3275
    %v3516 = vpack.c.b16 %v3292, %v3284
    %v3517 = vpack.c.b16 %v3293, %v3285
    %v3518 = vpack.c.b16 %v3294, %v3286
    %v3519 = vpack.c.b16 %v3295, %v3287
    %v3520 = vpack.c.b16 %v3296, %v3288
    %v3521 = vpack.c.b16 %v3297, %v3289
    %v3522 = vpack.c.b16 %v3298, %v3290
    %v3523 = vpack.c.b16 %v3299, %v3291
    %v3524 = vpack.c.b16 %v3308, %v3300
    %v3525 = vpack.c.b16 %v3309, %v3301
    %v3526 = vpack.c.b16 %v3310, %v3302
    %v3527 = vpack.c.b16 %v3311, %v3303
    %v3528 = vpack.c.b16 %v3312, %v3304
    %v3529 = vpack.c.b16 %v3313, %v3305
    %v3530 = vpack.c.b16 %v3314, %v3306
    %v3531 = vpack.c.b16 %v3315, %v3307
    %v3532 = vpack.c.b16 %v3324, %v3316
    %v3533 = vpack.c.b16 %v3325, %v3317
    %v3534 = vpack.c.b16 %v3326, %v3318
    %v3535 = vpack.c.b16 %v3327, %v3319
    %v3536 = vpack.c.b16 %v3328, %v3320
    %v3537 = vpack.c.b16 %v3329, %v3321
    %v3538 = vpack.c.b16 %v3330, %v3322
    %v3539 = vpack.c.b16 %v3331, %v3323
    %v3540 = vpack.c.b16 %v3340, %v3332
    %v3541 = vpack.c.b16 %v3341, %v3333
    %v3542 = vpack.c.b16 %v3342, %v3334
    %v3543 = vpack.c.b16 %v3343, %v3335
    %v3544 = vpack.c.b16 %v3344, %v3336
    %v3545 = vpack.c.b16 %v3345, %v3337
    %v3546 = vpack.c.b16 %v3346, %v3338
    %v3547 = vpack.c.b16 %v3347, %v3339
    %v3548 = vpack.c.b16 %v3356, %v3348
    %v3549 = vpack.c.b16 %v3357, %v3349
    %v3550 = vpack.c.b16 %v3358, %v3350
    %v3551 = vpack.c.b16 %v3359, %v3351
    %v3552 = vpack.c.b16 %v3360, %v3352
    %v3553 = vpack.c.b16 %v3361, %v3353
    %v3554 = vpack.c.b16 %v3362, %v3354
    %v3555 = vpack.c.b16 %v3363, %v3355
    %v3556 = vpack.c.b16 %v3372, %v3364
    %v3557 = vpack.c.b16 %v3373, %v3365
    %v3558 = vpack.c.b16 %v3374, %v3366
    %v3559 = vpack.c.b16 %v3375, %v3367
    %v3560 = vpack.c.b16 %v3376, %v3368
    %v3561 = vpack.c.b16 %v3377, %v3369
    %v3562 = vpack.c.b16 %v3378, %v3370
    %v3563 = vpack.c.b16 %v3379, %v3371
    %v3564 = vpack.c.b16 %v3388, %v3380
    %v3565 = vpack.c.b16 %v3389, %v3381
    %v3566 = vpack.c.b16 %v3390, %v3382
    %v3567 = vpack.c.b16 %v3391, %v3383
    %v3568 = vpack.c.b16 %v3392, %v3384
    %v3569 = vpack.c.b16 %v3393, %v3385
    %v3570 = vpack.c.b16 %v3394, %v3386
    %v3571 = vpack.c.b16 %v3395, %v3387
    %v3572 = vpack.c.b16 %v3404, %v3396
    %v3573 = vpack.c.b16 %v3405, %v3397
    %v3574 = vpack.c.b16 %v3406, %v3398
    %v3575 = vpack.c.b16 %v3407, %v3399
    %v3576 = vpack.c.b16 %v3408, %v3400
    %v3577 = vpack.c.b16 %v3409, %v3401
    %v3578 = vpack.c.b16 %v3410, %v3402
    %v3579 = vpack.c.b16 %v3411, %v3403
    %v3580 = vpack.c.b16 %v3420, %v3412
    %v3581 = vpack.c.b16 %v3421, %v3413
    %v3582 = vpack.c.b16 %v3422, %v3414
    %v3583 = vpack.c.b16 %v3423, %v3415
    %v3584 = vpack.c.b16 %v3424, %v3416
    %v3585 = vpack.c.b16 %v3425, %v3417
    %v3586 = vpack.c.b16 %v3426, %v3418
    %v3587 = vpack.c.b16 %v3427, %v3419
    %v3588 = vpack.c.b16 %v3436, %v3428
    %v3589 = vpack.c.b16 %v3437, %v3429
    %v3590 = vpack.c.b16 %v3438, %v3430
    %v3591 = vpack.c.b16 %v3439, %v3431
    %v3592 = vpack.c.b16 %v3440, %v3432
    %v3593 = vpack.c.b16 %v3441, %v3433
    %v3594 = vpack.c.b16 %v3442, %v3434
    %v3595 = vpack.c.b16 %v3443, %v3435
    %v3596 = vpack.c.b16 %v3452, %v3444
    %v3597 = vpack.c.b16 %v3453, %v3445
    %v3598 = vpack.c.b16 %v3454, %v3446
    %v3599 = vpack.c.b16 %v3455, %v3447
    %v3600 = vpack.c.b16 %v3456, %v3448
    %v3601 = vpack.c.b16 %v3457, %v3449
    %v3602 = vpack.c.b16 %v3458, %v3450
    %v3603 = vpack.c.b16 %v3459, %v3451
    %v3604 = vpack.c.b16 %v3468, %v3460
    %v3605 = vpack.c.b16 %v3469, %v3461
    %v3606 = vpack.c.b16 %v3470, %v3462
    %v3607 = vpack.c.b16 %v3471, %v3463
    %v3608 = vpack.c.b16 %v3472, %v3464
    %v3609 = vpack.c.b16 %v3473, %v3465
    %v3610 = vpack.c.b16 %v3474, %v3466
    %v3611 = vpack.c.b16 %v3475, %v3467
    %v3612 = vpack.c.b16 %v3484, %v3476
    %v3613 = vpack.c.b16 %v3485, %v3477
    %v3614 = vpack.c.b16 %v3486, %v3478
    %v3615 = vpack.c.b16 %v3487, %v3479
    %v3616 = vpack.c.b16 %v3488, %v3480
    %v3617 = vpack.c.b16 %v3489, %v3481
    %v3618 = vpack.c.b16 %v3490, %v3482
    %v3619 = vpack.c.b16 %v3491, %v3483
    %3748 = vmatpush.bf16.msra.mxu0 %v3548
    %3749 = vmatpush.bf16.msra.mxu0 %v3540
    %3750 = vmatpush.bf16.msra.mxu0 %v3532
    %3751 = vmatpush.bf16.msra.mxu0 %v3524
    %3752 = vmatpush.bf16.msra.mxu0 %v3516
    %3753 = vmatpush.bf16.msra.mxu0 %v3508
    %3754 = vmatpush.bf16.msra.mxu0 %v3500
    %3755 = vmatpush.bf16.msra.mxu0 %v3492
    %3756 = vmatmul.bf16.gmra.mxu0 %v234
    %v3757 = vpop.f32.mrf.mxu0
    %v3758 = vadd.f32 0.0, %v3757
    %v3759 = vpop.f32.mrf.mxu0
    %v3760 = vadd.f32 0.0, %v3759
    %3761 = vmatmul.bf16.gmra.mxu0 %v236
    %v3762 = vpop.f32.mrf.mxu0
    %v3763 = vadd.f32 0.0, %v3762
    %v3764 = vpop.f32.mrf.mxu0
    %v3765 = vadd.f32 0.0, %v3764
    %3766 = vmatmul.bf16.gmra.mxu0 %v238
    %v3767 = vpop.f32.mrf.mxu0
    %v3768 = vadd.f32 0.0, %v3767
    %v3769 = vpop.f32.mrf.mxu0
    %v3770 = vadd.f32 0.0, %v3769
    %3771 = vmatmul.bf16.gmra.mxu0 %v240
    %v3772 = vpop.f32.mrf.mxu0
    %v3773 = vadd.f32 0.0, %v3772
    %v3774 = vpop.f32.mrf.mxu0
    %v3775 = vadd.f32 0.0, %v3774
    %3776 = vdwg.mxu0
    %3777 = vmatpush.bf16.msra.mxu0 %v3612
    %3778 = vmatpush.bf16.msra.mxu0 %v3604
    %3779 = vmatpush.bf16.msra.mxu0 %v3596
    %3780 = vmatpush.bf16.msra.mxu0 %v3588
    %3781 = vmatpush.bf16.msra.mxu0 %v3580
    %3782 = vmatpush.bf16.msra.mxu0 %v3572
    %3783 = vmatpush.bf16.msra.mxu0 %v3564
    %3784 = vmatpush.bf16.msra.mxu0 %v3556
    %3785 = vmatmul.bf16.gmra.mxu0 %v235
    %v3786 = vpop.f32.mrf.mxu0
    %v3787 = vadd.f32 %v3758, %v3786
    %v3788 = vpop.f32.mrf.mxu0
    %v3789 = vadd.f32 %v3760, %v3788
    %3790 = vmatmul.bf16.gmra.mxu0 %v237
    %v3791 = vpop.f32.mrf.mxu0
    %v3792 = vadd.f32 %v3763, %v3791
    %v3793 = vpop.f32.mrf.mxu0
    %v3794 = vadd.f32 %v3765, %v3793
    %3795 = vmatmul.bf16.gmra.mxu0 %v239
    %v3796 = vpop.f32.mrf.mxu0
    %v3797 = vadd.f32 %v3768, %v3796
    %v3798 = vpop.f32.mrf.mxu0
    %v3799 = vadd.f32 %v3770, %v3798
    %3800 = vmatmul.bf16.gmra.mxu0 %v241
    %v3801 = vpop.f32.mrf.mxu0
    %v3802 = vadd.f32 %v3773, %v3801
    %v3803 = vpop.f32.mrf.mxu0
    %v3804 = vadd.f32 %v3775, %v3803
    %3805 = vdwg.mxu0
    %3806 = vmatpush.bf16.msra.mxu0 %v3549
    %3807 = vmatpush.bf16.msra.mxu0 %v3541
    %3808 = vmatpush.bf16.msra.mxu0 %v3533
    %3809 = vmatpush.bf16.msra.mxu0 %v3525
    %3810 = vmatpush.bf16.msra.mxu0 %v3517
    %3811 = vmatpush.bf16.msra.mxu0 %v3509
    %3812 = vmatpush.bf16.msra.mxu0 %v3501
    %3813 = vmatpush.bf16.msra.mxu0 %v3493
    %3814 = vmatmul.bf16.gmra.mxu0 %v234
    %v3815 = vpop.f32.mrf.mxu0
    %v3816 = vadd.f32 0.0, %v3815
    %v3817 = vpop.f32.mrf.mxu0
    %v3818 = vadd.f32 0.0, %v3817
    %3819 = vmatmul.bf16.gmra.mxu0 %v236
    %v3820 = vpop.f32.mrf.mxu0
    %v3821 = vadd.f32 0.0, %v3820
    %v3822 = vpop.f32.mrf.mxu0
    %v3823 = vadd.f32 0.0, %v3822
    %3824 = vmatmul.bf16.gmra.mxu0 %v238
    %v3825 = vpop.f32.mrf.mxu0
    %v3826 = vadd.f32 0.0, %v3825
    %v3827 = vpop.f32.mrf.mxu0
    %v3828 = vadd.f32 0.0, %v3827
    %3829 = vmatmul.bf16.gmra.mxu0 %v240
    %v3830 = vpop.f32.mrf.mxu0
    %v3831 = vadd.f32 0.0, %v3830
    %v3832 = vpop.f32.mrf.mxu0
    %v3833 = vadd.f32 0.0, %v3832
    %3834 = vdwg.mxu0
    %3835 = vmatpush.bf16.msra.mxu0 %v3613
    %3836 = vmatpush.bf16.msra.mxu0 %v3605
    %3837 = vmatpush.bf16.msra.mxu0 %v3597
    %3838 = vmatpush.bf16.msra.mxu0 %v3589
    %3839 = vmatpush.bf16.msra.mxu0 %v3581
    %3840 = vmatpush.bf16.msra.mxu0 %v3573
    %3841 = vmatpush.bf16.msra.mxu0 %v3565
    %3842 = vmatpush.bf16.msra.mxu0 %v3557
    %3843 = vmatmul.bf16.gmra.mxu0 %v235
    %v3844 = vpop.f32.mrf.mxu0
    %v3845 = vadd.f32 %v3816, %v3844
    %v3846 = vpop.f32.mrf.mxu0
    %v3847 = vadd.f32 %v3818, %v3846
    %3848 = vmatmul.bf16.gmra.mxu0 %v237
    %v3849 = vpop.f32.mrf.mxu0
    %v3850 = vadd.f32 %v3821, %v3849
    %v3851 = vpop.f32.mrf.mxu0
    %v3852 = vadd.f32 %v3823, %v3851
    %3853 = vmatmul.bf16.gmra.mxu0 %v239
    %v3854 = vpop.f32.mrf.mxu0
    %v3855 = vadd.f32 %v3826, %v3854
    %v3856 = vpop.f32.mrf.mxu0
    %v3857 = vadd.f32 %v3828, %v3856
    %3858 = vmatmul.bf16.gmra.mxu0 %v241
    %v3859 = vpop.f32.mrf.mxu0
    %v3860 = vadd.f32 %v3831, %v3859
    %v3861 = vpop.f32.mrf.mxu0
    %v3862 = vadd.f32 %v3833, %v3861
    %3863 = vdwg.mxu0
    %3864 = vmatpush.bf16.msra.mxu0 %v3550
    %3865 = vmatpush.bf16.msra.mxu0 %v3542
    %3866 = vmatpush.bf16.msra.mxu0 %v3534
    %3867 = vmatpush.bf16.msra.mxu0 %v3526
    %3868 = vmatpush.bf16.msra.mxu0 %v3518
    %3869 = vmatpush.bf16.msra.mxu0 %v3510
    %3870 = vmatpush.bf16.msra.mxu0 %v3502
    %3871 = vmatpush.bf16.msra.mxu0 %v3494
    %3872 = vmatmul.bf16.gmra.mxu0 %v234
    %v3873 = vpop.f32.mrf.mxu0
    %v3874 = vadd.f32 0.0, %v3873
    %v3875 = vpop.f32.mrf.mxu0
    %v3876 = vadd.f32 0.0, %v3875
    %3877 = vmatmul.bf16.gmra.mxu0 %v236
    %v3878 = vpop.f32.mrf.mxu0
    %v3879 = vadd.f32 0.0, %v3878
    %v3880 = vpop.f32.mrf.mxu0
    %v3881 = vadd.f32 0.0, %v3880
    %3882 = vmatmul.bf16.gmra.mxu0 %v238
    %v3883 = vpop.f32.mrf.mxu0
    %v3884 = vadd.f32 0.0, %v3883
    %v3885 = vpop.f32.mrf.mxu0
    %v3886 = vadd.f32 0.0, %v3885
    %3887 = vmatmul.bf16.gmra.mxu0 %v240
    %v3888 = vpop.f32.mrf.mxu0
    %v3889 = vadd.f32 0.0, %v3888
    %v3890 = vpop.f32.mrf.mxu0
    %v3891 = vadd.f32 0.0, %v3890
    %3892 = vdwg.mxu0
    %3893 = vmatpush.bf16.msra.mxu0 %v3614
    %3894 = vmatpush.bf16.msra.mxu0 %v3606
    %3895 = vmatpush.bf16.msra.mxu0 %v3598
    %3896 = vmatpush.bf16.msra.mxu0 %v3590
    %3897 = vmatpush.bf16.msra.mxu0 %v3582
    %3898 = vmatpush.bf16.msra.mxu0 %v3574
    %3899 = vmatpush.bf16.msra.mxu0 %v3566
    %3900 = vmatpush.bf16.msra.mxu0 %v3558
    %3901 = vmatmul.bf16.gmra.mxu0 %v235
    %v3902 = vpop.f32.mrf.mxu0
    %v3903 = vadd.f32 %v3874, %v3902
    %v3904 = vpop.f32.mrf.mxu0
    %v3905 = vadd.f32 %v3876, %v3904
    %3906 = vmatmul.bf16.gmra.mxu0 %v237
    %v3907 = vpop.f32.mrf.mxu0
    %v3908 = vadd.f32 %v3879, %v3907
    %v3909 = vpop.f32.mrf.mxu0
    %v3910 = vadd.f32 %v3881, %v3909
    %3911 = vmatmul.bf16.gmra.mxu0 %v239
    %v3912 = vpop.f32.mrf.mxu0
    %v3913 = vadd.f32 %v3884, %v3912
    %v3914 = vpop.f32.mrf.mxu0
    %v3915 = vadd.f32 %v3886, %v3914
    %3916 = vmatmul.bf16.gmra.mxu0 %v241
    %v3917 = vpop.f32.mrf.mxu0
    %v3918 = vadd.f32 %v3889, %v3917
    %v3919 = vpop.f32.mrf.mxu0
    %v3920 = vadd.f32 %v3891, %v3919
    %3921 = vdwg.mxu0
    %3922 = vmatpush.bf16.msra.mxu0 %v3551
    %3923 = vmatpush.bf16.msra.mxu0 %v3543
    %3924 = vmatpush.bf16.msra.mxu0 %v3535
    %3925 = vmatpush.bf16.msra.mxu0 %v3527
    %3926 = vmatpush.bf16.msra.mxu0 %v3519
    %3927 = vmatpush.bf16.msra.mxu0 %v3511
    %3928 = vmatpush.bf16.msra.mxu0 %v3503
    %3929 = vmatpush.bf16.msra.mxu0 %v3495
    %3930 = vmatmul.bf16.gmra.mxu0 %v234
    %v3931 = vpop.f32.mrf.mxu0
    %v3932 = vadd.f32 0.0, %v3931
    %v3933 = vpop.f32.mrf.mxu0
    %v3934 = vadd.f32 0.0, %v3933
    %3935 = vmatmul.bf16.gmra.mxu0 %v236
    %v3936 = vpop.f32.mrf.mxu0
    %v3937 = vadd.f32 0.0, %v3936
    %v3938 = vpop.f32.mrf.mxu0
    %v3939 = vadd.f32 0.0, %v3938
    %3940 = vmatmul.bf16.gmra.mxu0 %v238
    %v3941 = vpop.f32.mrf.mxu0
    %v3942 = vadd.f32 0.0, %v3941
    %v3943 = vpop.f32.mrf.mxu0
    %v3944 = vadd.f32 0.0, %v3943
    %3945 = vmatmul.bf16.gmra.mxu0 %v240
    %v3946 = vpop.f32.mrf.mxu0
    %v3947 = vadd.f32 0.0, %v3946
    %v3948 = vpop.f32.mrf.mxu0
    %v3949 = vadd.f32 0.0, %v3948
    %3950 = vdwg.mxu0
    %3951 = vmatpush.bf16.msra.mxu0 %v3615
    %3952 = vmatpush.bf16.msra.mxu0 %v3607
    %3953 = vmatpush.bf16.msra.mxu0 %v3599
    %3954 = vmatpush.bf16.msra.mxu0 %v3591
    %3955 = vmatpush.bf16.msra.mxu0 %v3583
    %3956 = vmatpush.bf16.msra.mxu0 %v3575
    %3957 = vmatpush.bf16.msra.mxu0 %v3567
    %3958 = vmatpush.bf16.msra.mxu0 %v3559
    %3959 = vmatmul.bf16.gmra.mxu0 %v235
    %v3960 = vpop.f32.mrf.mxu0
    %v3961 = vadd.f32 %v3932, %v3960
    %v3962 = vpop.f32.mrf.mxu0
    %v3963 = vadd.f32 %v3934, %v3962
    %3964 = vmatmul.bf16.gmra.mxu0 %v237
    %v3965 = vpop.f32.mrf.mxu0
    %v3966 = vadd.f32 %v3937, %v3965
    %v3967 = vpop.f32.mrf.mxu0
    %v3968 = vadd.f32 %v3939, %v3967
    %3969 = vmatmul.bf16.gmra.mxu0 %v239
    %v3970 = vpop.f32.mrf.mxu0
    %v3971 = vadd.f32 %v3942, %v3970
    %v3972 = vpop.f32.mrf.mxu0
    %v3973 = vadd.f32 %v3944, %v3972
    %3974 = vmatmul.bf16.gmra.mxu0 %v241
    %v3975 = vpop.f32.mrf.mxu0
    %v3976 = vadd.f32 %v3947, %v3975
    %v3977 = vpop.f32.mrf.mxu0
    %v3978 = vadd.f32 %v3949, %v3977
    %3979 = vdwg.mxu0
    %3980 = vmatpush.bf16.msra.mxu0 %v3552
    %3981 = vmatpush.bf16.msra.mxu0 %v3544
    %3982 = vmatpush.bf16.msra.mxu0 %v3536
    %3983 = vmatpush.bf16.msra.mxu0 %v3528
    %3984 = vmatpush.bf16.msra.mxu0 %v3520
    %3985 = vmatpush.bf16.msra.mxu0 %v3512
    %3986 = vmatpush.bf16.msra.mxu0 %v3504
    %3987 = vmatpush.bf16.msra.mxu0 %v3496
    %3988 = vmatmul.bf16.gmra.mxu0 %v234
    %v3989 = vpop.f32.mrf.mxu0
    %v3990 = vadd.f32 0.0, %v3989
    %v3991 = vpop.f32.mrf.mxu0
    %v3992 = vadd.f32 0.0, %v3991
    %3993 = vmatmul.bf16.gmra.mxu0 %v236
    %v3994 = vpop.f32.mrf.mxu0
    %v3995 = vadd.f32 0.0, %v3994
    %v3996 = vpop.f32.mrf.mxu0
    %v3997 = vadd.f32 0.0, %v3996
    %3998 = vmatmul.bf16.gmra.mxu0 %v238
    %v3999 = vpop.f32.mrf.mxu0
    %v4000 = vadd.f32 0.0, %v3999
    %v4001 = vpop.f32.mrf.mxu0
    %v4002 = vadd.f32 0.0, %v4001
    %4003 = vmatmul.bf16.gmra.mxu0 %v240
    %v4004 = vpop.f32.mrf.mxu0
    %v4005 = vadd.f32 0.0, %v4004
    %v4006 = vpop.f32.mrf.mxu0
    %v4007 = vadd.f32 0.0, %v4006
    %4008 = vdwg.mxu0
    %4009 = vmatpush.bf16.msra.mxu0 %v3616
    %4010 = vmatpush.bf16.msra.mxu0 %v3608
    %4011 = vmatpush.bf16.msra.mxu0 %v3600
    %4012 = vmatpush.bf16.msra.mxu0 %v3592
    %4013 = vmatpush.bf16.msra.mxu0 %v3584
    %4014 = vmatpush.bf16.msra.mxu0 %v3576
    %4015 = vmatpush.bf16.msra.mxu0 %v3568
    %4016 = vmatpush.bf16.msra.mxu0 %v3560
    %4017 = vmatmul.bf16.gmra.mxu0 %v235
    %v4018 = vpop.f32.mrf.mxu0
    %v4019 = vadd.f32 %v3990, %v4018
    %v4020 = vpop.f32.mrf.mxu0
    %v4021 = vadd.f32 %v3992, %v4020
    %4022 = vmatmul.bf16.gmra.mxu0 %v237
    %v4023 = vpop.f32.mrf.mxu0
    %v4024 = vadd.f32 %v3995, %v4023
    %v4025 = vpop.f32.mrf.mxu0
    %v4026 = vadd.f32 %v3997, %v4025
    %4027 = vmatmul.bf16.gmra.mxu0 %v239
    %v4028 = vpop.f32.mrf.mxu0
    %v4029 = vadd.f32 %v4000, %v4028
    %v4030 = vpop.f32.mrf.mxu0
    %v4031 = vadd.f32 %v4002, %v4030
    %4032 = vmatmul.bf16.gmra.mxu0 %v241
    %v4033 = vpop.f32.mrf.mxu0
    %v4034 = vadd.f32 %v4005, %v4033
    %v4035 = vpop.f32.mrf.mxu0
    %v4036 = vadd.f32 %v4007, %v4035
    %4037 = vdwg.mxu0
    %4038 = vmatpush.bf16.msra.mxu0 %v3553
    %4039 = vmatpush.bf16.msra.mxu0 %v3545
    %4040 = vmatpush.bf16.msra.mxu0 %v3537
    %4041 = vmatpush.bf16.msra.mxu0 %v3529
    %4042 = vmatpush.bf16.msra.mxu0 %v3521
    %4043 = vmatpush.bf16.msra.mxu0 %v3513
    %4044 = vmatpush.bf16.msra.mxu0 %v3505
    %4045 = vmatpush.bf16.msra.mxu0 %v3497
    %4046 = vmatmul.bf16.gmra.mxu0 %v234
    %v4047 = vpop.f32.mrf.mxu0
    %v4048 = vadd.f32 0.0, %v4047
    %v4049 = vpop.f32.mrf.mxu0
    %v4050 = vadd.f32 0.0, %v4049
    %4051 = vmatmul.bf16.gmra.mxu0 %v236
    %v4052 = vpop.f32.mrf.mxu0
    %v4053 = vadd.f32 0.0, %v4052
    %v4054 = vpop.f32.mrf.mxu0
    %v4055 = vadd.f32 0.0, %v4054
    %4056 = vmatmul.bf16.gmra.mxu0 %v238
    %v4057 = vpop.f32.mrf.mxu0
    %v4058 = vadd.f32 0.0, %v4057
    %v4059 = vpop.f32.mrf.mxu0
    %v4060 = vadd.f32 0.0, %v4059
    %4061 = vmatmul.bf16.gmra.mxu0 %v240
    %v4062 = vpop.f32.mrf.mxu0
    %v4063 = vadd.f32 0.0, %v4062
    %v4064 = vpop.f32.mrf.mxu0
    %v4065 = vadd.f32 0.0, %v4064
    %4066 = vdwg.mxu0
    %4067 = vmatpush.bf16.msra.mxu0 %v3617
    %4068 = vmatpush.bf16.msra.mxu0 %v3609
    %4069 = vmatpush.bf16.msra.mxu0 %v3601
    %4070 = vmatpush.bf16.msra.mxu0 %v3593
    %4071 = vmatpush.bf16.msra.mxu0 %v3585
    %4072 = vmatpush.bf16.msra.mxu0 %v3577
    %4073 = vmatpush.bf16.msra.mxu0 %v3569
    %4074 = vmatpush.bf16.msra.mxu0 %v3561
    %4075 = vmatmul.bf16.gmra.mxu0 %v235
    %v4076 = vpop.f32.mrf.mxu0
    %v4077 = vadd.f32 %v4048, %v4076
    %v4078 = vpop.f32.mrf.mxu0
    %v4079 = vadd.f32 %v4050, %v4078
    %4080 = vmatmul.bf16.gmra.mxu0 %v237
    %v4081 = vpop.f32.mrf.mxu0
    %v4082 = vadd.f32 %v4053, %v4081
    %v4083 = vpop.f32.mrf.mxu0
    %v4084 = vadd.f32 %v4055, %v4083
    %4085 = vmatmul.bf16.gmra.mxu0 %v239
    %v4086 = vpop.f32.mrf.mxu0
    %v4087 = vadd.f32 %v4058, %v4086
    %v4088 = vpop.f32.mrf.mxu0
    %v4089 = vadd.f32 %v4060, %v4088
    %4090 = vmatmul.bf16.gmra.mxu0 %v241
    %v4091 = vpop.f32.mrf.mxu0
    %v4092 = vadd.f32 %v4063, %v4091
    %v4093 = vpop.f32.mrf.mxu0
    %v4094 = vadd.f32 %v4065, %v4093
    %4095 = vdwg.mxu0
    %4096 = vmatpush.bf16.msra.mxu0 %v3554
    %4097 = vmatpush.bf16.msra.mxu0 %v3546
    %4098 = vmatpush.bf16.msra.mxu0 %v3538
    %4099 = vmatpush.bf16.msra.mxu0 %v3530
    %4100 = vmatpush.bf16.msra.mxu0 %v3522
    %4101 = vmatpush.bf16.msra.mxu0 %v3514
    %4102 = vmatpush.bf16.msra.mxu0 %v3506
    %4103 = vmatpush.bf16.msra.mxu0 %v3498
    %4104 = vmatmul.bf16.gmra.mxu0 %v234
    %v4105 = vpop.f32.mrf.mxu0
    %v4106 = vadd.f32 0.0, %v4105
    %v4107 = vpop.f32.mrf.mxu0
    %v4108 = vadd.f32 0.0, %v4107
    %4109 = vmatmul.bf16.gmra.mxu0 %v236
    %v4110 = vpop.f32.mrf.mxu0
    %v4111 = vadd.f32 0.0, %v4110
    %v4112 = vpop.f32.mrf.mxu0
    %v4113 = vadd.f32 0.0, %v4112
    %4114 = vmatmul.bf16.gmra.mxu0 %v238
    %v4115 = vpop.f32.mrf.mxu0
    %v4116 = vadd.f32 0.0, %v4115
    %v4117 = vpop.f32.mrf.mxu0
    %v4118 = vadd.f32 0.0, %v4117
    %4119 = vmatmul.bf16.gmra.mxu0 %v240
    %v4120 = vpop.f32.mrf.mxu0
    %v4121 = vadd.f32 0.0, %v4120
    %v4122 = vpop.f32.mrf.mxu0
    %v4123 = vadd.f32 0.0, %v4122
    %4124 = vdwg.mxu0
    %4125 = vmatpush.bf16.msra.mxu0 %v3618
    %4126 = vmatpush.bf16.msra.mxu0 %v3610
    %4127 = vmatpush.bf16.msra.mxu0 %v3602
    %4128 = vmatpush.bf16.msra.mxu0 %v3594
    %4129 = vmatpush.bf16.msra.mxu0 %v3586
    %4130 = vmatpush.bf16.msra.mxu0 %v3578
    %4131 = vmatpush.bf16.msra.mxu0 %v3570
    %4132 = vmatpush.bf16.msra.mxu0 %v3562
    %4133 = vmatmul.bf16.gmra.mxu0 %v235
    %v4134 = vpop.f32.mrf.mxu0
    %v4135 = vadd.f32 %v4106, %v4134
    %v4136 = vpop.f32.mrf.mxu0
    %v4137 = vadd.f32 %v4108, %v4136
    %4138 = vmatmul.bf16.gmra.mxu0 %v237
    %v4139 = vpop.f32.mrf.mxu0
    %v4140 = vadd.f32 %v4111, %v4139
    %v4141 = vpop.f32.mrf.mxu0
    %v4142 = vadd.f32 %v4113, %v4141
    %4143 = vmatmul.bf16.gmra.mxu0 %v239
    %v4144 = vpop.f32.mrf.mxu0
    %v4145 = vadd.f32 %v4116, %v4144
    %v4146 = vpop.f32.mrf.mxu0
    %v4147 = vadd.f32 %v4118, %v4146
    %4148 = vmatmul.bf16.gmra.mxu0 %v241
    %v4149 = vpop.f32.mrf.mxu0
    %v4150 = vadd.f32 %v4121, %v4149
    %v4151 = vpop.f32.mrf.mxu0
    %v4152 = vadd.f32 %v4123, %v4151
    %4153 = vdwg.mxu0
    %4154 = vmatpush.bf16.msra.mxu0 %v3555
    %4155 = vmatpush.bf16.msra.mxu0 %v3547
    %4156 = vmatpush.bf16.msra.mxu0 %v3539
    %4157 = vmatpush.bf16.msra.mxu0 %v3531
    %4158 = vmatpush.bf16.msra.mxu0 %v3523
    %4159 = vmatpush.bf16.msra.mxu0 %v3515
    %4160 = vmatpush.bf16.msra.mxu0 %v3507
    %4161 = vmatpush.bf16.msra.mxu0 %v3499
    %4162 = vmatmul.bf16.gmra.mxu0 %v234
    %v4163 = vpop.f32.mrf.mxu0
    %v4164 = vadd.f32 0.0, %v4163
    %v4165 = vpop.f32.mrf.mxu0
    %v4166 = vadd.f32 0.0, %v4165
    %4167 = vmatmul.bf16.gmra.mxu0 %v236
    %v4168 = vpop.f32.mrf.mxu0
    %v4169 = vadd.f32 0.0, %v4168
    %v4170 = vpop.f32.mrf.mxu0
    %v4171 = vadd.f32 0.0, %v4170
    %4172 = vmatmul.bf16.gmra.mxu0 %v238
    %v4173 = vpop.f32.mrf.mxu0
    %v4174 = vadd.f32 0.0, %v4173
    %v4175 = vpop.f32.mrf.mxu0
    %v4176 = vadd.f32 0.0, %v4175
    %4177 = vmatmul.bf16.gmra.mxu0 %v240
    %v4178 = vpop.f32.mrf.mxu0
    %v4179 = vadd.f32 0.0, %v4178
    %v4180 = vpop.f32.mrf.mxu0
    %v4181 = vadd.f32 0.0, %v4180
    %4182 = vdwg.mxu0
    %4183 = vmatpush.bf16.msra.mxu0 %v3619
    %4184 = vmatpush.bf16.msra.mxu0 %v3611
    %4185 = vmatpush.bf16.msra.mxu0 %v3603
    %4186 = vmatpush.bf16.msra.mxu0 %v3595
    %4187 = vmatpush.bf16.msra.mxu0 %v3587
    %4188 = vmatpush.bf16.msra.mxu0 %v3579
    %4189 = vmatpush.bf16.msra.mxu0 %v3571
    %4190 = vmatpush.bf16.msra.mxu0 %v3563
    %4191 = vmatmul.bf16.gmra.mxu0 %v235
    %v4192 = vpop.f32.mrf.mxu0
    %v4193 = vadd.f32 %v4164, %v4192
    %v4194 = vpop.f32.mrf.mxu0
    %v4195 = vadd.f32 %v4166, %v4194
    %4196 = vmatmul.bf16.gmra.mxu0 %v237
    %v4197 = vpop.f32.mrf.mxu0
    %v4198 = vadd.f32 %v4169, %v4197
    %v4199 = vpop.f32.mrf.mxu0
    %v4200 = vadd.f32 %v4171, %v4199
    %4201 = vmatmul.bf16.gmra.mxu0 %v239
    %v4202 = vpop.f32.mrf.mxu0
    %v4203 = vadd.f32 %v4174, %v4202
    %v4204 = vpop.f32.mrf.mxu0
    %v4205 = vadd.f32 %v4176, %v4204
    %4206 = vmatmul.bf16.gmra.mxu0 %v241
    %v4207 = vpop.f32.mrf.mxu0
    %v4208 = vadd.f32 %v4179, %v4207
    %v4209 = vpop.f32.mrf.mxu0
    %v4210 = vadd.f32 %v4181, %v4209
    %4211 = vdwg.mxu0
    %v4340 = vunpack.c.l.b16 %v2852
    %v4341 = vunpack.c.h.b16 %v2852
    %v4342 = vunpack.c.l.b16 %v2853
    %v4343 = vunpack.c.h.b16 %v2853
    %v4344 = vunpack.c.l.b16 %v2854
    %v4345 = vunpack.c.h.b16 %v2854
    %v4346 = vunpack.c.l.b16 %v2855
    %v4347 = vunpack.c.h.b16 %v2855
    %v4348 = vunpack.c.l.b16 %v2856
    %v4349 = vunpack.c.h.b16 %v2856
    %v4350 = vunpack.c.l.b16 %v2857
    %v4351 = vunpack.c.h.b16 %v2857
    %v4352 = vunpack.c.l.b16 %v2858
    %v4353 = vunpack.c.h.b16 %v2858
    %v4354 = vunpack.c.l.b16 %v2859
    %v4355 = vunpack.c.h.b16 %v2859
    %v4356 = vunpack.c.l.b16 %v2860
    %v4357 = vunpack.c.h.b16 %v2860
    %v4358 = vunpack.c.l.b16 %v2861
    %v4359 = vunpack.c.h.b16 %v2861
    %v4360 = vunpack.c.l.b16 %v2862
    %v4361 = vunpack.c.h.b16 %v2862
    %v4362 = vunpack.c.l.b16 %v2863
    %v4363 = vunpack.c.h.b16 %v2863
    %v4364 = vunpack.c.l.b16 %v2864
    %v4365 = vunpack.c.h.b16 %v2864
    %v4366 = vunpack.c.l.b16 %v2865
    %v4367 = vunpack.c.h.b16 %v2865
    %v4368 = vunpack.c.l.b16 %v2866
    %v4369 = vunpack.c.h.b16 %v2866
    %v4370 = vunpack.c.l.b16 %v2867
    %v4371 = vunpack.c.h.b16 %v2867
    %v4372 = vunpack.c.l.b16 %v2868
    %v4373 = vunpack.c.h.b16 %v2868
    %v4374 = vunpack.c.l.b16 %v2869
    %v4375 = vunpack.c.h.b16 %v2869
    %v4376 = vunpack.c.l.b16 %v2870
    %v4377 = vunpack.c.h.b16 %v2870
    %v4378 = vunpack.c.l.b16 %v2871
    %v4379 = vunpack.c.h.b16 %v2871
    %v4380 = vunpack.c.l.b16 %v2872
    %v4381 = vunpack.c.h.b16 %v2872
    %v4382 = vunpack.c.l.b16 %v2873
    %v4383 = vunpack.c.h.b16 %v2873
    %v4384 = vunpack.c.l.b16 %v2874
    %v4385 = vunpack.c.h.b16 %v2874
    %v4386 = vunpack.c.l.b16 %v2875
    %v4387 = vunpack.c.h.b16 %v2875
    %v4388 = vunpack.c.l.b16 %v2876
    %v4389 = vunpack.c.h.b16 %v2876
    %v4390 = vunpack.c.l.b16 %v2877
    %v4391 = vunpack.c.h.b16 %v2877
    %v4392 = vunpack.c.l.b16 %v2878
    %v4393 = vunpack.c.h.b16 %v2878
    %v4394 = vunpack.c.l.b16 %v2879
    %v4395 = vunpack.c.h.b16 %v2879
    %v4396 = vunpack.c.l.b16 %v2880
    %v4397 = vunpack.c.h.b16 %v2880
    %v4398 = vunpack.c.l.b16 %v2881
    %v4399 = vunpack.c.h.b16 %v2881
    %v4400 = vunpack.c.l.b16 %v2882
    %v4401 = vunpack.c.h.b16 %v2882
    %v4402 = vunpack.c.l.b16 %v2883
    %v4403 = vunpack.c.h.b16 %v2883
    %v4404 = vunpack.c.l.b16 %v2884
    %v4405 = vunpack.c.h.b16 %v2884
    %v4406 = vunpack.c.l.b16 %v2885
    %v4407 = vunpack.c.h.b16 %v2885
    %v4408 = vunpack.c.l.b16 %v2886
    %v4409 = vunpack.c.h.b16 %v2886
    %v4410 = vunpack.c.l.b16 %v2887
    %v4411 = vunpack.c.h.b16 %v2887
    %v4412 = vunpack.c.l.b16 %v2888
    %v4413 = vunpack.c.h.b16 %v2888
    %v4414 = vunpack.c.l.b16 %v2889
    %v4415 = vunpack.c.h.b16 %v2889
    %v4416 = vunpack.c.l.b16 %v2890
    %v4417 = vunpack.c.h.b16 %v2890
    %v4418 = vunpack.c.l.b16 %v2891
    %v4419 = vunpack.c.h.b16 %v2891
    %v4420 = vunpack.c.l.b16 %v2892
    %v4421 = vunpack.c.h.b16 %v2892
    %v4422 = vunpack.c.l.b16 %v2893
    %v4423 = vunpack.c.h.b16 %v2893
    %v4424 = vunpack.c.l.b16 %v2894
    %v4425 = vunpack.c.h.b16 %v2894
    %v4426 = vunpack.c.l.b16 %v2895
    %v4427 = vunpack.c.h.b16 %v2895
    %v4428 = vunpack.c.l.b16 %v2896
    %v4429 = vunpack.c.h.b16 %v2896
    %v4430 = vunpack.c.l.b16 %v2897
    %v4431 = vunpack.c.h.b16 %v2897
    %v4432 = vunpack.c.l.b16 %v2898
    %v4433 = vunpack.c.h.b16 %v2898
    %v4434 = vunpack.c.l.b16 %v2899
    %v4435 = vunpack.c.h.b16 %v2899
    %v4436 = vunpack.c.l.b16 %v2900
    %v4437 = vunpack.c.h.b16 %v2900
    %v4438 = vunpack.c.l.b16 %v2901
    %v4439 = vunpack.c.h.b16 %v2901
    %v4440 = vunpack.c.l.b16 %v2902
    %v4441 = vunpack.c.h.b16 %v2902
    %v4442 = vunpack.c.l.b16 %v2903
    %v4443 = vunpack.c.h.b16 %v2903
    %v4444 = vunpack.c.l.b16 %v2904
    %v4445 = vunpack.c.h.b16 %v2904
    %v4446 = vunpack.c.l.b16 %v2905
    %v4447 = vunpack.c.h.b16 %v2905
    %v4448 = vunpack.c.l.b16 %v2906
    %v4449 = vunpack.c.h.b16 %v2906
    %v4450 = vunpack.c.l.b16 %v2907
    %v4451 = vunpack.c.h.b16 %v2907
    %v4452 = vunpack.c.l.b16 %v2908
    %v4453 = vunpack.c.h.b16 %v2908
    %v4454 = vunpack.c.l.b16 %v2909
    %v4455 = vunpack.c.h.b16 %v2909
    %v4456 = vunpack.c.l.b16 %v2910
    %v4457 = vunpack.c.h.b16 %v2910
    %v4458 = vunpack.c.l.b16 %v2911
    %v4459 = vunpack.c.h.b16 %v2911
    %v4460 = vunpack.c.l.b16 %v2912
    %v4461 = vunpack.c.h.b16 %v2912
    %v4462 = vunpack.c.l.b16 %v2913
    %v4463 = vunpack.c.h.b16 %v2913
    %v4464 = vunpack.c.l.b16 %v2914
    %v4465 = vunpack.c.h.b16 %v2914
    %v4466 = vunpack.c.l.b16 %v2915
    %v4467 = vunpack.c.h.b16 %v2915
    %v4468 = vunpack.c.l.b16 %v2916
    %v4469 = vunpack.c.h.b16 %v2916
    %v4470 = vunpack.c.l.b16 %v2917
    %v4471 = vunpack.c.h.b16 %v2917
    %v4472 = vunpack.c.l.b16 %v2918
    %v4473 = vunpack.c.h.b16 %v2918
    %v4474 = vunpack.c.l.b16 %v2919
    %v4475 = vunpack.c.h.b16 %v2919
    %v4476 = vunpack.c.l.b16 %v2920
    %v4477 = vunpack.c.h.b16 %v2920
    %v4478 = vunpack.c.l.b16 %v2921
    %v4479 = vunpack.c.h.b16 %v2921
    %v4480 = vunpack.c.l.b16 %v2922
    %v4481 = vunpack.c.h.b16 %v2922
    %v4482 = vunpack.c.l.b16 %v2923
    %v4483 = vunpack.c.h.b16 %v2923
    %v4484 = vunpack.c.l.b16 %v2924
    %v4485 = vunpack.c.h.b16 %v2924
    %v4486 = vunpack.c.l.b16 %v2925
    %v4487 = vunpack.c.h.b16 %v2925
    %v4488 = vunpack.c.l.b16 %v2926
    %v4489 = vunpack.c.h.b16 %v2926
    %v4490 = vunpack.c.l.b16 %v2927
    %v4491 = vunpack.c.h.b16 %v2927
    %v4492 = vunpack.c.l.b16 %v2928
    %v4493 = vunpack.c.h.b16 %v2928
    %v4494 = vunpack.c.l.b16 %v2929
    %v4495 = vunpack.c.h.b16 %v2929
    %v4496 = vunpack.c.l.b16 %v2930
    %v4497 = vunpack.c.h.b16 %v2930
    %v4498 = vunpack.c.l.b16 %v2931
    %v4499 = vunpack.c.h.b16 %v2931
    %v4500 = vunpack.c.l.b16 %v2932
    %v4501 = vunpack.c.h.b16 %v2932
    %v4502 = vunpack.c.l.b16 %v2933
    %v4503 = vunpack.c.h.b16 %v2933
    %v4504 = vunpack.c.l.b16 %v2934
    %v4505 = vunpack.c.h.b16 %v2934
    %v4506 = vunpack.c.l.b16 %v2935
    %v4507 = vunpack.c.h.b16 %v2935
    %v4508 = vunpack.c.l.b16 %v2936
    %v4509 = vunpack.c.h.b16 %v2936
    %v4510 = vunpack.c.l.b16 %v2937
    %v4511 = vunpack.c.h.b16 %v2937
    %v4512 = vunpack.c.l.b16 %v2938
    %v4513 = vunpack.c.h.b16 %v2938
    %v4514 = vunpack.c.l.b16 %v2939
    %v4515 = vunpack.c.h.b16 %v2939
    %v4516 = vunpack.c.l.b16 %v2940
    %v4517 = vunpack.c.h.b16 %v2940
    %v4518 = vunpack.c.l.b16 %v2941
    %v4519 = vunpack.c.h.b16 %v2941
    %v4520 = vunpack.c.l.b16 %v2942
    %v4521 = vunpack.c.h.b16 %v2942
    %v4522 = vunpack.c.l.b16 %v2943
    %v4523 = vunpack.c.h.b16 %v2943
    %v4524 = vunpack.c.l.b16 %v2944
    %v4525 = vunpack.c.h.b16 %v2944
    %v4526 = vunpack.c.l.b16 %v2945
    %v4527 = vunpack.c.h.b16 %v2945
    %v4528 = vunpack.c.l.b16 %v2946
    %v4529 = vunpack.c.h.b16 %v2946
    %v4530 = vunpack.c.l.b16 %v2947
    %v4531 = vunpack.c.h.b16 %v2947
    %v4532 = vunpack.c.l.b16 %v2948
    %v4533 = vunpack.c.h.b16 %v2948
    %v4534 = vunpack.c.l.b16 %v2949
    %v4535 = vunpack.c.h.b16 %v2949
    %v4536 = vunpack.c.l.b16 %v2950
    %v4537 = vunpack.c.h.b16 %v2950
    %v4538 = vunpack.c.l.b16 %v2951
    %v4539 = vunpack.c.h.b16 %v2951
    %v4540 = vunpack.c.l.b16 %v2952
    %v4541 = vunpack.c.h.b16 %v2952
    %v4542 = vunpack.c.l.b16 %v2953
    %v4543 = vunpack.c.h.b16 %v2953
    %v4544 = vunpack.c.l.b16 %v2954
    %v4545 = vunpack.c.h.b16 %v2954
    %v4546 = vunpack.c.l.b16 %v2955
    %v4547 = vunpack.c.h.b16 %v2955
    %v4548 = vunpack.c.l.b16 %v2956
    %v4549 = vunpack.c.h.b16 %v2956
    %v4550 = vunpack.c.l.b16 %v2957
    %v4551 = vunpack.c.h.b16 %v2957
    %v4552 = vunpack.c.l.b16 %v2958
    %v4553 = vunpack.c.h.b16 %v2958
    %v4554 = vunpack.c.l.b16 %v2959
    %v4555 = vunpack.c.h.b16 %v2959
    %v4556 = vunpack.c.l.b16 %v2960
    %v4557 = vunpack.c.h.b16 %v2960
    %v4558 = vunpack.c.l.b16 %v2961
    %v4559 = vunpack.c.h.b16 %v2961
    %v4560 = vunpack.c.l.b16 %v2962
    %v4561 = vunpack.c.h.b16 %v2962
    %v4562 = vunpack.c.l.b16 %v2963
    %v4563 = vunpack.c.h.b16 %v2963
    %v4564 = vunpack.c.l.b16 %v2964
    %v4565 = vunpack.c.h.b16 %v2964
    %v4566 = vunpack.c.l.b16 %v2965
    %v4567 = vunpack.c.h.b16 %v2965
    %v4568 = vunpack.c.l.b16 %v2966
    %v4569 = vunpack.c.h.b16 %v2966
    %v4570 = vunpack.c.l.b16 %v2967
    %v4571 = vunpack.c.h.b16 %v2967
    %v4572 = vunpack.c.l.b16 %v2968
    %v4573 = vunpack.c.h.b16 %v2968
    %v4574 = vunpack.c.l.b16 %v2969
    %v4575 = vunpack.c.h.b16 %v2969
    %v4576 = vunpack.c.l.b16 %v2970
    %v4577 = vunpack.c.h.b16 %v2970
    %v4578 = vunpack.c.l.b16 %v2971
    %v4579 = vunpack.c.h.b16 %v2971
    %v4580 = vunpack.c.l.b16 %v2972
    %v4581 = vunpack.c.h.b16 %v2972
    %v4582 = vunpack.c.l.b16 %v2973
    %v4583 = vunpack.c.h.b16 %v2973
    %v4584 = vunpack.c.l.b16 %v2974
    %v4585 = vunpack.c.h.b16 %v2974
    %v4586 = vunpack.c.l.b16 %v2975
    %v4587 = vunpack.c.h.b16 %v2975
    %v4588 = vunpack.c.l.b16 %v2976
    %v4589 = vunpack.c.h.b16 %v2976
    %v4590 = vunpack.c.l.b16 %v2977
    %v4591 = vunpack.c.h.b16 %v2977
    %v4592 = vunpack.c.l.b16 %v2978
    %v4593 = vunpack.c.h.b16 %v2978
    %v4594 = vunpack.c.l.b16 %v2979
    %v4595 = vunpack.c.h.b16 %v2979
    %v4596 = vpack.c.b16 %v4348, %v4340
    %v4597 = vpack.c.b16 %v4349, %v4341
    %v4598 = vpack.c.b16 %v4350, %v4342
    %v4599 = vpack.c.b16 %v4351, %v4343
    %v4600 = vpack.c.b16 %v4352, %v4344
    %v4601 = vpack.c.b16 %v4353, %v4345
    %v4602 = vpack.c.b16 %v4354, %v4346
    %v4603 = vpack.c.b16 %v4355, %v4347
    %v4604 = vpack.c.b16 %v4364, %v4356
    %v4605 = vpack.c.b16 %v4365, %v4357
    %v4606 = vpack.c.b16 %v4366, %v4358
    %v4607 = vpack.c.b16 %v4367, %v4359
    %v4608 = vpack.c.b16 %v4368, %v4360
    %v4609 = vpack.c.b16 %v4369, %v4361
    %v4610 = vpack.c.b16 %v4370, %v4362
    %v4611 = vpack.c.b16 %v4371, %v4363
    %v4612 = vpack.c.b16 %v4380, %v4372
    %v4613 = vpack.c.b16 %v4381, %v4373
    %v4614 = vpack.c.b16 %v4382, %v4374
    %v4615 = vpack.c.b16 %v4383, %v4375
    %v4616 = vpack.c.b16 %v4384, %v4376
    %v4617 = vpack.c.b16 %v4385, %v4377
    %v4618 = vpack.c.b16 %v4386, %v4378
    %v4619 = vpack.c.b16 %v4387, %v4379
    %v4620 = vpack.c.b16 %v4396, %v4388
    %v4621 = vpack.c.b16 %v4397, %v4389
    %v4622 = vpack.c.b16 %v4398, %v4390
    %v4623 = vpack.c.b16 %v4399, %v4391
    %v4624 = vpack.c.b16 %v4400, %v4392
    %v4625 = vpack.c.b16 %v4401, %v4393
    %v4626 = vpack.c.b16 %v4402, %v4394
    %v4627 = vpack.c.b16 %v4403, %v4395
    %v4628 = vpack.c.b16 %v4412, %v4404
    %v4629 = vpack.c.b16 %v4413, %v4405
    %v4630 = vpack.c.b16 %v4414, %v4406
    %v4631 = vpack.c.b16 %v4415, %v4407
    %v4632 = vpack.c.b16 %v4416, %v4408
    %v4633 = vpack.c.b16 %v4417, %v4409
    %v4634 = vpack.c.b16 %v4418, %v4410
    %v4635 = vpack.c.b16 %v4419, %v4411
    %v4636 = vpack.c.b16 %v4428, %v4420
    %v4637 = vpack.c.b16 %v4429, %v4421
    %v4638 = vpack.c.b16 %v4430, %v4422
    %v4639 = vpack.c.b16 %v4431, %v4423
    %v4640 = vpack.c.b16 %v4432, %v4424
    %v4641 = vpack.c.b16 %v4433, %v4425
    %v4642 = vpack.c.b16 %v4434, %v4426
    %v4643 = vpack.c.b16 %v4435, %v4427
    %v4644 = vpack.c.b16 %v4444, %v4436
    %v4645 = vpack.c.b16 %v4445, %v4437
    %v4646 = vpack.c.b16 %v4446, %v4438
    %v4647 = vpack.c.b16 %v4447, %v4439
    %v4648 = vpack.c.b16 %v4448, %v4440
    %v4649 = vpack.c.b16 %v4449, %v4441
    %v4650 = vpack.c.b16 %v4450, %v4442
    %v4651 = vpack.c.b16 %v4451, %v4443
    %v4652 = vpack.c.b16 %v4460, %v4452
    %v4653 = vpack.c.b16 %v4461, %v4453
    %v4654 = vpack.c.b16 %v4462, %v4454
    %v4655 = vpack.c.b16 %v4463, %v4455
    %v4656 = vpack.c.b16 %v4464, %v4456
    %v4657 = vpack.c.b16 %v4465, %v4457
    %v4658 = vpack.c.b16 %v4466, %v4458
    %v4659 = vpack.c.b16 %v4467, %v4459
    %v4660 = vpack.c.b16 %v4476, %v4468
    %v4661 = vpack.c.b16 %v4477, %v4469
    %v4662 = vpack.c.b16 %v4478, %v4470
    %v4663 = vpack.c.b16 %v4479, %v4471
    %v4664 = vpack.c.b16 %v4480, %v4472
    %v4665 = vpack.c.b16 %v4481, %v4473
    %v4666 = vpack.c.b16 %v4482, %v4474
    %v4667 = vpack.c.b16 %v4483, %v4475
    %v4668 = vpack.c.b16 %v4492, %v4484
    %v4669 = vpack.c.b16 %v4493, %v4485
    %v4670 = vpack.c.b16 %v4494, %v4486
    %v4671 = vpack.c.b16 %v4495, %v4487
    %v4672 = vpack.c.b16 %v4496, %v4488
    %v4673 = vpack.c.b16 %v4497, %v4489
    %v4674 = vpack.c.b16 %v4498, %v4490
    %v4675 = vpack.c.b16 %v4499, %v4491
    %v4676 = vpack.c.b16 %v4508, %v4500
    %v4677 = vpack.c.b16 %v4509, %v4501
    %v4678 = vpack.c.b16 %v4510, %v4502
    %v4679 = vpack.c.b16 %v4511, %v4503
    %v4680 = vpack.c.b16 %v4512, %v4504
    %v4681 = vpack.c.b16 %v4513, %v4505
    %v4682 = vpack.c.b16 %v4514, %v4506
    %v4683 = vpack.c.b16 %v4515, %v4507
    %v4684 = vpack.c.b16 %v4524, %v4516
    %v4685 = vpack.c.b16 %v4525, %v4517
    %v4686 = vpack.c.b16 %v4526, %v4518
    %v4687 = vpack.c.b16 %v4527, %v4519
    %v4688 = vpack.c.b16 %v4528, %v4520
    %v4689 = vpack.c.b16 %v4529, %v4521
    %v4690 = vpack.c.b16 %v4530, %v4522
    %v4691 = vpack.c.b16 %v4531, %v4523
    %v4692 = vpack.c.b16 %v4540, %v4532
    %v4693 = vpack.c.b16 %v4541, %v4533
    %v4694 = vpack.c.b16 %v4542, %v4534
    %v4695 = vpack.c.b16 %v4543, %v4535
    %v4696 = vpack.c.b16 %v4544, %v4536
    %v4697 = vpack.c.b16 %v4545, %v4537
    %v4698 = vpack.c.b16 %v4546, %v4538
    %v4699 = vpack.c.b16 %v4547, %v4539
    %v4700 = vpack.c.b16 %v4556, %v4548
    %v4701 = vpack.c.b16 %v4557, %v4549
    %v4702 = vpack.c.b16 %v4558, %v4550
    %v4703 = vpack.c.b16 %v4559, %v4551
    %v4704 = vpack.c.b16 %v4560, %v4552
    %v4705 = vpack.c.b16 %v4561, %v4553
    %v4706 = vpack.c.b16 %v4562, %v4554
    %v4707 = vpack.c.b16 %v4563, %v4555
    %v4708 = vpack.c.b16 %v4572, %v4564
    %v4709 = vpack.c.b16 %v4573, %v4565
    %v4710 = vpack.c.b16 %v4574, %v4566
    %v4711 = vpack.c.b16 %v4575, %v4567
    %v4712 = vpack.c.b16 %v4576, %v4568
    %v4713 = vpack.c.b16 %v4577, %v4569
    %v4714 = vpack.c.b16 %v4578, %v4570
    %v4715 = vpack.c.b16 %v4579, %v4571
    %v4716 = vpack.c.b16 %v4588, %v4580
    %v4717 = vpack.c.b16 %v4589, %v4581
    %v4718 = vpack.c.b16 %v4590, %v4582
    %v4719 = vpack.c.b16 %v4591, %v4583
    %v4720 = vpack.c.b16 %v4592, %v4584
    %v4721 = vpack.c.b16 %v4593, %v4585
    %v4722 = vpack.c.b16 %v4594, %v4586
    %v4723 = vpack.c.b16 %v4595, %v4587
    %4852 = vmatpush.bf16.msra.mxu0 %v4652
    %4853 = vmatpush.bf16.msra.mxu0 %v4644
    %4854 = vmatpush.bf16.msra.mxu0 %v4636
    %4855 = vmatpush.bf16.msra.mxu0 %v4628
    %4856 = vmatpush.bf16.msra.mxu0 %v4620
    %4857 = vmatpush.bf16.msra.mxu0 %v4612
    %4858 = vmatpush.bf16.msra.mxu0 %v4604
    %4859 = vmatpush.bf16.msra.mxu0 %v4596
    %4860 = vmatmul.bf16.gmra.mxu0 %v210
    %v4861 = vpop.f32.mrf.mxu0
    %v4862 = vadd.f32 %v3787, %v4861
    %v4863 = vpop.f32.mrf.mxu0
    %v4864 = vadd.f32 %v3789, %v4863
    %4865 = vmatmul.bf16.gmra.mxu0 %v212
    %v4866 = vpop.f32.mrf.mxu0
    %v4867 = vadd.f32 %v3792, %v4866
    %v4868 = vpop.f32.mrf.mxu0
    %v4869 = vadd.f32 %v3794, %v4868
    %4870 = vmatmul.bf16.gmra.mxu0 %v214
    %v4871 = vpop.f32.mrf.mxu0
    %v4872 = vadd.f32 %v3797, %v4871
    %v4873 = vpop.f32.mrf.mxu0
    %v4874 = vadd.f32 %v3799, %v4873
    %4875 = vmatmul.bf16.gmra.mxu0 %v216
    %v4876 = vpop.f32.mrf.mxu0
    %v4877 = vadd.f32 %v3802, %v4876
    %v4878 = vpop.f32.mrf.mxu0
    %v4879 = vadd.f32 %v3804, %v4878
    %4880 = vdwg.mxu0
    %4881 = vmatpush.bf16.msra.mxu0 %v4716
    %4882 = vmatpush.bf16.msra.mxu0 %v4708
    %4883 = vmatpush.bf16.msra.mxu0 %v4700
    %4884 = vmatpush.bf16.msra.mxu0 %v4692
    %4885 = vmatpush.bf16.msra.mxu0 %v4684
    %4886 = vmatpush.bf16.msra.mxu0 %v4676
    %4887 = vmatpush.bf16.msra.mxu0 %v4668
    %4888 = vmatpush.bf16.msra.mxu0 %v4660
    %4889 = vmatmul.bf16.gmra.mxu0 %v211
    %v4890 = vpop.f32.mrf.mxu0
    %v4891 = vadd.f32 %v4862, %v4890
    %v4892 = vpop.f32.mrf.mxu0
    %v4893 = vadd.f32 %v4864, %v4892
    %4894 = vmatmul.bf16.gmra.mxu0 %v213
    %v4895 = vpop.f32.mrf.mxu0
    %v4896 = vadd.f32 %v4867, %v4895
    %v4897 = vpop.f32.mrf.mxu0
    %v4898 = vadd.f32 %v4869, %v4897
    %4899 = vmatmul.bf16.gmra.mxu0 %v215
    %v4900 = vpop.f32.mrf.mxu0
    %v4901 = vadd.f32 %v4872, %v4900
    %v4902 = vpop.f32.mrf.mxu0
    %v4903 = vadd.f32 %v4874, %v4902
    %4904 = vmatmul.bf16.gmra.mxu0 %v217
    %v4905 = vpop.f32.mrf.mxu0
    %v4906 = vadd.f32 %v4877, %v4905
    %v4907 = vpop.f32.mrf.mxu0
    %v4908 = vadd.f32 %v4879, %v4907
    %4909 = vdwg.mxu0
    %4910 = vmatpush.bf16.msra.mxu0 %v4653
    %4911 = vmatpush.bf16.msra.mxu0 %v4645
    %4912 = vmatpush.bf16.msra.mxu0 %v4637
    %4913 = vmatpush.bf16.msra.mxu0 %v4629
    %4914 = vmatpush.bf16.msra.mxu0 %v4621
    %4915 = vmatpush.bf16.msra.mxu0 %v4613
    %4916 = vmatpush.bf16.msra.mxu0 %v4605
    %4917 = vmatpush.bf16.msra.mxu0 %v4597
    %4918 = vmatmul.bf16.gmra.mxu0 %v210
    %v4919 = vpop.f32.mrf.mxu0
    %v4920 = vadd.f32 %v3845, %v4919
    %v4921 = vpop.f32.mrf.mxu0
    %v4922 = vadd.f32 %v3847, %v4921
    %4923 = vmatmul.bf16.gmra.mxu0 %v212
    %v4924 = vpop.f32.mrf.mxu0
    %v4925 = vadd.f32 %v3850, %v4924
    %v4926 = vpop.f32.mrf.mxu0
    %v4927 = vadd.f32 %v3852, %v4926
    %4928 = vmatmul.bf16.gmra.mxu0 %v214
    %v4929 = vpop.f32.mrf.mxu0
    %v4930 = vadd.f32 %v3855, %v4929
    %v4931 = vpop.f32.mrf.mxu0
    %v4932 = vadd.f32 %v3857, %v4931
    %4933 = vmatmul.bf16.gmra.mxu0 %v216
    %v4934 = vpop.f32.mrf.mxu0
    %v4935 = vadd.f32 %v3860, %v4934
    %v4936 = vpop.f32.mrf.mxu0
    %v4937 = vadd.f32 %v3862, %v4936
    %4938 = vdwg.mxu0
    %4939 = vmatpush.bf16.msra.mxu0 %v4717
    %4940 = vmatpush.bf16.msra.mxu0 %v4709
    %4941 = vmatpush.bf16.msra.mxu0 %v4701
    %4942 = vmatpush.bf16.msra.mxu0 %v4693
    %4943 = vmatpush.bf16.msra.mxu0 %v4685
    %4944 = vmatpush.bf16.msra.mxu0 %v4677
    %4945 = vmatpush.bf16.msra.mxu0 %v4669
    %4946 = vmatpush.bf16.msra.mxu0 %v4661
    %4947 = vmatmul.bf16.gmra.mxu0 %v211
    %v4948 = vpop.f32.mrf.mxu0
    %v4949 = vadd.f32 %v4920, %v4948
    %v4950 = vpop.f32.mrf.mxu0
    %v4951 = vadd.f32 %v4922, %v4950
    %4952 = vmatmul.bf16.gmra.mxu0 %v213
    %v4953 = vpop.f32.mrf.mxu0
    %v4954 = vadd.f32 %v4925, %v4953
    %v4955 = vpop.f32.mrf.mxu0
    %v4956 = vadd.f32 %v4927, %v4955
    %4957 = vmatmul.bf16.gmra.mxu0 %v215
    %v4958 = vpop.f32.mrf.mxu0
    %v4959 = vadd.f32 %v4930, %v4958
    %v4960 = vpop.f32.mrf.mxu0
    %v4961 = vadd.f32 %v4932, %v4960
    %4962 = vmatmul.bf16.gmra.mxu0 %v217
    %v4963 = vpop.f32.mrf.mxu0
    %v4964 = vadd.f32 %v4935, %v4963
    %v4965 = vpop.f32.mrf.mxu0
    %v4966 = vadd.f32 %v4937, %v4965
    %4967 = vdwg.mxu0
    %4968 = vmatpush.bf16.msra.mxu0 %v4654
    %4969 = vmatpush.bf16.msra.mxu0 %v4646
    %4970 = vmatpush.bf16.msra.mxu0 %v4638
    %4971 = vmatpush.bf16.msra.mxu0 %v4630
    %4972 = vmatpush.bf16.msra.mxu0 %v4622
    %4973 = vmatpush.bf16.msra.mxu0 %v4614
    %4974 = vmatpush.bf16.msra.mxu0 %v4606
    %4975 = vmatpush.bf16.msra.mxu0 %v4598
    %4976 = vmatmul.bf16.gmra.mxu0 %v210
    %v4977 = vpop.f32.mrf.mxu0
    %v4978 = vadd.f32 %v3903, %v4977
    %v4979 = vpop.f32.mrf.mxu0
    %v4980 = vadd.f32 %v3905, %v4979
    %4981 = vmatmul.bf16.gmra.mxu0 %v212
    %v4982 = vpop.f32.mrf.mxu0
    %v4983 = vadd.f32 %v3908, %v4982
    %v4984 = vpop.f32.mrf.mxu0
    %v4985 = vadd.f32 %v3910, %v4984
    %4986 = vmatmul.bf16.gmra.mxu0 %v214
    %v4987 = vpop.f32.mrf.mxu0
    %v4988 = vadd.f32 %v3913, %v4987
    %v4989 = vpop.f32.mrf.mxu0
    %v4990 = vadd.f32 %v3915, %v4989
    %4991 = vmatmul.bf16.gmra.mxu0 %v216
    %v4992 = vpop.f32.mrf.mxu0
    %v4993 = vadd.f32 %v3918, %v4992
    %v4994 = vpop.f32.mrf.mxu0
    %v4995 = vadd.f32 %v3920, %v4994
    %4996 = vdwg.mxu0
    %4997 = vmatpush.bf16.msra.mxu0 %v4718
    %4998 = vmatpush.bf16.msra.mxu0 %v4710
    %4999 = vmatpush.bf16.msra.mxu0 %v4702
    %5000 = vmatpush.bf16.msra.mxu0 %v4694
    %5001 = vmatpush.bf16.msra.mxu0 %v4686
    %5002 = vmatpush.bf16.msra.mxu0 %v4678
    %5003 = vmatpush.bf16.msra.mxu0 %v4670
    %5004 = vmatpush.bf16.msra.mxu0 %v4662
    %5005 = vmatmul.bf16.gmra.mxu0 %v211
    %v5006 = vpop.f32.mrf.mxu0
    %v5007 = vadd.f32 %v4978, %v5006
    %v5008 = vpop.f32.mrf.mxu0
    %v5009 = vadd.f32 %v4980, %v5008
    %5010 = vmatmul.bf16.gmra.mxu0 %v213
    %v5011 = vpop.f32.mrf.mxu0
    %v5012 = vadd.f32 %v4983, %v5011
    %v5013 = vpop.f32.mrf.mxu0
    %v5014 = vadd.f32 %v4985, %v5013
    %5015 = vmatmul.bf16.gmra.mxu0 %v215
    %v5016 = vpop.f32.mrf.mxu0
    %v5017 = vadd.f32 %v4988, %v5016
    %v5018 = vpop.f32.mrf.mxu0
    %v5019 = vadd.f32 %v4990, %v5018
    %5020 = vmatmul.bf16.gmra.mxu0 %v217
    %v5021 = vpop.f32.mrf.mxu0
    %v5022 = vadd.f32 %v4993, %v5021
    %v5023 = vpop.f32.mrf.mxu0
    %v5024 = vadd.f32 %v4995, %v5023
    %5025 = vdwg.mxu0
    %5026 = vmatpush.bf16.msra.mxu0 %v4655
    %5027 = vmatpush.bf16.msra.mxu0 %v4647
    %5028 = vmatpush.bf16.msra.mxu0 %v4639
    %5029 = vmatpush.bf16.msra.mxu0 %v4631
    %5030 = vmatpush.bf16.msra.mxu0 %v4623
    %5031 = vmatpush.bf16.msra.mxu0 %v4615
    %5032 = vmatpush.bf16.msra.mxu0 %v4607
    %5033 = vmatpush.bf16.msra.mxu0 %v4599
    %5034 = vmatmul.bf16.gmra.mxu0 %v210
    %v5035 = vpop.f32.mrf.mxu0
    %v5036 = vadd.f32 %v3961, %v5035
    %v5037 = vpop.f32.mrf.mxu0
    %v5038 = vadd.f32 %v3963, %v5037
    %5039 = vmatmul.bf16.gmra.mxu0 %v212
    %v5040 = vpop.f32.mrf.mxu0
    %v5041 = vadd.f32 %v3966, %v5040
    %v5042 = vpop.f32.mrf.mxu0
    %v5043 = vadd.f32 %v3968, %v5042
    %5044 = vmatmul.bf16.gmra.mxu0 %v214
    %v5045 = vpop.f32.mrf.mxu0
    %v5046 = vadd.f32 %v3971, %v5045
    %v5047 = vpop.f32.mrf.mxu0
    %v5048 = vadd.f32 %v3973, %v5047
    %5049 = vmatmul.bf16.gmra.mxu0 %v216
    %v5050 = vpop.f32.mrf.mxu0
    %v5051 = vadd.f32 %v3976, %v5050
    %v5052 = vpop.f32.mrf.mxu0
    %v5053 = vadd.f32 %v3978, %v5052
    %5054 = vdwg.mxu0
    %5055 = vmatpush.bf16.msra.mxu0 %v4719
    %5056 = vmatpush.bf16.msra.mxu0 %v4711
    %5057 = vmatpush.bf16.msra.mxu0 %v4703
    %5058 = vmatpush.bf16.msra.mxu0 %v4695
    %5059 = vmatpush.bf16.msra.mxu0 %v4687
    %5060 = vmatpush.bf16.msra.mxu0 %v4679
    %5061 = vmatpush.bf16.msra.mxu0 %v4671
    %5062 = vmatpush.bf16.msra.mxu0 %v4663
    %5063 = vmatmul.bf16.gmra.mxu0 %v211
    %v5064 = vpop.f32.mrf.mxu0
    %v5065 = vadd.f32 %v5036, %v5064
    %v5066 = vpop.f32.mrf.mxu0
    %v5067 = vadd.f32 %v5038, %v5066
    %5068 = vmatmul.bf16.gmra.mxu0 %v213
    %v5069 = vpop.f32.mrf.mxu0
    %v5070 = vadd.f32 %v5041, %v5069
    %v5071 = vpop.f32.mrf.mxu0
    %v5072 = vadd.f32 %v5043, %v5071
    %5073 = vmatmul.bf16.gmra.mxu0 %v215
    %v5074 = vpop.f32.mrf.mxu0
    %v5075 = vadd.f32 %v5046, %v5074
    %v5076 = vpop.f32.mrf.mxu0
    %v5077 = vadd.f32 %v5048, %v5076
    %5078 = vmatmul.bf16.gmra.mxu0 %v217
    %v5079 = vpop.f32.mrf.mxu0
    %v5080 = vadd.f32 %v5051, %v5079
    %v5081 = vpop.f32.mrf.mxu0
    %v5082 = vadd.f32 %v5053, %v5081
    %5083 = vdwg.mxu0
    %5084 = vmatpush.bf16.msra.mxu0 %v4656
    %5085 = vmatpush.bf16.msra.mxu0 %v4648
    %5086 = vmatpush.bf16.msra.mxu0 %v4640
    %5087 = vmatpush.bf16.msra.mxu0 %v4632
    %5088 = vmatpush.bf16.msra.mxu0 %v4624
    %5089 = vmatpush.bf16.msra.mxu0 %v4616
    %5090 = vmatpush.bf16.msra.mxu0 %v4608
    %5091 = vmatpush.bf16.msra.mxu0 %v4600
    %5092 = vmatmul.bf16.gmra.mxu0 %v210
    %v5093 = vpop.f32.mrf.mxu0
    %v5094 = vadd.f32 %v4019, %v5093
    %v5095 = vpop.f32.mrf.mxu0
    %v5096 = vadd.f32 %v4021, %v5095
    %5097 = vmatmul.bf16.gmra.mxu0 %v212
    %v5098 = vpop.f32.mrf.mxu0
    %v5099 = vadd.f32 %v4024, %v5098
    %v5100 = vpop.f32.mrf.mxu0
    %v5101 = vadd.f32 %v4026, %v5100
    %5102 = vmatmul.bf16.gmra.mxu0 %v214
    %v5103 = vpop.f32.mrf.mxu0
    %v5104 = vadd.f32 %v4029, %v5103
    %v5105 = vpop.f32.mrf.mxu0
    %v5106 = vadd.f32 %v4031, %v5105
    %5107 = vmatmul.bf16.gmra.mxu0 %v216
    %v5108 = vpop.f32.mrf.mxu0
    %v5109 = vadd.f32 %v4034, %v5108
    %v5110 = vpop.f32.mrf.mxu0
    %v5111 = vadd.f32 %v4036, %v5110
    %5112 = vdwg.mxu0
    %5113 = vmatpush.bf16.msra.mxu0 %v4720
    %5114 = vmatpush.bf16.msra.mxu0 %v4712
    %5115 = vmatpush.bf16.msra.mxu0 %v4704
    %5116 = vmatpush.bf16.msra.mxu0 %v4696
    %5117 = vmatpush.bf16.msra.mxu0 %v4688
    %5118 = vmatpush.bf16.msra.mxu0 %v4680
    %5119 = vmatpush.bf16.msra.mxu0 %v4672
    %5120 = vmatpush.bf16.msra.mxu0 %v4664
    %5121 = vmatmul.bf16.gmra.mxu0 %v211
    %v5122 = vpop.f32.mrf.mxu0
    %v5123 = vadd.f32 %v5094, %v5122
    %v5124 = vpop.f32.mrf.mxu0
    %v5125 = vadd.f32 %v5096, %v5124
    %5126 = vmatmul.bf16.gmra.mxu0 %v213
    %v5127 = vpop.f32.mrf.mxu0
    %v5128 = vadd.f32 %v5099, %v5127
    %v5129 = vpop.f32.mrf.mxu0
    %v5130 = vadd.f32 %v5101, %v5129
    %5131 = vmatmul.bf16.gmra.mxu0 %v215
    %v5132 = vpop.f32.mrf.mxu0
    %v5133 = vadd.f32 %v5104, %v5132
    %v5134 = vpop.f32.mrf.mxu0
    %v5135 = vadd.f32 %v5106, %v5134
    %5136 = vmatmul.bf16.gmra.mxu0 %v217
    %v5137 = vpop.f32.mrf.mxu0
    %v5138 = vadd.f32 %v5109, %v5137
    %v5139 = vpop.f32.mrf.mxu0
    %v5140 = vadd.f32 %v5111, %v5139
    %5141 = vdwg.mxu0
    %5142 = vmatpush.bf16.msra.mxu0 %v4657
    %5143 = vmatpush.bf16.msra.mxu0 %v4649
    %5144 = vmatpush.bf16.msra.mxu0 %v4641
    %5145 = vmatpush.bf16.msra.mxu0 %v4633
    %5146 = vmatpush.bf16.msra.mxu0 %v4625
    %5147 = vmatpush.bf16.msra.mxu0 %v4617
    %5148 = vmatpush.bf16.msra.mxu0 %v4609
    %5149 = vmatpush.bf16.msra.mxu0 %v4601
    %5150 = vmatmul.bf16.gmra.mxu0 %v210
    %v5151 = vpop.f32.mrf.mxu0
    %v5152 = vadd.f32 %v4077, %v5151
    %v5153 = vpop.f32.mrf.mxu0
    %v5154 = vadd.f32 %v4079, %v5153
    %5155 = vmatmul.bf16.gmra.mxu0 %v212
    %v5156 = vpop.f32.mrf.mxu0
    %v5157 = vadd.f32 %v4082, %v5156
    %v5158 = vpop.f32.mrf.mxu0
    %v5159 = vadd.f32 %v4084, %v5158
    %5160 = vmatmul.bf16.gmra.mxu0 %v214
    %v5161 = vpop.f32.mrf.mxu0
    %v5162 = vadd.f32 %v4087, %v5161
    %v5163 = vpop.f32.mrf.mxu0
    %v5164 = vadd.f32 %v4089, %v5163
    %5165 = vmatmul.bf16.gmra.mxu0 %v216
    %v5166 = vpop.f32.mrf.mxu0
    %v5167 = vadd.f32 %v4092, %v5166
    %v5168 = vpop.f32.mrf.mxu0
    %v5169 = vadd.f32 %v4094, %v5168
    %5170 = vdwg.mxu0
    %5171 = vmatpush.bf16.msra.mxu0 %v4721
    %5172 = vmatpush.bf16.msra.mxu0 %v4713
    %5173 = vmatpush.bf16.msra.mxu0 %v4705
    %5174 = vmatpush.bf16.msra.mxu0 %v4697
    %5175 = vmatpush.bf16.msra.mxu0 %v4689
    %5176 = vmatpush.bf16.msra.mxu0 %v4681
    %5177 = vmatpush.bf16.msra.mxu0 %v4673
    %5178 = vmatpush.bf16.msra.mxu0 %v4665
    %5179 = vmatmul.bf16.gmra.mxu0 %v211
    %v5180 = vpop.f32.mrf.mxu0
    %v5181 = vadd.f32 %v5152, %v5180
    %v5182 = vpop.f32.mrf.mxu0
    %v5183 = vadd.f32 %v5154, %v5182
    %5184 = vmatmul.bf16.gmra.mxu0 %v213
    %v5185 = vpop.f32.mrf.mxu0
    %v5186 = vadd.f32 %v5157, %v5185
    %v5187 = vpop.f32.mrf.mxu0
    %v5188 = vadd.f32 %v5159, %v5187
    %5189 = vmatmul.bf16.gmra.mxu0 %v215
    %v5190 = vpop.f32.mrf.mxu0
    %v5191 = vadd.f32 %v5162, %v5190
    %v5192 = vpop.f32.mrf.mxu0
    %v5193 = vadd.f32 %v5164, %v5192
    %5194 = vmatmul.bf16.gmra.mxu0 %v217
    %v5195 = vpop.f32.mrf.mxu0
    %v5196 = vadd.f32 %v5167, %v5195
    %v5197 = vpop.f32.mrf.mxu0
    %v5198 = vadd.f32 %v5169, %v5197
    %5199 = vdwg.mxu0
    %5200 = vmatpush.bf16.msra.mxu0 %v4658
    %5201 = vmatpush.bf16.msra.mxu0 %v4650
    %5202 = vmatpush.bf16.msra.mxu0 %v4642
    %5203 = vmatpush.bf16.msra.mxu0 %v4634
    %5204 = vmatpush.bf16.msra.mxu0 %v4626
    %5205 = vmatpush.bf16.msra.mxu0 %v4618
    %5206 = vmatpush.bf16.msra.mxu0 %v4610
    %5207 = vmatpush.bf16.msra.mxu0 %v4602
    %5208 = vmatmul.bf16.gmra.mxu0 %v210
    %v5209 = vpop.f32.mrf.mxu0
    %v5210 = vadd.f32 %v4135, %v5209
    %v5211 = vpop.f32.mrf.mxu0
    %v5212 = vadd.f32 %v4137, %v5211
    %5213 = vmatmul.bf16.gmra.mxu0 %v212
    %v5214 = vpop.f32.mrf.mxu0
    %v5215 = vadd.f32 %v4140, %v5214
    %v5216 = vpop.f32.mrf.mxu0
    %v5217 = vadd.f32 %v4142, %v5216
    %5218 = vmatmul.bf16.gmra.mxu0 %v214
    %v5219 = vpop.f32.mrf.mxu0
    %v5220 = vadd.f32 %v4145, %v5219
    %v5221 = vpop.f32.mrf.mxu0
    %v5222 = vadd.f32 %v4147, %v5221
    %5223 = vmatmul.bf16.gmra.mxu0 %v216
    %v5224 = vpop.f32.mrf.mxu0
    %v5225 = vadd.f32 %v4150, %v5224
    %v5226 = vpop.f32.mrf.mxu0
    %v5227 = vadd.f32 %v4152, %v5226
    %5228 = vdwg.mxu0
    %5229 = vmatpush.bf16.msra.mxu0 %v4722
    %5230 = vmatpush.bf16.msra.mxu0 %v4714
    %5231 = vmatpush.bf16.msra.mxu0 %v4706
    %5232 = vmatpush.bf16.msra.mxu0 %v4698
    %5233 = vmatpush.bf16.msra.mxu0 %v4690
    %5234 = vmatpush.bf16.msra.mxu0 %v4682
    %5235 = vmatpush.bf16.msra.mxu0 %v4674
    %5236 = vmatpush.bf16.msra.mxu0 %v4666
    %5237 = vmatmul.bf16.gmra.mxu0 %v211
    %v5238 = vpop.f32.mrf.mxu0
    %v5239 = vadd.f32 %v5210, %v5238
    %v5240 = vpop.f32.mrf.mxu0
    %v5241 = vadd.f32 %v5212, %v5240
    %5242 = vmatmul.bf16.gmra.mxu0 %v213
    %v5243 = vpop.f32.mrf.mxu0
    %v5244 = vadd.f32 %v5215, %v5243
    %v5245 = vpop.f32.mrf.mxu0
    %v5246 = vadd.f32 %v5217, %v5245
    %5247 = vmatmul.bf16.gmra.mxu0 %v215
    %v5248 = vpop.f32.mrf.mxu0
    %v5249 = vadd.f32 %v5220, %v5248
    %v5250 = vpop.f32.mrf.mxu0
    %v5251 = vadd.f32 %v5222, %v5250
    %5252 = vmatmul.bf16.gmra.mxu0 %v217
    %v5253 = vpop.f32.mrf.mxu0
    %v5254 = vadd.f32 %v5225, %v5253
    %v5255 = vpop.f32.mrf.mxu0
    %v5256 = vadd.f32 %v5227, %v5255
    %5257 = vdwg.mxu0
    %5258 = vmatpush.bf16.msra.mxu0 %v4659
    %5259 = vmatpush.bf16.msra.mxu0 %v4651
    %5260 = vmatpush.bf16.msra.mxu0 %v4643
    %5261 = vmatpush.bf16.msra.mxu0 %v4635
    %5262 = vmatpush.bf16.msra.mxu0 %v4627
    %5263 = vmatpush.bf16.msra.mxu0 %v4619
    %5264 = vmatpush.bf16.msra.mxu0 %v4611
    %5265 = vmatpush.bf16.msra.mxu0 %v4603
    %5266 = vmatmul.bf16.gmra.mxu0 %v210
    %v5267 = vpop.f32.mrf.mxu0
    %v5268 = vadd.f32 %v4193, %v5267
    %v5269 = vpop.f32.mrf.mxu0
    %v5270 = vadd.f32 %v4195, %v5269
    %5271 = vmatmul.bf16.gmra.mxu0 %v212
    %v5272 = vpop.f32.mrf.mxu0
    %v5273 = vadd.f32 %v4198, %v5272
    %v5274 = vpop.f32.mrf.mxu0
    %v5275 = vadd.f32 %v4200, %v5274
    %5276 = vmatmul.bf16.gmra.mxu0 %v214
    %v5277 = vpop.f32.mrf.mxu0
    %v5278 = vadd.f32 %v4203, %v5277
    %v5279 = vpop.f32.mrf.mxu0
    %v5280 = vadd.f32 %v4205, %v5279
    %5281 = vmatmul.bf16.gmra.mxu0 %v216
    %v5282 = vpop.f32.mrf.mxu0
    %v5283 = vadd.f32 %v4208, %v5282
    %v5284 = vpop.f32.mrf.mxu0
    %v5285 = vadd.f32 %v4210, %v5284
    %5286 = vdwg.mxu0
    %5287 = vmatpush.bf16.msra.mxu0 %v4723
    %5288 = vmatpush.bf16.msra.mxu0 %v4715
    %5289 = vmatpush.bf16.msra.mxu0 %v4707
    %5290 = vmatpush.bf16.msra.mxu0 %v4699
    %5291 = vmatpush.bf16.msra.mxu0 %v4691
    %5292 = vmatpush.bf16.msra.mxu0 %v4683
    %5293 = vmatpush.bf16.msra.mxu0 %v4675
    %5294 = vmatpush.bf16.msra.mxu0 %v4667
    %5295 = vmatmul.bf16.gmra.mxu0 %v211
    %v5296 = vpop.f32.mrf.mxu0
    %v5297 = vadd.f32 %v5268, %v5296
    %v5298 = vpop.f32.mrf.mxu0
    %v5299 = vadd.f32 %v5270, %v5298
    %5300 = vmatmul.bf16.gmra.mxu0 %v213
    %v5301 = vpop.f32.mrf.mxu0
    %v5302 = vadd.f32 %v5273, %v5301
    %v5303 = vpop.f32.mrf.mxu0
    %v5304 = vadd.f32 %v5275, %v5303
    %5305 = vmatmul.bf16.gmra.mxu0 %v215
    %v5306 = vpop.f32.mrf.mxu0
    %v5307 = vadd.f32 %v5278, %v5306
    %v5308 = vpop.f32.mrf.mxu0
    %v5309 = vadd.f32 %v5280, %v5308
    %5310 = vmatmul.bf16.gmra.mxu0 %v217
    %v5311 = vpop.f32.mrf.mxu0
    %v5312 = vadd.f32 %v5283, %v5311
    %v5313 = vpop.f32.mrf.mxu0
    %v5314 = vadd.f32 %v5285, %v5313
    %5315 = vdwg.mxu0
    %v5316 = vld [vmem:[%s9] sm:$0xff]
    %v5318 = vperm.slane %v5316, 0
    %v5319 = vperm.slane %v5316, 1
    %v5320 = vperm.slane %v5316, 2
    %v5321 = vperm.slane %v5316, 3
    %v5322 = vperm.slane %v5316, 4
    %v5323 = vperm.slane %v5316, 5
    %v5324 = vperm.slane %v5316, 6
    %v5325 = vperm.slane %v5316, 7
    %v5334 = vadd.f32 %v4891, %v5318
    %v5335 = vadd.f32 %v4949, %v5319
    %v5336 = vadd.f32 %v5007, %v5320
    %v5337 = vadd.f32 %v5065, %v5321
    %v5338 = vadd.f32 %v5123, %v5322
    %v5339 = vadd.f32 %v5181, %v5323
    %v5340 = vadd.f32 %v5239, %v5324
    %v5341 = vadd.f32 %v5297, %v5325
    %v5342 = vadd.f32 %v4893, %v5318
    %v5343 = vadd.f32 %v4951, %v5319
    %v5344 = vadd.f32 %v5009, %v5320
    %v5345 = vadd.f32 %v5067, %v5321
    %v5346 = vadd.f32 %v5125, %v5322
    %v5347 = vadd.f32 %v5183, %v5323
    %v5348 = vadd.f32 %v5241, %v5324
    %v5349 = vadd.f32 %v5299, %v5325
    %v5350 = vadd.f32 %v4896, %v5318
    %v5351 = vadd.f32 %v4954, %v5319
    %v5352 = vadd.f32 %v5012, %v5320
    %v5353 = vadd.f32 %v5070, %v5321
    %v5354 = vadd.f32 %v5128, %v5322
    %v5355 = vadd.f32 %v5186, %v5323
    %v5356 = vadd.f32 %v5244, %v5324
    %v5357 = vadd.f32 %v5302, %v5325
    %v5358 = vadd.f32 %v4898, %v5318
    %v5359 = vadd.f32 %v4956, %v5319
    %v5360 = vadd.f32 %v5014, %v5320
    %v5361 = vadd.f32 %v5072, %v5321
    %v5362 = vadd.f32 %v5130, %v5322
    %v5363 = vadd.f32 %v5188, %v5323
    %v5364 = vadd.f32 %v5246, %v5324
    %v5365 = vadd.f32 %v5304, %v5325
    %v5366 = vadd.f32 %v4901, %v5318
    %v5367 = vadd.f32 %v4959, %v5319
    %v5368 = vadd.f32 %v5017, %v5320
    %v5369 = vadd.f32 %v5075, %v5321
    %v5370 = vadd.f32 %v5133, %v5322
    %v5371 = vadd.f32 %v5191, %v5323
    %v5372 = vadd.f32 %v5249, %v5324
    %v5373 = vadd.f32 %v5307, %v5325
    %v5374 = vadd.f32 %v4903, %v5318
    %v5375 = vadd.f32 %v4961, %v5319
    %v5376 = vadd.f32 %v5019, %v5320
    %v5377 = vadd.f32 %v5077, %v5321
    %v5378 = vadd.f32 %v5135, %v5322
    %v5379 = vadd.f32 %v5193, %v5323
    %v5380 = vadd.f32 %v5251, %v5324
    %v5381 = vadd.f32 %v5309, %v5325
    %v5382 = vadd.f32 %v4906, %v5318
    %v5383 = vadd.f32 %v4964, %v5319
    %v5384 = vadd.f32 %v5022, %v5320
    %v5385 = vadd.f32 %v5080, %v5321
    %v5386 = vadd.f32 %v5138, %v5322
    %v5387 = vadd.f32 %v5196, %v5323
    %v5388 = vadd.f32 %v5254, %v5324
    %v5389 = vadd.f32 %v5312, %v5325
    %v5390 = vadd.f32 %v4908, %v5318
    %v5391 = vadd.f32 %v4966, %v5319
    %v5392 = vadd.f32 %v5024, %v5320
    %v5393 = vadd.f32 %v5082, %v5321
    %v5394 = vadd.f32 %v5140, %v5322
    %v5395 = vadd.f32 %v5198, %v5323
    %v5396 = vadd.f32 %v5256, %v5324
    %v5397 = vadd.f32 %v5314, %v5325
    %5398 = vst [vmem:[#allocation3] sm:$0xff] %v5334
    %5399 = vst [vmem:[#allocation3 + $0x8] sm:$0xff] %v5335
    %5400 = vst [vmem:[#allocation3 + $0x10] sm:$0xff] %v5336
    %5401 = vst [vmem:[#allocation3 + $0x18] sm:$0xff] %v5337
    %5402 = vst [vmem:[#allocation3 + $0x20] sm:$0xff] %v5338
    %5403 = vst [vmem:[#allocation3 + $0x28] sm:$0xff] %v5339
    %5404 = vst [vmem:[#allocation3 + $0x30] sm:$0xff] %v5340
    %5405 = vst [vmem:[#allocation3 + $0x38] sm:$0xff] %v5341
    %5406 = vst [vmem:[#allocation3 + $0x40] sm:$0xff] %v5342
    %5407 = vst [vmem:[#allocation3 + $0x48] sm:$0xff] %v5343
    %5408 = vst [vmem:[#allocation3 + $0x50] sm:$0xff] %v5344
    %5409 = vst [vmem:[#allocation3 + $0x58] sm:$0xff] %v5345
    %5410 = vst [vmem:[#allocation3 + $0x60] sm:$0xff] %v5346
    %5411 = vst [vmem:[#allocation3 + $0x68] sm:$0xff] %v5347
    %5412 = vst [vmem:[#allocation3 + $0x70] sm:$0xff] %v5348
    %5413 = vst [vmem:[#allocation3 + $0x78] sm:$0xff] %v5349
    %5414 = vst [vmem:[#allocation3 + $0x80] sm:$0xff] %v5350
    %5415 = vst [vmem:[#allocation3 + $0x88] sm:$0xff] %v5351
    %5416 = vst [vmem:[#allocation3 + $0x90] sm:$0xff] %v5352
    %5417 = vst [vmem:[#allocation3 + $0x98] sm:$0xff] %v5353
    %5418 = vst [vmem:[#allocation3 + $0xa0] sm:$0xff] %v5354
    %5419 = vst [vmem:[#allocation3 + $0xa8] sm:$0xff] %v5355
    %5420 = vst [vmem:[#allocation3 + $0xb0] sm:$0xff] %v5356
    %5421 = vst [vmem:[#allocation3 + $0xb8] sm:$0xff] %v5357
    %5422 = vst [vmem:[#allocation3 + $0xc0] sm:$0xff] %v5358
    %5423 = vst [vmem:[#allocation3 + $0xc8] sm:$0xff] %v5359
    %5424 = vst [vmem:[#allocation3 + $0xd0] sm:$0xff] %v5360
    %5425 = vst [vmem:[#allocation3 + $0xd8] sm:$0xff] %v5361
    %5426 = vst [vmem:[#allocation3 + $0xe0] sm:$0xff] %v5362
    %5427 = vst [vmem:[#allocation3 + $0xe8] sm:$0xff] %v5363
    %5428 = vst [vmem:[#allocation3 + $0xf0] sm:$0xff] %v5364
    %5429 = vst [vmem:[#allocation3 + $0xf8] sm:$0xff] %v5365
    %5430 = vst [vmem:[#allocation3 + $0x100] sm:$0xff] %v5366
    %5431 = vst [vmem:[#allocation3 + $0x108] sm:$0xff] %v5367
    %5432 = vst [vmem:[#allocation3 + $0x110] sm:$0xff] %v5368
    %5433 = vst [vmem:[#allocation3 + $0x118] sm:$0xff] %v5369
    %5434 = vst [vmem:[#allocation3 + $0x120] sm:$0xff] %v5370
    %5435 = vst [vmem:[#allocation3 + $0x128] sm:$0xff] %v5371
    %5436 = vst [vmem:[#allocation3 + $0x130] sm:$0xff] %v5372
    %5437 = vst [vmem:[#allocation3 + $0x138] sm:$0xff] %v5373
    %5438 = vst [vmem:[#allocation3 + $0x140] sm:$0xff] %v5374
    %5439 = vst [vmem:[#allocation3 + $0x148] sm:$0xff] %v5375
    %5440 = vst [vmem:[#allocation3 + $0x150] sm:$0xff] %v5376
    %5441 = vst [vmem:[#allocation3 + $0x158] sm:$0xff] %v5377
    %5442 = vst [vmem:[#allocation3 + $0x160] sm:$0xff] %v5378
    %5443 = vst [vmem:[#allocation3 + $0x168] sm:$0xff] %v5379
    %5444 = vst [vmem:[#allocation3 + $0x170] sm:$0xff] %v5380
    %5445 = vst [vmem:[#allocation3 + $0x178] sm:$0xff] %v5381
    %5446 = vst [vmem:[#allocation3 + $0x180] sm:$0xff] %v5382
    %5447 = vst [vmem:[#allocation3 + $0x188] sm:$0xff] %v5383
    %5448 = vst [vmem:[#allocation3 + $0x190] sm:$0xff] %v5384
    %5449 = vst [vmem:[#allocation3 + $0x198] sm:$0xff] %v5385
    %5450 = vst [vmem:[#allocation3 + $0x1a0] sm:$0xff] %v5386
    %5451 = vst [vmem:[#allocation3 + $0x1a8] sm:$0xff] %v5387
    %5452 = vst [vmem:[#allocation3 + $0x1b0] sm:$0xff] %v5388
    %5453 = vst [vmem:[#allocation3 + $0x1b8] sm:$0xff] %v5389
    %5454 = vst [vmem:[#allocation3 + $0x1c0] sm:$0xff] %v5390
    %5455 = vst [vmem:[#allocation3 + $0x1c8] sm:$0xff] %v5391
    %5456 = vst [vmem:[#allocation3 + $0x1d0] sm:$0xff] %v5392
    %5457 = vst [vmem:[#allocation3 + $0x1d8] sm:$0xff] %v5393
    %5458 = vst [vmem:[#allocation3 + $0x1e0] sm:$0xff] %v5394
    %5459 = vst [vmem:[#allocation3 + $0x1e8] sm:$0xff] %v5395
    %5460 = vst [vmem:[#allocation3 + $0x1f0] sm:$0xff] %v5396
    %5461 = vst [vmem:[#allocation3 + $0x1f8] sm:$0xff] %v5397
    %5462 = vst [vmem:[#allocation4] sm:$0xff] 0.0
    %5463 = vst [vmem:[#allocation4 + $0x8] sm:$0xff] 0.0
    %5464 = vst [vmem:[#allocation5] sm:$0xff] 0.0
    %5465 = vst [vmem:[#allocation5 + $0x8] sm:$0xff] 0.0
    %5466 = vst [vmem:[#allocation6] sm:$0xff] 0.0
    %5467 = vst [vmem:[#allocation6 + $0x8] sm:$0xff] 0.0
    %5468 = vst [vmem:[#allocation7] sm:$0xff] 0.0
    %5469 = vst [vmem:[#allocation7 + $0x8] sm:$0xff] 0.0
    loop: start=0, step=1, limit=8
    $region106: #{custom_bert_forward.3} parent=1 // loop_pre_header
      _
    $region107: #{custom_bert_forward.3} parent=1 // loop_header
      %s5471 = sphi 0, %s5475
      %p5472 = scmp.ge.s32.totalorder %s5471, 8
    $region108: #{custom_bert_forward.3} parent=1 // loop_header_branch
      %5474 = sbr.rel (%p5472) target = $region112
    $region109: #{custom_bert_forward.3} parent=1 // loop_body
      %s5476 = smul.u32 %s5471, 8
      %s5477 = sshra.s32 %s5476, 3
      %s5478 = sand.u32 %s5476, 7
      %s5479 = smul.u32 %s5477, 8
      %s5480 = smul.addr %s5479, 8
      %s5481 = scalar_lea.vmem [#allocation2], %s5480
      %v5482 = vld [vmem:[%s5481] sm:$0xff]
      %v5483 = vld [vmem:[%s5481 + $0x8] sm:$0xff]
      %v5484 = vld [vmem:[%s5481 + $0x10] sm:$0xff]
      %v5485 = vld [vmem:[%s5481 + $0x18] sm:$0xff]
      %v5486 = vld [vmem:[%s5481 + $0x20] sm:$0xff]
      %v5487 = vld [vmem:[%s5481 + $0x28] sm:$0xff]
      %v5488 = vld [vmem:[%s5481 + $0x30] sm:$0xff]
      %v5489 = vld [vmem:[%s5481 + $0x38] sm:$0xff]
      %v5490 = vld [vmem:[#allocation4] sm:$0xff]
      %v5491 = vld [vmem:[#allocation4 + $0x8] sm:$0xff]
      %v5492 = vpack.c.bf16 %v5490, %v5490
      %v5493 = vpack.c.bf16 %v5491, %v5491
      %v5494 = vld [vmem:[#allocation12] sm:$0xff]
      %v5495 = vld [vmem:[#allocation12 + $0x8] sm:$0xff]
      %v5496 = vld [vmem:[#allocation12 + $0x10] sm:$0xff]
      %v5497 = vld [vmem:[#allocation12 + $0x18] sm:$0xff]
      %v5498 = vld [vmem:[#allocation12 + $0x20] sm:$0xff]
      %v5499 = vld [vmem:[#allocation12 + $0x28] sm:$0xff]
      %v5500 = vld [vmem:[#allocation12 + $0x30] sm:$0xff]
      %v5501 = vld [vmem:[#allocation12 + $0x38] sm:$0xff]
      %v5502 = vld [vmem:[#allocation12 + $0x40] sm:$0xff]
      %v5503 = vld [vmem:[#allocation12 + $0x48] sm:$0xff]
      %v5504 = vld [vmem:[#allocation12 + $0x50] sm:$0xff]
      %v5505 = vld [vmem:[#allocation12 + $0x58] sm:$0xff]
      %v5506 = vld [vmem:[#allocation12 + $0x60] sm:$0xff]
      %v5507 = vld [vmem:[#allocation12 + $0x68] sm:$0xff]
      %v5508 = vld [vmem:[#allocation12 + $0x70] sm:$0xff]
      %v5509 = vld [vmem:[#allocation12 + $0x78] sm:$0xff]
      %v5510 = vld [vmem:[#allocation12 + $0x80] sm:$0xff]
      %v5511 = vld [vmem:[#allocation12 + $0x88] sm:$0xff]
      %v5512 = vld [vmem:[#allocation12 + $0x90] sm:$0xff]
      %v5513 = vld [vmem:[#allocation12 + $0x98] sm:$0xff]
      %v5514 = vld [vmem:[#allocation12 + $0xa0] sm:$0xff]
      %v5515 = vld [vmem:[#allocation12 + $0xa8] sm:$0xff]
      %v5516 = vld [vmem:[#allocation12 + $0xb0] sm:$0xff]
      %v5517 = vld [vmem:[#allocation12 + $0xb8] sm:$0xff]
      %v5518 = vld [vmem:[#allocation12 + $0xc0] sm:$0xff]
      %v5519 = vld [vmem:[#allocation12 + $0xc8] sm:$0xff]
      %v5520 = vld [vmem:[#allocation12 + $0xd0] sm:$0xff]
      %v5521 = vld [vmem:[#allocation12 + $0xd8] sm:$0xff]
      %v5522 = vld [vmem:[#allocation12 + $0xe0] sm:$0xff]
      %v5523 = vld [vmem:[#allocation12 + $0xe8] sm:$0xff]
      %v5524 = vld [vmem:[#allocation12 + $0xf0] sm:$0xff]
      %v5525 = vld [vmem:[#allocation12 + $0xf8] sm:$0xff]
      %v5526 = vld [vmem:[#allocation12 + $0x100] sm:$0xff]
      %v5527 = vld [vmem:[#allocation12 + $0x108] sm:$0xff]
      %v5528 = vld [vmem:[#allocation12 + $0x110] sm:$0xff]
      %v5529 = vld [vmem:[#allocation12 + $0x118] sm:$0xff]
      %v5530 = vld [vmem:[#allocation12 + $0x120] sm:$0xff]
      %v5531 = vld [vmem:[#allocation12 + $0x128] sm:$0xff]
      %v5532 = vld [vmem:[#allocation12 + $0x130] sm:$0xff]
      %v5533 = vld [vmem:[#allocation12 + $0x138] sm:$0xff]
      %v5534 = vld [vmem:[#allocation12 + $0x140] sm:$0xff]
      %v5535 = vld [vmem:[#allocation12 + $0x148] sm:$0xff]
      %v5536 = vld [vmem:[#allocation12 + $0x150] sm:$0xff]
      %v5537 = vld [vmem:[#allocation12 + $0x158] sm:$0xff]
      %v5538 = vld [vmem:[#allocation12 + $0x160] sm:$0xff]
      %v5539 = vld [vmem:[#allocation12 + $0x168] sm:$0xff]
      %v5540 = vld [vmem:[#allocation12 + $0x170] sm:$0xff]
      %v5541 = vld [vmem:[#allocation12 + $0x178] sm:$0xff]
      %v5542 = vld [vmem:[#allocation12 + $0x180] sm:$0xff]
      %v5543 = vld [vmem:[#allocation12 + $0x188] sm:$0xff]
      %v5544 = vld [vmem:[#allocation12 + $0x190] sm:$0xff]
      %v5545 = vld [vmem:[#allocation12 + $0x198] sm:$0xff]
      %v5546 = vld [vmem:[#allocation12 + $0x1a0] sm:$0xff]
      %v5547 = vld [vmem:[#allocation12 + $0x1a8] sm:$0xff]
      %v5548 = vld [vmem:[#allocation12 + $0x1b0] sm:$0xff]
      %v5549 = vld [vmem:[#allocation12 + $0x1b8] sm:$0xff]
      %v5550 = vld [vmem:[#allocation12 + $0x1c0] sm:$0xff]
      %v5551 = vld [vmem:[#allocation12 + $0x1c8] sm:$0xff]
      %v5552 = vld [vmem:[#allocation12 + $0x1d0] sm:$0xff]
      %v5553 = vld [vmem:[#allocation12 + $0x1d8] sm:$0xff]
      %v5554 = vld [vmem:[#allocation12 + $0x1e0] sm:$0xff]
      %v5555 = vld [vmem:[#allocation12 + $0x1e8] sm:$0xff]
      %v5556 = vld [vmem:[#allocation12 + $0x1f0] sm:$0xff]
      %v5557 = vld [vmem:[#allocation12 + $0x1f8] sm:$0xff]
      %v5558 = vld [vmem:[#allocation12 + $0x200] sm:$0xff]
      %v5559 = vld [vmem:[#allocation12 + $0x208] sm:$0xff]
      %v5560 = vld [vmem:[#allocation12 + $0x210] sm:$0xff]
      %v5561 = vld [vmem:[#allocation12 + $0x218] sm:$0xff]
      %v5562 = vld [vmem:[#allocation12 + $0x220] sm:$0xff]
      %v5563 = vld [vmem:[#allocation12 + $0x228] sm:$0xff]
      %v5564 = vld [vmem:[#allocation12 + $0x230] sm:$0xff]
      %v5565 = vld [vmem:[#allocation12 + $0x238] sm:$0xff]
      %v5566 = vld [vmem:[#allocation12 + $0x240] sm:$0xff]
      %v5567 = vld [vmem:[#allocation12 + $0x248] sm:$0xff]
      %v5568 = vld [vmem:[#allocation12 + $0x250] sm:$0xff]
      %v5569 = vld [vmem:[#allocation12 + $0x258] sm:$0xff]
      %v5570 = vld [vmem:[#allocation12 + $0x260] sm:$0xff]
      %v5571 = vld [vmem:[#allocation12 + $0x268] sm:$0xff]
      %v5572 = vld [vmem:[#allocation12 + $0x270] sm:$0xff]
      %v5573 = vld [vmem:[#allocation12 + $0x278] sm:$0xff]
      %v5574 = vld [vmem:[#allocation12 + $0x280] sm:$0xff]
      %v5575 = vld [vmem:[#allocation12 + $0x288] sm:$0xff]
      %v5576 = vld [vmem:[#allocation12 + $0x290] sm:$0xff]
      %v5577 = vld [vmem:[#allocation12 + $0x298] sm:$0xff]
      %v5578 = vld [vmem:[#allocation12 + $0x2a0] sm:$0xff]
      %v5579 = vld [vmem:[#allocation12 + $0x2a8] sm:$0xff]
      %v5580 = vld [vmem:[#allocation12 + $0x2b0] sm:$0xff]
      %v5581 = vld [vmem:[#allocation12 + $0x2b8] sm:$0xff]
      %v5582 = vld [vmem:[#allocation12 + $0x2c0] sm:$0xff]
      %v5583 = vld [vmem:[#allocation12 + $0x2c8] sm:$0xff]
      %v5584 = vld [vmem:[#allocation12 + $0x2d0] sm:$0xff]
      %v5585 = vld [vmem:[#allocation12 + $0x2d8] sm:$0xff]
      %v5586 = vld [vmem:[#allocation12 + $0x2e0] sm:$0xff]
      %v5587 = vld [vmem:[#allocation12 + $0x2e8] sm:$0xff]
      %v5588 = vld [vmem:[#allocation12 + $0x2f0] sm:$0xff]
      %v5589 = vld [vmem:[#allocation12 + $0x2f8] sm:$0xff]
      %v5590 = vld [vmem:[#allocation12 + $0x300] sm:$0xff]
      %v5591 = vld [vmem:[#allocation12 + $0x308] sm:$0xff]
      %v5592 = vld [vmem:[#allocation12 + $0x310] sm:$0xff]
      %v5593 = vld [vmem:[#allocation12 + $0x318] sm:$0xff]
      %v5594 = vld [vmem:[#allocation12 + $0x320] sm:$0xff]
      %v5595 = vld [vmem:[#allocation12 + $0x328] sm:$0xff]
      %v5596 = vld [vmem:[#allocation12 + $0x330] sm:$0xff]
      %v5597 = vld [vmem:[#allocation12 + $0x338] sm:$0xff]
      %v5598 = vld [vmem:[#allocation12 + $0x340] sm:$0xff]
      %v5599 = vld [vmem:[#allocation12 + $0x348] sm:$0xff]
      %v5600 = vld [vmem:[#allocation12 + $0x350] sm:$0xff]
      %v5601 = vld [vmem:[#allocation12 + $0x358] sm:$0xff]
      %v5602 = vld [vmem:[#allocation12 + $0x360] sm:$0xff]
      %v5603 = vld [vmem:[#allocation12 + $0x368] sm:$0xff]
      %v5604 = vld [vmem:[#allocation12 + $0x370] sm:$0xff]
      %v5605 = vld [vmem:[#allocation12 + $0x378] sm:$0xff]
      %v5606 = vld [vmem:[#allocation12 + $0x380] sm:$0xff]
      %v5607 = vld [vmem:[#allocation12 + $0x388] sm:$0xff]
      %v5608 = vld [vmem:[#allocation12 + $0x390] sm:$0xff]
      %v5609 = vld [vmem:[#allocation12 + $0x398] sm:$0xff]
      %v5610 = vld [vmem:[#allocation12 + $0x3a0] sm:$0xff]
      %v5611 = vld [vmem:[#allocation12 + $0x3a8] sm:$0xff]
      %v5612 = vld [vmem:[#allocation12 + $0x3b0] sm:$0xff]
      %v5613 = vld [vmem:[#allocation12 + $0x3b8] sm:$0xff]
      %v5614 = vld [vmem:[#allocation12 + $0x3c0] sm:$0xff]
      %v5615 = vld [vmem:[#allocation12 + $0x3c8] sm:$0xff]
      %v5616 = vld [vmem:[#allocation12 + $0x3d0] sm:$0xff]
      %v5617 = vld [vmem:[#allocation12 + $0x3d8] sm:$0xff]
      %v5618 = vld [vmem:[#allocation12 + $0x3e0] sm:$0xff]
      %v5619 = vld [vmem:[#allocation12 + $0x3e8] sm:$0xff]
      %v5620 = vld [vmem:[#allocation12 + $0x3f0] sm:$0xff]
      %v5621 = vld [vmem:[#allocation12 + $0x3f8] sm:$0xff]
      %v5750 = vunpack.c.l.b16 %v5494
      %v5751 = vunpack.c.h.b16 %v5494
      %v5752 = vunpack.c.l.b16 %v5495
      %v5753 = vunpack.c.h.b16 %v5495
      %v5754 = vunpack.c.l.b16 %v5496
      %v5755 = vunpack.c.h.b16 %v5496
      %v5756 = vunpack.c.l.b16 %v5497
      %v5757 = vunpack.c.h.b16 %v5497
      %v5758 = vunpack.c.l.b16 %v5498
      %v5759 = vunpack.c.h.b16 %v5498
      %v5760 = vunpack.c.l.b16 %v5499
      %v5761 = vunpack.c.h.b16 %v5499
      %v5762 = vunpack.c.l.b16 %v5500
      %v5763 = vunpack.c.h.b16 %v5500
      %v5764 = vunpack.c.l.b16 %v5501
      %v5765 = vunpack.c.h.b16 %v5501
      %v5766 = vunpack.c.l.b16 %v5502
      %v5767 = vunpack.c.h.b16 %v5502
      %v5768 = vunpack.c.l.b16 %v5503
      %v5769 = vunpack.c.h.b16 %v5503
      %v5770 = vunpack.c.l.b16 %v5504
      %v5771 = vunpack.c.h.b16 %v5504
      %v5772 = vunpack.c.l.b16 %v5505
      %v5773 = vunpack.c.h.b16 %v5505
      %v5774 = vunpack.c.l.b16 %v5506
      %v5775 = vunpack.c.h.b16 %v5506
      %v5776 = vunpack.c.l.b16 %v5507
      %v5777 = vunpack.c.h.b16 %v5507
      %v5778 = vunpack.c.l.b16 %v5508
      %v5779 = vunpack.c.h.b16 %v5508
      %v5780 = vunpack.c.l.b16 %v5509
      %v5781 = vunpack.c.h.b16 %v5509
      %v5782 = vunpack.c.l.b16 %v5510
      %v5783 = vunpack.c.h.b16 %v5510
      %v5784 = vunpack.c.l.b16 %v5511
      %v5785 = vunpack.c.h.b16 %v5511
      %v5786 = vunpack.c.l.b16 %v5512
      %v5787 = vunpack.c.h.b16 %v5512
      %v5788 = vunpack.c.l.b16 %v5513
      %v5789 = vunpack.c.h.b16 %v5513
      %v5790 = vunpack.c.l.b16 %v5514
      %v5791 = vunpack.c.h.b16 %v5514
      %v5792 = vunpack.c.l.b16 %v5515
      %v5793 = vunpack.c.h.b16 %v5515
      %v5794 = vunpack.c.l.b16 %v5516
      %v5795 = vunpack.c.h.b16 %v5516
      %v5796 = vunpack.c.l.b16 %v5517
      %v5797 = vunpack.c.h.b16 %v5517
      %v5798 = vunpack.c.l.b16 %v5518
      %v5799 = vunpack.c.h.b16 %v5518
      %v5800 = vunpack.c.l.b16 %v5519
      %v5801 = vunpack.c.h.b16 %v5519
      %v5802 = vunpack.c.l.b16 %v5520
      %v5803 = vunpack.c.h.b16 %v5520
      %v5804 = vunpack.c.l.b16 %v5521
      %v5805 = vunpack.c.h.b16 %v5521
      %v5806 = vunpack.c.l.b16 %v5522
      %v5807 = vunpack.c.h.b16 %v5522
      %v5808 = vunpack.c.l.b16 %v5523
      %v5809 = vunpack.c.h.b16 %v5523
      %v5810 = vunpack.c.l.b16 %v5524
      %v5811 = vunpack.c.h.b16 %v5524
      %v5812 = vunpack.c.l.b16 %v5525
      %v5813 = vunpack.c.h.b16 %v5525
      %v5814 = vunpack.c.l.b16 %v5526
      %v5815 = vunpack.c.h.b16 %v5526
      %v5816 = vunpack.c.l.b16 %v5527
      %v5817 = vunpack.c.h.b16 %v5527
      %v5818 = vunpack.c.l.b16 %v5528
      %v5819 = vunpack.c.h.b16 %v5528
      %v5820 = vunpack.c.l.b16 %v5529
      %v5821 = vunpack.c.h.b16 %v5529
      %v5822 = vunpack.c.l.b16 %v5530
      %v5823 = vunpack.c.h.b16 %v5530
      %v5824 = vunpack.c.l.b16 %v5531
      %v5825 = vunpack.c.h.b16 %v5531
      %v5826 = vunpack.c.l.b16 %v5532
      %v5827 = vunpack.c.h.b16 %v5532
      %v5828 = vunpack.c.l.b16 %v5533
      %v5829 = vunpack.c.h.b16 %v5533
      %v5830 = vunpack.c.l.b16 %v5534
      %v5831 = vunpack.c.h.b16 %v5534
      %v5832 = vunpack.c.l.b16 %v5535
      %v5833 = vunpack.c.h.b16 %v5535
      %v5834 = vunpack.c.l.b16 %v5536
      %v5835 = vunpack.c.h.b16 %v5536
      %v5836 = vunpack.c.l.b16 %v5537
      %v5837 = vunpack.c.h.b16 %v5537
      %v5838 = vunpack.c.l.b16 %v5538
      %v5839 = vunpack.c.h.b16 %v5538
      %v5840 = vunpack.c.l.b16 %v5539
      %v5841 = vunpack.c.h.b16 %v5539
      %v5842 = vunpack.c.l.b16 %v5540
      %v5843 = vunpack.c.h.b16 %v5540
      %v5844 = vunpack.c.l.b16 %v5541
      %v5845 = vunpack.c.h.b16 %v5541
      %v5846 = vunpack.c.l.b16 %v5542
      %v5847 = vunpack.c.h.b16 %v5542
      %v5848 = vunpack.c.l.b16 %v5543
      %v5849 = vunpack.c.h.b16 %v5543
      %v5850 = vunpack.c.l.b16 %v5544
      %v5851 = vunpack.c.h.b16 %v5544
      %v5852 = vunpack.c.l.b16 %v5545
      %v5853 = vunpack.c.h.b16 %v5545
      %v5854 = vunpack.c.l.b16 %v5546
      %v5855 = vunpack.c.h.b16 %v5546
      %v5856 = vunpack.c.l.b16 %v5547
      %v5857 = vunpack.c.h.b16 %v5547
      %v5858 = vunpack.c.l.b16 %v5548
      %v5859 = vunpack.c.h.b16 %v5548
      %v5860 = vunpack.c.l.b16 %v5549
      %v5861 = vunpack.c.h.b16 %v5549
      %v5862 = vunpack.c.l.b16 %v5550
      %v5863 = vunpack.c.h.b16 %v5550
      %v5864 = vunpack.c.l.b16 %v5551
      %v5865 = vunpack.c.h.b16 %v5551
      %v5866 = vunpack.c.l.b16 %v5552
      %v5867 = vunpack.c.h.b16 %v5552
      %v5868 = vunpack.c.l.b16 %v5553
      %v5869 = vunpack.c.h.b16 %v5553
      %v5870 = vunpack.c.l.b16 %v5554
      %v5871 = vunpack.c.h.b16 %v5554
      %v5872 = vunpack.c.l.b16 %v5555
      %v5873 = vunpack.c.h.b16 %v5555
      %v5874 = vunpack.c.l.b16 %v5556
      %v5875 = vunpack.c.h.b16 %v5556
      %v5876 = vunpack.c.l.b16 %v5557
      %v5877 = vunpack.c.h.b16 %v5557
      %v5878 = vunpack.c.l.b16 %v5558
      %v5879 = vunpack.c.h.b16 %v5558
      %v5880 = vunpack.c.l.b16 %v5559
      %v5881 = vunpack.c.h.b16 %v5559
      %v5882 = vunpack.c.l.b16 %v5560
      %v5883 = vunpack.c.h.b16 %v5560
      %v5884 = vunpack.c.l.b16 %v5561
      %v5885 = vunpack.c.h.b16 %v5561
      %v5886 = vunpack.c.l.b16 %v5562
      %v5887 = vunpack.c.h.b16 %v5562
      %v5888 = vunpack.c.l.b16 %v5563
      %v5889 = vunpack.c.h.b16 %v5563
      %v5890 = vunpack.c.l.b16 %v5564
      %v5891 = vunpack.c.h.b16 %v5564
      %v5892 = vunpack.c.l.b16 %v5565
      %v5893 = vunpack.c.h.b16 %v5565
      %v5894 = vunpack.c.l.b16 %v5566
      %v5895 = vunpack.c.h.b16 %v5566
      %v5896 = vunpack.c.l.b16 %v5567
      %v5897 = vunpack.c.h.b16 %v5567
      %v5898 = vunpack.c.l.b16 %v5568
      %v5899 = vunpack.c.h.b16 %v5568
      %v5900 = vunpack.c.l.b16 %v5569
      %v5901 = vunpack.c.h.b16 %v5569
      %v5902 = vunpack.c.l.b16 %v5570
      %v5903 = vunpack.c.h.b16 %v5570
      %v5904 = vunpack.c.l.b16 %v5571
      %v5905 = vunpack.c.h.b16 %v5571
      %v5906 = vunpack.c.l.b16 %v5572
      %v5907 = vunpack.c.h.b16 %v5572
      %v5908 = vunpack.c.l.b16 %v5573
      %v5909 = vunpack.c.h.b16 %v5573
      %v5910 = vunpack.c.l.b16 %v5574
      %v5911 = vunpack.c.h.b16 %v5574
      %v5912 = vunpack.c.l.b16 %v5575
      %v5913 = vunpack.c.h.b16 %v5575
      %v5914 = vunpack.c.l.b16 %v5576
      %v5915 = vunpack.c.h.b16 %v5576
      %v5916 = vunpack.c.l.b16 %v5577
      %v5917 = vunpack.c.h.b16 %v5577
      %v5918 = vunpack.c.l.b16 %v5578
      %v5919 = vunpack.c.h.b16 %v5578
      %v5920 = vunpack.c.l.b16 %v5579
      %v5921 = vunpack.c.h.b16 %v5579
      %v5922 = vunpack.c.l.b16 %v5580
      %v5923 = vunpack.c.h.b16 %v5580
      %v5924 = vunpack.c.l.b16 %v5581
      %v5925 = vunpack.c.h.b16 %v5581
      %v5926 = vunpack.c.l.b16 %v5582
      %v5927 = vunpack.c.h.b16 %v5582
      %v5928 = vunpack.c.l.b16 %v5583
      %v5929 = vunpack.c.h.b16 %v5583
      %v5930 = vunpack.c.l.b16 %v5584
      %v5931 = vunpack.c.h.b16 %v5584
      %v5932 = vunpack.c.l.b16 %v5585
      %v5933 = vunpack.c.h.b16 %v5585
      %v5934 = vunpack.c.l.b16 %v5586
      %v5935 = vunpack.c.h.b16 %v5586
      %v5936 = vunpack.c.l.b16 %v5587
      %v5937 = vunpack.c.h.b16 %v5587
      %v5938 = vunpack.c.l.b16 %v5588
      %v5939 = vunpack.c.h.b16 %v5588
      %v5940 = vunpack.c.l.b16 %v5589
      %v5941 = vunpack.c.h.b16 %v5589
      %v5942 = vunpack.c.l.b16 %v5590
      %v5943 = vunpack.c.h.b16 %v5590
      %v5944 = vunpack.c.l.b16 %v5591
      %v5945 = vunpack.c.h.b16 %v5591
      %v5946 = vunpack.c.l.b16 %v5592
      %v5947 = vunpack.c.h.b16 %v5592
      %v5948 = vunpack.c.l.b16 %v5593
      %v5949 = vunpack.c.h.b16 %v5593
      %v5950 = vunpack.c.l.b16 %v5594
      %v5951 = vunpack.c.h.b16 %v5594
      %v5952 = vunpack.c.l.b16 %v5595
      %v5953 = vunpack.c.h.b16 %v5595
      %v5954 = vunpack.c.l.b16 %v5596
      %v5955 = vunpack.c.h.b16 %v5596
      %v5956 = vunpack.c.l.b16 %v5597
      %v5957 = vunpack.c.h.b16 %v5597
      %v5958 = vunpack.c.l.b16 %v5598
      %v5959 = vunpack.c.h.b16 %v5598
      %v5960 = vunpack.c.l.b16 %v5599
      %v5961 = vunpack.c.h.b16 %v5599
      %v5962 = vunpack.c.l.b16 %v5600
      %v5963 = vunpack.c.h.b16 %v5600
      %v5964 = vunpack.c.l.b16 %v5601
      %v5965 = vunpack.c.h.b16 %v5601
      %v5966 = vunpack.c.l.b16 %v5602
      %v5967 = vunpack.c.h.b16 %v5602
      %v5968 = vunpack.c.l.b16 %v5603
      %v5969 = vunpack.c.h.b16 %v5603
      %v5970 = vunpack.c.l.b16 %v5604
      %v5971 = vunpack.c.h.b16 %v5604
      %v5972 = vunpack.c.l.b16 %v5605
      %v5973 = vunpack.c.h.b16 %v5605
      %v5974 = vunpack.c.l.b16 %v5606
      %v5975 = vunpack.c.h.b16 %v5606
      %v5976 = vunpack.c.l.b16 %v5607
      %v5977 = vunpack.c.h.b16 %v5607
      %v5978 = vunpack.c.l.b16 %v5608
      %v5979 = vunpack.c.h.b16 %v5608
      %v5980 = vunpack.c.l.b16 %v5609
      %v5981 = vunpack.c.h.b16 %v5609
      %v5982 = vunpack.c.l.b16 %v5610
      %v5983 = vunpack.c.h.b16 %v5610
      %v5984 = vunpack.c.l.b16 %v5611
      %v5985 = vunpack.c.h.b16 %v5611
      %v5986 = vunpack.c.l.b16 %v5612
      %v5987 = vunpack.c.h.b16 %v5612
      %v5988 = vunpack.c.l.b16 %v5613
      %v5989 = vunpack.c.h.b16 %v5613
      %v5990 = vunpack.c.l.b16 %v5614
      %v5991 = vunpack.c.h.b16 %v5614
      %v5992 = vunpack.c.l.b16 %v5615
      %v5993 = vunpack.c.h.b16 %v5615
      %v5994 = vunpack.c.l.b16 %v5616
      %v5995 = vunpack.c.h.b16 %v5616
      %v5996 = vunpack.c.l.b16 %v5617
      %v5997 = vunpack.c.h.b16 %v5617
      %v5998 = vunpack.c.l.b16 %v5618
      %v5999 = vunpack.c.h.b16 %v5618
      %v6000 = vunpack.c.l.b16 %v5619
      %v6001 = vunpack.c.h.b16 %v5619
      %v6002 = vunpack.c.l.b16 %v5620
      %v6003 = vunpack.c.h.b16 %v5620
      %v6004 = vunpack.c.l.b16 %v5621
      %v6005 = vunpack.c.h.b16 %v5621
      %v6006 = vpack.c.b16 %v5758, %v5750
      %v6007 = vpack.c.b16 %v5759, %v5751
      %v6008 = vpack.c.b16 %v5760, %v5752
      %v6009 = vpack.c.b16 %v5761, %v5753
      %v6010 = vpack.c.b16 %v5762, %v5754
      %v6011 = vpack.c.b16 %v5763, %v5755
      %v6012 = vpack.c.b16 %v5764, %v5756
      %v6013 = vpack.c.b16 %v5765, %v5757
      %v6014 = vpack.c.b16 %v5774, %v5766
      %v6015 = vpack.c.b16 %v5775, %v5767
      %v6016 = vpack.c.b16 %v5776, %v5768
      %v6017 = vpack.c.b16 %v5777, %v5769
      %v6018 = vpack.c.b16 %v5778, %v5770
      %v6019 = vpack.c.b16 %v5779, %v5771
      %v6020 = vpack.c.b16 %v5780, %v5772
      %v6021 = vpack.c.b16 %v5781, %v5773
      %v6022 = vpack.c.b16 %v5790, %v5782
      %v6023 = vpack.c.b16 %v5791, %v5783
      %v6024 = vpack.c.b16 %v5792, %v5784
      %v6025 = vpack.c.b16 %v5793, %v5785
      %v6026 = vpack.c.b16 %v5794, %v5786
      %v6027 = vpack.c.b16 %v5795, %v5787
      %v6028 = vpack.c.b16 %v5796, %v5788
      %v6029 = vpack.c.b16 %v5797, %v5789
      %v6030 = vpack.c.b16 %v5806, %v5798
      %v6031 = vpack.c.b16 %v5807, %v5799
      %v6032 = vpack.c.b16 %v5808, %v5800
      %v6033 = vpack.c.b16 %v5809, %v5801
      %v6034 = vpack.c.b16 %v5810, %v5802
      %v6035 = vpack.c.b16 %v5811, %v5803
      %v6036 = vpack.c.b16 %v5812, %v5804
      %v6037 = vpack.c.b16 %v5813, %v5805
      %v6038 = vpack.c.b16 %v5822, %v5814
      %v6039 = vpack.c.b16 %v5823, %v5815
      %v6040 = vpack.c.b16 %v5824, %v5816
      %v6041 = vpack.c.b16 %v5825, %v5817
      %v6042 = vpack.c.b16 %v5826, %v5818
      %v6043 = vpack.c.b16 %v5827, %v5819
      %v6044 = vpack.c.b16 %v5828, %v5820
      %v6045 = vpack.c.b16 %v5829, %v5821
      %v6046 = vpack.c.b16 %v5838, %v5830
      %v6047 = vpack.c.b16 %v5839, %v5831
      %v6048 = vpack.c.b16 %v5840, %v5832
      %v6049 = vpack.c.b16 %v5841, %v5833
      %v6050 = vpack.c.b16 %v5842, %v5834
      %v6051 = vpack.c.b16 %v5843, %v5835
      %v6052 = vpack.c.b16 %v5844, %v5836
      %v6053 = vpack.c.b16 %v5845, %v5837
      %v6054 = vpack.c.b16 %v5854, %v5846
      %v6055 = vpack.c.b16 %v5855, %v5847
      %v6056 = vpack.c.b16 %v5856, %v5848
      %v6057 = vpack.c.b16 %v5857, %v5849
      %v6058 = vpack.c.b16 %v5858, %v5850
      %v6059 = vpack.c.b16 %v5859, %v5851
      %v6060 = vpack.c.b16 %v5860, %v5852
      %v6061 = vpack.c.b16 %v5861, %v5853
      %v6062 = vpack.c.b16 %v5870, %v5862
      %v6063 = vpack.c.b16 %v5871, %v5863
      %v6064 = vpack.c.b16 %v5872, %v5864
      %v6065 = vpack.c.b16 %v5873, %v5865
      %v6066 = vpack.c.b16 %v5874, %v5866
      %v6067 = vpack.c.b16 %v5875, %v5867
      %v6068 = vpack.c.b16 %v5876, %v5868
      %v6069 = vpack.c.b16 %v5877, %v5869
      %v6070 = vpack.c.b16 %v5886, %v5878
      %v6071 = vpack.c.b16 %v5887, %v5879
      %v6072 = vpack.c.b16 %v5888, %v5880
      %v6073 = vpack.c.b16 %v5889, %v5881
      %v6074 = vpack.c.b16 %v5890, %v5882
      %v6075 = vpack.c.b16 %v5891, %v5883
      %v6076 = vpack.c.b16 %v5892, %v5884
      %v6077 = vpack.c.b16 %v5893, %v5885
      %v6078 = vpack.c.b16 %v5902, %v5894
      %v6079 = vpack.c.b16 %v5903, %v5895
      %v6080 = vpack.c.b16 %v5904, %v5896
      %v6081 = vpack.c.b16 %v5905, %v5897
      %v6082 = vpack.c.b16 %v5906, %v5898
      %v6083 = vpack.c.b16 %v5907, %v5899
      %v6084 = vpack.c.b16 %v5908, %v5900
      %v6085 = vpack.c.b16 %v5909, %v5901
      %v6086 = vpack.c.b16 %v5918, %v5910
      %v6087 = vpack.c.b16 %v5919, %v5911
      %v6088 = vpack.c.b16 %v5920, %v5912
      %v6089 = vpack.c.b16 %v5921, %v5913
      %v6090 = vpack.c.b16 %v5922, %v5914
      %v6091 = vpack.c.b16 %v5923, %v5915
      %v6092 = vpack.c.b16 %v5924, %v5916
      %v6093 = vpack.c.b16 %v5925, %v5917
      %v6094 = vpack.c.b16 %v5934, %v5926
      %v6095 = vpack.c.b16 %v5935, %v5927
      %v6096 = vpack.c.b16 %v5936, %v5928
      %v6097 = vpack.c.b16 %v5937, %v5929
      %v6098 = vpack.c.b16 %v5938, %v5930
      %v6099 = vpack.c.b16 %v5939, %v5931
      %v6100 = vpack.c.b16 %v5940, %v5932
      %v6101 = vpack.c.b16 %v5941, %v5933
      %v6102 = vpack.c.b16 %v5950, %v5942
      %v6103 = vpack.c.b16 %v5951, %v5943
      %v6104 = vpack.c.b16 %v5952, %v5944
      %v6105 = vpack.c.b16 %v5953, %v5945
      %v6106 = vpack.c.b16 %v5954, %v5946
      %v6107 = vpack.c.b16 %v5955, %v5947
      %v6108 = vpack.c.b16 %v5956, %v5948
      %v6109 = vpack.c.b16 %v5957, %v5949
      %v6110 = vpack.c.b16 %v5966, %v5958
      %v6111 = vpack.c.b16 %v5967, %v5959
      %v6112 = vpack.c.b16 %v5968, %v5960
      %v6113 = vpack.c.b16 %v5969, %v5961
      %v6114 = vpack.c.b16 %v5970, %v5962
      %v6115 = vpack.c.b16 %v5971, %v5963
      %v6116 = vpack.c.b16 %v5972, %v5964
      %v6117 = vpack.c.b16 %v5973, %v5965
      %v6118 = vpack.c.b16 %v5982, %v5974
      %v6119 = vpack.c.b16 %v5983, %v5975
      %v6120 = vpack.c.b16 %v5984, %v5976
      %v6121 = vpack.c.b16 %v5985, %v5977
      %v6122 = vpack.c.b16 %v5986, %v5978
      %v6123 = vpack.c.b16 %v5987, %v5979
      %v6124 = vpack.c.b16 %v5988, %v5980
      %v6125 = vpack.c.b16 %v5989, %v5981
      %v6126 = vpack.c.b16 %v5998, %v5990
      %v6127 = vpack.c.b16 %v5999, %v5991
      %v6128 = vpack.c.b16 %v6000, %v5992
      %v6129 = vpack.c.b16 %v6001, %v5993
      %v6130 = vpack.c.b16 %v6002, %v5994
      %v6131 = vpack.c.b16 %v6003, %v5995
      %v6132 = vpack.c.b16 %v6004, %v5996
      %v6133 = vpack.c.b16 %v6005, %v5997
      %6262 = vmatpush.bf16.msra.mxu0 %v6062
      %6263 = vmatpush.bf16.msra.mxu0 %v6054
      %6264 = vmatpush.bf16.msra.mxu0 %v6046
      %6265 = vmatpush.bf16.msra.mxu0 %v6038
      %6266 = vmatpush.bf16.msra.mxu0 %v6030
      %6267 = vmatpush.bf16.msra.mxu0 %v6022
      %6268 = vmatpush.bf16.msra.mxu0 %v6014
      %6269 = vmatpush.bf16.msra.mxu0 %v6006
      %6270 = vmatmul.bf16.gmra.mxu0 %v5492
      %v6271 = vpop.f32.mrf.mxu0
      %v6272 = vadd.f32 0.0, %v6271
      %v6273 = vpop.f32.mrf.mxu0
      %6274 = vdwg.mxu0
      %6275 = vmatpush.bf16.msra.mxu0 %v6126
      %6276 = vmatpush.bf16.msra.mxu0 %v6118
      %6277 = vmatpush.bf16.msra.mxu0 %v6110
      %6278 = vmatpush.bf16.msra.mxu0 %v6102
      %6279 = vmatpush.bf16.msra.mxu0 %v6094
      %6280 = vmatpush.bf16.msra.mxu0 %v6086
      %6281 = vmatpush.bf16.msra.mxu0 %v6078
      %6282 = vmatpush.bf16.msra.mxu0 %v6070
      %6283 = vmatmul.bf16.gmra.mxu0 %v5493
      %v6284 = vpop.f32.mrf.mxu0
      %v6285 = vadd.f32 %v6272, %v6284
      %v6286 = vpop.f32.mrf.mxu0
      %6287 = vdwg.mxu0
      %6288 = vmatpush.bf16.msra.mxu0 %v6063
      %6289 = vmatpush.bf16.msra.mxu0 %v6055
      %6290 = vmatpush.bf16.msra.mxu0 %v6047
      %6291 = vmatpush.bf16.msra.mxu0 %v6039
      %6292 = vmatpush.bf16.msra.mxu0 %v6031
      %6293 = vmatpush.bf16.msra.mxu0 %v6023
      %6294 = vmatpush.bf16.msra.mxu0 %v6015
      %6295 = vmatpush.bf16.msra.mxu0 %v6007
      %6296 = vmatmul.bf16.gmra.mxu0 %v5492
      %v6297 = vpop.f32.mrf.mxu0
      %v6298 = vadd.f32 0.0, %v6297
      %v6299 = vpop.f32.mrf.mxu0
      %6300 = vdwg.mxu0
      %6301 = vmatpush.bf16.msra.mxu0 %v6127
      %6302 = vmatpush.bf16.msra.mxu0 %v6119
      %6303 = vmatpush.bf16.msra.mxu0 %v6111
      %6304 = vmatpush.bf16.msra.mxu0 %v6103
      %6305 = vmatpush.bf16.msra.mxu0 %v6095
      %6306 = vmatpush.bf16.msra.mxu0 %v6087
      %6307 = vmatpush.bf16.msra.mxu0 %v6079
      %6308 = vmatpush.bf16.msra.mxu0 %v6071
      %6309 = vmatmul.bf16.gmra.mxu0 %v5493
      %v6310 = vpop.f32.mrf.mxu0
      %v6311 = vadd.f32 %v6298, %v6310
      %v6312 = vpop.f32.mrf.mxu0
      %6313 = vdwg.mxu0
      %6314 = vmatpush.bf16.msra.mxu0 %v6064
      %6315 = vmatpush.bf16.msra.mxu0 %v6056
      %6316 = vmatpush.bf16.msra.mxu0 %v6048
      %6317 = vmatpush.bf16.msra.mxu0 %v6040
      %6318 = vmatpush.bf16.msra.mxu0 %v6032
      %6319 = vmatpush.bf16.msra.mxu0 %v6024
      %6320 = vmatpush.bf16.msra.mxu0 %v6016
      %6321 = vmatpush.bf16.msra.mxu0 %v6008
      %6322 = vmatmul.bf16.gmra.mxu0 %v5492
      %v6323 = vpop.f32.mrf.mxu0
      %v6324 = vadd.f32 0.0, %v6323
      %v6325 = vpop.f32.mrf.mxu0
      %6326 = vdwg.mxu0
      %6327 = vmatpush.bf16.msra.mxu0 %v6128
      %6328 = vmatpush.bf16.msra.mxu0 %v6120
      %6329 = vmatpush.bf16.msra.mxu0 %v6112
      %6330 = vmatpush.bf16.msra.mxu0 %v6104
      %6331 = vmatpush.bf16.msra.mxu0 %v6096
      %6332 = vmatpush.bf16.msra.mxu0 %v6088
      %6333 = vmatpush.bf16.msra.mxu0 %v6080
      %6334 = vmatpush.bf16.msra.mxu0 %v6072
      %6335 = vmatmul.bf16.gmra.mxu0 %v5493
      %v6336 = vpop.f32.mrf.mxu0
      %v6337 = vadd.f32 %v6324, %v6336
      %v6338 = vpop.f32.mrf.mxu0
      %6339 = vdwg.mxu0
      %6340 = vmatpush.bf16.msra.mxu0 %v6065
      %6341 = vmatpush.bf16.msra.mxu0 %v6057
      %6342 = vmatpush.bf16.msra.mxu0 %v6049
      %6343 = vmatpush.bf16.msra.mxu0 %v6041
      %6344 = vmatpush.bf16.msra.mxu0 %v6033
      %6345 = vmatpush.bf16.msra.mxu0 %v6025
      %6346 = vmatpush.bf16.msra.mxu0 %v6017
      %6347 = vmatpush.bf16.msra.mxu0 %v6009
      %6348 = vmatmul.bf16.gmra.mxu0 %v5492
      %v6349 = vpop.f32.mrf.mxu0
      %v6350 = vadd.f32 0.0, %v6349
      %v6351 = vpop.f32.mrf.mxu0
      %6352 = vdwg.mxu0
      %6353 = vmatpush.bf16.msra.mxu0 %v6129
      %6354 = vmatpush.bf16.msra.mxu0 %v6121
      %6355 = vmatpush.bf16.msra.mxu0 %v6113
      %6356 = vmatpush.bf16.msra.mxu0 %v6105
      %6357 = vmatpush.bf16.msra.mxu0 %v6097
      %6358 = vmatpush.bf16.msra.mxu0 %v6089
      %6359 = vmatpush.bf16.msra.mxu0 %v6081
      %6360 = vmatpush.bf16.msra.mxu0 %v6073
      %6361 = vmatmul.bf16.gmra.mxu0 %v5493
      %v6362 = vpop.f32.mrf.mxu0
      %v6363 = vadd.f32 %v6350, %v6362
      %v6364 = vpop.f32.mrf.mxu0
      %6365 = vdwg.mxu0
      %6366 = vmatpush.bf16.msra.mxu0 %v6066
      %6367 = vmatpush.bf16.msra.mxu0 %v6058
      %6368 = vmatpush.bf16.msra.mxu0 %v6050
      %6369 = vmatpush.bf16.msra.mxu0 %v6042
      %6370 = vmatpush.bf16.msra.mxu0 %v6034
      %6371 = vmatpush.bf16.msra.mxu0 %v6026
      %6372 = vmatpush.bf16.msra.mxu0 %v6018
      %6373 = vmatpush.bf16.msra.mxu0 %v6010
      %6374 = vmatmul.bf16.gmra.mxu0 %v5492
      %v6375 = vpop.f32.mrf.mxu0
      %v6376 = vadd.f32 0.0, %v6375
      %v6377 = vpop.f32.mrf.mxu0
      %6378 = vdwg.mxu0
      %6379 = vmatpush.bf16.msra.mxu0 %v6130
      %6380 = vmatpush.bf16.msra.mxu0 %v6122
      %6381 = vmatpush.bf16.msra.mxu0 %v6114
      %6382 = vmatpush.bf16.msra.mxu0 %v6106
      %6383 = vmatpush.bf16.msra.mxu0 %v6098
      %6384 = vmatpush.bf16.msra.mxu0 %v6090
      %6385 = vmatpush.bf16.msra.mxu0 %v6082
      %6386 = vmatpush.bf16.msra.mxu0 %v6074
      %6387 = vmatmul.bf16.gmra.mxu0 %v5493
      %v6388 = vpop.f32.mrf.mxu0
      %v6389 = vadd.f32 %v6376, %v6388
      %v6390 = vpop.f32.mrf.mxu0
      %6391 = vdwg.mxu0
      %6392 = vmatpush.bf16.msra.mxu0 %v6067
      %6393 = vmatpush.bf16.msra.mxu0 %v6059
      %6394 = vmatpush.bf16.msra.mxu0 %v6051
      %6395 = vmatpush.bf16.msra.mxu0 %v6043
      %6396 = vmatpush.bf16.msra.mxu0 %v6035
      %6397 = vmatpush.bf16.msra.mxu0 %v6027
      %6398 = vmatpush.bf16.msra.mxu0 %v6019
      %6399 = vmatpush.bf16.msra.mxu0 %v6011
      %6400 = vmatmul.bf16.gmra.mxu0 %v5492
      %v6401 = vpop.f32.mrf.mxu0
      %v6402 = vadd.f32 0.0, %v6401
      %v6403 = vpop.f32.mrf.mxu0
      %6404 = vdwg.mxu0
      %6405 = vmatpush.bf16.msra.mxu0 %v6131
      %6406 = vmatpush.bf16.msra.mxu0 %v6123
      %6407 = vmatpush.bf16.msra.mxu0 %v6115
      %6408 = vmatpush.bf16.msra.mxu0 %v6107
      %6409 = vmatpush.bf16.msra.mxu0 %v6099
      %6410 = vmatpush.bf16.msra.mxu0 %v6091
      %6411 = vmatpush.bf16.msra.mxu0 %v6083
      %6412 = vmatpush.bf16.msra.mxu0 %v6075
      %6413 = vmatmul.bf16.gmra.mxu0 %v5493
      %v6414 = vpop.f32.mrf.mxu0
      %v6415 = vadd.f32 %v6402, %v6414
      %v6416 = vpop.f32.mrf.mxu0
      %6417 = vdwg.mxu0
      %6418 = vmatpush.bf16.msra.mxu0 %v6068
      %6419 = vmatpush.bf16.msra.mxu0 %v6060
      %6420 = vmatpush.bf16.msra.mxu0 %v6052
      %6421 = vmatpush.bf16.msra.mxu0 %v6044
      %6422 = vmatpush.bf16.msra.mxu0 %v6036
      %6423 = vmatpush.bf16.msra.mxu0 %v6028
      %6424 = vmatpush.bf16.msra.mxu0 %v6020
      %6425 = vmatpush.bf16.msra.mxu0 %v6012
      %6426 = vmatmul.bf16.gmra.mxu0 %v5492
      %v6427 = vpop.f32.mrf.mxu0
      %v6428 = vadd.f32 0.0, %v6427
      %v6429 = vpop.f32.mrf.mxu0
      %6430 = vdwg.mxu0
      %6431 = vmatpush.bf16.msra.mxu0 %v6132
      %6432 = vmatpush.bf16.msra.mxu0 %v6124
      %6433 = vmatpush.bf16.msra.mxu0 %v6116
      %6434 = vmatpush.bf16.msra.mxu0 %v6108
      %6435 = vmatpush.bf16.msra.mxu0 %v6100
      %6436 = vmatpush.bf16.msra.mxu0 %v6092
      %6437 = vmatpush.bf16.msra.mxu0 %v6084
      %6438 = vmatpush.bf16.msra.mxu0 %v6076
      %6439 = vmatmul.bf16.gmra.mxu0 %v5493
      %v6440 = vpop.f32.mrf.mxu0
      %v6441 = vadd.f32 %v6428, %v6440
      %v6442 = vpop.f32.mrf.mxu0
      %6443 = vdwg.mxu0
      %6444 = vmatpush.bf16.msra.mxu0 %v6069
      %6445 = vmatpush.bf16.msra.mxu0 %v6061
      %6446 = vmatpush.bf16.msra.mxu0 %v6053
      %6447 = vmatpush.bf16.msra.mxu0 %v6045
      %6448 = vmatpush.bf16.msra.mxu0 %v6037
      %6449 = vmatpush.bf16.msra.mxu0 %v6029
      %6450 = vmatpush.bf16.msra.mxu0 %v6021
      %6451 = vmatpush.bf16.msra.mxu0 %v6013
      %6452 = vmatmul.bf16.gmra.mxu0 %v5492
      %v6453 = vpop.f32.mrf.mxu0
      %v6454 = vadd.f32 0.0, %v6453
      %v6455 = vpop.f32.mrf.mxu0
      %6456 = vdwg.mxu0
      %6457 = vmatpush.bf16.msra.mxu0 %v6133
      %6458 = vmatpush.bf16.msra.mxu0 %v6125
      %6459 = vmatpush.bf16.msra.mxu0 %v6117
      %6460 = vmatpush.bf16.msra.mxu0 %v6109
      %6461 = vmatpush.bf16.msra.mxu0 %v6101
      %6462 = vmatpush.bf16.msra.mxu0 %v6093
      %6463 = vmatpush.bf16.msra.mxu0 %v6085
      %6464 = vmatpush.bf16.msra.mxu0 %v6077
      %6465 = vmatmul.bf16.gmra.mxu0 %v5493
      %v6466 = vpop.f32.mrf.mxu0
      %v6467 = vadd.f32 %v6454, %v6466
      %v6468 = vpop.f32.mrf.mxu0
      %6469 = vdwg.mxu0
      %v6470 = vadd.f32 %v5482, %v6285
      %v6471 = vadd.f32 %v5483, %v6311
      %v6472 = vadd.f32 %v5484, %v6337
      %v6473 = vadd.f32 %v5485, %v6363
      %v6474 = vadd.f32 %v5486, %v6389
      %v6475 = vadd.f32 %v5487, %v6415
      %v6476 = vadd.f32 %v5488, %v6441
      %v6477 = vadd.f32 %v5489, %v6467
      %v6478 = vld [vmem:[#allocation5] sm:$0xff]
      %v6479 = vld [vmem:[#allocation5 + $0x8] sm:$0xff]
      %v6480 = vxor.u32 %v6470, 2147483648
      %v6481 = vxor.u32 %v6471, 2147483648
      %v6482 = vmul.f32 %v6480, 1.442695
      %v6483 = vpow.pop %v6482
      %v6484 = vmul.f32 %v6481, 1.442695
      %v6485 = vpow.pop %v6484
      %v6486 = vadd.f32 %v6483, 1.0
      %v6487 = vadd.f32 %v6485, 1.0
      %v6488 = vrcp.pop %v6486
      %v6489 = vmul.f32 %v6486, %v6488
      %v6490 = vsub.f32 1.0, %v6489
      %v6491 = vmul.f32 %v6488, %v6490
      %v6492 = vadd.f32 %v6488, %v6491
      %vm6493 = vweird.f32 %v6486
      %vm6494 = vweird.f32 %v6488
      %vm6495 = vmor %vm6493, %vm6494
      %v6496 = vsel %vm6495, %v6488, %v6492
      %v6497 = vand.u32 2147483647, %v6486
      %vm6498 = vcmp.eq.f32.partialorder %v6497, 8.507059e+37
      %v6499 = vand.u32 %v6486, 2147483648
      %v6500 = vor.u32 1.1754944e-38, %v6499
      %v6501 = vsel %vm6498, %v6500, %v6496
      %v6502 = vmul.f32 1.0, %v6501
      %v6503 = vrcp.pop %v6487
      %v6504 = vmul.f32 %v6487, %v6503
      %v6505 = vsub.f32 1.0, %v6504
      %v6506 = vmul.f32 %v6503, %v6505
      %v6507 = vadd.f32 %v6503, %v6506
      %vm6508 = vweird.f32 %v6487
      %vm6509 = vweird.f32 %v6503
      %vm6510 = vmor %vm6508, %vm6509
      %v6511 = vsel %vm6510, %v6503, %v6507
      %v6512 = vand.u32 2147483647, %v6487
      %vm6513 = vcmp.eq.f32.partialorder %v6512, 8.507059e+37
      %v6514 = vand.u32 %v6487, 2147483648
      %v6515 = vor.u32 1.1754944e-38, %v6514
      %v6516 = vsel %vm6513, %v6515, %v6511
      %v6517 = vmul.f32 1.0, %v6516
      %v6518 = vxor.u32 %v6472, 2147483648
      %v6519 = vxor.u32 %v6473, 2147483648
      %v6520 = vmul.f32 %v6518, 1.442695
      %v6521 = vpow.pop %v6520
      %v6522 = vmul.f32 %v6519, 1.442695
      %v6523 = vpow.pop %v6522
      %v6524 = vadd.f32 %v6521, 1.0
      %v6525 = vadd.f32 %v6523, 1.0
      %v6526 = vrcp.pop %v6524
      %v6527 = vmul.f32 %v6524, %v6526
      %v6528 = vsub.f32 1.0, %v6527
      %v6529 = vmul.f32 %v6526, %v6528
      %v6530 = vadd.f32 %v6526, %v6529
      %vm6531 = vweird.f32 %v6524
      %vm6532 = vweird.f32 %v6526
      %vm6533 = vmor %vm6531, %vm6532
      %v6534 = vsel %vm6533, %v6526, %v6530
      %v6535 = vand.u32 2147483647, %v6524
      %vm6536 = vcmp.eq.f32.partialorder %v6535, 8.507059e+37
      %v6537 = vand.u32 %v6524, 2147483648
      %v6538 = vor.u32 1.1754944e-38, %v6537
      %v6539 = vsel %vm6536, %v6538, %v6534
      %v6540 = vmul.f32 1.0, %v6539
      %v6541 = vrcp.pop %v6525
      %v6542 = vmul.f32 %v6525, %v6541
      %v6543 = vsub.f32 1.0, %v6542
      %v6544 = vmul.f32 %v6541, %v6543
      %v6545 = vadd.f32 %v6541, %v6544
      %vm6546 = vweird.f32 %v6525
      %vm6547 = vweird.f32 %v6541
      %vm6548 = vmor %vm6546, %vm6547
      %v6549 = vsel %vm6548, %v6541, %v6545
      %v6550 = vand.u32 2147483647, %v6525
      %vm6551 = vcmp.eq.f32.partialorder %v6550, 8.507059e+37
      %v6552 = vand.u32 %v6525, 2147483648
      %v6553 = vor.u32 1.1754944e-38, %v6552
      %v6554 = vsel %vm6551, %v6553, %v6549
      %v6555 = vmul.f32 1.0, %v6554
      %v6556 = vtanh.pop %v6474
      %v6557 = vtanh.pop %v6475
      %v6558 = vxor.u32 %v6476, 2147483648
      %v6559 = vxor.u32 %v6477, 2147483648
      %v6560 = vmul.f32 %v6558, 1.442695
      %v6561 = vpow.pop %v6560
      %v6562 = vmul.f32 %v6559, 1.442695
      %v6563 = vpow.pop %v6562
      %v6564 = vadd.f32 %v6561, 1.0
      %v6565 = vadd.f32 %v6563, 1.0
      %v6566 = vrcp.pop %v6564
      %v6567 = vmul.f32 %v6564, %v6566
      %v6568 = vsub.f32 1.0, %v6567
      %v6569 = vmul.f32 %v6566, %v6568
      %v6570 = vadd.f32 %v6566, %v6569
      %vm6571 = vweird.f32 %v6564
      %vm6572 = vweird.f32 %v6566
      %vm6573 = vmor %vm6571, %vm6572
      %v6574 = vsel %vm6573, %v6566, %v6570
      %v6575 = vand.u32 2147483647, %v6564
      %vm6576 = vcmp.eq.f32.partialorder %v6575, 8.507059e+37
      %v6577 = vand.u32 %v6564, 2147483648
      %v6578 = vor.u32 1.1754944e-38, %v6577
      %v6579 = vsel %vm6576, %v6578, %v6574
      %v6580 = vmul.f32 1.0, %v6579
      %v6581 = vrcp.pop %v6565
      %v6582 = vmul.f32 %v6565, %v6581
      %v6583 = vsub.f32 1.0, %v6582
      %v6584 = vmul.f32 %v6581, %v6583
      %v6585 = vadd.f32 %v6581, %v6584
      %vm6586 = vweird.f32 %v6565
      %vm6587 = vweird.f32 %v6581
      %vm6588 = vmor %vm6586, %vm6587
      %v6589 = vsel %vm6588, %v6581, %v6585
      %v6590 = vand.u32 2147483647, %v6565
      %vm6591 = vcmp.eq.f32.partialorder %v6590, 8.507059e+37
      %v6592 = vand.u32 %v6565, 2147483648
      %v6593 = vor.u32 1.1754944e-38, %v6592
      %v6594 = vsel %vm6591, %v6593, %v6589
      %v6595 = vmul.f32 1.0, %v6594
      %v6596 = vmul.f32 %v6540, %v6478
      %v6597 = vmul.f32 %v6555, %v6479
      %v6598 = vmul.f32 %v6502, %v6556
      %v6599 = vmul.f32 %v6517, %v6557
      %v6600 = vadd.f32 %v6596, %v6598
      %v6601 = vadd.f32 %v6597, %v6599
      %v6602 = vtanh.pop %v6600
      %v6603 = vtanh.pop %v6601
      %v6604 = vmul.f32 %v6580, %v6602
      %v6605 = vmul.f32 %v6595, %v6603
      %6606 = vst [vmem:[#allocation4] sm:$0xff] %v6604
      %6607 = vst [vmem:[#allocation4 + $0x8] sm:$0xff] %v6605
      %6608 = vst [vmem:[#allocation5] sm:$0xff] %v6600
      %6609 = vst [vmem:[#allocation5 + $0x8] sm:$0xff] %v6601
      %s6610 = ssub.s32 7, %s5471
      %s6611 = smul.u32 %s6610, 8
      %s6612 = sshra.s32 %s6611, 3
      %s6613 = sand.u32 %s6611, 7
      %s6614 = smul.u32 %s6612, 8
      %s6615 = smul.addr %s6614, 8
      %s6616 = scalar_lea.vmem [#allocation3], %s6615
      %v6617 = vld [vmem:[%s6616] sm:$0xff]
      %v6618 = vld [vmem:[%s6616 + $0x8] sm:$0xff]
      %v6619 = vld [vmem:[%s6616 + $0x10] sm:$0xff]
      %v6620 = vld [vmem:[%s6616 + $0x18] sm:$0xff]
      %v6621 = vld [vmem:[%s6616 + $0x20] sm:$0xff]
      %v6622 = vld [vmem:[%s6616 + $0x28] sm:$0xff]
      %v6623 = vld [vmem:[%s6616 + $0x30] sm:$0xff]
      %v6624 = vld [vmem:[%s6616 + $0x38] sm:$0xff]
      %v6625 = vld [vmem:[#allocation6] sm:$0xff]
      %v6626 = vld [vmem:[#allocation6 + $0x8] sm:$0xff]
      %v6627 = vpack.c.bf16 %v6625, %v6625
      %v6628 = vpack.c.bf16 %v6626, %v6626
      %v6629 = vld [vmem:[#allocation16] sm:$0xff]
      %v6630 = vld [vmem:[#allocation16 + $0x8] sm:$0xff]
      %v6631 = vld [vmem:[#allocation16 + $0x10] sm:$0xff]
      %v6632 = vld [vmem:[#allocation16 + $0x18] sm:$0xff]
      %v6633 = vld [vmem:[#allocation16 + $0x20] sm:$0xff]
      %v6634 = vld [vmem:[#allocation16 + $0x28] sm:$0xff]
      %v6635 = vld [vmem:[#allocation16 + $0x30] sm:$0xff]
      %v6636 = vld [vmem:[#allocation16 + $0x38] sm:$0xff]
      %v6637 = vld [vmem:[#allocation16 + $0x40] sm:$0xff]
      %v6638 = vld [vmem:[#allocation16 + $0x48] sm:$0xff]
      %v6639 = vld [vmem:[#allocation16 + $0x50] sm:$0xff]
      %v6640 = vld [vmem:[#allocation16 + $0x58] sm:$0xff]
      %v6641 = vld [vmem:[#allocation16 + $0x60] sm:$0xff]
      %v6642 = vld [vmem:[#allocation16 + $0x68] sm:$0xff]
      %v6643 = vld [vmem:[#allocation16 + $0x70] sm:$0xff]
      %v6644 = vld [vmem:[#allocation16 + $0x78] sm:$0xff]
      %v6645 = vld [vmem:[#allocation16 + $0x80] sm:$0xff]
      %v6646 = vld [vmem:[#allocation16 + $0x88] sm:$0xff]
      %v6647 = vld [vmem:[#allocation16 + $0x90] sm:$0xff]
      %v6648 = vld [vmem:[#allocation16 + $0x98] sm:$0xff]
      %v6649 = vld [vmem:[#allocation16 + $0xa0] sm:$0xff]
      %v6650 = vld [vmem:[#allocation16 + $0xa8] sm:$0xff]
      %v6651 = vld [vmem:[#allocation16 + $0xb0] sm:$0xff]
      %v6652 = vld [vmem:[#allocation16 + $0xb8] sm:$0xff]
      %v6653 = vld [vmem:[#allocation16 + $0xc0] sm:$0xff]
      %v6654 = vld [vmem:[#allocation16 + $0xc8] sm:$0xff]
      %v6655 = vld [vmem:[#allocation16 + $0xd0] sm:$0xff]
      %v6656 = vld [vmem:[#allocation16 + $0xd8] sm:$0xff]
      %v6657 = vld [vmem:[#allocation16 + $0xe0] sm:$0xff]
      %v6658 = vld [vmem:[#allocation16 + $0xe8] sm:$0xff]
      %v6659 = vld [vmem:[#allocation16 + $0xf0] sm:$0xff]
      %v6660 = vld [vmem:[#allocation16 + $0xf8] sm:$0xff]
      %v6661 = vld [vmem:[#allocation16 + $0x100] sm:$0xff]
      %v6662 = vld [vmem:[#allocation16 + $0x108] sm:$0xff]
      %v6663 = vld [vmem:[#allocation16 + $0x110] sm:$0xff]
      %v6664 = vld [vmem:[#allocation16 + $0x118] sm:$0xff]
      %v6665 = vld [vmem:[#allocation16 + $0x120] sm:$0xff]
      %v6666 = vld [vmem:[#allocation16 + $0x128] sm:$0xff]
      %v6667 = vld [vmem:[#allocation16 + $0x130] sm:$0xff]
      %v6668 = vld [vmem:[#allocation16 + $0x138] sm:$0xff]
      %v6669 = vld [vmem:[#allocation16 + $0x140] sm:$0xff]
      %v6670 = vld [vmem:[#allocation16 + $0x148] sm:$0xff]
      %v6671 = vld [vmem:[#allocation16 + $0x150] sm:$0xff]
      %v6672 = vld [vmem:[#allocation16 + $0x158] sm:$0xff]
      %v6673 = vld [vmem:[#allocation16 + $0x160] sm:$0xff]
      %v6674 = vld [vmem:[#allocation16 + $0x168] sm:$0xff]
      %v6675 = vld [vmem:[#allocation16 + $0x170] sm:$0xff]
      %v6676 = vld [vmem:[#allocation16 + $0x178] sm:$0xff]
      %v6677 = vld [vmem:[#allocation16 + $0x180] sm:$0xff]
      %v6678 = vld [vmem:[#allocation16 + $0x188] sm:$0xff]
      %v6679 = vld [vmem:[#allocation16 + $0x190] sm:$0xff]
      %v6680 = vld [vmem:[#allocation16 + $0x198] sm:$0xff]
      %v6681 = vld [vmem:[#allocation16 + $0x1a0] sm:$0xff]
      %v6682 = vld [vmem:[#allocation16 + $0x1a8] sm:$0xff]
      %v6683 = vld [vmem:[#allocation16 + $0x1b0] sm:$0xff]
      %v6684 = vld [vmem:[#allocation16 + $0x1b8] sm:$0xff]
      %v6685 = vld [vmem:[#allocation16 + $0x1c0] sm:$0xff]
      %v6686 = vld [vmem:[#allocation16 + $0x1c8] sm:$0xff]
      %v6687 = vld [vmem:[#allocation16 + $0x1d0] sm:$0xff]
      %v6688 = vld [vmem:[#allocation16 + $0x1d8] sm:$0xff]
      %v6689 = vld [vmem:[#allocation16 + $0x1e0] sm:$0xff]
      %v6690 = vld [vmem:[#allocation16 + $0x1e8] sm:$0xff]
      %v6691 = vld [vmem:[#allocation16 + $0x1f0] sm:$0xff]
      %v6692 = vld [vmem:[#allocation16 + $0x1f8] sm:$0xff]
      %v6693 = vld [vmem:[#allocation16 + $0x200] sm:$0xff]
      %v6694 = vld [vmem:[#allocation16 + $0x208] sm:$0xff]
      %v6695 = vld [vmem:[#allocation16 + $0x210] sm:$0xff]
      %v6696 = vld [vmem:[#allocation16 + $0x218] sm:$0xff]
      %v6697 = vld [vmem:[#allocation16 + $0x220] sm:$0xff]
      %v6698 = vld [vmem:[#allocation16 + $0x228] sm:$0xff]
      %v6699 = vld [vmem:[#allocation16 + $0x230] sm:$0xff]
      %v6700 = vld [vmem:[#allocation16 + $0x238] sm:$0xff]
      %v6701 = vld [vmem:[#allocation16 + $0x240] sm:$0xff]
      %v6702 = vld [vmem:[#allocation16 + $0x248] sm:$0xff]
      %v6703 = vld [vmem:[#allocation16 + $0x250] sm:$0xff]
      %v6704 = vld [vmem:[#allocation16 + $0x258] sm:$0xff]
      %v6705 = vld [vmem:[#allocation16 + $0x260] sm:$0xff]
      %v6706 = vld [vmem:[#allocation16 + $0x268] sm:$0xff]
      %v6707 = vld [vmem:[#allocation16 + $0x270] sm:$0xff]
      %v6708 = vld [vmem:[#allocation16 + $0x278] sm:$0xff]
      %v6709 = vld [vmem:[#allocation16 + $0x280] sm:$0xff]
      %v6710 = vld [vmem:[#allocation16 + $0x288] sm:$0xff]
      %v6711 = vld [vmem:[#allocation16 + $0x290] sm:$0xff]
      %v6712 = vld [vmem:[#allocation16 + $0x298] sm:$0xff]
      %v6713 = vld [vmem:[#allocation16 + $0x2a0] sm:$0xff]
      %v6714 = vld [vmem:[#allocation16 + $0x2a8] sm:$0xff]
      %v6715 = vld [vmem:[#allocation16 + $0x2b0] sm:$0xff]
      %v6716 = vld [vmem:[#allocation16 + $0x2b8] sm:$0xff]
      %v6717 = vld [vmem:[#allocation16 + $0x2c0] sm:$0xff]
      %v6718 = vld [vmem:[#allocation16 + $0x2c8] sm:$0xff]
      %v6719 = vld [vmem:[#allocation16 + $0x2d0] sm:$0xff]
      %v6720 = vld [vmem:[#allocation16 + $0x2d8] sm:$0xff]
      %v6721 = vld [vmem:[#allocation16 + $0x2e0] sm:$0xff]
      %v6722 = vld [vmem:[#allocation16 + $0x2e8] sm:$0xff]
      %v6723 = vld [vmem:[#allocation16 + $0x2f0] sm:$0xff]
      %v6724 = vld [vmem:[#allocation16 + $0x2f8] sm:$0xff]
      %v6725 = vld [vmem:[#allocation16 + $0x300] sm:$0xff]
      %v6726 = vld [vmem:[#allocation16 + $0x308] sm:$0xff]
      %v6727 = vld [vmem:[#allocation16 + $0x310] sm:$0xff]
      %v6728 = vld [vmem:[#allocation16 + $0x318] sm:$0xff]
      %v6729 = vld [vmem:[#allocation16 + $0x320] sm:$0xff]
      %v6730 = vld [vmem:[#allocation16 + $0x328] sm:$0xff]
      %v6731 = vld [vmem:[#allocation16 + $0x330] sm:$0xff]
      %v6732 = vld [vmem:[#allocation16 + $0x338] sm:$0xff]
      %v6733 = vld [vmem:[#allocation16 + $0x340] sm:$0xff]
      %v6734 = vld [vmem:[#allocation16 + $0x348] sm:$0xff]
      %v6735 = vld [vmem:[#allocation16 + $0x350] sm:$0xff]
      %v6736 = vld [vmem:[#allocation16 + $0x358] sm:$0xff]
      %v6737 = vld [vmem:[#allocation16 + $0x360] sm:$0xff]
      %v6738 = vld [vmem:[#allocation16 + $0x368] sm:$0xff]
      %v6739 = vld [vmem:[#allocation16 + $0x370] sm:$0xff]
      %v6740 = vld [vmem:[#allocation16 + $0x378] sm:$0xff]
      %v6741 = vld [vmem:[#allocation16 + $0x380] sm:$0xff]
      %v6742 = vld [vmem:[#allocation16 + $0x388] sm:$0xff]
      %v6743 = vld [vmem:[#allocation16 + $0x390] sm:$0xff]
      %v6744 = vld [vmem:[#allocation16 + $0x398] sm:$0xff]
      %v6745 = vld [vmem:[#allocation16 + $0x3a0] sm:$0xff]
      %v6746 = vld [vmem:[#allocation16 + $0x3a8] sm:$0xff]
      %v6747 = vld [vmem:[#allocation16 + $0x3b0] sm:$0xff]
      %v6748 = vld [vmem:[#allocation16 + $0x3b8] sm:$0xff]
      %v6749 = vld [vmem:[#allocation16 + $0x3c0] sm:$0xff]
      %v6750 = vld [vmem:[#allocation16 + $0x3c8] sm:$0xff]
      %v6751 = vld [vmem:[#allocation16 + $0x3d0] sm:$0xff]
      %v6752 = vld [vmem:[#allocation16 + $0x3d8] sm:$0xff]
      %v6753 = vld [vmem:[#allocation16 + $0x3e0] sm:$0xff]
      %v6754 = vld [vmem:[#allocation16 + $0x3e8] sm:$0xff]
      %v6755 = vld [vmem:[#allocation16 + $0x3f0] sm:$0xff]
      %v6756 = vld [vmem:[#allocation16 + $0x3f8] sm:$0xff]
      %v6885 = vunpack.c.l.b16 %v6629
      %v6886 = vunpack.c.h.b16 %v6629
      %v6887 = vunpack.c.l.b16 %v6630
      %v6888 = vunpack.c.h.b16 %v6630
      %v6889 = vunpack.c.l.b16 %v6631
      %v6890 = vunpack.c.h.b16 %v6631
      %v6891 = vunpack.c.l.b16 %v6632
      %v6892 = vunpack.c.h.b16 %v6632
      %v6893 = vunpack.c.l.b16 %v6633
      %v6894 = vunpack.c.h.b16 %v6633
      %v6895 = vunpack.c.l.b16 %v6634
      %v6896 = vunpack.c.h.b16 %v6634
      %v6897 = vunpack.c.l.b16 %v6635
      %v6898 = vunpack.c.h.b16 %v6635
      %v6899 = vunpack.c.l.b16 %v6636
      %v6900 = vunpack.c.h.b16 %v6636
      %v6901 = vunpack.c.l.b16 %v6637
      %v6902 = vunpack.c.h.b16 %v6637
      %v6903 = vunpack.c.l.b16 %v6638
      %v6904 = vunpack.c.h.b16 %v6638
      %v6905 = vunpack.c.l.b16 %v6639
      %v6906 = vunpack.c.h.b16 %v6639
      %v6907 = vunpack.c.l.b16 %v6640
      %v6908 = vunpack.c.h.b16 %v6640
      %v6909 = vunpack.c.l.b16 %v6641
      %v6910 = vunpack.c.h.b16 %v6641
      %v6911 = vunpack.c.l.b16 %v6642
      %v6912 = vunpack.c.h.b16 %v6642
      %v6913 = vunpack.c.l.b16 %v6643
      %v6914 = vunpack.c.h.b16 %v6643
      %v6915 = vunpack.c.l.b16 %v6644
      %v6916 = vunpack.c.h.b16 %v6644
      %v6917 = vunpack.c.l.b16 %v6645
      %v6918 = vunpack.c.h.b16 %v6645
      %v6919 = vunpack.c.l.b16 %v6646
      %v6920 = vunpack.c.h.b16 %v6646
      %v6921 = vunpack.c.l.b16 %v6647
      %v6922 = vunpack.c.h.b16 %v6647
      %v6923 = vunpack.c.l.b16 %v6648
      %v6924 = vunpack.c.h.b16 %v6648
      %v6925 = vunpack.c.l.b16 %v6649
      %v6926 = vunpack.c.h.b16 %v6649
      %v6927 = vunpack.c.l.b16 %v6650
      %v6928 = vunpack.c.h.b16 %v6650
      %v6929 = vunpack.c.l.b16 %v6651
      %v6930 = vunpack.c.h.b16 %v6651
      %v6931 = vunpack.c.l.b16 %v6652
      %v6932 = vunpack.c.h.b16 %v6652
      %v6933 = vunpack.c.l.b16 %v6653
      %v6934 = vunpack.c.h.b16 %v6653
      %v6935 = vunpack.c.l.b16 %v6654
      %v6936 = vunpack.c.h.b16 %v6654
      %v6937 = vunpack.c.l.b16 %v6655
      %v6938 = vunpack.c.h.b16 %v6655
      %v6939 = vunpack.c.l.b16 %v6656
      %v6940 = vunpack.c.h.b16 %v6656
      %v6941 = vunpack.c.l.b16 %v6657
      %v6942 = vunpack.c.h.b16 %v6657
      %v6943 = vunpack.c.l.b16 %v6658
      %v6944 = vunpack.c.h.b16 %v6658
      %v6945 = vunpack.c.l.b16 %v6659
      %v6946 = vunpack.c.h.b16 %v6659
      %v6947 = vunpack.c.l.b16 %v6660
      %v6948 = vunpack.c.h.b16 %v6660
      %v6949 = vunpack.c.l.b16 %v6661
      %v6950 = vunpack.c.h.b16 %v6661
      %v6951 = vunpack.c.l.b16 %v6662
      %v6952 = vunpack.c.h.b16 %v6662
      %v6953 = vunpack.c.l.b16 %v6663
      %v6954 = vunpack.c.h.b16 %v6663
      %v6955 = vunpack.c.l.b16 %v6664
      %v6956 = vunpack.c.h.b16 %v6664
      %v6957 = vunpack.c.l.b16 %v6665
      %v6958 = vunpack.c.h.b16 %v6665
      %v6959 = vunpack.c.l.b16 %v6666
      %v6960 = vunpack.c.h.b16 %v6666
      %v6961 = vunpack.c.l.b16 %v6667
      %v6962 = vunpack.c.h.b16 %v6667
      %v6963 = vunpack.c.l.b16 %v6668
      %v6964 = vunpack.c.h.b16 %v6668
      %v6965 = vunpack.c.l.b16 %v6669
      %v6966 = vunpack.c.h.b16 %v6669
      %v6967 = vunpack.c.l.b16 %v6670
      %v6968 = vunpack.c.h.b16 %v6670
      %v6969 = vunpack.c.l.b16 %v6671
      %v6970 = vunpack.c.h.b16 %v6671
      %v6971 = vunpack.c.l.b16 %v6672
      %v6972 = vunpack.c.h.b16 %v6672
      %v6973 = vunpack.c.l.b16 %v6673
      %v6974 = vunpack.c.h.b16 %v6673
      %v6975 = vunpack.c.l.b16 %v6674
      %v6976 = vunpack.c.h.b16 %v6674
      %v6977 = vunpack.c.l.b16 %v6675
      %v6978 = vunpack.c.h.b16 %v6675
      %v6979 = vunpack.c.l.b16 %v6676
      %v6980 = vunpack.c.h.b16 %v6676
      %v6981 = vunpack.c.l.b16 %v6677
      %v6982 = vunpack.c.h.b16 %v6677
      %v6983 = vunpack.c.l.b16 %v6678
      %v6984 = vunpack.c.h.b16 %v6678
      %v6985 = vunpack.c.l.b16 %v6679
      %v6986 = vunpack.c.h.b16 %v6679
      %v6987 = vunpack.c.l.b16 %v6680
      %v6988 = vunpack.c.h.b16 %v6680
      %v6989 = vunpack.c.l.b16 %v6681
      %v6990 = vunpack.c.h.b16 %v6681
      %v6991 = vunpack.c.l.b16 %v6682
      %v6992 = vunpack.c.h.b16 %v6682
      %v6993 = vunpack.c.l.b16 %v6683
      %v6994 = vunpack.c.h.b16 %v6683
      %v6995 = vunpack.c.l.b16 %v6684
      %v6996 = vunpack.c.h.b16 %v6684
      %v6997 = vunpack.c.l.b16 %v6685
      %v6998 = vunpack.c.h.b16 %v6685
      %v6999 = vunpack.c.l.b16 %v6686
      %v7000 = vunpack.c.h.b16 %v6686
      %v7001 = vunpack.c.l.b16 %v6687
      %v7002 = vunpack.c.h.b16 %v6687
      %v7003 = vunpack.c.l.b16 %v6688
      %v7004 = vunpack.c.h.b16 %v6688
      %v7005 = vunpack.c.l.b16 %v6689
      %v7006 = vunpack.c.h.b16 %v6689
      %v7007 = vunpack.c.l.b16 %v6690
      %v7008 = vunpack.c.h.b16 %v6690
      %v7009 = vunpack.c.l.b16 %v6691
      %v7010 = vunpack.c.h.b16 %v6691
      %v7011 = vunpack.c.l.b16 %v6692
      %v7012 = vunpack.c.h.b16 %v6692
      %v7013 = vunpack.c.l.b16 %v6693
      %v7014 = vunpack.c.h.b16 %v6693
      %v7015 = vunpack.c.l.b16 %v6694
      %v7016 = vunpack.c.h.b16 %v6694
      %v7017 = vunpack.c.l.b16 %v6695
      %v7018 = vunpack.c.h.b16 %v6695
      %v7019 = vunpack.c.l.b16 %v6696
      %v7020 = vunpack.c.h.b16 %v6696
      %v7021 = vunpack.c.l.b16 %v6697
      %v7022 = vunpack.c.h.b16 %v6697
      %v7023 = vunpack.c.l.b16 %v6698
      %v7024 = vunpack.c.h.b16 %v6698
      %v7025 = vunpack.c.l.b16 %v6699
      %v7026 = vunpack.c.h.b16 %v6699
      %v7027 = vunpack.c.l.b16 %v6700
      %v7028 = vunpack.c.h.b16 %v6700
      %v7029 = vunpack.c.l.b16 %v6701
      %v7030 = vunpack.c.h.b16 %v6701
      %v7031 = vunpack.c.l.b16 %v6702
      %v7032 = vunpack.c.h.b16 %v6702
      %v7033 = vunpack.c.l.b16 %v6703
      %v7034 = vunpack.c.h.b16 %v6703
      %v7035 = vunpack.c.l.b16 %v6704
      %v7036 = vunpack.c.h.b16 %v6704
      %v7037 = vunpack.c.l.b16 %v6705
      %v7038 = vunpack.c.h.b16 %v6705
      %v7039 = vunpack.c.l.b16 %v6706
      %v7040 = vunpack.c.h.b16 %v6706
      %v7041 = vunpack.c.l.b16 %v6707
      %v7042 = vunpack.c.h.b16 %v6707
      %v7043 = vunpack.c.l.b16 %v6708
      %v7044 = vunpack.c.h.b16 %v6708
      %v7045 = vunpack.c.l.b16 %v6709
      %v7046 = vunpack.c.h.b16 %v6709
      %v7047 = vunpack.c.l.b16 %v6710
      %v7048 = vunpack.c.h.b16 %v6710
      %v7049 = vunpack.c.l.b16 %v6711
      %v7050 = vunpack.c.h.b16 %v6711
      %v7051 = vunpack.c.l.b16 %v6712
      %v7052 = vunpack.c.h.b16 %v6712
      %v7053 = vunpack.c.l.b16 %v6713
      %v7054 = vunpack.c.h.b16 %v6713
      %v7055 = vunpack.c.l.b16 %v6714
      %v7056 = vunpack.c.h.b16 %v6714
      %v7057 = vunpack.c.l.b16 %v6715
      %v7058 = vunpack.c.h.b16 %v6715
      %v7059 = vunpack.c.l.b16 %v6716
      %v7060 = vunpack.c.h.b16 %v6716
      %v7061 = vunpack.c.l.b16 %v6717
      %v7062 = vunpack.c.h.b16 %v6717
      %v7063 = vunpack.c.l.b16 %v6718
      %v7064 = vunpack.c.h.b16 %v6718
      %v7065 = vunpack.c.l.b16 %v6719
      %v7066 = vunpack.c.h.b16 %v6719
      %v7067 = vunpack.c.l.b16 %v6720
      %v7068 = vunpack.c.h.b16 %v6720
      %v7069 = vunpack.c.l.b16 %v6721
      %v7070 = vunpack.c.h.b16 %v6721
      %v7071 = vunpack.c.l.b16 %v6722
      %v7072 = vunpack.c.h.b16 %v6722
      %v7073 = vunpack.c.l.b16 %v6723
      %v7074 = vunpack.c.h.b16 %v6723
      %v7075 = vunpack.c.l.b16 %v6724
      %v7076 = vunpack.c.h.b16 %v6724
      %v7077 = vunpack.c.l.b16 %v6725
      %v7078 = vunpack.c.h.b16 %v6725
      %v7079 = vunpack.c.l.b16 %v6726
      %v7080 = vunpack.c.h.b16 %v6726
      %v7081 = vunpack.c.l.b16 %v6727
      %v7082 = vunpack.c.h.b16 %v6727
      %v7083 = vunpack.c.l.b16 %v6728
      %v7084 = vunpack.c.h.b16 %v6728
      %v7085 = vunpack.c.l.b16 %v6729
      %v7086 = vunpack.c.h.b16 %v6729
      %v7087 = vunpack.c.l.b16 %v6730
      %v7088 = vunpack.c.h.b16 %v6730
      %v7089 = vunpack.c.l.b16 %v6731
      %v7090 = vunpack.c.h.b16 %v6731
      %v7091 = vunpack.c.l.b16 %v6732
      %v7092 = vunpack.c.h.b16 %v6732
      %v7093 = vunpack.c.l.b16 %v6733
      %v7094 = vunpack.c.h.b16 %v6733
      %v7095 = vunpack.c.l.b16 %v6734
      %v7096 = vunpack.c.h.b16 %v6734
      %v7097 = vunpack.c.l.b16 %v6735
      %v7098 = vunpack.c.h.b16 %v6735
      %v7099 = vunpack.c.l.b16 %v6736
      %v7100 = vunpack.c.h.b16 %v6736
      %v7101 = vunpack.c.l.b16 %v6737
      %v7102 = vunpack.c.h.b16 %v6737
      %v7103 = vunpack.c.l.b16 %v6738
      %v7104 = vunpack.c.h.b16 %v6738
      %v7105 = vunpack.c.l.b16 %v6739
      %v7106 = vunpack.c.h.b16 %v6739
      %v7107 = vunpack.c.l.b16 %v6740
      %v7108 = vunpack.c.h.b16 %v6740
      %v7109 = vunpack.c.l.b16 %v6741
      %v7110 = vunpack.c.h.b16 %v6741
      %v7111 = vunpack.c.l.b16 %v6742
      %v7112 = vunpack.c.h.b16 %v6742
      %v7113 = vunpack.c.l.b16 %v6743
      %v7114 = vunpack.c.h.b16 %v6743
      %v7115 = vunpack.c.l.b16 %v6744
      %v7116 = vunpack.c.h.b16 %v6744
      %v7117 = vunpack.c.l.b16 %v6745
      %v7118 = vunpack.c.h.b16 %v6745
      %v7119 = vunpack.c.l.b16 %v6746
      %v7120 = vunpack.c.h.b16 %v6746
      %v7121 = vunpack.c.l.b16 %v6747
      %v7122 = vunpack.c.h.b16 %v6747
      %v7123 = vunpack.c.l.b16 %v6748
      %v7124 = vunpack.c.h.b16 %v6748
      %v7125 = vunpack.c.l.b16 %v6749
      %v7126 = vunpack.c.h.b16 %v6749
      %v7127 = vunpack.c.l.b16 %v6750
      %v7128 = vunpack.c.h.b16 %v6750
      %v7129 = vunpack.c.l.b16 %v6751
      %v7130 = vunpack.c.h.b16 %v6751
      %v7131 = vunpack.c.l.b16 %v6752
      %v7132 = vunpack.c.h.b16 %v6752
      %v7133 = vunpack.c.l.b16 %v6753
      %v7134 = vunpack.c.h.b16 %v6753
      %v7135 = vunpack.c.l.b16 %v6754
      %v7136 = vunpack.c.h.b16 %v6754
      %v7137 = vunpack.c.l.b16 %v6755
      %v7138 = vunpack.c.h.b16 %v6755
      %v7139 = vunpack.c.l.b16 %v6756
      %v7140 = vunpack.c.h.b16 %v6756
      %v7141 = vpack.c.b16 %v6893, %v6885
      %v7142 = vpack.c.b16 %v6894, %v6886
      %v7143 = vpack.c.b16 %v6895, %v6887
      %v7144 = vpack.c.b16 %v6896, %v6888
      %v7145 = vpack.c.b16 %v6897, %v6889
      %v7146 = vpack.c.b16 %v6898, %v6890
      %v7147 = vpack.c.b16 %v6899, %v6891
      %v7148 = vpack.c.b16 %v6900, %v6892
      %v7149 = vpack.c.b16 %v6909, %v6901
      %v7150 = vpack.c.b16 %v6910, %v6902
      %v7151 = vpack.c.b16 %v6911, %v6903
      %v7152 = vpack.c.b16 %v6912, %v6904
      %v7153 = vpack.c.b16 %v6913, %v6905
      %v7154 = vpack.c.b16 %v6914, %v6906
      %v7155 = vpack.c.b16 %v6915, %v6907
      %v7156 = vpack.c.b16 %v6916, %v6908
      %v7157 = vpack.c.b16 %v6925, %v6917
      %v7158 = vpack.c.b16 %v6926, %v6918
      %v7159 = vpack.c.b16 %v6927, %v6919
      %v7160 = vpack.c.b16 %v6928, %v6920
      %v7161 = vpack.c.b16 %v6929, %v6921
      %v7162 = vpack.c.b16 %v6930, %v6922
      %v7163 = vpack.c.b16 %v6931, %v6923
      %v7164 = vpack.c.b16 %v6932, %v6924
      %v7165 = vpack.c.b16 %v6941, %v6933
      %v7166 = vpack.c.b16 %v6942, %v6934
      %v7167 = vpack.c.b16 %v6943, %v6935
      %v7168 = vpack.c.b16 %v6944, %v6936
      %v7169 = vpack.c.b16 %v6945, %v6937
      %v7170 = vpack.c.b16 %v6946, %v6938
      %v7171 = vpack.c.b16 %v6947, %v6939
      %v7172 = vpack.c.b16 %v6948, %v6940
      %v7173 = vpack.c.b16 %v6957, %v6949
      %v7174 = vpack.c.b16 %v6958, %v6950
      %v7175 = vpack.c.b16 %v6959, %v6951
      %v7176 = vpack.c.b16 %v6960, %v6952
      %v7177 = vpack.c.b16 %v6961, %v6953
      %v7178 = vpack.c.b16 %v6962, %v6954
      %v7179 = vpack.c.b16 %v6963, %v6955
      %v7180 = vpack.c.b16 %v6964, %v6956
      %v7181 = vpack.c.b16 %v6973, %v6965
      %v7182 = vpack.c.b16 %v6974, %v6966
      %v7183 = vpack.c.b16 %v6975, %v6967
      %v7184 = vpack.c.b16 %v6976, %v6968
      %v7185 = vpack.c.b16 %v6977, %v6969
      %v7186 = vpack.c.b16 %v6978, %v6970
      %v7187 = vpack.c.b16 %v6979, %v6971
      %v7188 = vpack.c.b16 %v6980, %v6972
      %v7189 = vpack.c.b16 %v6989, %v6981
      %v7190 = vpack.c.b16 %v6990, %v6982
      %v7191 = vpack.c.b16 %v6991, %v6983
      %v7192 = vpack.c.b16 %v6992, %v6984
      %v7193 = vpack.c.b16 %v6993, %v6985
      %v7194 = vpack.c.b16 %v6994, %v6986
      %v7195 = vpack.c.b16 %v6995, %v6987
      %v7196 = vpack.c.b16 %v6996, %v6988
      %v7197 = vpack.c.b16 %v7005, %v6997
      %v7198 = vpack.c.b16 %v7006, %v6998
      %v7199 = vpack.c.b16 %v7007, %v6999
      %v7200 = vpack.c.b16 %v7008, %v7000
      %v7201 = vpack.c.b16 %v7009, %v7001
      %v7202 = vpack.c.b16 %v7010, %v7002
      %v7203 = vpack.c.b16 %v7011, %v7003
      %v7204 = vpack.c.b16 %v7012, %v7004
      %v7205 = vpack.c.b16 %v7021, %v7013
      %v7206 = vpack.c.b16 %v7022, %v7014
      %v7207 = vpack.c.b16 %v7023, %v7015
      %v7208 = vpack.c.b16 %v7024, %v7016
      %v7209 = vpack.c.b16 %v7025, %v7017
      %v7210 = vpack.c.b16 %v7026, %v7018
      %v7211 = vpack.c.b16 %v7027, %v7019
      %v7212 = vpack.c.b16 %v7028, %v7020
      %v7213 = vpack.c.b16 %v7037, %v7029
      %v7214 = vpack.c.b16 %v7038, %v7030
      %v7215 = vpack.c.b16 %v7039, %v7031
      %v7216 = vpack.c.b16 %v7040, %v7032
      %v7217 = vpack.c.b16 %v7041, %v7033
      %v7218 = vpack.c.b16 %v7042, %v7034
      %v7219 = vpack.c.b16 %v7043, %v7035
      %v7220 = vpack.c.b16 %v7044, %v7036
      %v7221 = vpack.c.b16 %v7053, %v7045
      %v7222 = vpack.c.b16 %v7054, %v7046
      %v7223 = vpack.c.b16 %v7055, %v7047
      %v7224 = vpack.c.b16 %v7056, %v7048
      %v7225 = vpack.c.b16 %v7057, %v7049
      %v7226 = vpack.c.b16 %v7058, %v7050
      %v7227 = vpack.c.b16 %v7059, %v7051
      %v7228 = vpack.c.b16 %v7060, %v7052
      %v7229 = vpack.c.b16 %v7069, %v7061
      %v7230 = vpack.c.b16 %v7070, %v7062
      %v7231 = vpack.c.b16 %v7071, %v7063
      %v7232 = vpack.c.b16 %v7072, %v7064
      %v7233 = vpack.c.b16 %v7073, %v7065
      %v7234 = vpack.c.b16 %v7074, %v7066
      %v7235 = vpack.c.b16 %v7075, %v7067
      %v7236 = vpack.c.b16 %v7076, %v7068
      %v7237 = vpack.c.b16 %v7085, %v7077
      %v7238 = vpack.c.b16 %v7086, %v7078
      %v7239 = vpack.c.b16 %v7087, %v7079
      %v7240 = vpack.c.b16 %v7088, %v7080
      %v7241 = vpack.c.b16 %v7089, %v7081
      %v7242 = vpack.c.b16 %v7090, %v7082
      %v7243 = vpack.c.b16 %v7091, %v7083
      %v7244 = vpack.c.b16 %v7092, %v7084
      %v7245 = vpack.c.b16 %v7101, %v7093
      %v7246 = vpack.c.b16 %v7102, %v7094
      %v7247 = vpack.c.b16 %v7103, %v7095
      %v7248 = vpack.c.b16 %v7104, %v7096
      %v7249 = vpack.c.b16 %v7105, %v7097
      %v7250 = vpack.c.b16 %v7106, %v7098
      %v7251 = vpack.c.b16 %v7107, %v7099
      %v7252 = vpack.c.b16 %v7108, %v7100
      %v7253 = vpack.c.b16 %v7117, %v7109
      %v7254 = vpack.c.b16 %v7118, %v7110
      %v7255 = vpack.c.b16 %v7119, %v7111
      %v7256 = vpack.c.b16 %v7120, %v7112
      %v7257 = vpack.c.b16 %v7121, %v7113
      %v7258 = vpack.c.b16 %v7122, %v7114
      %v7259 = vpack.c.b16 %v7123, %v7115
      %v7260 = vpack.c.b16 %v7124, %v7116
      %v7261 = vpack.c.b16 %v7133, %v7125
      %v7262 = vpack.c.b16 %v7134, %v7126
      %v7263 = vpack.c.b16 %v7135, %v7127
      %v7264 = vpack.c.b16 %v7136, %v7128
      %v7265 = vpack.c.b16 %v7137, %v7129
      %v7266 = vpack.c.b16 %v7138, %v7130
      %v7267 = vpack.c.b16 %v7139, %v7131
      %v7268 = vpack.c.b16 %v7140, %v7132
      %7397 = vmatpush.bf16.msra.mxu0 %v7197
      %7398 = vmatpush.bf16.msra.mxu0 %v7189
      %7399 = vmatpush.bf16.msra.mxu0 %v7181
      %7400 = vmatpush.bf16.msra.mxu0 %v7173
      %7401 = vmatpush.bf16.msra.mxu0 %v7165
      %7402 = vmatpush.bf16.msra.mxu0 %v7157
      %7403 = vmatpush.bf16.msra.mxu0 %v7149
      %7404 = vmatpush.bf16.msra.mxu0 %v7141
      %7405 = vmatmul.bf16.gmra.mxu0 %v6627
      %v7406 = vpop.f32.mrf.mxu0
      %v7407 = vadd.f32 0.0, %v7406
      %v7408 = vpop.f32.mrf.mxu0
      %7409 = vdwg.mxu0
      %7410 = vmatpush.bf16.msra.mxu0 %v7261
      %7411 = vmatpush.bf16.msra.mxu0 %v7253
      %7412 = vmatpush.bf16.msra.mxu0 %v7245
      %7413 = vmatpush.bf16.msra.mxu0 %v7237
      %7414 = vmatpush.bf16.msra.mxu0 %v7229
      %7415 = vmatpush.bf16.msra.mxu0 %v7221
      %7416 = vmatpush.bf16.msra.mxu0 %v7213
      %7417 = vmatpush.bf16.msra.mxu0 %v7205
      %7418 = vmatmul.bf16.gmra.mxu0 %v6628
      %v7419 = vpop.f32.mrf.mxu0
      %v7420 = vadd.f32 %v7407, %v7419
      %v7421 = vpop.f32.mrf.mxu0
      %7422 = vdwg.mxu0
      %7423 = vmatpush.bf16.msra.mxu0 %v7198
      %7424 = vmatpush.bf16.msra.mxu0 %v7190
      %7425 = vmatpush.bf16.msra.mxu0 %v7182
      %7426 = vmatpush.bf16.msra.mxu0 %v7174
      %7427 = vmatpush.bf16.msra.mxu0 %v7166
      %7428 = vmatpush.bf16.msra.mxu0 %v7158
      %7429 = vmatpush.bf16.msra.mxu0 %v7150
      %7430 = vmatpush.bf16.msra.mxu0 %v7142
      %7431 = vmatmul.bf16.gmra.mxu0 %v6627
      %v7432 = vpop.f32.mrf.mxu0
      %v7433 = vadd.f32 0.0, %v7432
      %v7434 = vpop.f32.mrf.mxu0
      %7435 = vdwg.mxu0
      %7436 = vmatpush.bf16.msra.mxu0 %v7262
      %7437 = vmatpush.bf16.msra.mxu0 %v7254
      %7438 = vmatpush.bf16.msra.mxu0 %v7246
      %7439 = vmatpush.bf16.msra.mxu0 %v7238
      %7440 = vmatpush.bf16.msra.mxu0 %v7230
      %7441 = vmatpush.bf16.msra.mxu0 %v7222
      %7442 = vmatpush.bf16.msra.mxu0 %v7214
      %7443 = vmatpush.bf16.msra.mxu0 %v7206
      %7444 = vmatmul.bf16.gmra.mxu0 %v6628
      %v7445 = vpop.f32.mrf.mxu0
      %v7446 = vadd.f32 %v7433, %v7445
      %v7447 = vpop.f32.mrf.mxu0
      %7448 = vdwg.mxu0
      %7449 = vmatpush.bf16.msra.mxu0 %v7199
      %7450 = vmatpush.bf16.msra.mxu0 %v7191
      %7451 = vmatpush.bf16.msra.mxu0 %v7183
      %7452 = vmatpush.bf16.msra.mxu0 %v7175
      %7453 = vmatpush.bf16.msra.mxu0 %v7167
      %7454 = vmatpush.bf16.msra.mxu0 %v7159
      %7455 = vmatpush.bf16.msra.mxu0 %v7151
      %7456 = vmatpush.bf16.msra.mxu0 %v7143
      %7457 = vmatmul.bf16.gmra.mxu0 %v6627
      %v7458 = vpop.f32.mrf.mxu0
      %v7459 = vadd.f32 0.0, %v7458
      %v7460 = vpop.f32.mrf.mxu0
      %7461 = vdwg.mxu0
      %7462 = vmatpush.bf16.msra.mxu0 %v7263
      %7463 = vmatpush.bf16.msra.mxu0 %v7255
      %7464 = vmatpush.bf16.msra.mxu0 %v7247
      %7465 = vmatpush.bf16.msra.mxu0 %v7239
      %7466 = vmatpush.bf16.msra.mxu0 %v7231
      %7467 = vmatpush.bf16.msra.mxu0 %v7223
      %7468 = vmatpush.bf16.msra.mxu0 %v7215
      %7469 = vmatpush.bf16.msra.mxu0 %v7207
      %7470 = vmatmul.bf16.gmra.mxu0 %v6628
      %v7471 = vpop.f32.mrf.mxu0
      %v7472 = vadd.f32 %v7459, %v7471
      %v7473 = vpop.f32.mrf.mxu0
      %7474 = vdwg.mxu0
      %7475 = vmatpush.bf16.msra.mxu0 %v7200
      %7476 = vmatpush.bf16.msra.mxu0 %v7192
      %7477 = vmatpush.bf16.msra.mxu0 %v7184
      %7478 = vmatpush.bf16.msra.mxu0 %v7176
      %7479 = vmatpush.bf16.msra.mxu0 %v7168
      %7480 = vmatpush.bf16.msra.mxu0 %v7160
      %7481 = vmatpush.bf16.msra.mxu0 %v7152
      %7482 = vmatpush.bf16.msra.mxu0 %v7144
      %7483 = vmatmul.bf16.gmra.mxu0 %v6627
      %v7484 = vpop.f32.mrf.mxu0
      %v7485 = vadd.f32 0.0, %v7484
      %v7486 = vpop.f32.mrf.mxu0
      %7487 = vdwg.mxu0
      %7488 = vmatpush.bf16.msra.mxu0 %v7264
      %7489 = vmatpush.bf16.msra.mxu0 %v7256
      %7490 = vmatpush.bf16.msra.mxu0 %v7248
      %7491 = vmatpush.bf16.msra.mxu0 %v7240
      %7492 = vmatpush.bf16.msra.mxu0 %v7232
      %7493 = vmatpush.bf16.msra.mxu0 %v7224
      %7494 = vmatpush.bf16.msra.mxu0 %v7216
      %7495 = vmatpush.bf16.msra.mxu0 %v7208
      %7496 = vmatmul.bf16.gmra.mxu0 %v6628
      %v7497 = vpop.f32.mrf.mxu0
      %v7498 = vadd.f32 %v7485, %v7497
      %v7499 = vpop.f32.mrf.mxu0
      %7500 = vdwg.mxu0
      %7501 = vmatpush.bf16.msra.mxu0 %v7201
      %7502 = vmatpush.bf16.msra.mxu0 %v7193
      %7503 = vmatpush.bf16.msra.mxu0 %v7185
      %7504 = vmatpush.bf16.msra.mxu0 %v7177
      %7505 = vmatpush.bf16.msra.mxu0 %v7169
      %7506 = vmatpush.bf16.msra.mxu0 %v7161
      %7507 = vmatpush.bf16.msra.mxu0 %v7153
      %7508 = vmatpush.bf16.msra.mxu0 %v7145
      %7509 = vmatmul.bf16.gmra.mxu0 %v6627
      %v7510 = vpop.f32.mrf.mxu0
      %v7511 = vadd.f32 0.0, %v7510
      %v7512 = vpop.f32.mrf.mxu0
      %7513 = vdwg.mxu0
      %7514 = vmatpush.bf16.msra.mxu0 %v7265
      %7515 = vmatpush.bf16.msra.mxu0 %v7257
      %7516 = vmatpush.bf16.msra.mxu0 %v7249
      %7517 = vmatpush.bf16.msra.mxu0 %v7241
      %7518 = vmatpush.bf16.msra.mxu0 %v7233
      %7519 = vmatpush.bf16.msra.mxu0 %v7225
      %7520 = vmatpush.bf16.msra.mxu0 %v7217
      %7521 = vmatpush.bf16.msra.mxu0 %v7209
      %7522 = vmatmul.bf16.gmra.mxu0 %v6628
      %v7523 = vpop.f32.mrf.mxu0
      %v7524 = vadd.f32 %v7511, %v7523
      %v7525 = vpop.f32.mrf.mxu0
      %7526 = vdwg.mxu0
      %7527 = vmatpush.bf16.msra.mxu0 %v7202
      %7528 = vmatpush.bf16.msra.mxu0 %v7194
      %7529 = vmatpush.bf16.msra.mxu0 %v7186
      %7530 = vmatpush.bf16.msra.mxu0 %v7178
      %7531 = vmatpush.bf16.msra.mxu0 %v7170
      %7532 = vmatpush.bf16.msra.mxu0 %v7162
      %7533 = vmatpush.bf16.msra.mxu0 %v7154
      %7534 = vmatpush.bf16.msra.mxu0 %v7146
      %7535 = vmatmul.bf16.gmra.mxu0 %v6627
      %v7536 = vpop.f32.mrf.mxu0
      %v7537 = vadd.f32 0.0, %v7536
      %v7538 = vpop.f32.mrf.mxu0
      %7539 = vdwg.mxu0
      %7540 = vmatpush.bf16.msra.mxu0 %v7266
      %7541 = vmatpush.bf16.msra.mxu0 %v7258
      %7542 = vmatpush.bf16.msra.mxu0 %v7250
      %7543 = vmatpush.bf16.msra.mxu0 %v7242
      %7544 = vmatpush.bf16.msra.mxu0 %v7234
      %7545 = vmatpush.bf16.msra.mxu0 %v7226
      %7546 = vmatpush.bf16.msra.mxu0 %v7218
      %7547 = vmatpush.bf16.msra.mxu0 %v7210
      %7548 = vmatmul.bf16.gmra.mxu0 %v6628
      %v7549 = vpop.f32.mrf.mxu0
      %v7550 = vadd.f32 %v7537, %v7549
      %v7551 = vpop.f32.mrf.mxu0
      %7552 = vdwg.mxu0
      %7553 = vmatpush.bf16.msra.mxu0 %v7203
      %7554 = vmatpush.bf16.msra.mxu0 %v7195
      %7555 = vmatpush.bf16.msra.mxu0 %v7187
      %7556 = vmatpush.bf16.msra.mxu0 %v7179
      %7557 = vmatpush.bf16.msra.mxu0 %v7171
      %7558 = vmatpush.bf16.msra.mxu0 %v7163
      %7559 = vmatpush.bf16.msra.mxu0 %v7155
      %7560 = vmatpush.bf16.msra.mxu0 %v7147
      %7561 = vmatmul.bf16.gmra.mxu0 %v6627
      %v7562 = vpop.f32.mrf.mxu0
      %v7563 = vadd.f32 0.0, %v7562
      %v7564 = vpop.f32.mrf.mxu0
      %7565 = vdwg.mxu0
      %7566 = vmatpush.bf16.msra.mxu0 %v7267
      %7567 = vmatpush.bf16.msra.mxu0 %v7259
      %7568 = vmatpush.bf16.msra.mxu0 %v7251
      %7569 = vmatpush.bf16.msra.mxu0 %v7243
      %7570 = vmatpush.bf16.msra.mxu0 %v7235
      %7571 = vmatpush.bf16.msra.mxu0 %v7227
      %7572 = vmatpush.bf16.msra.mxu0 %v7219
      %7573 = vmatpush.bf16.msra.mxu0 %v7211
      %7574 = vmatmul.bf16.gmra.mxu0 %v6628
      %v7575 = vpop.f32.mrf.mxu0
      %v7576 = vadd.f32 %v7563, %v7575
      %v7577 = vpop.f32.mrf.mxu0
      %7578 = vdwg.mxu0
      %7579 = vmatpush.bf16.msra.mxu0 %v7204
      %7580 = vmatpush.bf16.msra.mxu0 %v7196
      %7581 = vmatpush.bf16.msra.mxu0 %v7188
      %7582 = vmatpush.bf16.msra.mxu0 %v7180
      %7583 = vmatpush.bf16.msra.mxu0 %v7172
      %7584 = vmatpush.bf16.msra.mxu0 %v7164
      %7585 = vmatpush.bf16.msra.mxu0 %v7156
      %7586 = vmatpush.bf16.msra.mxu0 %v7148
      %7587 = vmatmul.bf16.gmra.mxu0 %v6627
      %v7588 = vpop.f32.mrf.mxu0
      %v7589 = vadd.f32 0.0, %v7588
      %v7590 = vpop.f32.mrf.mxu0
      %7591 = vdwg.mxu0
      %7592 = vmatpush.bf16.msra.mxu0 %v7268
      %7593 = vmatpush.bf16.msra.mxu0 %v7260
      %7594 = vmatpush.bf16.msra.mxu0 %v7252
      %7595 = vmatpush.bf16.msra.mxu0 %v7244
      %7596 = vmatpush.bf16.msra.mxu0 %v7236
      %7597 = vmatpush.bf16.msra.mxu0 %v7228
      %7598 = vmatpush.bf16.msra.mxu0 %v7220
      %7599 = vmatpush.bf16.msra.mxu0 %v7212
      %7600 = vmatmul.bf16.gmra.mxu0 %v6628
      %v7601 = vpop.f32.mrf.mxu0
      %v7602 = vadd.f32 %v7589, %v7601
      %v7603 = vpop.f32.mrf.mxu0
      %7604 = vdwg.mxu0
      %v7605 = vadd.f32 %v6617, %v7420
      %v7606 = vadd.f32 %v6618, %v7446
      %v7607 = vadd.f32 %v6619, %v7472
      %v7608 = vadd.f32 %v6620, %v7498
      %v7609 = vadd.f32 %v6621, %v7524
      %v7610 = vadd.f32 %v6622, %v7550
      %v7611 = vadd.f32 %v6623, %v7576
      %v7612 = vadd.f32 %v6624, %v7602
      %v7613 = vld [vmem:[#allocation7] sm:$0xff]
      %v7614 = vld [vmem:[#allocation7 + $0x8] sm:$0xff]
      %v7615 = vxor.u32 %v7605, 2147483648
      %v7616 = vxor.u32 %v7606, 2147483648
      %v7617 = vmul.f32 %v7615, 1.442695
      %v7618 = vpow.pop %v7617
      %v7619 = vmul.f32 %v7616, 1.442695
      %v7620 = vpow.pop %v7619
      %v7621 = vadd.f32 %v7618, 1.0
      %v7622 = vadd.f32 %v7620, 1.0
      %v7623 = vrcp.pop %v7621
      %v7624 = vmul.f32 %v7621, %v7623
      %v7625 = vsub.f32 1.0, %v7624
      %v7626 = vmul.f32 %v7623, %v7625
      %v7627 = vadd.f32 %v7623, %v7626
      %vm7628 = vweird.f32 %v7621
      %vm7629 = vweird.f32 %v7623
      %vm7630 = vmor %vm7628, %vm7629
      %v7631 = vsel %vm7630, %v7623, %v7627
      %v7632 = vand.u32 2147483647, %v7621
      %vm7633 = vcmp.eq.f32.partialorder %v7632, 8.507059e+37
      %v7634 = vand.u32 %v7621, 2147483648
      %v7635 = vor.u32 1.1754944e-38, %v7634
      %v7636 = vsel %vm7633, %v7635, %v7631
      %v7637 = vmul.f32 1.0, %v7636
      %v7638 = vrcp.pop %v7622
      %v7639 = vmul.f32 %v7622, %v7638
      %v7640 = vsub.f32 1.0, %v7639
      %v7641 = vmul.f32 %v7638, %v7640
      %v7642 = vadd.f32 %v7638, %v7641
      %vm7643 = vweird.f32 %v7622
      %vm7644 = vweird.f32 %v7638
      %vm7645 = vmor %vm7643, %vm7644
      %v7646 = vsel %vm7645, %v7638, %v7642
      %v7647 = vand.u32 2147483647, %v7622
      %vm7648 = vcmp.eq.f32.partialorder %v7647, 8.507059e+37
      %v7649 = vand.u32 %v7622, 2147483648
      %v7650 = vor.u32 1.1754944e-38, %v7649
      %v7651 = vsel %vm7648, %v7650, %v7646
      %v7652 = vmul.f32 1.0, %v7651
      %v7653 = vxor.u32 %v7607, 2147483648
      %v7654 = vxor.u32 %v7608, 2147483648
      %v7655 = vmul.f32 %v7653, 1.442695
      %v7656 = vpow.pop %v7655
      %v7657 = vmul.f32 %v7654, 1.442695
      %v7658 = vpow.pop %v7657
      %v7659 = vadd.f32 %v7656, 1.0
      %v7660 = vadd.f32 %v7658, 1.0
      %v7661 = vrcp.pop %v7659
      %v7662 = vmul.f32 %v7659, %v7661
      %v7663 = vsub.f32 1.0, %v7662
      %v7664 = vmul.f32 %v7661, %v7663
      %v7665 = vadd.f32 %v7661, %v7664
      %vm7666 = vweird.f32 %v7659
      %vm7667 = vweird.f32 %v7661
      %vm7668 = vmor %vm7666, %vm7667
      %v7669 = vsel %vm7668, %v7661, %v7665
      %v7670 = vand.u32 2147483647, %v7659
      %vm7671 = vcmp.eq.f32.partialorder %v7670, 8.507059e+37
      %v7672 = vand.u32 %v7659, 2147483648
      %v7673 = vor.u32 1.1754944e-38, %v7672
      %v7674 = vsel %vm7671, %v7673, %v7669
      %v7675 = vmul.f32 1.0, %v7674
      %v7676 = vrcp.pop %v7660
      %v7677 = vmul.f32 %v7660, %v7676
      %v7678 = vsub.f32 1.0, %v7677
      %v7679 = vmul.f32 %v7676, %v7678
      %v7680 = vadd.f32 %v7676, %v7679
      %vm7681 = vweird.f32 %v7660
      %vm7682 = vweird.f32 %v7676
      %vm7683 = vmor %vm7681, %vm7682
      %v7684 = vsel %vm7683, %v7676, %v7680
      %v7685 = vand.u32 2147483647, %v7660
      %vm7686 = vcmp.eq.f32.partialorder %v7685, 8.507059e+37
      %v7687 = vand.u32 %v7660, 2147483648
      %v7688 = vor.u32 1.1754944e-38, %v7687
      %v7689 = vsel %vm7686, %v7688, %v7684
      %v7690 = vmul.f32 1.0, %v7689
      %v7691 = vtanh.pop %v7609
      %v7692 = vtanh.pop %v7610
      %v7693 = vxor.u32 %v7611, 2147483648
      %v7694 = vxor.u32 %v7612, 2147483648
      %v7695 = vmul.f32 %v7693, 1.442695
      %v7696 = vpow.pop %v7695
      %v7697 = vmul.f32 %v7694, 1.442695
      %v7698 = vpow.pop %v7697
      %v7699 = vadd.f32 %v7696, 1.0
      %v7700 = vadd.f32 %v7698, 1.0
      %v7701 = vrcp.pop %v7699
      %v7702 = vmul.f32 %v7699, %v7701
      %v7703 = vsub.f32 1.0, %v7702
      %v7704 = vmul.f32 %v7701, %v7703
      %v7705 = vadd.f32 %v7701, %v7704
      %vm7706 = vweird.f32 %v7699
      %vm7707 = vweird.f32 %v7701
      %vm7708 = vmor %vm7706, %vm7707
      %v7709 = vsel %vm7708, %v7701, %v7705
      %v7710 = vand.u32 2147483647, %v7699
      %vm7711 = vcmp.eq.f32.partialorder %v7710, 8.507059e+37
      %v7712 = vand.u32 %v7699, 2147483648
      %v7713 = vor.u32 1.1754944e-38, %v7712
      %v7714 = vsel %vm7711, %v7713, %v7709
      %v7715 = vmul.f32 1.0, %v7714
      %v7716 = vrcp.pop %v7700
      %v7717 = vmul.f32 %v7700, %v7716
      %v7718 = vsub.f32 1.0, %v7717
      %v7719 = vmul.f32 %v7716, %v7718
      %v7720 = vadd.f32 %v7716, %v7719
      %vm7721 = vweird.f32 %v7700
      %vm7722 = vweird.f32 %v7716
      %vm7723 = vmor %vm7721, %vm7722
      %v7724 = vsel %vm7723, %v7716, %v7720
      %v7725 = vand.u32 2147483647, %v7700
      %vm7726 = vcmp.eq.f32.partialorder %v7725, 8.507059e+37
      %v7727 = vand.u32 %v7700, 2147483648
      %v7728 = vor.u32 1.1754944e-38, %v7727
      %v7729 = vsel %vm7726, %v7728, %v7724
      %v7730 = vmul.f32 1.0, %v7729
      %v7731 = vmul.f32 %v7675, %v7613
      %v7732 = vmul.f32 %v7690, %v7614
      %v7733 = vmul.f32 %v7637, %v7691
      %v7734 = vmul.f32 %v7652, %v7692
      %v7735 = vadd.f32 %v7731, %v7733
      %v7736 = vadd.f32 %v7732, %v7734
      %v7737 = vtanh.pop %v7735
      %v7738 = vtanh.pop %v7736
      %v7739 = vmul.f32 %v7715, %v7737
      %v7740 = vmul.f32 %v7730, %v7738
      %7741 = vst [vmem:[#allocation6] sm:$0xff] %v7739
      %7742 = vst [vmem:[#allocation6 + $0x8] sm:$0xff] %v7740
      %7743 = vst [vmem:[#allocation7] sm:$0xff] %v7735
      %7744 = vst [vmem:[#allocation7 + $0x8] sm:$0xff] %v7736
    $region110: #{custom_bert_forward.3} parent=1 // loop_footer
      %s5475 = sadd.s32 1, %s5471
    $region111: #{custom_bert_forward.3} parent=1 // loop_footer_branch
      %5470 = sbr.rel target = $region107
    $region112: #{custom_bert_forward.3} parent=1 // loop_exit
      _
    %v7745 = vld [vmem:[#allocation4] sm:$0xff]
    %v7746 = vld [vmem:[#allocation4 + $0x8] sm:$0xff]
    %v7747 = vpack.c.bf16 %v7745, %v7745
    %v7748 = vpack.c.bf16 %v7746, %v7746
    %v7749 = vld [vmem:[#allocation6] sm:$0xff]
    %v7750 = vld [vmem:[#allocation6 + $0x8] sm:$0xff]
    %v7751 = vpack.c.bf16 %v7749, %v7749
    %v7752 = vpack.c.bf16 %v7750, %v7750
    %v7753 = vld [vmem:[#allocation18] sm:$0xff]
    %v7754 = vld [vmem:[#allocation18 + $0x8] sm:$0xff]
    %v7755 = vld [vmem:[#allocation18 + $0x10] sm:$0xff]
    %v7756 = vld [vmem:[#allocation18 + $0x18] sm:$0xff]
    %v7757 = vld [vmem:[#allocation18 + $0x20] sm:$0xff]
    %v7758 = vld [vmem:[#allocation18 + $0x28] sm:$0xff]
    %v7759 = vld [vmem:[#allocation18 + $0x30] sm:$0xff]
    %v7760 = vld [vmem:[#allocation18 + $0x38] sm:$0xff]
    %v7761 = vld [vmem:[#allocation18 + $0x40] sm:$0xff]
    %v7762 = vld [vmem:[#allocation18 + $0x48] sm:$0xff]
    %v7763 = vld [vmem:[#allocation18 + $0x50] sm:$0xff]
    %v7764 = vld [vmem:[#allocation18 + $0x58] sm:$0xff]
    %v7765 = vld [vmem:[#allocation18 + $0x60] sm:$0xff]
    %v7766 = vld [vmem:[#allocation18 + $0x68] sm:$0xff]
    %v7767 = vld [vmem:[#allocation18 + $0x70] sm:$0xff]
    %v7768 = vld [vmem:[#allocation18 + $0x78] sm:$0xff]
    %v7769 = vld [vmem:[#allocation18 + $0x80] sm:$0xff]
    %v7770 = vld [vmem:[#allocation18 + $0x88] sm:$0xff]
    %v7771 = vld [vmem:[#allocation18 + $0x90] sm:$0xff]
    %v7772 = vld [vmem:[#allocation18 + $0x98] sm:$0xff]
    %v7773 = vld [vmem:[#allocation18 + $0xa0] sm:$0xff]
    %v7774 = vld [vmem:[#allocation18 + $0xa8] sm:$0xff]
    %v7775 = vld [vmem:[#allocation18 + $0xb0] sm:$0xff]
    %v7776 = vld [vmem:[#allocation18 + $0xb8] sm:$0xff]
    %v7777 = vld [vmem:[#allocation18 + $0xc0] sm:$0xff]
    %v7778 = vld [vmem:[#allocation18 + $0xc8] sm:$0xff]
    %v7779 = vld [vmem:[#allocation18 + $0xd0] sm:$0xff]
    %v7780 = vld [vmem:[#allocation18 + $0xd8] sm:$0xff]
    %v7781 = vld [vmem:[#allocation18 + $0xe0] sm:$0xff]
    %v7782 = vld [vmem:[#allocation18 + $0xe8] sm:$0xff]
    %v7783 = vld [vmem:[#allocation18 + $0xf0] sm:$0xff]
    %v7784 = vld [vmem:[#allocation18 + $0xf8] sm:$0xff]
    %v7785 = vld [vmem:[#allocation19] sm:$0xff]
    %v7786 = vld [vmem:[#allocation19 + $0x8] sm:$0xff]
    %v7787 = vld [vmem:[#allocation19 + $0x10] sm:$0xff]
    %v7788 = vld [vmem:[#allocation19 + $0x18] sm:$0xff]
    %v7789 = vld [vmem:[#allocation19 + $0x20] sm:$0xff]
    %v7790 = vld [vmem:[#allocation19 + $0x28] sm:$0xff]
    %v7791 = vld [vmem:[#allocation19 + $0x30] sm:$0xff]
    %v7792 = vld [vmem:[#allocation19 + $0x38] sm:$0xff]
    %v7793 = vld [vmem:[#allocation19 + $0x40] sm:$0xff]
    %v7794 = vld [vmem:[#allocation19 + $0x48] sm:$0xff]
    %v7795 = vld [vmem:[#allocation19 + $0x50] sm:$0xff]
    %v7796 = vld [vmem:[#allocation19 + $0x58] sm:$0xff]
    %v7797 = vld [vmem:[#allocation19 + $0x60] sm:$0xff]
    %v7798 = vld [vmem:[#allocation19 + $0x68] sm:$0xff]
    %v7799 = vld [vmem:[#allocation19 + $0x70] sm:$0xff]
    %v7800 = vld [vmem:[#allocation19 + $0x78] sm:$0xff]
    %v7801 = vld [vmem:[#allocation19 + $0x80] sm:$0xff]
    %v7802 = vld [vmem:[#allocation19 + $0x88] sm:$0xff]
    %v7803 = vld [vmem:[#allocation19 + $0x90] sm:$0xff]
    %v7804 = vld [vmem:[#allocation19 + $0x98] sm:$0xff]
    %v7805 = vld [vmem:[#allocation19 + $0xa0] sm:$0xff]
    %v7806 = vld [vmem:[#allocation19 + $0xa8] sm:$0xff]
    %v7807 = vld [vmem:[#allocation19 + $0xb0] sm:$0xff]
    %v7808 = vld [vmem:[#allocation19 + $0xb8] sm:$0xff]
    %v7809 = vld [vmem:[#allocation19 + $0xc0] sm:$0xff]
    %v7810 = vld [vmem:[#allocation19 + $0xc8] sm:$0xff]
    %v7811 = vld [vmem:[#allocation19 + $0xd0] sm:$0xff]
    %v7812 = vld [vmem:[#allocation19 + $0xd8] sm:$0xff]
    %v7813 = vld [vmem:[#allocation19 + $0xe0] sm:$0xff]
    %v7814 = vld [vmem:[#allocation19 + $0xe8] sm:$0xff]
    %v7815 = vld [vmem:[#allocation19 + $0xf0] sm:$0xff]
    %v7816 = vld [vmem:[#allocation19 + $0xf8] sm:$0xff]
    %v7849 = vunpack.c.l.b16 %v7785
    %v7850 = vunpack.c.h.b16 %v7785
    %v7851 = vunpack.c.l.b16 %v7786
    %v7852 = vunpack.c.h.b16 %v7786
    %v7853 = vunpack.c.l.b16 %v7787
    %v7854 = vunpack.c.h.b16 %v7787
    %v7855 = vunpack.c.l.b16 %v7788
    %v7856 = vunpack.c.h.b16 %v7788
    %v7857 = vunpack.c.l.b16 %v7789
    %v7858 = vunpack.c.h.b16 %v7789
    %v7859 = vunpack.c.l.b16 %v7790
    %v7860 = vunpack.c.h.b16 %v7790
    %v7861 = vunpack.c.l.b16 %v7791
    %v7862 = vunpack.c.h.b16 %v7791
    %v7863 = vunpack.c.l.b16 %v7792
    %v7864 = vunpack.c.h.b16 %v7792
    %v7865 = vunpack.c.l.b16 %v7793
    %v7866 = vunpack.c.h.b16 %v7793
    %v7867 = vunpack.c.l.b16 %v7794
    %v7868 = vunpack.c.h.b16 %v7794
    %v7869 = vunpack.c.l.b16 %v7795
    %v7870 = vunpack.c.h.b16 %v7795
    %v7871 = vunpack.c.l.b16 %v7796
    %v7872 = vunpack.c.h.b16 %v7796
    %v7873 = vunpack.c.l.b16 %v7797
    %v7874 = vunpack.c.h.b16 %v7797
    %v7875 = vunpack.c.l.b16 %v7798
    %v7876 = vunpack.c.h.b16 %v7798
    %v7877 = vunpack.c.l.b16 %v7799
    %v7878 = vunpack.c.h.b16 %v7799
    %v7879 = vunpack.c.l.b16 %v7800
    %v7880 = vunpack.c.h.b16 %v7800
    %v7881 = vunpack.c.l.b16 %v7801
    %v7882 = vunpack.c.h.b16 %v7801
    %v7883 = vunpack.c.l.b16 %v7802
    %v7884 = vunpack.c.h.b16 %v7802
    %v7885 = vunpack.c.l.b16 %v7803
    %v7886 = vunpack.c.h.b16 %v7803
    %v7887 = vunpack.c.l.b16 %v7804
    %v7888 = vunpack.c.h.b16 %v7804
    %v7889 = vunpack.c.l.b16 %v7805
    %v7890 = vunpack.c.h.b16 %v7805
    %v7891 = vunpack.c.l.b16 %v7806
    %v7892 = vunpack.c.h.b16 %v7806
    %v7893 = vunpack.c.l.b16 %v7807
    %v7894 = vunpack.c.h.b16 %v7807
    %v7895 = vunpack.c.l.b16 %v7808
    %v7896 = vunpack.c.h.b16 %v7808
    %v7897 = vunpack.c.l.b16 %v7809
    %v7898 = vunpack.c.h.b16 %v7809
    %v7899 = vunpack.c.l.b16 %v7810
    %v7900 = vunpack.c.h.b16 %v7810
    %v7901 = vunpack.c.l.b16 %v7811
    %v7902 = vunpack.c.h.b16 %v7811
    %v7903 = vunpack.c.l.b16 %v7812
    %v7904 = vunpack.c.h.b16 %v7812
    %v7905 = vunpack.c.l.b16 %v7813
    %v7906 = vunpack.c.h.b16 %v7813
    %v7907 = vunpack.c.l.b16 %v7814
    %v7908 = vunpack.c.h.b16 %v7814
    %v7909 = vunpack.c.l.b16 %v7815
    %v7910 = vunpack.c.h.b16 %v7815
    %v7911 = vunpack.c.l.b16 %v7816
    %v7912 = vunpack.c.h.b16 %v7816
    %v7913 = vpack.c.b16 %v7851, %v7849
    %v7914 = vpack.c.b16 %v7852, %v7850
    %v7915 = vpack.c.b16 %v7855, %v7853
    %v7916 = vpack.c.b16 %v7856, %v7854
    %v7917 = vpack.c.b16 %v7859, %v7857
    %v7918 = vpack.c.b16 %v7860, %v7858
    %v7919 = vpack.c.b16 %v7863, %v7861
    %v7920 = vpack.c.b16 %v7864, %v7862
    %v7921 = vpack.c.b16 %v7867, %v7865
    %v7922 = vpack.c.b16 %v7868, %v7866
    %v7923 = vpack.c.b16 %v7871, %v7869
    %v7924 = vpack.c.b16 %v7872, %v7870
    %v7925 = vpack.c.b16 %v7875, %v7873
    %v7926 = vpack.c.b16 %v7876, %v7874
    %v7927 = vpack.c.b16 %v7879, %v7877
    %v7928 = vpack.c.b16 %v7880, %v7878
    %v7929 = vpack.c.b16 %v7883, %v7881
    %v7930 = vpack.c.b16 %v7884, %v7882
    %v7931 = vpack.c.b16 %v7887, %v7885
    %v7932 = vpack.c.b16 %v7888, %v7886
    %v7933 = vpack.c.b16 %v7891, %v7889
    %v7934 = vpack.c.b16 %v7892, %v7890
    %v7935 = vpack.c.b16 %v7895, %v7893
    %v7936 = vpack.c.b16 %v7896, %v7894
    %v7937 = vpack.c.b16 %v7899, %v7897
    %v7938 = vpack.c.b16 %v7900, %v7898
    %v7939 = vpack.c.b16 %v7903, %v7901
    %v7940 = vpack.c.b16 %v7904, %v7902
    %v7941 = vpack.c.b16 %v7907, %v7905
    %v7942 = vpack.c.b16 %v7908, %v7906
    %v7943 = vpack.c.b16 %v7911, %v7909
    %v7944 = vpack.c.b16 %v7912, %v7910
    %7977 = vmatpush.bf16.msra.mxu0 %v7927
    %7978 = vmatpush.bf16.msra.mxu0 %v7925
    %7979 = vmatpush.bf16.msra.mxu0 %v7923
    %7980 = vmatpush.bf16.msra.mxu0 %v7921
    %7981 = vmatpush.bf16.msra.mxu0 %v7919
    %7982 = vmatpush.bf16.msra.mxu0 %v7917
    %7983 = vmatpush.bf16.msra.mxu0 %v7915
    %7984 = vmatpush.bf16.msra.mxu0 %v7913
    %7985 = vmatmul.bf16.gmra.mxu0 %v7751
    %v7986 = vpop.f32.mrf.mxu0
    %v7987 = vadd.f32 0.0, %v7986
    %v7988 = vpop.f32.mrf.mxu0
    %7989 = vdwg.mxu0
    %7990 = vmatpush.bf16.msra.mxu0 %v7943
    %7991 = vmatpush.bf16.msra.mxu0 %v7941
    %7992 = vmatpush.bf16.msra.mxu0 %v7939
    %7993 = vmatpush.bf16.msra.mxu0 %v7937
    %7994 = vmatpush.bf16.msra.mxu0 %v7935
    %7995 = vmatpush.bf16.msra.mxu0 %v7933
    %7996 = vmatpush.bf16.msra.mxu0 %v7931
    %7997 = vmatpush.bf16.msra.mxu0 %v7929
    %7998 = vmatmul.bf16.gmra.mxu0 %v7752
    %v7999 = vpop.f32.mrf.mxu0
    %v8000 = vadd.f32 %v7987, %v7999
    %v8001 = vpop.f32.mrf.mxu0
    %8002 = vdwg.mxu0
    %8003 = vmatpush.bf16.msra.mxu0 %v7928
    %8004 = vmatpush.bf16.msra.mxu0 %v7926
    %8005 = vmatpush.bf16.msra.mxu0 %v7924
    %8006 = vmatpush.bf16.msra.mxu0 %v7922
    %8007 = vmatpush.bf16.msra.mxu0 %v7920
    %8008 = vmatpush.bf16.msra.mxu0 %v7918
    %8009 = vmatpush.bf16.msra.mxu0 %v7916
    %8010 = vmatpush.bf16.msra.mxu0 %v7914
    %8011 = vmatmul.bf16.gmra.mxu0 %v7751
    %v8012 = vpop.f32.mrf.mxu0
    %v8013 = vadd.f32 0.0, %v8012
    %v8014 = vpop.f32.mrf.mxu0
    %8015 = vdwg.mxu0
    %8016 = vmatpush.bf16.msra.mxu0 %v7944
    %8017 = vmatpush.bf16.msra.mxu0 %v7942
    %8018 = vmatpush.bf16.msra.mxu0 %v7940
    %8019 = vmatpush.bf16.msra.mxu0 %v7938
    %8020 = vmatpush.bf16.msra.mxu0 %v7936
    %8021 = vmatpush.bf16.msra.mxu0 %v7934
    %8022 = vmatpush.bf16.msra.mxu0 %v7932
    %8023 = vmatpush.bf16.msra.mxu0 %v7930
    %8024 = vmatmul.bf16.gmra.mxu0 %v7752
    %v8025 = vpop.f32.mrf.mxu0
    %v8026 = vadd.f32 %v8013, %v8025
    %v8027 = vpop.f32.mrf.mxu0
    %8028 = vdwg.mxu0
    %v8061 = vunpack.c.l.b16 %v7753
    %v8062 = vunpack.c.h.b16 %v7753
    %v8063 = vunpack.c.l.b16 %v7754
    %v8064 = vunpack.c.h.b16 %v7754
    %v8065 = vunpack.c.l.b16 %v7755
    %v8066 = vunpack.c.h.b16 %v7755
    %v8067 = vunpack.c.l.b16 %v7756
    %v8068 = vunpack.c.h.b16 %v7756
    %v8069 = vunpack.c.l.b16 %v7757
    %v8070 = vunpack.c.h.b16 %v7757
    %v8071 = vunpack.c.l.b16 %v7758
    %v8072 = vunpack.c.h.b16 %v7758
    %v8073 = vunpack.c.l.b16 %v7759
    %v8074 = vunpack.c.h.b16 %v7759
    %v8075 = vunpack.c.l.b16 %v7760
    %v8076 = vunpack.c.h.b16 %v7760
    %v8077 = vunpack.c.l.b16 %v7761
    %v8078 = vunpack.c.h.b16 %v7761
    %v8079 = vunpack.c.l.b16 %v7762
    %v8080 = vunpack.c.h.b16 %v7762
    %v8081 = vunpack.c.l.b16 %v7763
    %v8082 = vunpack.c.h.b16 %v7763
    %v8083 = vunpack.c.l.b16 %v7764
    %v8084 = vunpack.c.h.b16 %v7764
    %v8085 = vunpack.c.l.b16 %v7765
    %v8086 = vunpack.c.h.b16 %v7765
    %v8087 = vunpack.c.l.b16 %v7766
    %v8088 = vunpack.c.h.b16 %v7766
    %v8089 = vunpack.c.l.b16 %v7767
    %v8090 = vunpack.c.h.b16 %v7767
    %v8091 = vunpack.c.l.b16 %v7768
    %v8092 = vunpack.c.h.b16 %v7768
    %v8093 = vunpack.c.l.b16 %v7769
    %v8094 = vunpack.c.h.b16 %v7769
    %v8095 = vunpack.c.l.b16 %v7770
    %v8096 = vunpack.c.h.b16 %v7770
    %v8097 = vunpack.c.l.b16 %v7771
    %v8098 = vunpack.c.h.b16 %v7771
    %v8099 = vunpack.c.l.b16 %v7772
    %v8100 = vunpack.c.h.b16 %v7772
    %v8101 = vunpack.c.l.b16 %v7773
    %v8102 = vunpack.c.h.b16 %v7773
    %v8103 = vunpack.c.l.b16 %v7774
    %v8104 = vunpack.c.h.b16 %v7774
    %v8105 = vunpack.c.l.b16 %v7775
    %v8106 = vunpack.c.h.b16 %v7775
    %v8107 = vunpack.c.l.b16 %v7776
    %v8108 = vunpack.c.h.b16 %v7776
    %v8109 = vunpack.c.l.b16 %v7777
    %v8110 = vunpack.c.h.b16 %v7777
    %v8111 = vunpack.c.l.b16 %v7778
    %v8112 = vunpack.c.h.b16 %v7778
    %v8113 = vunpack.c.l.b16 %v7779
    %v8114 = vunpack.c.h.b16 %v7779
    %v8115 = vunpack.c.l.b16 %v7780
    %v8116 = vunpack.c.h.b16 %v7780
    %v8117 = vunpack.c.l.b16 %v7781
    %v8118 = vunpack.c.h.b16 %v7781
    %v8119 = vunpack.c.l.b16 %v7782
    %v8120 = vunpack.c.h.b16 %v7782
    %v8121 = vunpack.c.l.b16 %v7783
    %v8122 = vunpack.c.h.b16 %v7783
    %v8123 = vunpack.c.l.b16 %v7784
    %v8124 = vunpack.c.h.b16 %v7784
    %v8125 = vpack.c.b16 %v8063, %v8061
    %v8126 = vpack.c.b16 %v8064, %v8062
    %v8127 = vpack.c.b16 %v8067, %v8065
    %v8128 = vpack.c.b16 %v8068, %v8066
    %v8129 = vpack.c.b16 %v8071, %v8069
    %v8130 = vpack.c.b16 %v8072, %v8070
    %v8131 = vpack.c.b16 %v8075, %v8073
    %v8132 = vpack.c.b16 %v8076, %v8074
    %v8133 = vpack.c.b16 %v8079, %v8077
    %v8134 = vpack.c.b16 %v8080, %v8078
    %v8135 = vpack.c.b16 %v8083, %v8081
    %v8136 = vpack.c.b16 %v8084, %v8082
    %v8137 = vpack.c.b16 %v8087, %v8085
    %v8138 = vpack.c.b16 %v8088, %v8086
    %v8139 = vpack.c.b16 %v8091, %v8089
    %v8140 = vpack.c.b16 %v8092, %v8090
    %v8141 = vpack.c.b16 %v8095, %v8093
    %v8142 = vpack.c.b16 %v8096, %v8094
    %v8143 = vpack.c.b16 %v8099, %v8097
    %v8144 = vpack.c.b16 %v8100, %v8098
    %v8145 = vpack.c.b16 %v8103, %v8101
    %v8146 = vpack.c.b16 %v8104, %v8102
    %v8147 = vpack.c.b16 %v8107, %v8105
    %v8148 = vpack.c.b16 %v8108, %v8106
    %v8149 = vpack.c.b16 %v8111, %v8109
    %v8150 = vpack.c.b16 %v8112, %v8110
    %v8151 = vpack.c.b16 %v8115, %v8113
    %v8152 = vpack.c.b16 %v8116, %v8114
    %v8153 = vpack.c.b16 %v8119, %v8117
    %v8154 = vpack.c.b16 %v8120, %v8118
    %v8155 = vpack.c.b16 %v8123, %v8121
    %v8156 = vpack.c.b16 %v8124, %v8122
    %8189 = vmatpush.bf16.msra.mxu0 %v8139
    %8190 = vmatpush.bf16.msra.mxu0 %v8137
    %8191 = vmatpush.bf16.msra.mxu0 %v8135
    %8192 = vmatpush.bf16.msra.mxu0 %v8133
    %8193 = vmatpush.bf16.msra.mxu0 %v8131
    %8194 = vmatpush.bf16.msra.mxu0 %v8129
    %8195 = vmatpush.bf16.msra.mxu0 %v8127
    %8196 = vmatpush.bf16.msra.mxu0 %v8125
    %8197 = vmatmul.bf16.gmra.mxu0 %v7747
    %v8198 = vpop.f32.mrf.mxu0
    %v8199 = vadd.f32 %v8000, %v8198
    %v8200 = vpop.f32.mrf.mxu0
    %8201 = vdwg.mxu0
    %8202 = vmatpush.bf16.msra.mxu0 %v8155
    %8203 = vmatpush.bf16.msra.mxu0 %v8153
    %8204 = vmatpush.bf16.msra.mxu0 %v8151
    %8205 = vmatpush.bf16.msra.mxu0 %v8149
    %8206 = vmatpush.bf16.msra.mxu0 %v8147
    %8207 = vmatpush.bf16.msra.mxu0 %v8145
    %8208 = vmatpush.bf16.msra.mxu0 %v8143
    %8209 = vmatpush.bf16.msra.mxu0 %v8141
    %8210 = vmatmul.bf16.gmra.mxu0 %v7748
    %v8211 = vpop.f32.mrf.mxu0
    %v8212 = vadd.f32 %v8199, %v8211
    %v8213 = vpop.f32.mrf.mxu0
    %8214 = vdwg.mxu0
    %8215 = vmatpush.bf16.msra.mxu0 %v8140
    %8216 = vmatpush.bf16.msra.mxu0 %v8138
    %8217 = vmatpush.bf16.msra.mxu0 %v8136
    %8218 = vmatpush.bf16.msra.mxu0 %v8134
    %8219 = vmatpush.bf16.msra.mxu0 %v8132
    %8220 = vmatpush.bf16.msra.mxu0 %v8130
    %8221 = vmatpush.bf16.msra.mxu0 %v8128
    %8222 = vmatpush.bf16.msra.mxu0 %v8126
    %8223 = vmatmul.bf16.gmra.mxu0 %v7747
    %v8224 = vpop.f32.mrf.mxu0
    %v8225 = vadd.f32 %v8026, %v8224
    %v8226 = vpop.f32.mrf.mxu0
    %8227 = vdwg.mxu0
    %8228 = vmatpush.bf16.msra.mxu0 %v8156
    %8229 = vmatpush.bf16.msra.mxu0 %v8154
    %8230 = vmatpush.bf16.msra.mxu0 %v8152
    %8231 = vmatpush.bf16.msra.mxu0 %v8150
    %8232 = vmatpush.bf16.msra.mxu0 %v8148
    %8233 = vmatpush.bf16.msra.mxu0 %v8146
    %8234 = vmatpush.bf16.msra.mxu0 %v8144
    %8235 = vmatpush.bf16.msra.mxu0 %v8142
    %8236 = vmatmul.bf16.gmra.mxu0 %v7748
    %v8237 = vpop.f32.mrf.mxu0
    %v8238 = vadd.f32 %v8225, %v8237
    %v8239 = vpop.f32.mrf.mxu0
    %8240 = vdwg.mxu0
    %v8241 = vld [vmem:[%s12] sm:$0x3]
    %v8243 = vperm.slane %v8241, 0
    %v8244 = vperm.slane %v8241, 1
    %v8247 = vadd.f32 %v8212, %v8243
    %v8248 = vadd.f32 %v8238, %v8244
    %v8249 = vmax.f32 %v8247, 0.0
    %v8250 = vmax.f32 %v8248, 0.0
    %v8251 = vpack.c.bf16 %v8249, %v8249
    %v8252 = vpack.c.bf16 %v8250, %v8250
    %v8253 = vld [vmem:[%s13] sm:$0xf]
    %v8254 = vld [vmem:[%s13 + $0x4] sm:$0xf]
    %v8255 = vld [vmem:[%s13 + $0x8] sm:$0xf]
    %v8256 = vld [vmem:[%s13 + $0xc] sm:$0xf]
    %v8257 = vld [vmem:[%s13 + $0x10] sm:$0xf]
    %v8258 = vld [vmem:[%s13 + $0x14] sm:$0xf]
    %v8259 = vld [vmem:[%s13 + $0x18] sm:$0xf]
    %v8260 = vld [vmem:[%s13 + $0x1c] sm:$0xf]
    %v8261 = vld [vmem:[%s13 + $0x20] sm:$0xf]
    %v8262 = vld [vmem:[%s13 + $0x24] sm:$0xf]
    %v8263 = vld [vmem:[%s13 + $0x28] sm:$0xf]
    %v8264 = vld [vmem:[%s13 + $0x2c] sm:$0xf]
    %v8265 = vld [vmem:[%s13 + $0x30] sm:$0xf]
    %v8266 = vld [vmem:[%s13 + $0x34] sm:$0xf]
    %v8267 = vld [vmem:[%s13 + $0x38] sm:$0xf]
    %v8268 = vld [vmem:[%s13 + $0x3c] sm:$0xf]
    %v8269 = vld [vmem:[%s13 + $0x40] sm:$0xf]
    %v8270 = vld [vmem:[%s13 + $0x44] sm:$0xf]
    %v8271 = vld [vmem:[%s13 + $0x48] sm:$0xf]
    %v8272 = vld [vmem:[%s13 + $0x4c] sm:$0xf]
    %v8273 = vld [vmem:[%s13 + $0x50] sm:$0xf]
    %v8274 = vld [vmem:[%s13 + $0x54] sm:$0xf]
    %v8275 = vld [vmem:[%s13 + $0x58] sm:$0xf]
    %v8276 = vld [vmem:[%s13 + $0x5c] sm:$0xf]
    %v8277 = vld [vmem:[%s13 + $0x60] sm:$0xf]
    %v8278 = vld [vmem:[%s13 + $0x64] sm:$0xf]
    %v8279 = vld [vmem:[%s13 + $0x68] sm:$0xf]
    %v8280 = vld [vmem:[%s13 + $0x6c] sm:$0xf]
    %v8281 = vld [vmem:[%s13 + $0x70] sm:$0xf]
    %v8282 = vld [vmem:[%s13 + $0x74] sm:$0xf]
    %v8283 = vld [vmem:[%s13 + $0x78] sm:$0xf]
    %v8284 = vld [vmem:[%s13 + $0x7c] sm:$0xf]
    %v8285 = vld [vmem:[%s14] sm:$0x1]
    %v8287 = vperm.slane %v8285, 0
    %v8321 = vunpack.c.l.b16 %v8253
    %v8322 = vunpack.c.l.b16 %v8254
    %v8323 = vunpack.c.l.b16 %v8255
    %v8324 = vunpack.c.l.b16 %v8256
    %v8325 = vunpack.c.l.b16 %v8257
    %v8326 = vunpack.c.l.b16 %v8258
    %v8327 = vunpack.c.l.b16 %v8259
    %v8328 = vunpack.c.l.b16 %v8260
    %v8329 = vunpack.c.l.b16 %v8261
    %v8330 = vunpack.c.l.b16 %v8262
    %v8331 = vunpack.c.l.b16 %v8263
    %v8332 = vunpack.c.l.b16 %v8264
    %v8333 = vunpack.c.l.b16 %v8265
    %v8334 = vunpack.c.l.b16 %v8266
    %v8335 = vunpack.c.l.b16 %v8267
    %v8336 = vunpack.c.l.b16 %v8268
    %v8337 = vunpack.c.l.b16 %v8269
    %v8338 = vunpack.c.l.b16 %v8270
    %v8339 = vunpack.c.l.b16 %v8271
    %v8340 = vunpack.c.l.b16 %v8272
    %v8341 = vunpack.c.l.b16 %v8273
    %v8342 = vunpack.c.l.b16 %v8274
    %v8343 = vunpack.c.l.b16 %v8275
    %v8344 = vunpack.c.l.b16 %v8276
    %v8345 = vunpack.c.l.b16 %v8277
    %v8346 = vunpack.c.l.b16 %v8278
    %v8347 = vunpack.c.l.b16 %v8279
    %v8348 = vunpack.c.l.b16 %v8280
    %v8349 = vunpack.c.l.b16 %v8281
    %v8350 = vunpack.c.l.b16 %v8282
    %v8351 = vunpack.c.l.b16 %v8283
    %v8352 = vunpack.c.l.b16 %v8284
    %v8353 = vpack.c.b16 %v8322, %v8321
    %v8354 = vpack.c.b16 %v8324, %v8323
    %v8355 = vpack.c.b16 %v8326, %v8325
    %v8356 = vpack.c.b16 %v8328, %v8327
    %v8357 = vpack.c.b16 %v8330, %v8329
    %v8358 = vpack.c.b16 %v8332, %v8331
    %v8359 = vpack.c.b16 %v8334, %v8333
    %v8360 = vpack.c.b16 %v8336, %v8335
    %v8361 = vpack.c.b16 %v8338, %v8337
    %v8362 = vpack.c.b16 %v8340, %v8339
    %v8363 = vpack.c.b16 %v8342, %v8341
    %v8364 = vpack.c.b16 %v8344, %v8343
    %v8365 = vpack.c.b16 %v8346, %v8345
    %v8366 = vpack.c.b16 %v8348, %v8347
    %v8367 = vpack.c.b16 %v8350, %v8349
    %v8368 = vpack.c.b16 %v8352, %v8351
    %8385 = vmatpush.bf16.msra.mxu0 %v8360
    %8386 = vmatpush.bf16.msra.mxu0 %v8359
    %8387 = vmatpush.bf16.msra.mxu0 %v8358
    %8388 = vmatpush.bf16.msra.mxu0 %v8357
    %8389 = vmatpush.bf16.msra.mxu0 %v8356
    %8390 = vmatpush.bf16.msra.mxu0 %v8355
    %8391 = vmatpush.bf16.msra.mxu0 %v8354
    %8392 = vmatpush.bf16.msra.mxu0 %v8353
    %8393 = vmatmul.bf16.gmra.mxu0 %v8251
    %v8394 = vpop.f32.mrf.mxu0
    %v8395 = vadd.f32 %v8287, %v8394
    %v8396 = vpop.f32.mrf.mxu0
    %8397 = vdwg.mxu0
    %8398 = vmatpush.bf16.msra.mxu0 %v8368
    %8399 = vmatpush.bf16.msra.mxu0 %v8367
    %8400 = vmatpush.bf16.msra.mxu0 %v8366
    %8401 = vmatpush.bf16.msra.mxu0 %v8365
    %8402 = vmatpush.bf16.msra.mxu0 %v8364
    %8403 = vmatpush.bf16.msra.mxu0 %v8363
    %8404 = vmatpush.bf16.msra.mxu0 %v8362
    %8405 = vmatpush.bf16.msra.mxu0 %v8361
    %8406 = vmatmul.bf16.gmra.mxu0 %v8252
    %v8407 = vpop.f32.mrf.mxu0
    %v8408 = vadd.f32 %v8395, %v8407
    %v8409 = vpop.f32.mrf.mxu0
    %8410 = vdwg.mxu0
    %v8411 = vmax.f32 %v8408, 0.0
    %v8412 = vpack.c.bf16 %v8411, %v8411
    %v8413 = vld [vmem:[%s15] sm:$0xf]
    %v8414 = vld [vmem:[%s15 + $0x4] sm:$0xf]
    %v8415 = vld [vmem:[%s15 + $0x8] sm:$0xf]
    %v8416 = vld [vmem:[%s15 + $0xc] sm:$0xf]
    %v8417 = vld [vmem:[%s15 + $0x10] sm:$0xf]
    %v8418 = vld [vmem:[%s15 + $0x14] sm:$0xf]
    %v8419 = vld [vmem:[%s15 + $0x18] sm:$0xf]
    %v8420 = vld [vmem:[%s15 + $0x1c] sm:$0xf]
    %v8421 = vld [vmem:[%s15 + $0x20] sm:$0xf]
    %v8422 = vld [vmem:[%s15 + $0x24] sm:$0xf]
    %v8423 = vld [vmem:[%s15 + $0x28] sm:$0xf]
    %v8424 = vld [vmem:[%s15 + $0x2c] sm:$0xf]
    %v8425 = vld [vmem:[%s15 + $0x30] sm:$0xf]
    %v8426 = vld [vmem:[%s15 + $0x34] sm:$0xf]
    %v8427 = vld [vmem:[%s15 + $0x38] sm:$0xf]
    %v8428 = vld [vmem:[%s15 + $0x3c] sm:$0xf]
    %v8429 = vld [vmem:[#allocation21] sm:$0x1]
    %v8431 = vperm.slane %v8429, 0
    %v8449 = vunpack.c.l.b16 %v8413
    %v8450 = vunpack.c.l.b16 %v8414
    %v8451 = vunpack.c.l.b16 %v8415
    %v8452 = vunpack.c.l.b16 %v8416
    %v8453 = vunpack.c.l.b16 %v8417
    %v8454 = vunpack.c.l.b16 %v8418
    %v8455 = vunpack.c.l.b16 %v8419
    %v8456 = vunpack.c.l.b16 %v8420
    %v8457 = vunpack.c.l.b16 %v8421
    %v8458 = vunpack.c.l.b16 %v8422
    %v8459 = vunpack.c.l.b16 %v8423
    %v8460 = vunpack.c.l.b16 %v8424
    %v8461 = vunpack.c.l.b16 %v8425
    %v8462 = vunpack.c.l.b16 %v8426
    %v8463 = vunpack.c.l.b16 %v8427
    %v8464 = vunpack.c.l.b16 %v8428
    %v8465 = vpack.c.b16 %v8450, %v8449
    %v8466 = vpack.c.b16 %v8452, %v8451
    %v8467 = vpack.c.b16 %v8454, %v8453
    %v8468 = vpack.c.b16 %v8456, %v8455
    %v8469 = vpack.c.b16 %v8458, %v8457
    %v8470 = vpack.c.b16 %v8460, %v8459
    %v8471 = vpack.c.b16 %v8462, %v8461
    %v8472 = vpack.c.b16 %v8464, %v8463
    %8481 = vmatpush.bf16.msra.mxu0 %v8472
    %8482 = vmatpush.bf16.msra.mxu0 %v8471
    %8483 = vmatpush.bf16.msra.mxu0 %v8470
    %8484 = vmatpush.bf16.msra.mxu0 %v8469
    %8485 = vmatpush.bf16.msra.mxu0 %v8468
    %8486 = vmatpush.bf16.msra.mxu0 %v8467
    %8487 = vmatpush.bf16.msra.mxu0 %v8466
    %8488 = vmatpush.bf16.msra.mxu0 %v8465
    %8489 = vmatmul.bf16.gmra.mxu0 %v8412
    %v8490 = vpop.f32.mrf.mxu0
    %v8491 = vadd.f32 %v8431, %v8490
    %v8492 = vpop.f32.mrf.mxu0
    %8493 = vdwg.mxu0
    %8494 = vst [vmem:[%s17] sm:$0xff] %v8491
    // Predicated region
    $region113: #{custom_bert_forward.3} parent=1 // pred_check
      _
    $region114: #{custom_bert_forward.3} parent=1 // pred_check_branch
      %8496 = sbr.rel (0) target = $region116
    $region115: #{custom_bert_forward.3} parent=1 // pred_region
      _
    $region116: #{custom_bert_forward.3} parent=1 // pred_fallthru
      _
    // Predicated region
    $region117: #{custom_bert_forward.3} parent=1 // pred_check
      _
    $region118: #{custom_bert_forward.3} parent=1 // pred_check_branch
      %8498 = sbr.rel (0) target = $region120
    $region119: #{custom_bert_forward.3} parent=1 // pred_region
      _
    $region120: #{custom_bert_forward.3} parent=1 // pred_fallthru
      _
    %8499 = vsyncpa [#allocation9], 1
    %8500 = vsyncpa [#allocation11], 1
    %8501 = vsyncpa [#allocation14], 1
    %8502 = vsyncpa [#allocation17], 1
    %8503 = vsyncpa [#allocation20], 1

</llo_original>
